<compile_context>
chip_gen: v5e
topology: v5e:2x2
jax: 0.10.0
libtpu: 0.0.40
codegen_flags: <defaults>
</compile_context>

<pallas_src>
import functools

import numpy as np
import jax
import jax.numpy as jnp
from jax.experimental import pallas as pl
from jax.experimental.pallas import tpu as pltpu


def sepconv_kernel(x_ref, dw1_ref, w2_ref, bn1g_ref, bn1b_ref,
                   dw3_ref, w4_ref, bn2g_ref, bn2b_ref,
                   fc1_ref, fc2_ref, out_ref, xrelu_scr, mid_scr,
                   *, stride, pad, K, H1, W1, H2, W2, eps):
    B = out_ref.shape[1]
    Ci = x_ref.shape[-1]          # packed input channels  (splits_per_group * C_in)
    Co = out_ref.shape[-1]        # packed output channels (splits_per_group * C_out)

    # ---- ReLU once, stage (pre-padded) input in VMEM scratch; taps below are ref loads ----
    xrelu_scr[...] = jnp.maximum(x_ref[0], 0.0)          # padding stays zero (relu(0)=0)

    # ---- depthwise conv_1 (KxK, stride, per-channel, no bias) ----
    dw1 = dw1_ref[0]                                     # (K, K, Ci)
    acc1 = jnp.zeros((B, H1, W1, Ci), jnp.float32)
    for kh in range(K):
        hsl = slice(kh, kh + H1) if stride == 1 else pl.ds(kh, H1, stride)
        for kw in range(K):
            wsl = slice(kw, kw + W1) if stride == 1 else pl.ds(kw, W1, stride)
            acc1 = acc1 + xrelu_scr[:, hsl, wsl, :] * dw1[kh, kw, :]

    # ---- conv_2: per-split 1x1 == block-diagonal matmul (bf16 in, f32 acc) ----
    n1 = B * H1 * W1
    flat1 = jnp.dot(acc1.reshape(n1, Ci).astype(jnp.bfloat16), w2_ref[0],
                    preferred_element_type=jnp.float32)

    # ---- bn_1: training-mode batch stats, single-pass sum / sum-of-squares ----
    inv_n1 = 1.0 / n1
    m1 = jnp.sum(flat1, axis=0, keepdims=True) * inv_n1
    v1 = jnp.sum(flat1 * flat1, axis=0, keepdims=True) * inv_n1 - m1 * m1
    flat1 = (flat1 - m1) * (bn1g_ref[0, 0, :] * jax.lax.rsqrt(v1 + eps)) + bn1b_ref[0, 0, :]
    flat1 = jnp.maximum(flat1, 0.0)                      # relu2

    # ---- stage padded intermediate for conv_3: zero only the thin halo, write interior ----
    Hp1, Wp1 = H1 + 2 * pad, W1 + 2 * pad
    if pad > 0:
        zrow = jnp.zeros((B, pad, Wp1, Ci), jnp.float32)
        mid_scr[:, 0:pad, :, :] = zrow
        mid_scr[:, pad + H1:Hp1, :, :] = zrow
        zcol = jnp.zeros((B, Hp1, pad, Ci), jnp.float32)
        mid_scr[:, :, 0:pad, :] = zcol
        mid_scr[:, :, pad + W1:Wp1, :] = zcol
    mid_scr[:, pad:pad + H1, pad:pad + W1, :] = flat1.reshape(B, H1, W1, Ci)

    # ---- depthwise conv_3 (KxK, stride 1, per-channel, no bias) ----
    dw3 = dw3_ref[0]                                     # (K, K, Ci)
    acc3 = jnp.zeros((B, H2, W2, Ci), jnp.float32)
    for kh in range(K):
        for kw in range(K):
            acc3 = acc3 + mid_scr[:, kh:kh + H2, kw:kw + W2, :] * dw3[kh, kw, :]

    # ---- conv_4: block-diagonal 1x1, Ci -> Co ----
    n2 = B * H2 * W2
    flat2 = jnp.dot(acc3.reshape(n2, Ci).astype(jnp.bfloat16), w4_ref[0],
                    preferred_element_type=jnp.float32)

    # ---- bn_2 ----
    inv_n2 = 1.0 / n2
    m2 = jnp.sum(flat2, axis=0, keepdims=True) * inv_n2
    v2 = jnp.sum(flat2 * flat2, axis=0, keepdims=True) * inv_n2 - m2 * m2
    flat2 = (flat2 - m2) * (bn2g_ref[0, 0, :] * jax.lax.rsqrt(v2 + eps)) + bn2b_ref[0, 0, :]

    # ---- SE layer: global avg pool -> FC -> ReLU -> FC -> sigmoid -> channel scale ----
    pooled = jnp.mean(flat2.reshape(B, H2 * W2, Co), axis=1)          # (B, Co) f32
    z = jnp.dot(pooled.astype(jnp.bfloat16), fc1_ref[0],
                preferred_element_type=jnp.float32)
    z = jnp.maximum(z, 0.0)
    z = jnp.dot(z.astype(jnp.bfloat16), fc2_ref[0],
                preferred_element_type=jnp.float32)
    z = jax.nn.sigmoid(z)

    y = flat2.reshape(B, H2, W2, Co) * z[:, None, None, :]
    out_ref[0] = y.astype(out_ref.dtype)


def sepconv_forward(x_nchw, params, *, splits, kernel_size, stride, padding, groups=None):
    B, C, H, W = x_nchw.shape
    assert C % splits == 0
    C_in = C // splits
    C_out = params["pw4"].shape[1]
    K, p = kernel_size, padding

    if groups is None:                       # groups of splits packed per grid step
        groups = 2 if splits % 2 == 0 else 1
    assert splits % groups == 0
    spg = splits // groups
    Cg_in, Cg_out = spg * C_in, spg * C_out

    Hp, Wp = H + 2 * p, W + 2 * p
    H1 = (H + 2 * p - K) // stride + 1
    W1 = (W + 2 * p - K) // stride + 1
    H2 = H1 + 2 * p - K + 1
    W2 = W1 + 2 * p - K + 1
    Hp1, Wp1 = H1 + 2 * p, W1 + 2 * p

    # NCHW -> (groups, B, Hp, Wp, Cg_in): single transpose + spatial pre-pad.
    x = x_nchw.astype(jnp.float32).reshape(B, groups, Cg_in, H, W)
    x = jnp.transpose(x, (1, 0, 3, 4, 2))                        # (G, B, H, W, Cg_in)
    x = jnp.pad(x, ((0, 0), (0, 0), (p, p), (p, p), (0, 0)))     # relu(0)=0 -> pad commutes
    # TODO(synk): x could be carried as bf16 in HBM to halve input DMA bytes (v5e);
    # kept f32 so all VPU elementwise math stays f32.

    # ---- pack per-split params into per-group, lane-dense layouts (trace-time, XLA) ----
    def dw_pack(w):                          # (S,K,K,C) -> (G,K,K,spg*C), f32
        _, _, _, Cc = w.shape
        return jnp.transpose(w.reshape(groups, spg, K, K, Cc),
                             (0, 2, 3, 1, 4)).reshape(groups, K, K, spg * Cc).astype(jnp.float32)

    def bd_pack(w_oi):                       # (S,O,I) (out,in) -> (G,spg*I,spg*O) block-diag of w[s].T
        S, O, I = w_oi.shape
        w_io = jnp.transpose(w_oi, (0, 2, 1)).reshape(groups, spg, I, O)
        eye = jnp.eye(spg, dtype=w_oi.dtype)
        bd = jnp.einsum('st,gsio->gsito', eye, w_io)
        return bd.reshape(groups, spg * I, spg * O).astype(jnp.bfloat16)

    def vec_pack(v):                         # (S,C) -> (G,1,spg*C), f32
        return v.reshape(groups, 1, -1).astype(jnp.float32)

    dw1_p, dw3_p = dw_pack(params["dw1"]), dw_pack(params["dw3"])
    w2_p, w4_p = bd_pack(params["pw2"]), bd_pack(params["pw4"])
    fc1_p, fc2_p = bd_pack(params["fc1"]), bd_pack(params["fc2"])
    bn1g_p, bn1b_p = vec_pack(params["bn1_g"]), vec_pack(params["bn1_b"])
    bn2g_p, bn2b_p = vec_pack(params["bn2_g"]), vec_pack(params["bn2_b"])

    kernel = functools.partial(
        sepconv_kernel, stride=stride, pad=p, K=K,
        H1=H1, W1=W1, H2=H2, W2=W2, eps=1e-5)

    n1, n2 = B * H1 * W1, B * H2 * W2
    flops = groups * (2 * K * K * n1 * Cg_in + 2 * n1 * Cg_in * Cg_in +
                      2 * K * K * n2 * Cg_in + 2 * n2 * Cg_in * Cg_out +
                      4 * B * Cg_out * Cg_out)
    bytes_accessed = 4 * (int(x.size) + groups * B * H2 * W2 * Cg_out) + sum(
        int(a.size) * a.dtype.itemsize
        for a in (dw1_p, dw3_p, w2_p, w4_p, fc1_p, fc2_p, bn1g_p, bn1b_p, bn2g_p, bn2b_p))
    cost = pl.CostEstimate(flops=flops,
                           transcendentals=groups * (B * Cg_out + Cg_in + Cg_out),
                           bytes_accessed=bytes_accessed)

    out = pl.pallas_call(
        kernel,
        out_shape=jax.ShapeDtypeStruct((groups, B, H2, W2, Cg_out), jnp.float32),
        grid=(groups,),
        in_specs=[
            pl.BlockSpec((1, B, Hp, Wp, Cg_in), lambda g: (g, 0, 0, 0, 0)),   # x (padded)
            pl.BlockSpec((1, K, K, Cg_in), lambda g: (g, 0, 0, 0)),           # dw1
            pl.BlockSpec((1, Cg_in, Cg_in), lambda g: (g, 0, 0)),             # pw2 (in,out) block-diag
            pl.BlockSpec((1, 1, Cg_in), lambda g: (g, 0, 0)),                 # bn1 gamma
            pl.BlockSpec((1, 1, Cg_in), lambda g: (g, 0, 0)),                 # bn1 beta
            pl.BlockSpec((1, K, K, Cg_in), lambda g: (g, 0, 0, 0)),           # dw3
            pl.BlockSpec((1, Cg_in, Cg_out), lambda g: (g, 0, 0)),            # pw4 (in,out) block-diag
            pl.BlockSpec((1, 1, Cg_out), lambda g: (g, 0, 0)),                # bn2 gamma
            pl.BlockSpec((1, 1, Cg_out), lambda g: (g, 0, 0)),                # bn2 beta
            pl.BlockSpec((1, Cg_out, Cg_out), lambda g: (g, 0, 0)),           # se fc1
            pl.BlockSpec((1, Cg_out, Cg_out), lambda g: (g, 0, 0)),           # se fc2
        ],
        out_specs=pl.BlockSpec((1, B, H2, W2, Cg_out), lambda g: (g, 0, 0, 0, 0)),
        scratch_shapes=[
            pltpu.VMEM((B, Hp, Wp, Cg_in), jnp.float32),      # relu'd padded input
            pltpu.VMEM((B, Hp1, Wp1, Cg_in), jnp.float32),    # padded BN1/relu intermediate
        ],
        compiler_params=pltpu.CompilerParams(
            dimension_semantics=("parallel",),
            vmem_limit_bytes=48 * 1024 * 1024),
        cost_estimate=cost,
    )(x, dw1_p, w2_p, bn1g_p, bn1b_p, dw3_p, w4_p, bn2g_p, bn2b_p, fc1_p, fc2_p)

    # (G, B, H2, W2, Cg_out) -> NCHW; group-major channel order == torch.cat(split order)
    out = jnp.transpose(out, (1, 0, 4, 2, 3)).reshape(B, groups * Cg_out, H2, W2)
    return out


def sepconv_ref(x_nchw, params, *, splits, K, stride, p):
    """Pure-JAX per-split reference (PyTorch training-mode BN semantics)."""
    B, C, H, W = x_nchw.shape
    C_in = C // splits
    eps = 1e-5
    outs = []
    dn = ("NHWC", "HWIO", "NHWC")
    for s in range(splits):
        xs = x_nchw[:, s * C_in:(s + 1) * C_in].astype(jnp.float32)
        out = jnp.maximum(jnp.transpose(xs, (0, 2, 3, 1)), 0.0)
        w1 = params["dw1"][s][:, :, None, :]                              # (K,K,1,Cin)
        out = jax.lax.conv_general_dilated(out, w1, (stride, stride),
                                           [(p, p), (p, p)], dimension_numbers=dn,
                                           feature_group_count=C_in)
        out = jnp.einsum("bhwc,oc->bhwo", out, params["pw2"][s])
        m, v = jnp.mean(out, axis=(0, 1, 2)), jnp.var(out, axis=(0, 1, 2))
        out = (out - m) * (params["bn1_g"][s] / jnp.sqrt(v + eps)) + params["bn1_b"][s]
        out = jnp.maximum(out, 0.0)
        w3 = params["dw3"][s][:, :, None, :]
        out = jax.lax.conv_general_dilated(out, w3, (1, 1), [(p, p), (p, p)],
                                           dimension_numbers=dn, feature_group_count=C_in)
        out = jnp.einsum("bhwc,oc->bhwo", out, params["pw4"][s])
        m, v = jnp.mean(out, axis=(0, 1, 2)), jnp.var(out, axis=(0, 1, 2))
        out = (out - m) * (params["bn2_g"][s] / jnp.sqrt(v + eps)) + params["bn2_b"][s]
        pooled = jnp.mean(out, axis=(1, 2))
        z = jnp.maximum(pooled @ params["fc1"][s].T, 0.0)
        z = jax.nn.sigmoid(z @ params["fc2"][s].T)
        out = out * z[:, None, None, :]
        outs.append(jnp.transpose(out, (0, 3, 1, 2)))
    return jnp.concatenate(outs, axis=1)


def make_params(key, splits, C_in, C_out, K):
    ks = jax.random.split(key, 10)
    sc = 0.3
    return dict(
        dw1=sc * jax.random.normal(ks[0], (splits, K, K, C_in), jnp.float32),
        pw2=sc * jax.random.normal(ks[1], (splits, C_in, C_in), jnp.float32),      # (out,in)
        bn1_g=1.0 + 0.1 * jax.random.normal(ks[2], (splits, C_in), jnp.float32),
        bn1_b=0.1 * jax.random.normal(ks[3], (splits, C_in), jnp.float32),
        dw3=sc * jax.random.normal(ks[4], (splits, K, K, C_in), jnp.float32),
        pw4=sc * jax.random.normal(ks[5], (splits, C_out, C_in), jnp.float32),     # (out,in)
        bn2_g=1.0 + 0.1 * jax.random.normal(ks[6], (splits, C_out), jnp.float32),
        bn2_b=0.1 * jax.random.normal(ks[7], (splits, C_out), jnp.float32),
        fc1=sc * jax.random.normal(ks[8], (splits, C_out, C_out), jnp.float32),    # (out,in)
        fc2=sc * jax.random.normal(ks[9], (splits, C_out, C_out), jnp.float32),    # (out,in)
    )


if __name__ == "__main__":
    B, S, C_in, C_out, H, W = 2, 4, 4, 4, 16, 16
    K, stride, pad = 3, 1, 1

    key = jax.random.PRNGKey(0)
    kx, kp = jax.random.split(key)
    x = jax.random.normal(kx, (B, S * C_in, H, W), jnp.float32)   # NCHW like PyTorch
    params = make_params(kp, S, C_in, C_out, K)

    out = sepconv_forward(x, params, splits=S, kernel_size=K, stride=stride, padding=pad)
    out = jax.block_until_ready(out)

    ref = sepconv_ref(x, params, splits=S, K=K, stride=stride, p=pad)
    ref = jax.block_until_ready(ref)

    assert out.shape == ref.shape, (out.shape, ref.shape)
    # bf16 MXU operands (f32 accumulation / f32 BN stats) -> slightly looser tolerance.
    if not np.allclose(np.asarray(out), np.asarray(ref), atol=5e-2, rtol=5e-2):
        raise SystemExit("mismatch: max|diff|=%g"
                         % float(np.max(np.abs(np.asarray(out) - np.asarray(ref)))))
    print("KERNEL_OK")
</pallas_src>

<mosaic_0001>
module attributes {stable_mosaic.version = 11 : i64} {
  func.func @sepconv_kernel(%arg0: i32, %arg1: memref<1x2x18x18x8xf32, #tpu.memory_space<vmem>>, %arg2: memref<1x3x3x8xf32, #tpu.memory_space<vmem>>, %arg3: memref<1x8x8xbf16, #tpu.memory_space<vmem>>, %arg4: memref<1x1x8xf32, #tpu.memory_space<vmem>>, %arg5: memref<1x1x8xf32, #tpu.memory_space<vmem>>, %arg6: memref<1x3x3x8xf32, #tpu.memory_space<vmem>>, %arg7: memref<1x8x8xbf16, #tpu.memory_space<vmem>>, %arg8: memref<1x1x8xf32, #tpu.memory_space<vmem>>, %arg9: memref<1x1x8xf32, #tpu.memory_space<vmem>>, %arg10: memref<1x8x8xbf16, #tpu.memory_space<vmem>>, %arg11: memref<1x8x8xbf16, #tpu.memory_space<vmem>>, %arg12: memref<1x2x16x16x8xf32, #tpu.memory_space<vmem>>, %arg13: memref<2x18x18x8xf32, #tpu.memory_space<vmem>>, %arg14: memref<2x18x18x8xf32, #tpu.memory_space<vmem>>) attributes {dimension_semantics = [#tpu.dimension_semantics<parallel>], iteration_bounds = array<i64: 2>, scalar_prefetch = 0 : i64, scratch_operands = 2 : i64, tpu.core_type = #tpu.core_type<tc>, window_params = [{transform_indices = @transform_0, window_bounds = array<i64: 1, 2, 18, 18, 8>}, {transform_indices = @transform_1, window_bounds = array<i64: 1, 3, 3, 8>}, {transform_indices = @transform_2, window_bounds = array<i64: 1, 8, 8>}, {transform_indices = @transform_3, window_bounds = array<i64: 1, 1, 8>}, {transform_indices = @transform_4, window_bounds = array<i64: 1, 1, 8>}, {transform_indices = @transform_5, window_bounds = array<i64: 1, 3, 3, 8>}, {transform_indices = @transform_6, window_bounds = array<i64: 1, 8, 8>}, {transform_indices = @transform_7, window_bounds = array<i64: 1, 1, 8>}, {transform_indices = @transform_8, window_bounds = array<i64: 1, 1, 8>}, {transform_indices = @transform_9, window_bounds = array<i64: 1, 8, 8>}, {transform_indices = @transform_10, window_bounds = array<i64: 1, 8, 8>}, {transform_indices = @transform_11, window_bounds = array<i64: 1, 2, 16, 16, 8>}]} {
    %c0 = arith.constant 0 : index
    %c0_0 = arith.constant 0 : index
    %c0_1 = arith.constant 0 : index
    %c0_2 = arith.constant 0 : index
    %c0_3 = arith.constant 0 : index
    %0 = vector.load %arg1[%c0, %c0_0, %c0_1, %c0_2, %c0_3] : memref<1x2x18x18x8xf32, #tpu.memory_space<vmem>>, vector<1x2x18x18x8xf32>
    %1 = vector.shape_cast %0 : vector<1x2x18x18x8xf32> to vector<2x18x18x8xf32>
    %cst = arith.constant 0.000000e+00 : f32
    %2 = vector.broadcast %cst : f32 to vector<2x18x18x8xf32>
    %3 = arith.maximumf %1, %2 : vector<2x18x18x8xf32>
    %c0_4 = arith.constant 0 : index
    %c0_5 = arith.constant 0 : index
    %c0_6 = arith.constant 0 : index
    %c0_7 = arith.constant 0 : index
    %4 = vector.load %arg13[%c0_4, %c0_5, %c0_6, %c0_7] : memref<2x18x18x8xf32, #tpu.memory_space<vmem>>, vector<2x18x18x8xf32>
    tpu.vector_store %arg13[%c0_4, %c0_5, %c0_6, %c0_7], %3 {strides = array<i32>} : memref<2x18x18x8xf32, #tpu.memory_space<vmem>>, vector<2x18x18x8xf32>,
    %c0_8 = arith.constant 0 : index
    %c0_9 = arith.constant 0 : index
    %c0_10 = arith.constant 0 : index
    %c0_11 = arith.constant 0 : index
    %5 = vector.load %arg2[%c0_8, %c0_9, %c0_10, %c0_11] : memref<1x3x3x8xf32, #tpu.memory_space<vmem>>, vector<1x3x3x8xf32>
    %6 = vector.shape_cast %5 : vector<1x3x3x8xf32> to vector<3x3x8xf32>
    %cst_12 = arith.constant 0.000000e+00 : f32
    %7 = vector.broadcast %cst_12 : f32 to vector<2x16x16x8xf32>
    %c0_13 = arith.constant 0 : index
    %c0_14 = arith.constant 0 : index
    %c0_15 = arith.constant 0 : index
    %c0_16 = arith.constant 0 : index
    %8 = vector.load %arg13[%c0_13, %c0_14, %c0_15, %c0_16] : memref<2x18x18x8xf32, #tpu.memory_space<vmem>>, vector<2x16x16x8xf32>
    %9 = vector.extract_strided_slice %6 {offsets = [0, 0, 0], sizes = [1, 1, 8], strides = [1, 1, 1]} : vector<3x3x8xf32> to vector<1x1x8xf32>
    %10 = vector.shape_cast %9 : vector<1x1x8xf32> to vector<8xf32>
    %11 = vector.shape_cast %10 : vector<8xf32> to vector<1x1x1x8xf32>
    %12 = vector.broadcast %11 : vector<1x1x1x8xf32> to vector<2x16x16x8xf32>
    %13 = arith.mulf %8, %12 : vector<2x16x16x8xf32>
    %14 = arith.addf %7, %13 : vector<2x16x16x8xf32>
    %c0_17 = arith.constant 0 : index
    %c0_18 = arith.constant 0 : index
    %c1 = arith.constant 1 : index
    %c0_19 = arith.constant 0 : index
    %15 = vector.load %arg13[%c0_17, %c0_18, %c1, %c0_19] : memref<2x18x18x8xf32, #tpu.memory_space<vmem>>, vector<2x16x16x8xf32>
    %16 = vector.extract_strided_slice %6 {offsets = [0, 1, 0], sizes = [1, 1, 8], strides = [1, 1, 1]} : vector<3x3x8xf32> to vector<1x1x8xf32>
    %17 = vector.shape_cast %16 : vector<1x1x8xf32> to vector<8xf32>
    %18 = vector.shape_cast %17 : vector<8xf32> to vector<1x1x1x8xf32>
    %19 = vector.broadcast %18 : vector<1x1x1x8xf32> to vector<2x16x16x8xf32>
    %20 = arith.mulf %15, %19 : vector<2x16x16x8xf32>
    %21 = arith.addf %14, %20 : vector<2x16x16x8xf32>
    %c0_20 = arith.constant 0 : index
    %c0_21 = arith.constant 0 : index
    %c2 = arith.constant 2 : index
    %c0_22 = arith.constant 0 : index
    %22 = vector.load %arg13[%c0_20, %c0_21, %c2, %c0_22] : memref<2x18x18x8xf32, #tpu.memory_space<vmem>>, vector<2x16x16x8xf32>
    %23 = vector.extract_strided_slice %6 {offsets = [0, 2, 0], sizes = [1, 1, 8], strides = [1, 1, 1]} : vector<3x3x8xf32> to vector<1x1x8xf32>
    %24 = vector.shape_cast %23 : vector<1x1x8xf32> to vector<8xf32>
    %25 = vector.shape_cast %24 : vector<8xf32> to vector<1x1x1x8xf32>
    %26 = vector.broadcast %25 : vector<1x1x1x8xf32> to vector<2x16x16x8xf32>
    %27 = arith.mulf %22, %26 : vector<2x16x16x8xf32>
    %28 = arith.addf %21, %27 : vector<2x16x16x8xf32>
    %c0_23 = arith.constant 0 : index
    %c1_24 = arith.constant 1 : index
    %c0_25 = arith.constant 0 : index
    %c0_26 = arith.constant 0 : index
    %29 = vector.load %arg13[%c0_23, %c1_24, %c0_25, %c0_26] : memref<2x18x18x8xf32, #tpu.memory_space<vmem>>, vector<2x16x16x8xf32>
    %30 = vector.extract_strided_slice %6 {offsets = [1, 0, 0], sizes = [1, 1, 8], strides = [1, 1, 1]} : vector<3x3x8xf32> to vector<1x1x8xf32>
    %31 = vector.shape_cast %30 : vector<1x1x8xf32> to vector<8xf32>
    %32 = vector.shape_cast %31 : vector<8xf32> to vector<1x1x1x8xf32>
    %33 = vector.broadcast %32 : vector<1x1x1x8xf32> to vector<2x16x16x8xf32>
    %34 = arith.mulf %29, %33 : vector<2x16x16x8xf32>
    %35 = arith.addf %28, %34 : vector<2x16x16x8xf32>
    %c0_27 = arith.constant 0 : index
    %c1_28 = arith.constant 1 : index
    %c1_29 = arith.constant 1 : index
    %c0_30 = arith.constant 0 : index
    %36 = vector.load %arg13[%c0_27, %c1_28, %c1_29, %c0_30] : memref<2x18x18x8xf32, #tpu.memory_space<vmem>>, vector<2x16x16x8xf32>
    %37 = vector.extract_strided_slice %6 {offsets = [1, 1, 0], sizes = [1, 1, 8], strides = [1, 1, 1]} : vector<3x3x8xf32> to vector<1x1x8xf32>
    %38 = vector.shape_cast %37 : vector<1x1x8xf32> to vector<8xf32>
    %39 = vector.shape_cast %38 : vector<8xf32> to vector<1x1x1x8xf32>
    %40 = vector.broadcast %39 : vector<1x1x1x8xf32> to vector<2x16x16x8xf32>
    %41 = arith.mulf %36, %40 : vector<2x16x16x8xf32>
    %42 = arith.addf %35, %41 : vector<2x16x16x8xf32>
    %c0_31 = arith.constant 0 : index
    %c1_32 = arith.constant 1 : index
    %c2_33 = arith.constant 2 : index
    %c0_34 = arith.constant 0 : index
    %43 = vector.load %arg13[%c0_31, %c1_32, %c2_33, %c0_34] : memref<2x18x18x8xf32, #tpu.memory_space<vmem>>, vector<2x16x16x8xf32>
    %44 = vector.extract_strided_slice %6 {offsets = [1, 2, 0], sizes = [1, 1, 8], strides = [1, 1, 1]} : vector<3x3x8xf32> to vector<1x1x8xf32>
    %45 = vector.shape_cast %44 : vector<1x1x8xf32> to vector<8xf32>
    %46 = vector.shape_cast %45 : vector<8xf32> to vector<1x1x1x8xf32>
    %47 = vector.broadcast %46 : vector<1x1x1x8xf32> to vector<2x16x16x8xf32>
    %48 = arith.mulf %43, %47 : vector<2x16x16x8xf32>
    %49 = arith.addf %42, %48 : vector<2x16x16x8xf32>
    %c0_35 = arith.constant 0 : index
    %c2_36 = arith.constant 2 : index
    %c0_37 = arith.constant 0 : index
    %c0_38 = arith.constant 0 : index
    %50 = vector.load %arg13[%c0_35, %c2_36, %c0_37, %c0_38] : memref<2x18x18x8xf32, #tpu.memory_space<vmem>>, vector<2x16x16x8xf32>
    %51 = vector.extract_strided_slice %6 {offsets = [2, 0, 0], sizes = [1, 1, 8], strides = [1, 1, 1]} : vector<3x3x8xf32> to vector<1x1x8xf32>
    %52 = vector.shape_cast %51 : vector<1x1x8xf32> to vector<8xf32>
    %53 = vector.shape_cast %52 : vector<8xf32> to vector<1x1x1x8xf32>
    %54 = vector.broadcast %53 : vector<1x1x1x8xf32> to vector<2x16x16x8xf32>
    %55 = arith.mulf %50, %54 : vector<2x16x16x8xf32>
    %56 = arith.addf %49, %55 : vector<2x16x16x8xf32>
    %c0_39 = arith.constant 0 : index
    %c2_40 = arith.constant 2 : index
    %c1_41 = arith.constant 1 : index
    %c0_42 = arith.constant 0 : index
    %57 = vector.load %arg13[%c0_39, %c2_40, %c1_41, %c0_42] : memref<2x18x18x8xf32, #tpu.memory_space<vmem>>, vector<2x16x16x8xf32>
    %58 = vector.extract_strided_slice %6 {offsets = [2, 1, 0], sizes = [1, 1, 8], strides = [1, 1, 1]} : vector<3x3x8xf32> to vector<1x1x8xf32>
    %59 = vector.shape_cast %58 : vector<1x1x8xf32> to vector<8xf32>
    %60 = vector.shape_cast %59 : vector<8xf32> to vector<1x1x1x8xf32>
    %61 = vector.broadcast %60 : vector<1x1x1x8xf32> to vector<2x16x16x8xf32>
    %62 = arith.mulf %57, %61 : vector<2x16x16x8xf32>
    %63 = arith.addf %56, %62 : vector<2x16x16x8xf32>
    %c0_43 = arith.constant 0 : index
    %c2_44 = arith.constant 2 : index
    %c2_45 = arith.constant 2 : index
    %c0_46 = arith.constant 0 : index
    %64 = vector.load %arg13[%c0_43, %c2_44, %c2_45, %c0_46] : memref<2x18x18x8xf32, #tpu.memory_space<vmem>>, vector<2x16x16x8xf32>
    %65 = vector.extract_strided_slice %6 {offsets = [2, 2, 0], sizes = [1, 1, 8], strides = [1, 1, 1]} : vector<3x3x8xf32> to vector<1x1x8xf32>
    %66 = vector.shape_cast %65 : vector<1x1x8xf32> to vector<8xf32>
    %67 = vector.shape_cast %66 : vector<8xf32> to vector<1x1x1x8xf32>
    %68 = vector.broadcast %67 : vector<1x1x1x8xf32> to vector<2x16x16x8xf32>
    %69 = arith.mulf %64, %68 : vector<2x16x16x8xf32>
    %70 = arith.addf %63, %69 : vector<2x16x16x8xf32>
    %71 = vector.shape_cast %70 : vector<2x16x16x8xf32> to vector<512x8xf32>
    %72 = arith.truncf %71 : vector<512x8xf32> to vector<512x8xbf16>
    %c0_47 = arith.constant 0 : index
    %c0_48 = arith.constant 0 : index
    %c0_49 = arith.constant 0 : index
    %73 = vector.load %arg3[%c0_47, %c0_48, %c0_49] : memref<1x8x8xbf16, #tpu.memory_space<vmem>>, vector<1x8x8xbf16>
    %74 = vector.shape_cast %73 : vector<1x8x8xbf16> to vector<8x8xbf16>
    %cst_50 = arith.constant dense<0.000000e+00> : vector<512x8xf32>
    %75 = tpu.matmul %72, %74, %cst_50 {dimension_numbers = #tpu.dot_dimension_numbers<[1], [0], [0], [1], [0, 0, 1, 1], [], []>} : vector<512x8xbf16>, vector<8x8xbf16>, vector<512x8xf32> -> vector<512x8xf32>
    %cst_51 = arith.constant dense<0.000000e+00> : vector<8xf32>
    %76 = vector.multi_reduction <add>, %75, %cst_51 [0] : vector<512x8xf32> to vector<8xf32>
    %77 = vector.shape_cast %76 : vector<8xf32> to vector<1x8xf32>
    %cst_52 = arith.constant 0.001953125 : f32
    %78 = vector.broadcast %cst_52 : f32 to vector<1x8xf32>
    %79 = arith.mulf %77, %78 : vector<1x8xf32>
    %80 = arith.mulf %75, %75 : vector<512x8xf32>
    %cst_53 = arith.constant dense<0.000000e+00> : vector<8xf32>
    %81 = vector.multi_reduction <add>, %80, %cst_53 [0] : vector<512x8xf32> to vector<8xf32>
    %82 = vector.shape_cast %81 : vector<8xf32> to vector<1x8xf32>
    %cst_54 = arith.constant 0.001953125 : f32
    %83 = vector.broadcast %cst_54 : f32 to vector<1x8xf32>
    %84 = arith.mulf %82, %83 : vector<1x8xf32>
    %85 = arith.mulf %79, %79 : vector<1x8xf32>
    %86 = arith.subf %84, %85 : vector<1x8xf32>
    %87 = vector.broadcast %79 : vector<1x8xf32> to vector<512x8xf32>
    %88 = arith.subf %75, %87 : vector<512x8xf32>
    %c0_55 = arith.constant 0 : index
    %c0_56 = arith.constant 0 : index
    %c0_57 = arith.constant 0 : index
    %89 = vector.load %arg4[%c0_55, %c0_56, %c0_57] : memref<1x1x8xf32, #tpu.memory_space<vmem>>, vector<1x1x8xf32>
    %90 = vector.shape_cast %89 : vector<1x1x8xf32> to vector<8xf32>
    %cst_58 = arith.constant 9.99999974E-6 : f32
    %91 = vector.broadcast %cst_58 : f32 to vector<1x8xf32>
    %92 = arith.addf %86, %91 : vector<1x8xf32>
    %93 = math.rsqrt %92 : vector<1x8xf32>
    %94 = vector.shape_cast %90 : vector<8xf32> to vector<1x8xf32>
    %95 = arith.mulf %94, %93 : vector<1x8xf32>
    %96 = vector.broadcast %95 : vector<1x8xf32> to vector<512x8xf32>
    %97 = arith.mulf %88, %96 : vector<512x8xf32>
    %c0_59 = arith.constant 0 : index
    %c0_60 = arith.constant 0 : index
    %c0_61 = arith.constant 0 : index
    %98 = vector.load %arg5[%c0_59, %c0_60, %c0_61] : memref<1x1x8xf32, #tpu.memory_space<vmem>>, vector<1x1x8xf32>
    %99 = vector.shape_cast %98 : vector<1x1x8xf32> to vector<8xf32>
    %100 = vector.shape_cast %99 : vector<8xf32> to vector<1x8xf32>
    %101 = vector.broadcast %100 : vector<1x8xf32> to vector<512x8xf32>
    %102 = arith.addf %97, %101 : vector<512x8xf32>
    %cst_62 = arith.constant 0.000000e+00 : f32
    %103 = vector.broadcast %cst_62 : f32 to vector<512x8xf32>
    %104 = arith.maximumf %102, %103 : vector<512x8xf32>
    %cst_63 = arith.constant 0.000000e+00 : f32
    %105 = vector.broadcast %cst_63 : f32 to vector<2x1x18x8xf32>
    %c0_64 = arith.constant 0 : index
    %c0_65 = arith.constant 0 : index
    %c0_66 = arith.constant 0 : index
    %c0_67 = arith.constant 0 : index
    %106 = vector.load %arg14[%c0_64, %c0_65, %c0_66, %c0_67] : memref<2x18x18x8xf32, #tpu.memory_space<vmem>>, vector<2x1x18x8xf32>
    tpu.vector_store %arg14[%c0_64, %c0_65, %c0_66, %c0_67], %105 {strides = array<i32>} : memref<2x18x18x8xf32, #tpu.memory_space<vmem>>, vector<2x1x18x8xf32>,
    %c0_68 = arith.constant 0 : index
    %c17 = arith.constant 17 : index
    %c0_69 = arith.constant 0 : index
    %c0_70 = arith.constant 0 : index
    %107 = vector.load %arg14[%c0_68, %c17, %c0_69, %c0_70] : memref<2x18x18x8xf32, #tpu.memory_space<vmem>>, vector<2x1x18x8xf32>
    tpu.vector_store %arg14[%c0_68, %c17, %c0_69, %c0_70], %105 {strides = array<i32>} : memref<2x18x18x8xf32, #tpu.memory_space<vmem>>, vector<2x1x18x8xf32>,
    %cst_71 = arith.constant 0.000000e+00 : f32
    %108 = vector.broadcast %cst_71 : f32 to vector<2x18x1x8xf32>
    %c0_72 = arith.constant 0 : index
    %c0_73 = arith.constant 0 : index
    %c0_74 = arith.constant 0 : index
    %c0_75 = arith.constant 0 : index
    %109 = vector.load %arg14[%c0_72, %c0_73, %c0_74, %c0_75] : memref<2x18x18x8xf32, #tpu.memory_space<vmem>>, vector<2x18x1x8xf32>
    tpu.vector_store %arg14[%c0_72, %c0_73, %c0_74, %c0_75], %108 {strides = array<i32>} : memref<2x18x18x8xf32, #tpu.memory_space<vmem>>, vector<2x18x1x8xf32>,
    %c0_76 = arith.constant 0 : index
    %c0_77 = arith.constant 0 : index
    %c17_78 = arith.constant 17 : index
    %c0_79 = arith.constant 0 : index
    %110 = vector.load %arg14[%c0_76, %c0_77, %c17_78, %c0_79] : memref<2x18x18x8xf32, #tpu.memory_space<vmem>>, vector<2x18x1x8xf32>
    tpu.vector_store %arg14[%c0_76, %c0_77, %c17_78, %c0_79], %108 {strides = array<i32>} : memref<2x18x18x8xf32, #tpu.memory_space<vmem>>, vector<2x18x1x8xf32>,
    %111 = vector.shape_cast %104 : vector<512x8xf32> to vector<2x16x16x8xf32>
    %c0_80 = arith.constant 0 : index
    %c1_81 = arith.constant 1 : index
    %c1_82 = arith.constant 1 : index
    %c0_83 = arith.constant 0 : index
    %112 = vector.load %arg14[%c0_80, %c1_81, %c1_82, %c0_83] : memref<2x18x18x8xf32, #tpu.memory_space<vmem>>, vector<2x16x16x8xf32>
    tpu.vector_store %arg14[%c0_80, %c1_81, %c1_82, %c0_83], %111 {strides = array<i32>} : memref<2x18x18x8xf32, #tpu.memory_space<vmem>>, vector<2x16x16x8xf32>,
    %c0_84 = arith.constant 0 : index
    %c0_85 = arith.constant 0 : index
    %c0_86 = arith.constant 0 : index
    %c0_87 = arith.constant 0 : index
    %113 = vector.load %arg6[%c0_84, %c0_85, %c0_86, %c0_87] : memref<1x3x3x8xf32, #tpu.memory_space<vmem>>, vector<1x3x3x8xf32>
    %114 = vector.shape_cast %113 : vector<1x3x3x8xf32> to vector<3x3x8xf32>
    %cst_88 = arith.constant 0.000000e+00 : f32
    %115 = vector.broadcast %cst_88 : f32 to vector<2x16x16x8xf32>
    %c0_89 = arith.constant 0 : index
    %c0_90 = arith.constant 0 : index
    %c0_91 = arith.constant 0 : index
    %c0_92 = arith.constant 0 : index
    %116 = vector.load %arg14[%c0_89, %c0_90, %c0_91, %c0_92] : memref<2x18x18x8xf32, #tpu.memory_space<vmem>>, vector<2x16x16x8xf32>
    %117 = vector.extract_strided_slice %114 {offsets = [0, 0, 0], sizes = [1, 1, 8], strides = [1, 1, 1]} : vector<3x3x8xf32> to vector<1x1x8xf32>
    %118 = vector.shape_cast %117 : vector<1x1x8xf32> to vector<8xf32>
    %119 = vector.shape_cast %118 : vector<8xf32> to vector<1x1x1x8xf32>
    %120 = vector.broadcast %119 : vector<1x1x1x8xf32> to vector<2x16x16x8xf32>
    %121 = arith.mulf %116, %120 : vector<2x16x16x8xf32>
    %122 = arith.addf %115, %121 : vector<2x16x16x8xf32>
    %c0_93 = arith.constant 0 : index
    %c0_94 = arith.constant 0 : index
    %c1_95 = arith.constant 1 : index
    %c0_96 = arith.constant 0 : index
    %123 = vector.load %arg14[%c0_93, %c0_94, %c1_95, %c0_96] : memref<2x18x18x8xf32, #tpu.memory_space<vmem>>, vector<2x16x16x8xf32>
    %124 = vector.extract_strided_slice %114 {offsets = [0, 1, 0], sizes = [1, 1, 8], strides = [1, 1, 1]} : vector<3x3x8xf32> to vector<1x1x8xf32>
    %125 = vector.shape_cast %124 : vector<1x1x8xf32> to vector<8xf32>
    %126 = vector.shape_cast %125 : vector<8xf32> to vector<1x1x1x8xf32>
    %127 = vector.broadcast %126 : vector<1x1x1x8xf32> to vector<2x16x16x8xf32>
    %128 = arith.mulf %123, %127 : vector<2x16x16x8xf32>
    %129 = arith.addf %122, %128 : vector<2x16x16x8xf32>
    %c0_97 = arith.constant 0 : index
    %c0_98 = arith.constant 0 : index
    %c2_99 = arith.constant 2 : index
    %c0_100 = arith.constant 0 : index
    %130 = vector.load %arg14[%c0_97, %c0_98, %c2_99, %c0_100] : memref<2x18x18x8xf32, #tpu.memory_space<vmem>>, vector<2x16x16x8xf32>
    %131 = vector.extract_strided_slice %114 {offsets = [0, 2, 0], sizes = [1, 1, 8], strides = [1, 1, 1]} : vector<3x3x8xf32> to vector<1x1x8xf32>
    %132 = vector.shape_cast %131 : vector<1x1x8xf32> to vector<8xf32>
    %133 = vector.shape_cast %132 : vector<8xf32> to vector<1x1x1x8xf32>
    %134 = vector.broadcast %133 : vector<1x1x1x8xf32> to vector<2x16x16x8xf32>
    %135 = arith.mulf %130, %134 : vector<2x16x16x8xf32>
    %136 = arith.addf %129, %135 : vector<2x16x16x8xf32>
    %c0_101 = arith.constant 0 : index
    %c1_102 = arith.constant 1 : index
    %c0_103 = arith.constant 0 : index
    %c0_104 = arith.constant 0 : index
    %137 = vector.load %arg14[%c0_101, %c1_102, %c0_103, %c0_104] : memref<2x18x18x8xf32, #tpu.memory_space<vmem>>, vector<2x16x16x8xf32>
    %138 = vector.extract_strided_slice %114 {offsets = [1, 0, 0], sizes = [1, 1, 8], strides = [1, 1, 1]} : vector<3x3x8xf32> to vector<1x1x8xf32>
    %139 = vector.shape_cast %138 : vector<1x1x8xf32> to vector<8xf32>
    %140 = vector.shape_cast %139 : vector<8xf32> to vector<1x1x1x8xf32>
    %141 = vector.broadcast %140 : vector<1x1x1x8xf32> to vector<2x16x16x8xf32>
    %142 = arith.mulf %137, %141 : vector<2x16x16x8xf32>
    %143 = arith.addf %136, %142 : vector<2x16x16x8xf32>
    %c0_105 = arith.constant 0 : index
    %c1_106 = arith.constant 1 : index
    %c1_107 = arith.constant 1 : index
    %c0_108 = arith.constant 0 : index
    %144 = vector.load %arg14[%c0_105, %c1_106, %c1_107, %c0_108] : memref<2x18x18x8xf32, #tpu.memory_space<vmem>>, vector<2x16x16x8xf32>
    %145 = vector.extract_strided_slice %114 {offsets = [1, 1, 0], sizes = [1, 1, 8], strides = [1, 1, 1]} : vector<3x3x8xf32> to vector<1x1x8xf32>
    %146 = vector.shape_cast %145 : vector<1x1x8xf32> to vector<8xf32>
    %147 = vector.shape_cast %146 : vector<8xf32> to vector<1x1x1x8xf32>
    %148 = vector.broadcast %147 : vector<1x1x1x8xf32> to vector<2x16x16x8xf32>
    %149 = arith.mulf %144, %148 : vector<2x16x16x8xf32>
    %150 = arith.addf %143, %149 : vector<2x16x16x8xf32>
    %c0_109 = arith.constant 0 : index
    %c1_110 = arith.constant 1 : index
    %c2_111 = arith.constant 2 : index
    %c0_112 = arith.constant 0 : index
    %151 = vector.load %arg14[%c0_109, %c1_110, %c2_111, %c0_112] : memref<2x18x18x8xf32, #tpu.memory_space<vmem>>, vector<2x16x16x8xf32>
    %152 = vector.extract_strided_slice %114 {offsets = [1, 2, 0], sizes = [1, 1, 8], strides = [1, 1, 1]} : vector<3x3x8xf32> to vector<1x1x8xf32>
    %153 = vector.shape_cast %152 : vector<1x1x8xf32> to vector<8xf32>
    %154 = vector.shape_cast %153 : vector<8xf32> to vector<1x1x1x8xf32>
    %155 = vector.broadcast %154 : vector<1x1x1x8xf32> to vector<2x16x16x8xf32>
    %156 = arith.mulf %151, %155 : vector<2x16x16x8xf32>
    %157 = arith.addf %150, %156 : vector<2x16x16x8xf32>
    %c0_113 = arith.constant 0 : index
    %c2_114 = arith.constant 2 : index
    %c0_115 = arith.constant 0 : index
    %c0_116 = arith.constant 0 : index
    %158 = vector.load %arg14[%c0_113, %c2_114, %c0_115, %c0_116] : memref<2x18x18x8xf32, #tpu.memory_space<vmem>>, vector<2x16x16x8xf32>
    %159 = vector.extract_strided_slice %114 {offsets = [2, 0, 0], sizes = [1, 1, 8], strides = [1, 1, 1]} : vector<3x3x8xf32> to vector<1x1x8xf32>
    %160 = vector.shape_cast %159 : vector<1x1x8xf32> to vector<8xf32>
    %161 = vector.shape_cast %160 : vector<8xf32> to vector<1x1x1x8xf32>
    %162 = vector.broadcast %161 : vector<1x1x1x8xf32> to vector<2x16x16x8xf32>
    %163 = arith.mulf %158, %162 : vector<2x16x16x8xf32>
    %164 = arith.addf %157, %163 : vector<2x16x16x8xf32>
    %c0_117 = arith.constant 0 : index
    %c2_118 = arith.constant 2 : index
    %c1_119 = arith.constant 1 : index
    %c0_120 = arith.constant 0 : index
    %165 = vector.load %arg14[%c0_117, %c2_118, %c1_119, %c0_120] : memref<2x18x18x8xf32, #tpu.memory_space<vmem>>, vector<2x16x16x8xf32>
    %166 = vector.extract_strided_slice %114 {offsets = [2, 1, 0], sizes = [1, 1, 8], strides = [1, 1, 1]} : vector<3x3x8xf32> to vector<1x1x8xf32>
    %167 = vector.shape_cast %166 : vector<1x1x8xf32> to vector<8xf32>
    %168 = vector.shape_cast %167 : vector<8xf32> to vector<1x1x1x8xf32>
    %169 = vector.broadcast %168 : vector<1x1x1x8xf32> to vector<2x16x16x8xf32>
    %170 = arith.mulf %165, %169 : vector<2x16x16x8xf32>
    %171 = arith.addf %164, %170 : vector<2x16x16x8xf32>
    %c0_121 = arith.constant 0 : index
    %c2_122 = arith.constant 2 : index
    %c2_123 = arith.constant 2 : index
    %c0_124 = arith.constant 0 : index
    %172 = vector.load %arg14[%c0_121, %c2_122, %c2_123, %c0_124] : memref<2x18x18x8xf32, #tpu.memory_space<vmem>>, vector<2x16x16x8xf32>
    %173 = vector.extract_strided_slice %114 {offsets = [2, 2, 0], sizes = [1, 1, 8], strides = [1, 1, 1]} : vector<3x3x8xf32> to vector<1x1x8xf32>
    %174 = vector.shape_cast %173 : vector<1x1x8xf32> to vector<8xf32>
    %175 = vector.shape_cast %174 : vector<8xf32> to vector<1x1x1x8xf32>
    %176 = vector.broadcast %175 : vector<1x1x1x8xf32> to vector<2x16x16x8xf32>
    %177 = arith.mulf %172, %176 : vector<2x16x16x8xf32>
    %178 = arith.addf %171, %177 : vector<2x16x16x8xf32>
    %179 = vector.shape_cast %178 : vector<2x16x16x8xf32> to vector<512x8xf32>
    %180 = arith.truncf %179 : vector<512x8xf32> to vector<512x8xbf16>
    %c0_125 = arith.constant 0 : index
    %c0_126 = arith.constant 0 : index
    %c0_127 = arith.constant 0 : index
    %181 = vector.load %arg7[%c0_125, %c0_126, %c0_127] : memref<1x8x8xbf16, #tpu.memory_space<vmem>>, vector<1x8x8xbf16>
    %182 = vector.shape_cast %181 : vector<1x8x8xbf16> to vector<8x8xbf16>
    %cst_128 = arith.constant dense<0.000000e+00> : vector<512x8xf32>
    %183 = tpu.matmul %180, %182, %cst_128 {dimension_numbers = #tpu.dot_dimension_numbers<[1], [0], [0], [1], [0, 0, 1, 1], [], []>} : vector<512x8xbf16>, vector<8x8xbf16>, vector<512x8xf32> -> vector<512x8xf32>
    %cst_129 = arith.constant dense<0.000000e+00> : vector<8xf32>
    %184 = vector.multi_reduction <add>, %183, %cst_129 [0] : vector<512x8xf32> to vector<8xf32>
    %185 = vector.shape_cast %184 : vector<8xf32> to vector<1x8xf32>
    %cst_130 = arith.constant 0.001953125 : f32
    %186 = vector.broadcast %cst_130 : f32 to vector<1x8xf32>
    %187 = arith.mulf %185, %186 : vector<1x8xf32>
    %188 = arith.mulf %183, %183 : vector<512x8xf32>
    %cst_131 = arith.constant dense<0.000000e+00> : vector<8xf32>
    %189 = vector.multi_reduction <add>, %188, %cst_131 [0] : vector<512x8xf32> to vector<8xf32>
    %190 = vector.shape_cast %189 : vector<8xf32> to vector<1x8xf32>
    %cst_132 = arith.constant 0.001953125 : f32
    %191 = vector.broadcast %cst_132 : f32 to vector<1x8xf32>
    %192 = arith.mulf %190, %191 : vector<1x8xf32>
    %193 = arith.mulf %187, %187 : vector<1x8xf32>
    %194 = arith.subf %192, %193 : vector<1x8xf32>
    %195 = vector.broadcast %187 : vector<1x8xf32> to vector<512x8xf32>
    %196 = arith.subf %183, %195 : vector<512x8xf32>
    %c0_133 = arith.constant 0 : index
    %c0_134 = arith.constant 0 : index
    %c0_135 = arith.constant 0 : index
    %197 = vector.load %arg8[%c0_133, %c0_134, %c0_135] : memref<1x1x8xf32, #tpu.memory_space<vmem>>, vector<1x1x8xf32>
    %198 = vector.shape_cast %197 : vector<1x1x8xf32> to vector<8xf32>
    %cst_136 = arith.constant 9.99999974E-6 : f32
    %199 = vector.broadcast %cst_136 : f32 to vector<1x8xf32>
    %200 = arith.addf %194, %199 : vector<1x8xf32>
    %201 = math.rsqrt %200 : vector<1x8xf32>
    %202 = vector.shape_cast %198 : vector<8xf32> to vector<1x8xf32>
    %203 = arith.mulf %202, %201 : vector<1x8xf32>
    %204 = vector.broadcast %203 : vector<1x8xf32> to vector<512x8xf32>
    %205 = arith.mulf %196, %204 : vector<512x8xf32>
    %c0_137 = arith.constant 0 : index
    %c0_138 = arith.constant 0 : index
    %c0_139 = arith.constant 0 : index
    %206 = vector.load %arg9[%c0_137, %c0_138, %c0_139] : memref<1x1x8xf32, #tpu.memory_space<vmem>>, vector<1x1x8xf32>
    %207 = vector.shape_cast %206 : vector<1x1x8xf32> to vector<8xf32>
    %208 = vector.shape_cast %207 : vector<8xf32> to vector<1x8xf32>
    %209 = vector.broadcast %208 : vector<1x8xf32> to vector<512x8xf32>
    %210 = arith.addf %205, %209 : vector<512x8xf32>
    %211 = vector.shape_cast %210 : vector<512x8xf32> to vector<2x256x8xf32>
    %cst_140 = arith.constant dense<0.000000e+00> : vector<2x8xf32>
    %212 = vector.multi_reduction <add>, %211, %cst_140 [1] : vector<2x256x8xf32> to vector<2x8xf32>
    %cst_141 = arith.constant 2.560000e+02 : f32
    %213 = vector.broadcast %cst_141 : f32 to vector<2x8xf32>
    %214 = arith.divf %212, %213 : vector<2x8xf32>
    %215 = arith.truncf %214 : vector<2x8xf32> to vector<2x8xbf16>
    %c0_142 = arith.constant 0 : index
    %c0_143 = arith.constant 0 : index
    %c0_144 = arith.constant 0 : index
    %216 = vector.load %arg10[%c0_142, %c0_143, %c0_144] : memref<1x8x8xbf16, #tpu.memory_space<vmem>>, vector<1x8x8xbf16>
    %217 = vector.shape_cast %216 : vector<1x8x8xbf16> to vector<8x8xbf16>
    %cst_145 = arith.constant dense<0.000000e+00> : vector<2x8xf32>
    %218 = tpu.matmul %215, %217, %cst_145 {dimension_numbers = #tpu.dot_dimension_numbers<[1], [0], [0], [1], [0, 0, 1, 1], [], []>} : vector<2x8xbf16>, vector<8x8xbf16>, vector<2x8xf32> -> vector<2x8xf32>
    %cst_146 = arith.constant 0.000000e+00 : f32
    %219 = vector.broadcast %cst_146 : f32 to vector<2x8xf32>
    %220 = arith.maximumf %218, %219 : vector<2x8xf32>
    %221 = arith.truncf %220 : vector<2x8xf32> to vector<2x8xbf16>
    %c0_147 = arith.constant 0 : index
    %c0_148 = arith.constant 0 : index
    %c0_149 = arith.constant 0 : index
    %222 = vector.load %arg11[%c0_147, %c0_148, %c0_149] : memref<1x8x8xbf16, #tpu.memory_space<vmem>>, vector<1x8x8xbf16>
    %223 = vector.shape_cast %222 : vector<1x8x8xbf16> to vector<8x8xbf16>
    %cst_150 = arith.constant dense<0.000000e+00> : vector<2x8xf32>
    %224 = tpu.matmul %221, %223, %cst_150 {dimension_numbers = #tpu.dot_dimension_numbers<[1], [0], [0], [1], [0, 0, 1, 1], [], []>} : vector<2x8xbf16>, vector<8x8xbf16>, vector<2x8xf32> -> vector<2x8xf32>
    %225 = arith.negf %224 : vector<2x8xf32>
    %226 = math.exp %225 : vector<2x8xf32>
    %cst_151 = arith.constant 1.000000e+00 : f32
    %227 = vector.broadcast %cst_151 : f32 to vector<2x8xf32>
    %228 = arith.addf %227, %226 : vector<2x8xf32>
    %229 = arith.divf %227, %228 : vector<2x8xf32>
    %230 = vector.shape_cast %210 : vector<512x8xf32> to vector<2x16x16x8xf32>
    %231 = vector.shape_cast %229 : vector<2x8xf32> to vector<2x1x1x8xf32>
    %232 = vector.broadcast %231 : vector<2x1x1x8xf32> to vector<2x16x16x8xf32>
    %233 = arith.mulf %230, %232 : vector<2x16x16x8xf32>
    %c0_152 = arith.constant 0 : index
    %c0_153 = arith.constant 0 : index
    %c0_154 = arith.constant 0 : index
    %c0_155 = arith.constant 0 : index
    %c0_156 = arith.constant 0 : index
    %234 = vector.load %arg12[%c0_152, %c0_153, %c0_154, %c0_155, %c0_156] : memref<1x2x16x16x8xf32, #tpu.memory_space<vmem>>, vector<1x2x16x16x8xf32>
    %235 = vector.shape_cast %234 : vector<1x2x16x16x8xf32> to vector<2x16x16x8xf32>
    %236 = vector.shape_cast %233 : vector<2x16x16x8xf32> to vector<1x2x16x16x8xf32>
    tpu.vector_store %arg12[%c0_152, %c0_153, %c0_154, %c0_155, %c0_156], %236 {strides = array<i32>} : memref<1x2x16x16x8xf32, #tpu.memory_space<vmem>>, vector<1x2x16x16x8xf32>,
    return
  }
  func.func @transform_0(%arg0: i32) -> (i32, i32, i32, i32, i32) {
    %c0_i32 = arith.constant 0 : i32
    %c0_i32_0 = arith.constant 0 : i32
    %c0_i32_1 = arith.constant 0 : i32
    %c0_i32_2 = arith.constant 0 : i32
    %c0_i32_3 = arith.constant 0 : i32
    return %arg0, %c0_i32, %c0_i32_0, %c0_i32_1, %c0_i32_2 : i32, i32, i32, i32, i32
  }
  func.func @transform_1(%arg0: i32) -> (i32, i32, i32, i32) {
    %c0_i32 = arith.constant 0 : i32
    %c0_i32_0 = arith.constant 0 : i32
    %c0_i32_1 = arith.constant 0 : i32
    %c0_i32_2 = arith.constant 0 : i32
    return %arg0, %c0_i32, %c0_i32_0, %c0_i32_1 : i32, i32, i32, i32
  }
  func.func @transform_2(%arg0: i32) -> (i32, i32, i32) {
    %c0_i32 = arith.constant 0 : i32
    %c0_i32_0 = arith.constant 0 : i32
    %c0_i32_1 = arith.constant 0 : i32
    return %arg0, %c0_i32, %c0_i32_0 : i32, i32, i32
  }
  func.func @transform_3(%arg0: i32) -> (i32, i32, i32) {
    %c0_i32 = arith.constant 0 : i32
    %c0_i32_0 = arith.constant 0 : i32
    %c0_i32_1 = arith.constant 0 : i32
    return %arg0, %c0_i32, %c0_i32_0 : i32, i32, i32
  }
  func.func @transform_4(%arg0: i32) -> (i32, i32, i32) {
    %c0_i32 = arith.constant 0 : i32
    %c0_i32_0 = arith.constant 0 : i32
    %c0_i32_1 = arith.constant 0 : i32
    return %arg0, %c0_i32, %c0_i32_0 : i32, i32, i32
  }
  func.func @transform_5(%arg0: i32) -> (i32, i32, i32, i32) {
    %c0_i32 = arith.constant 0 : i32
    %c0_i32_0 = arith.constant 0 : i32
    %c0_i32_1 = arith.constant 0 : i32
    %c0_i32_2 = arith.constant 0 : i32
    return %arg0, %c0_i32, %c0_i32_0, %c0_i32_1 : i32, i32, i32, i32
  }
  func.func @transform_6(%arg0: i32) -> (i32, i32, i32) {
    %c0_i32 = arith.constant 0 : i32
    %c0_i32_0 = arith.constant 0 : i32
    %c0_i32_1 = arith.constant 0 : i32
    return %arg0, %c0_i32, %c0_i32_0 : i32, i32, i32
  }
  func.func @transform_7(%arg0: i32) -> (i32, i32, i32) {
    %c0_i32 = arith.constant 0 : i32
    %c0_i32_0 = arith.constant 0 : i32
    %c0_i32_1 = arith.constant 0 : i32
    return %arg0, %c0_i32, %c0_i32_0 : i32, i32, i32
  }
  func.func @transform_8(%arg0: i32) -> (i32, i32, i32) {
    %c0_i32 = arith.constant 0 : i32
    %c0_i32_0 = arith.constant 0 : i32
    %c0_i32_1 = arith.constant 0 : i32
    return %arg0, %c0_i32, %c0_i32_0 : i32, i32, i32
  }
  func.func @transform_9(%arg0: i32) -> (i32, i32, i32) {
    %c0_i32 = arith.constant 0 : i32
    %c0_i32_0 = arith.constant 0 : i32
    %c0_i32_1 = arith.constant 0 : i32
    return %arg0, %c0_i32, %c0_i32_0 : i32, i32, i32
  }
  func.func @transform_10(%arg0: i32) -> (i32, i32, i32) {
    %c0_i32 = arith.constant 0 : i32
    %c0_i32_0 = arith.constant 0 : i32
    %c0_i32_1 = arith.constant 0 : i32
    return %arg0, %c0_i32, %c0_i32_0 : i32, i32, i32
  }
  func.func @transform_11(%arg0: i32) -> (i32, i32, i32, i32, i32) {
    %c0_i32 = arith.constant 0 : i32
    %c0_i32_0 = arith.constant 0 : i32
    %c0_i32_1 = arith.constant 0 : i32
    %c0_i32_2 = arith.constant 0 : i32
    %c0_i32_3 = arith.constant 0 : i32
    return %arg0, %c0_i32, %c0_i32_0, %c0_i32_1, %c0_i32_2 : i32, i32, i32, i32, i32
  }
}

</mosaic_0001>

<llo_original>
// kernel: tpu_custom_call.1
$region0: #{tpu_custom_call.1}
  #allocation0 [shape = 'u32[]', space=smem, size = 0x4, offset = 0x4, fixed_abs, tag = 'smem constant byte address 0x4 - core index']
  #allocation1 [shape = 'u32[72,128]{1,0:T(1,128)}', space=vmem, size = 0x9000, scoped, tag = 'internal scratch']
  #allocation2 [shape = 'f32[2,18,18,8]{3,2,1,0:T(8,128)}', space=vmem, size = 0x6c000, scoped, tag = 'scratch operand']
  #allocation3 [shape = 'f32[2,18,18,8]{3,2,1,0:T(8,128)}', space=vmem, size = 0x6c000, scoped, tag = 'scratch operand']
  %s0 = inlined_call_operand.vmem [shape: f32[2,2,18,18,8], index: 0, kind: input, shape index: {}]
  %s1 = inlined_call_operand.vmem [shape: f32[2,3,3,8], index: 1, kind: input, shape index: {}]
  %s2 = inlined_call_operand.vmem [shape: bf16[2,8,8], index: 2, kind: input, shape index: {}]
  %s3 = inlined_call_operand.vmem [shape: f32[2,1,8], index: 3, kind: input, shape index: {}]
  %s4 = inlined_call_operand.vmem [shape: f32[2,1,8], index: 4, kind: input, shape index: {}]
  %s5 = inlined_call_operand.vmem [shape: f32[2,3,3,8], index: 5, kind: input, shape index: {}]
  %s6 = inlined_call_operand.vmem [shape: bf16[2,8,8], index: 6, kind: input, shape index: {}]
  %s7 = inlined_call_operand.vmem [shape: f32[2,1,8], index: 7, kind: input, shape index: {}]
  %s8 = inlined_call_operand.vmem [shape: f32[2,1,8], index: 8, kind: input, shape index: {}]
  %s9 = inlined_call_operand.vmem [shape: bf16[2,8,8], index: 9, kind: input, shape index: {}]
  %s10 = inlined_call_operand.vmem [shape: bf16[2,8,8], index: 10, kind: input, shape index: {}]
  %s11 = inlined_call_operand.vmem [shape: f32[2,2,16,16,8], index: 11, kind: output, shape index: {}]
  %s12 = sld [smem:[#allocation0]]
  $region77: #{tpu_custom_call.1} parent=0
    _
  %s14 = ssub.s32 1, %s12
  %s15 = scalar_select 0, %s14, %s12
  loop: start=0, step=1, limit=4
  $region2: #{tpu_custom_call.1} parent=0 // loop_pre_header
    _
  $region3: #{tpu_custom_call.1} parent=0 // loop_header
    %s17 = sphi 0, %s21
    %p18 = scmp.ge.s32.totalorder %s17, 4
    %s27 = sphi 0, %s29
    %s30 = sphi 0, %s27
    %s31 = sphi 0, %s30
    %s47 = sphi 0, %s31
    %s53 = sphi 0, %s55
    %s56 = sphi 0, %s53
    %s57 = sphi 0, %s56
    %s73 = sphi 0, %s57
    %s79 = sphi 0, %s81
    %s82 = sphi 0, %s79
    %s83 = sphi 0, %s82
    %s99 = sphi 0, %s83
    %s105 = sphi 0, %s107
    %s108 = sphi 0, %s105
    %s109 = sphi 0, %s108
    %s125 = sphi 0, %s109
    %s131 = sphi 0, %s133
    %s134 = sphi 0, %s131
    %s135 = sphi 0, %s134
    %s151 = sphi 0, %s135
    %s157 = sphi 0, %s159
    %s160 = sphi 0, %s157
    %s161 = sphi 0, %s160
    %s177 = sphi 0, %s161
    %s183 = sphi 0, %s185
    %s186 = sphi 0, %s183
    %s187 = sphi 0, %s186
    %s203 = sphi 0, %s187
    %s209 = sphi 0, %s211
    %s212 = sphi 0, %s209
    %s213 = sphi 0, %s212
    %s229 = sphi 0, %s213
    %s235 = sphi 0, %s237
    %s238 = sphi 0, %s235
    %s239 = sphi 0, %s238
    %s255 = sphi 0, %s239
    %s261 = sphi 0, %s263
    %s264 = sphi 0, %s261
    %s265 = sphi 0, %s264
    %s281 = sphi 0, %s265
    %s287 = sphi 0, %s289
    %s290 = sphi 0, %s287
    %s291 = sphi 0, %s290
    %s307 = sphi 0, %s291
    %s313 = sphi 0, %s315
    %s316 = sphi 0, %s313
    %s317 = sphi 0, %s316
    %s333 = sphi 0, %s317
  $region4: #{tpu_custom_call.1} parent=0 // loop_header_branch
    %20 = sbr.rel (%p18) target = $region8
  $region5: #{tpu_custom_call.1} parent=0 // loop_body
    %s22 = ssub.s32 %s17, 1
    %s23 = ssub.s32 %s17, 2
    %s24 = sadd.s32 %s17, 1
    %s25 = ssub.s32 %s17, %s24
    %p26 = scmp.eq.s32.totalorder %s25, 0
    %s28 = sadd.s32 %s27, 1
    %s29 = scalar_select %p26, %s27, %s28
    %p32 = pneg %p26
    %p33 = scmp.eq.s32.totalorder %s17, 1
    %p34 = por %p32, %p33
    %p35 = scmp.ne.s32.totalorder %s27, %s30
    %p36 = scmp.eq.s32.totalorder %s17, 0
    %p37 = por %p35, %p36
    %p38 = scmp.ne.s32.totalorder %s27, %s30
    %p39 = scmp.eq.s32.totalorder %s22, 1
    %p40 = por %p38, %p39
    %p41 = scmp.ne.s32.totalorder %s30, %s31
    %p42 = scmp.eq.s32.totalorder %s22, 0
    %p43 = por %p41, %p42
    %p44 = scmp.ne.s32.totalorder %s30, %s31
    %p45 = scmp.eq.s32.totalorder %s23, 1
    %p46 = por %p44, %p45
    %p48 = scmp.ne.s32.totalorder %s31, %s47
    %p49 = scmp.eq.s32.totalorder %s23, 0
    %p50 = por %p48, %p49
    %s51 = ssub.s32 %s17, %s24
    %p52 = scmp.eq.s32.totalorder %s51, 0
    %s54 = sadd.s32 %s53, 1
    %s55 = scalar_select %p52, %s53, %s54
    %p58 = pneg %p52
    %p59 = scmp.eq.s32.totalorder %s17, 1
    %p60 = por %p58, %p59
    %p61 = scmp.ne.s32.totalorder %s53, %s56
    %p62 = scmp.eq.s32.totalorder %s17, 0
    %p63 = por %p61, %p62
    %p64 = scmp.ne.s32.totalorder %s53, %s56
    %p65 = scmp.eq.s32.totalorder %s22, 1
    %p66 = por %p64, %p65
    %p67 = scmp.ne.s32.totalorder %s56, %s57
    %p68 = scmp.eq.s32.totalorder %s22, 0
    %p69 = por %p67, %p68
    %p70 = scmp.ne.s32.totalorder %s56, %s57
    %p71 = scmp.eq.s32.totalorder %s23, 1
    %p72 = por %p70, %p71
    %p74 = scmp.ne.s32.totalorder %s57, %s73
    %p75 = scmp.eq.s32.totalorder %s23, 0
    %p76 = por %p74, %p75
    %s77 = ssub.s32 %s17, %s24
    %p78 = scmp.eq.s32.totalorder %s77, 0
    %s80 = sadd.s32 %s79, 1
    %s81 = scalar_select %p78, %s79, %s80
    %p84 = pneg %p78
    %p85 = scmp.eq.s32.totalorder %s17, 1
    %p86 = por %p84, %p85
    %p87 = scmp.ne.s32.totalorder %s79, %s82
    %p88 = scmp.eq.s32.totalorder %s17, 0
    %p89 = por %p87, %p88
    %p90 = scmp.ne.s32.totalorder %s79, %s82
    %p91 = scmp.eq.s32.totalorder %s22, 1
    %p92 = por %p90, %p91
    %p93 = scmp.ne.s32.totalorder %s82, %s83
    %p94 = scmp.eq.s32.totalorder %s22, 0
    %p95 = por %p93, %p94
    %p96 = scmp.ne.s32.totalorder %s82, %s83
    %p97 = scmp.eq.s32.totalorder %s23, 1
    %p98 = por %p96, %p97
    %p100 = scmp.ne.s32.totalorder %s83, %s99
    %p101 = scmp.eq.s32.totalorder %s23, 0
    %p102 = por %p100, %p101
    %s103 = ssub.s32 %s17, %s24
    %p104 = scmp.eq.s32.totalorder %s103, 0
    %s106 = sadd.s32 %s105, 1
    %s107 = scalar_select %p104, %s105, %s106
    %p110 = pneg %p104
    %p111 = scmp.eq.s32.totalorder %s17, 1
    %p112 = por %p110, %p111
    %p113 = scmp.ne.s32.totalorder %s105, %s108
    %p114 = scmp.eq.s32.totalorder %s17, 0
    %p115 = por %p113, %p114
    %p116 = scmp.ne.s32.totalorder %s105, %s108
    %p117 = scmp.eq.s32.totalorder %s22, 1
    %p118 = por %p116, %p117
    %p119 = scmp.ne.s32.totalorder %s108, %s109
    %p120 = scmp.eq.s32.totalorder %s22, 0
    %p121 = por %p119, %p120
    %p122 = scmp.ne.s32.totalorder %s108, %s109
    %p123 = scmp.eq.s32.totalorder %s23, 1
    %p124 = por %p122, %p123
    %p126 = scmp.ne.s32.totalorder %s109, %s125
    %p127 = scmp.eq.s32.totalorder %s23, 0
    %p128 = por %p126, %p127
    %s129 = ssub.s32 %s17, %s24
    %p130 = scmp.eq.s32.totalorder %s129, 0
    %s132 = sadd.s32 %s131, 1
    %s133 = scalar_select %p130, %s131, %s132
    %p136 = pneg %p130
    %p137 = scmp.eq.s32.totalorder %s17, 1
    %p138 = por %p136, %p137
    %p139 = scmp.ne.s32.totalorder %s131, %s134
    %p140 = scmp.eq.s32.totalorder %s17, 0
    %p141 = por %p139, %p140
    %p142 = scmp.ne.s32.totalorder %s131, %s134
    %p143 = scmp.eq.s32.totalorder %s22, 1
    %p144 = por %p142, %p143
    %p145 = scmp.ne.s32.totalorder %s134, %s135
    %p146 = scmp.eq.s32.totalorder %s22, 0
    %p147 = por %p145, %p146
    %p148 = scmp.ne.s32.totalorder %s134, %s135
    %p149 = scmp.eq.s32.totalorder %s23, 1
    %p150 = por %p148, %p149
    %p152 = scmp.ne.s32.totalorder %s135, %s151
    %p153 = scmp.eq.s32.totalorder %s23, 0
    %p154 = por %p152, %p153
    %s155 = ssub.s32 %s17, %s24
    %p156 = scmp.eq.s32.totalorder %s155, 0
    %s158 = sadd.s32 %s157, 1
    %s159 = scalar_select %p156, %s157, %s158
    %p162 = pneg %p156
    %p163 = scmp.eq.s32.totalorder %s17, 1
    %p164 = por %p162, %p163
    %p165 = scmp.ne.s32.totalorder %s157, %s160
    %p166 = scmp.eq.s32.totalorder %s17, 0
    %p167 = por %p165, %p166
    %p168 = scmp.ne.s32.totalorder %s157, %s160
    %p169 = scmp.eq.s32.totalorder %s22, 1
    %p170 = por %p168, %p169
    %p171 = scmp.ne.s32.totalorder %s160, %s161
    %p172 = scmp.eq.s32.totalorder %s22, 0
    %p173 = por %p171, %p172
    %p174 = scmp.ne.s32.totalorder %s160, %s161
    %p175 = scmp.eq.s32.totalorder %s23, 1
    %p176 = por %p174, %p175
    %p178 = scmp.ne.s32.totalorder %s161, %s177
    %p179 = scmp.eq.s32.totalorder %s23, 0
    %p180 = por %p178, %p179
    %s181 = ssub.s32 %s17, %s24
    %p182 = scmp.eq.s32.totalorder %s181, 0
    %s184 = sadd.s32 %s183, 1
    %s185 = scalar_select %p182, %s183, %s184
    %p188 = pneg %p182
    %p189 = scmp.eq.s32.totalorder %s17, 1
    %p190 = por %p188, %p189
    %p191 = scmp.ne.s32.totalorder %s183, %s186
    %p192 = scmp.eq.s32.totalorder %s17, 0
    %p193 = por %p191, %p192
    %p194 = scmp.ne.s32.totalorder %s183, %s186
    %p195 = scmp.eq.s32.totalorder %s22, 1
    %p196 = por %p194, %p195
    %p197 = scmp.ne.s32.totalorder %s186, %s187
    %p198 = scmp.eq.s32.totalorder %s22, 0
    %p199 = por %p197, %p198
    %p200 = scmp.ne.s32.totalorder %s186, %s187
    %p201 = scmp.eq.s32.totalorder %s23, 1
    %p202 = por %p200, %p201
    %p204 = scmp.ne.s32.totalorder %s187, %s203
    %p205 = scmp.eq.s32.totalorder %s23, 0
    %p206 = por %p204, %p205
    %s207 = ssub.s32 %s17, %s24
    %p208 = scmp.eq.s32.totalorder %s207, 0
    %s210 = sadd.s32 %s209, 1
    %s211 = scalar_select %p208, %s209, %s210
    %p214 = pneg %p208
    %p215 = scmp.eq.s32.totalorder %s17, 1
    %p216 = por %p214, %p215
    %p217 = scmp.ne.s32.totalorder %s209, %s212
    %p218 = scmp.eq.s32.totalorder %s17, 0
    %p219 = por %p217, %p218
    %p220 = scmp.ne.s32.totalorder %s209, %s212
    %p221 = scmp.eq.s32.totalorder %s22, 1
    %p222 = por %p220, %p221
    %p223 = scmp.ne.s32.totalorder %s212, %s213
    %p224 = scmp.eq.s32.totalorder %s22, 0
    %p225 = por %p223, %p224
    %p226 = scmp.ne.s32.totalorder %s212, %s213
    %p227 = scmp.eq.s32.totalorder %s23, 1
    %p228 = por %p226, %p227
    %p230 = scmp.ne.s32.totalorder %s213, %s229
    %p231 = scmp.eq.s32.totalorder %s23, 0
    %p232 = por %p230, %p231
    %s233 = ssub.s32 %s17, %s24
    %p234 = scmp.eq.s32.totalorder %s233, 0
    %s236 = sadd.s32 %s235, 1
    %s237 = scalar_select %p234, %s235, %s236
    %p240 = pneg %p234
    %p241 = scmp.eq.s32.totalorder %s17, 1
    %p242 = por %p240, %p241
    %p243 = scmp.ne.s32.totalorder %s235, %s238
    %p244 = scmp.eq.s32.totalorder %s17, 0
    %p245 = por %p243, %p244
    %p246 = scmp.ne.s32.totalorder %s235, %s238
    %p247 = scmp.eq.s32.totalorder %s22, 1
    %p248 = por %p246, %p247
    %p249 = scmp.ne.s32.totalorder %s238, %s239
    %p250 = scmp.eq.s32.totalorder %s22, 0
    %p251 = por %p249, %p250
    %p252 = scmp.ne.s32.totalorder %s238, %s239
    %p253 = scmp.eq.s32.totalorder %s23, 1
    %p254 = por %p252, %p253
    %p256 = scmp.ne.s32.totalorder %s239, %s255
    %p257 = scmp.eq.s32.totalorder %s23, 0
    %p258 = por %p256, %p257
    %s259 = ssub.s32 %s17, %s24
    %p260 = scmp.eq.s32.totalorder %s259, 0
    %s262 = sadd.s32 %s261, 1
    %s263 = scalar_select %p260, %s261, %s262
    %p266 = pneg %p260
    %p267 = scmp.eq.s32.totalorder %s17, 1
    %p268 = por %p266, %p267
    %p269 = scmp.ne.s32.totalorder %s261, %s264
    %p270 = scmp.eq.s32.totalorder %s17, 0
    %p271 = por %p269, %p270
    %p272 = scmp.ne.s32.totalorder %s261, %s264
    %p273 = scmp.eq.s32.totalorder %s22, 1
    %p274 = por %p272, %p273
    %p275 = scmp.ne.s32.totalorder %s264, %s265
    %p276 = scmp.eq.s32.totalorder %s22, 0
    %p277 = por %p275, %p276
    %p278 = scmp.ne.s32.totalorder %s264, %s265
    %p279 = scmp.eq.s32.totalorder %s23, 1
    %p280 = por %p278, %p279
    %p282 = scmp.ne.s32.totalorder %s265, %s281
    %p283 = scmp.eq.s32.totalorder %s23, 0
    %p284 = por %p282, %p283
    %s285 = ssub.s32 %s17, %s24
    %p286 = scmp.eq.s32.totalorder %s285, 0
    %s288 = sadd.s32 %s287, 1
    %s289 = scalar_select %p286, %s287, %s288
    %p292 = pneg %p286
    %p293 = scmp.eq.s32.totalorder %s17, 1
    %p294 = por %p292, %p293
    %p295 = scmp.ne.s32.totalorder %s287, %s290
    %p296 = scmp.eq.s32.totalorder %s17, 0
    %p297 = por %p295, %p296
    %p298 = scmp.ne.s32.totalorder %s287, %s290
    %p299 = scmp.eq.s32.totalorder %s22, 1
    %p300 = por %p298, %p299
    %p301 = scmp.ne.s32.totalorder %s290, %s291
    %p302 = scmp.eq.s32.totalorder %s22, 0
    %p303 = por %p301, %p302
    %p304 = scmp.ne.s32.totalorder %s290, %s291
    %p305 = scmp.eq.s32.totalorder %s23, 1
    %p306 = por %p304, %p305
    %p308 = scmp.ne.s32.totalorder %s291, %s307
    %p309 = scmp.eq.s32.totalorder %s23, 0
    %p310 = por %p308, %p309
    %s311 = ssub.s32 %s17, %s24
    %p312 = scmp.eq.s32.totalorder %s311, 0
    %s314 = sadd.s32 %s313, 1
    %s315 = scalar_select %p312, %s313, %s314
    %p318 = pneg %p312
    %p319 = scmp.eq.s32.totalorder %s17, 1
    %p320 = por %p318, %p319
    %p321 = scmp.ne.s32.totalorder %s313, %s316
    %p322 = scmp.eq.s32.totalorder %s17, 0
    %p323 = por %p321, %p322
    %p324 = scmp.ne.s32.totalorder %s313, %s316
    %p325 = scmp.eq.s32.totalorder %s22, 1
    %p326 = por %p324, %p325
    %p327 = scmp.ne.s32.totalorder %s316, %s317
    %p328 = scmp.eq.s32.totalorder %s22, 0
    %p329 = por %p327, %p328
    %p330 = scmp.ne.s32.totalorder %s316, %s317
    %p331 = scmp.eq.s32.totalorder %s23, 1
    %p332 = por %p330, %p331
    %p334 = scmp.ne.s32.totalorder %s317, %s333
    %p335 = scmp.eq.s32.totalorder %s23, 0
    %p336 = por %p334, %p335
    %p337 = scmp.le.s32.totalorder 1, %s17
    %p338 = scmp.lt.s32.totalorder %s17, 3
    %p339 = pnand %p337, %p338
    %p340 = pneg %p339
    // Predicated region
    $region9: #{tpu_custom_call.1} parent=5 // pred_check
      _
    $region10: #{tpu_custom_call.1} parent=5 // pred_check_branch
      %342 = sbr.rel (%p339) target = $region12
    $region11: #{tpu_custom_call.1} parent=5 // pred_region
      %s343 = ssub.s32 %s17, 1
    $region12: #{tpu_custom_call.1} parent=5 // pred_fallthru
      _
    %p344 = scmp.lt.s32.totalorder %s17, 2
    // Predicated region
    $region13: #{tpu_custom_call.1} parent=5 // pred_check
      %p345 = pneg %p344
    $region14: #{tpu_custom_call.1} parent=5 // pred_check_branch
      %347 = sbr.rel (%p345) target = $region16
    $region15: #{tpu_custom_call.1} parent=5 // pred_region
      // Predicated region
      $region17: #{tpu_custom_call.1} parent=15 // pred_check
        %p348 = pneg %p37
      $region18: #{tpu_custom_call.1} parent=15 // pred_check_branch
        %350 = sbr.rel (%p348) target = $region20
      $region19: #{tpu_custom_call.1} parent=15 // pred_region
        %p351 = scmp.lt.s32.totalorder %s17, 1
        %s352 = scalar_select %p351, %s17, 1
        %s353 = smul.addr %s352, 108
        %s354 = smul.addr %s353, 8
        %s355 = scalar_lea.vmem %s0, %s354
      $region20: #{tpu_custom_call.1} parent=15 // pred_fallthru
        _
      // Predicated region
      $region21: #{tpu_custom_call.1} parent=15 // pred_check
        %p356 = pneg %p63
      $region22: #{tpu_custom_call.1} parent=15 // pred_check_branch
        %358 = sbr.rel (%p356) target = $region24
      $region23: #{tpu_custom_call.1} parent=15 // pred_region
        %p359 = scmp.lt.s32.totalorder %s17, 1
        %s360 = scalar_select %p359, %s17, 1
        %s361 = smul.addr %s360, 3
        %s362 = smul.addr %s361, 4
        %s363 = scalar_lea.vmem %s1, %s362
      $region24: #{tpu_custom_call.1} parent=15 // pred_fallthru
        _
      // Predicated region
      $region25: #{tpu_custom_call.1} parent=15 // pred_check
        %p364 = pneg %p89
      $region26: #{tpu_custom_call.1} parent=15 // pred_check_branch
        %366 = sbr.rel (%p364) target = $region28
      $region27: #{tpu_custom_call.1} parent=15 // pred_region
        %p367 = scmp.lt.s32.totalorder %s17, 1
        %s368 = scalar_select %p367, %s17, 1
        %s369 = smul.addr %s368, 4
        %s370 = scalar_lea.vmem %s2, %s369
      $region28: #{tpu_custom_call.1} parent=15 // pred_fallthru
        _
      // Predicated region
      $region29: #{tpu_custom_call.1} parent=15 // pred_check
        %p371 = pneg %p115
      $region30: #{tpu_custom_call.1} parent=15 // pred_check_branch
        %373 = sbr.rel (%p371) target = $region32
      $region31: #{tpu_custom_call.1} parent=15 // pred_region
        %p374 = scmp.lt.s32.totalorder %s17, 1
        %s375 = scalar_select %p374, %s17, 1
        %s376 = scalar_lea.vmem %s3, %s375
      $region32: #{tpu_custom_call.1} parent=15 // pred_fallthru
        _
      // Predicated region
      $region33: #{tpu_custom_call.1} parent=15 // pred_check
        %p377 = pneg %p141
      $region34: #{tpu_custom_call.1} parent=15 // pred_check_branch
        %379 = sbr.rel (%p377) target = $region36
      $region35: #{tpu_custom_call.1} parent=15 // pred_region
        %p380 = scmp.lt.s32.totalorder %s17, 1
        %s381 = scalar_select %p380, %s17, 1
        %s382 = scalar_lea.vmem %s4, %s381
      $region36: #{tpu_custom_call.1} parent=15 // pred_fallthru
        _
      // Predicated region
      $region37: #{tpu_custom_call.1} parent=15 // pred_check
        %p383 = pneg %p167
      $region38: #{tpu_custom_call.1} parent=15 // pred_check_branch
        %385 = sbr.rel (%p383) target = $region40
      $region39: #{tpu_custom_call.1} parent=15 // pred_region
        %p386 = scmp.lt.s32.totalorder %s17, 1
        %s387 = scalar_select %p386, %s17, 1
        %s388 = smul.addr %s387, 3
        %s389 = smul.addr %s388, 4
        %s390 = scalar_lea.vmem %s5, %s389
      $region40: #{tpu_custom_call.1} parent=15 // pred_fallthru
        _
      // Predicated region
      $region41: #{tpu_custom_call.1} parent=15 // pred_check
        %p391 = pneg %p193
      $region42: #{tpu_custom_call.1} parent=15 // pred_check_branch
        %393 = sbr.rel (%p391) target = $region44
      $region43: #{tpu_custom_call.1} parent=15 // pred_region
        %p394 = scmp.lt.s32.totalorder %s17, 1
        %s395 = scalar_select %p394, %s17, 1
        %s396 = smul.addr %s395, 4
        %s397 = scalar_lea.vmem %s6, %s396
      $region44: #{tpu_custom_call.1} parent=15 // pred_fallthru
        _
      // Predicated region
      $region45: #{tpu_custom_call.1} parent=15 // pred_check
        %p398 = pneg %p219
      $region46: #{tpu_custom_call.1} parent=15 // pred_check_branch
        %400 = sbr.rel (%p398) target = $region48
      $region47: #{tpu_custom_call.1} parent=15 // pred_region
        %p401 = scmp.lt.s32.totalorder %s17, 1
        %s402 = scalar_select %p401, %s17, 1
        %s403 = scalar_lea.vmem %s7, %s402
      $region48: #{tpu_custom_call.1} parent=15 // pred_fallthru
        _
      // Predicated region
      $region49: #{tpu_custom_call.1} parent=15 // pred_check
        %p404 = pneg %p245
      $region50: #{tpu_custom_call.1} parent=15 // pred_check_branch
        %406 = sbr.rel (%p404) target = $region52
      $region51: #{tpu_custom_call.1} parent=15 // pred_region
        %p407 = scmp.lt.s32.totalorder %s17, 1
        %s408 = scalar_select %p407, %s17, 1
        %s409 = scalar_lea.vmem %s8, %s408
      $region52: #{tpu_custom_call.1} parent=15 // pred_fallthru
        _
      // Predicated region
      $region53: #{tpu_custom_call.1} parent=15 // pred_check
        %p410 = pneg %p271
      $region54: #{tpu_custom_call.1} parent=15 // pred_check_branch
        %412 = sbr.rel (%p410) target = $region56
      $region55: #{tpu_custom_call.1} parent=15 // pred_region
        %p413 = scmp.lt.s32.totalorder %s17, 1
        %s414 = scalar_select %p413, %s17, 1
        %s415 = smul.addr %s414, 4
        %s416 = scalar_lea.vmem %s9, %s415
      $region56: #{tpu_custom_call.1} parent=15 // pred_fallthru
        _
      // Predicated region
      $region57: #{tpu_custom_call.1} parent=15 // pred_check
        %p417 = pneg %p297
      $region58: #{tpu_custom_call.1} parent=15 // pred_check_branch
        %419 = sbr.rel (%p417) target = $region60
      $region59: #{tpu_custom_call.1} parent=15 // pred_region
        %p420 = scmp.lt.s32.totalorder %s17, 1
        %s421 = scalar_select %p420, %s17, 1
        %s422 = smul.addr %s421, 4
        %s423 = scalar_lea.vmem %s10, %s422
      $region60: #{tpu_custom_call.1} parent=15 // pred_fallthru
        _
    $region16: #{tpu_custom_call.1} parent=5 // pred_fallthru
      _
    %p424 = scmp.le.s32.totalorder 1, %s17
    %p425 = scmp.lt.s32.totalorder %s17, 3
    %p426 = pnand %p424, %p425
    %p427 = pneg %p426
    // Predicated region
    $region61: #{tpu_custom_call.1} parent=5 // pred_check
      _
    $region62: #{tpu_custom_call.1} parent=5 // pred_check_branch
      %429 = sbr.rel (%p426) target = $region64
    $region63: #{tpu_custom_call.1} parent=5 // pred_region
      %s430 = ssub.s32 %s17, 1
      %p431 = scmp.lt.s32.totalorder %s22, 1
      %s432 = scalar_select %p431, %s22, 1
      %s433 = smul.addr %s432, 108
      %s434 = smul.addr %s433, 8
      %s435 = scalar_lea.vmem %s0, %s434
      %p436 = pneg %p43
      %p437 = pneg %p40
      %p438 = scmp.lt.s32.totalorder %s22, 1
      %s439 = scalar_select %p438, %s22, 1
      %s440 = smul.addr %s439, 3
      %s441 = smul.addr %s440, 4
      %s442 = scalar_lea.vmem %s1, %s441
      %p443 = pneg %p69
      %p444 = pneg %p66
      %p445 = scmp.lt.s32.totalorder %s22, 1
      %s446 = scalar_select %p445, %s22, 1
      %s447 = smul.addr %s446, 4
      %s448 = scalar_lea.vmem %s2, %s447
      %p449 = pneg %p95
      %p450 = pneg %p92
      %p451 = scmp.lt.s32.totalorder %s22, 1
      %s452 = scalar_select %p451, %s22, 1
      %s453 = scalar_lea.vmem %s3, %s452
      %p454 = pneg %p121
      %p455 = pneg %p118
      %p456 = scmp.lt.s32.totalorder %s22, 1
      %s457 = scalar_select %p456, %s22, 1
      %s458 = scalar_lea.vmem %s4, %s457
      %p459 = pneg %p147
      %p460 = pneg %p144
      %p461 = scmp.lt.s32.totalorder %s22, 1
      %s462 = scalar_select %p461, %s22, 1
      %s463 = smul.addr %s462, 3
      %s464 = smul.addr %s463, 4
      %s465 = scalar_lea.vmem %s5, %s464
      %p466 = pneg %p173
      %p467 = pneg %p170
      %p468 = scmp.lt.s32.totalorder %s22, 1
      %s469 = scalar_select %p468, %s22, 1
      %s470 = smul.addr %s469, 4
      %s471 = scalar_lea.vmem %s6, %s470
      %p472 = pneg %p199
      %p473 = pneg %p196
      %p474 = scmp.lt.s32.totalorder %s22, 1
      %s475 = scalar_select %p474, %s22, 1
      %s476 = scalar_lea.vmem %s7, %s475
      %p477 = pneg %p225
      %p478 = pneg %p222
      %p479 = scmp.lt.s32.totalorder %s22, 1
      %s480 = scalar_select %p479, %s22, 1
      %s481 = scalar_lea.vmem %s8, %s480
      %p482 = pneg %p251
      %p483 = pneg %p248
      %p484 = scmp.lt.s32.totalorder %s22, 1
      %s485 = scalar_select %p484, %s22, 1
      %s486 = smul.addr %s485, 4
      %s487 = scalar_lea.vmem %s9, %s486
      %p488 = pneg %p277
      %p489 = pneg %p274
      %p490 = scmp.lt.s32.totalorder %s22, 1
      %s491 = scalar_select %p490, %s22, 1
      %s492 = smul.addr %s491, 4
      %s493 = scalar_lea.vmem %s10, %s492
      %p494 = pneg %p303
      %p495 = pneg %p300
      %p496 = pneg %p329
      %p497 = pneg %p326
      %p498 = scmp.lt.s32.totalorder %s22, 1
      %s499 = scalar_select %p498, %s22, 1
      %s500 = smul.addr %s499, 64
      %s501 = smul.addr %s500, 8
      %s502 = scalar_lea.vmem %s11, %s501
      %p503 = scmp.lt.s32.totalorder %s22, 1
      %s504 = scalar_select %p503, %s22, 1
      %s505 = smul.addr %s504, 108
      %s506 = smul.addr %s505, 8
      %s507 = scalar_lea.vmem %s0, %s506
      %p508 = scmp.lt.s32.totalorder %s22, 1
      %s509 = scalar_select %p508, %s22, 1
      %s510 = smul.addr %s509, 3
      %s511 = smul.addr %s510, 4
      %s512 = scalar_lea.vmem %s1, %s511
      %p513 = scmp.lt.s32.totalorder %s22, 1
      %s514 = scalar_select %p513, %s22, 1
      %s515 = smul.addr %s514, 4
      %s516 = scalar_lea.vmem %s2, %s515
      %p517 = scmp.lt.s32.totalorder %s22, 1
      %s518 = scalar_select %p517, %s22, 1
      %s519 = scalar_lea.vmem %s3, %s518
      %p520 = scmp.lt.s32.totalorder %s22, 1
      %s521 = scalar_select %p520, %s22, 1
      %s522 = scalar_lea.vmem %s4, %s521
      %p523 = scmp.lt.s32.totalorder %s22, 1
      %s524 = scalar_select %p523, %s22, 1
      %s525 = smul.addr %s524, 3
      %s526 = smul.addr %s525, 4
      %s527 = scalar_lea.vmem %s5, %s526
      %p528 = scmp.lt.s32.totalorder %s22, 1
      %s529 = scalar_select %p528, %s22, 1
      %s530 = smul.addr %s529, 4
      %s531 = scalar_lea.vmem %s6, %s530
      %p532 = scmp.lt.s32.totalorder %s22, 1
      %s533 = scalar_select %p532, %s22, 1
      %s534 = scalar_lea.vmem %s7, %s533
      %p535 = scmp.lt.s32.totalorder %s22, 1
      %s536 = scalar_select %p535, %s22, 1
      %s537 = scalar_lea.vmem %s8, %s536
      %p538 = scmp.lt.s32.totalorder %s22, 1
      %s539 = scalar_select %p538, %s22, 1
      %s540 = smul.addr %s539, 4
      %s541 = scalar_lea.vmem %s9, %s540
      %p542 = scmp.lt.s32.totalorder %s22, 1
      %s543 = scalar_select %p542, %s22, 1
      %s544 = smul.addr %s543, 4
      %s545 = scalar_lea.vmem %s10, %s544
      %p546 = scmp.lt.s32.totalorder %s22, 1
      %s547 = scalar_select %p546, %s22, 1
      %s548 = smul.addr %s547, 64
      %s549 = smul.addr %s548, 8
      %s550 = scalar_lea.vmem %s11, %s549
      %v552 = vld [vmem:[%s507] sm:$0xff]
      %v553 = vld [vmem:[%s507 + $0x8] sm:$0xff]
      %v554 = vld [vmem:[%s507 + $0x10] sm:$0x3]
      %v555 = vld [vmem:[%s507 + $0x18] sm:$0xff]
      %v556 = vld [vmem:[%s507 + $0x20] sm:$0xff]
      %v557 = vld [vmem:[%s507 + $0x28] sm:$0x3]
      %v558 = vld [vmem:[%s507 + $0x30] sm:$0xff]
      %v559 = vld [vmem:[%s507 + $0x38] sm:$0xff]
      %v560 = vld [vmem:[%s507 + $0x40] sm:$0x3]
      %v561 = vld [vmem:[%s507 + $0x48] sm:$0xff]
      %v562 = vld [vmem:[%s507 + $0x50] sm:$0xff]
      %v563 = vld [vmem:[%s507 + $0x58] sm:$0x3]
      %v564 = vld [vmem:[%s507 + $0x60] sm:$0xff]
      %v565 = vld [vmem:[%s507 + $0x68] sm:$0xff]
      %v566 = vld [vmem:[%s507 + $0x70] sm:$0x3]
      %v567 = vld [vmem:[%s507 + $0x78] sm:$0xff]
      %v568 = vld [vmem:[%s507 + $0x80] sm:$0xff]
      %v569 = vld [vmem:[%s507 + $0x88] sm:$0x3]
      %v570 = vld [vmem:[%s507 + $0x90] sm:$0xff]
      %v571 = vld [vmem:[%s507 + $0x98] sm:$0xff]
      %v572 = vld [vmem:[%s507 + $0xa0] sm:$0x3]
      %v573 = vld [vmem:[%s507 + $0xa8] sm:$0xff]
      %v574 = vld [vmem:[%s507 + $0xb0] sm:$0xff]
      %v575 = vld [vmem:[%s507 + $0xb8] sm:$0x3]
      %v576 = vld [vmem:[%s507 + $0xc0] sm:$0xff]
      %v577 = vld [vmem:[%s507 + $0xc8] sm:$0xff]
      %v578 = vld [vmem:[%s507 + $0xd0] sm:$0x3]
      %v579 = vld [vmem:[%s507 + $0xd8] sm:$0xff]
      %v580 = vld [vmem:[%s507 + $0xe0] sm:$0xff]
      %v581 = vld [vmem:[%s507 + $0xe8] sm:$0x3]
      %v582 = vld [vmem:[%s507 + $0xf0] sm:$0xff]
      %v583 = vld [vmem:[%s507 + $0xf8] sm:$0xff]
      %v584 = vld [vmem:[%s507 + $0x100] sm:$0x3]
      %v585 = vld [vmem:[%s507 + $0x108] sm:$0xff]
      %v586 = vld [vmem:[%s507 + $0x110] sm:$0xff]
      %v587 = vld [vmem:[%s507 + $0x118] sm:$0x3]
      %v588 = vld [vmem:[%s507 + $0x120] sm:$0xff]
      %v589 = vld [vmem:[%s507 + $0x128] sm:$0xff]
      %v590 = vld [vmem:[%s507 + $0x130] sm:$0x3]
      %v591 = vld [vmem:[%s507 + $0x138] sm:$0xff]
      %v592 = vld [vmem:[%s507 + $0x140] sm:$0xff]
      %v593 = vld [vmem:[%s507 + $0x148] sm:$0x3]
      %v594 = vld [vmem:[%s507 + $0x150] sm:$0xff]
      %v595 = vld [vmem:[%s507 + $0x158] sm:$0xff]
      %v596 = vld [vmem:[%s507 + $0x160] sm:$0x3]
      %v597 = vld [vmem:[%s507 + $0x168] sm:$0xff]
      %v598 = vld [vmem:[%s507 + $0x170] sm:$0xff]
      %v599 = vld [vmem:[%s507 + $0x178] sm:$0x3]
      %v600 = vld [vmem:[%s507 + $0x180] sm:$0xff]
      %v601 = vld [vmem:[%s507 + $0x188] sm:$0xff]
      %v602 = vld [vmem:[%s507 + $0x190] sm:$0x3]
      %v603 = vld [vmem:[%s507 + $0x198] sm:$0xff]
      %v604 = vld [vmem:[%s507 + $0x1a0] sm:$0xff]
      %v605 = vld [vmem:[%s507 + $0x1a8] sm:$0x3]
      %v606 = vld [vmem:[%s507 + $0x1b0] sm:$0xff]
      %v607 = vld [vmem:[%s507 + $0x1b8] sm:$0xff]
      %v608 = vld [vmem:[%s507 + $0x1c0] sm:$0x3]
      %v609 = vld [vmem:[%s507 + $0x1c8] sm:$0xff]
      %v610 = vld [vmem:[%s507 + $0x1d0] sm:$0xff]
      %v611 = vld [vmem:[%s507 + $0x1d8] sm:$0x3]
      %v612 = vld [vmem:[%s507 + $0x1e0] sm:$0xff]
      %v613 = vld [vmem:[%s507 + $0x1e8] sm:$0xff]
      %v614 = vld [vmem:[%s507 + $0x1f0] sm:$0x3]
      %v615 = vld [vmem:[%s507 + $0x1f8] sm:$0xff]
      %v616 = vld [vmem:[%s507 + $0x200] sm:$0xff]
      %v617 = vld [vmem:[%s507 + $0x208] sm:$0x3]
      %v618 = vld [vmem:[%s507 + $0x210] sm:$0xff]
      %v619 = vld [vmem:[%s507 + $0x218] sm:$0xff]
      %v620 = vld [vmem:[%s507 + $0x220] sm:$0x3]
      %v621 = vld [vmem:[%s507 + $0x228] sm:$0xff]
      %v622 = vld [vmem:[%s507 + $0x230] sm:$0xff]
      %v623 = vld [vmem:[%s507 + $0x238] sm:$0x3]
      %v624 = vld [vmem:[%s507 + $0x240] sm:$0xff]
      %v625 = vld [vmem:[%s507 + $0x248] sm:$0xff]
      %v626 = vld [vmem:[%s507 + $0x250] sm:$0x3]
      %v627 = vld [vmem:[%s507 + $0x258] sm:$0xff]
      %v628 = vld [vmem:[%s507 + $0x260] sm:$0xff]
      %v629 = vld [vmem:[%s507 + $0x268] sm:$0x3]
      %v630 = vld [vmem:[%s507 + $0x270] sm:$0xff]
      %v631 = vld [vmem:[%s507 + $0x278] sm:$0xff]
      %v632 = vld [vmem:[%s507 + $0x280] sm:$0x3]
      %v633 = vld [vmem:[%s507 + $0x288] sm:$0xff]
      %v634 = vld [vmem:[%s507 + $0x290] sm:$0xff]
      %v635 = vld [vmem:[%s507 + $0x298] sm:$0x3]
      %v636 = vld [vmem:[%s507 + $0x2a0] sm:$0xff]
      %v637 = vld [vmem:[%s507 + $0x2a8] sm:$0xff]
      %v638 = vld [vmem:[%s507 + $0x2b0] sm:$0x3]
      %v639 = vld [vmem:[%s507 + $0x2b8] sm:$0xff]
      %v640 = vld [vmem:[%s507 + $0x2c0] sm:$0xff]
      %v641 = vld [vmem:[%s507 + $0x2c8] sm:$0x3]
      %v642 = vld [vmem:[%s507 + $0x2d0] sm:$0xff]
      %v643 = vld [vmem:[%s507 + $0x2d8] sm:$0xff]
      %v644 = vld [vmem:[%s507 + $0x2e0] sm:$0x3]
      %v645 = vld [vmem:[%s507 + $0x2e8] sm:$0xff]
      %v646 = vld [vmem:[%s507 + $0x2f0] sm:$0xff]
      %v647 = vld [vmem:[%s507 + $0x2f8] sm:$0x3]
      %v648 = vld [vmem:[%s507 + $0x300] sm:$0xff]
      %v649 = vld [vmem:[%s507 + $0x308] sm:$0xff]
      %v650 = vld [vmem:[%s507 + $0x310] sm:$0x3]
      %v651 = vld [vmem:[%s507 + $0x318] sm:$0xff]
      %v652 = vld [vmem:[%s507 + $0x320] sm:$0xff]
      %v653 = vld [vmem:[%s507 + $0x328] sm:$0x3]
      %v654 = vld [vmem:[%s507 + $0x330] sm:$0xff]
      %v655 = vld [vmem:[%s507 + $0x338] sm:$0xff]
      %v656 = vld [vmem:[%s507 + $0x340] sm:$0x3]
      %v657 = vld [vmem:[%s507 + $0x348] sm:$0xff]
      %v658 = vld [vmem:[%s507 + $0x350] sm:$0xff]
      %v659 = vld [vmem:[%s507 + $0x358] sm:$0x3]
      %v660 = vmax.f32 %v552, 0.0
      %v661 = vmax.f32 %v553, 0.0
      %v662 = vmax.f32 %v554, 0.0
      %v663 = vmax.f32 %v555, 0.0
      %v664 = vmax.f32 %v556, 0.0
      %v665 = vmax.f32 %v557, 0.0
      %v666 = vmax.f32 %v558, 0.0
      %v667 = vmax.f32 %v559, 0.0
      %v668 = vmax.f32 %v560, 0.0
      %v669 = vmax.f32 %v561, 0.0
      %v670 = vmax.f32 %v562, 0.0
      %v671 = vmax.f32 %v563, 0.0
      %v672 = vmax.f32 %v564, 0.0
      %v673 = vmax.f32 %v565, 0.0
      %v674 = vmax.f32 %v566, 0.0
      %v675 = vmax.f32 %v567, 0.0
      %v676 = vmax.f32 %v568, 0.0
      %v677 = vmax.f32 %v569, 0.0
      %v678 = vmax.f32 %v570, 0.0
      %v679 = vmax.f32 %v571, 0.0
      %v680 = vmax.f32 %v572, 0.0
      %v681 = vmax.f32 %v573, 0.0
      %v682 = vmax.f32 %v574, 0.0
      %v683 = vmax.f32 %v575, 0.0
      %v684 = vmax.f32 %v576, 0.0
      %v685 = vmax.f32 %v577, 0.0
      %v686 = vmax.f32 %v578, 0.0
      %v687 = vmax.f32 %v579, 0.0
      %v688 = vmax.f32 %v580, 0.0
      %v689 = vmax.f32 %v581, 0.0
      %v690 = vmax.f32 %v582, 0.0
      %v691 = vmax.f32 %v583, 0.0
      %v692 = vmax.f32 %v584, 0.0
      %v693 = vmax.f32 %v585, 0.0
      %v694 = vmax.f32 %v586, 0.0
      %v695 = vmax.f32 %v587, 0.0
      %v696 = vmax.f32 %v588, 0.0
      %v697 = vmax.f32 %v589, 0.0
      %v698 = vmax.f32 %v590, 0.0
      %v699 = vmax.f32 %v591, 0.0
      %v700 = vmax.f32 %v592, 0.0
      %v701 = vmax.f32 %v593, 0.0
      %v702 = vmax.f32 %v594, 0.0
      %v703 = vmax.f32 %v595, 0.0
      %v704 = vmax.f32 %v596, 0.0
      %v705 = vmax.f32 %v597, 0.0
      %v706 = vmax.f32 %v598, 0.0
      %v707 = vmax.f32 %v599, 0.0
      %v708 = vmax.f32 %v600, 0.0
      %v709 = vmax.f32 %v601, 0.0
      %v710 = vmax.f32 %v602, 0.0
      %v711 = vmax.f32 %v603, 0.0
      %v712 = vmax.f32 %v604, 0.0
      %v713 = vmax.f32 %v605, 0.0
      %v714 = vmax.f32 %v606, 0.0
      %v715 = vmax.f32 %v607, 0.0
      %v716 = vmax.f32 %v608, 0.0
      %v717 = vmax.f32 %v609, 0.0
      %v718 = vmax.f32 %v610, 0.0
      %v719 = vmax.f32 %v611, 0.0
      %v720 = vmax.f32 %v612, 0.0
      %v721 = vmax.f32 %v613, 0.0
      %v722 = vmax.f32 %v614, 0.0
      %v723 = vmax.f32 %v615, 0.0
      %v724 = vmax.f32 %v616, 0.0
      %v725 = vmax.f32 %v617, 0.0
      %v726 = vmax.f32 %v618, 0.0
      %v727 = vmax.f32 %v619, 0.0
      %v728 = vmax.f32 %v620, 0.0
      %v729 = vmax.f32 %v621, 0.0
      %v730 = vmax.f32 %v622, 0.0
      %v731 = vmax.f32 %v623, 0.0
      %v732 = vmax.f32 %v624, 0.0
      %v733 = vmax.f32 %v625, 0.0
      %v734 = vmax.f32 %v626, 0.0
      %v735 = vmax.f32 %v627, 0.0
      %v736 = vmax.f32 %v628, 0.0
      %v737 = vmax.f32 %v629, 0.0
      %v738 = vmax.f32 %v630, 0.0
      %v739 = vmax.f32 %v631, 0.0
      %v740 = vmax.f32 %v632, 0.0
      %v741 = vmax.f32 %v633, 0.0
      %v742 = vmax.f32 %v634, 0.0
      %v743 = vmax.f32 %v635, 0.0
      %v744 = vmax.f32 %v636, 0.0
      %v745 = vmax.f32 %v637, 0.0
      %v746 = vmax.f32 %v638, 0.0
      %v747 = vmax.f32 %v639, 0.0
      %v748 = vmax.f32 %v640, 0.0
      %v749 = vmax.f32 %v641, 0.0
      %v750 = vmax.f32 %v642, 0.0
      %v751 = vmax.f32 %v643, 0.0
      %v752 = vmax.f32 %v644, 0.0
      %v753 = vmax.f32 %v645, 0.0
      %v754 = vmax.f32 %v646, 0.0
      %v755 = vmax.f32 %v647, 0.0
      %v756 = vmax.f32 %v648, 0.0
      %v757 = vmax.f32 %v649, 0.0
      %v758 = vmax.f32 %v650, 0.0
      %v759 = vmax.f32 %v651, 0.0
      %v760 = vmax.f32 %v652, 0.0
      %v761 = vmax.f32 %v653, 0.0
      %v762 = vmax.f32 %v654, 0.0
      %v763 = vmax.f32 %v655, 0.0
      %v764 = vmax.f32 %v656, 0.0
      %v765 = vmax.f32 %v657, 0.0
      %v766 = vmax.f32 %v658, 0.0
      %v767 = vmax.f32 %v659, 0.0
      %vm768 = vcmask 64512
      %769 = vst.msk [vmem:[#allocation2] sm:$0xff] %vm768, %v660
      %770 = vst.msk [vmem:[#allocation2 + $0x8] sm:$0xff] %vm768, %v661
      %vm771 = vcmask 58368
      %772 = vst.msk [vmem:[#allocation2 + $0x10] sm:$0x3] %vm771, %v662
      %773 = vst.msk [vmem:[#allocation2 + $0x18] sm:$0xff] %vm768, %v663
      %774 = vst.msk [vmem:[#allocation2 + $0x20] sm:$0xff] %vm768, %v664
      %775 = vst.msk [vmem:[#allocation2 + $0x28] sm:$0x3] %vm771, %v665
      %776 = vst.msk [vmem:[#allocation2 + $0x30] sm:$0xff] %vm768, %v666
      %777 = vst.msk [vmem:[#allocation2 + $0x38] sm:$0xff] %vm768, %v667
      %778 = vst.msk [vmem:[#allocation2 + $0x40] sm:$0x3] %vm771, %v668
      %779 = vst.msk [vmem:[#allocation2 + $0x48] sm:$0xff] %vm768, %v669
      %780 = vst.msk [vmem:[#allocation2 + $0x50] sm:$0xff] %vm768, %v670
      %781 = vst.msk [vmem:[#allocation2 + $0x58] sm:$0x3] %vm771, %v671
      %782 = vst.msk [vmem:[#allocation2 + $0x60] sm:$0xff] %vm768, %v672
      %783 = vst.msk [vmem:[#allocation2 + $0x68] sm:$0xff] %vm768, %v673
      %784 = vst.msk [vmem:[#allocation2 + $0x70] sm:$0x3] %vm771, %v674
      %785 = vst.msk [vmem:[#allocation2 + $0x78] sm:$0xff] %vm768, %v675
      %786 = vst.msk [vmem:[#allocation2 + $0x80] sm:$0xff] %vm768, %v676
      %787 = vst.msk [vmem:[#allocation2 + $0x88] sm:$0x3] %vm771, %v677
      %788 = vst.msk [vmem:[#allocation2 + $0x90] sm:$0xff] %vm768, %v678
      %789 = vst.msk [vmem:[#allocation2 + $0x98] sm:$0xff] %vm768, %v679
      %790 = vst.msk [vmem:[#allocation2 + $0xa0] sm:$0x3] %vm771, %v680
      %791 = vst.msk [vmem:[#allocation2 + $0xa8] sm:$0xff] %vm768, %v681
      %792 = vst.msk [vmem:[#allocation2 + $0xb0] sm:$0xff] %vm768, %v682
      %793 = vst.msk [vmem:[#allocation2 + $0xb8] sm:$0x3] %vm771, %v683
      %794 = vst.msk [vmem:[#allocation2 + $0xc0] sm:$0xff] %vm768, %v684
      %795 = vst.msk [vmem:[#allocation2 + $0xc8] sm:$0xff] %vm768, %v685
      %796 = vst.msk [vmem:[#allocation2 + $0xd0] sm:$0x3] %vm771, %v686
      %797 = vst.msk [vmem:[#allocation2 + $0xd8] sm:$0xff] %vm768, %v687
      %798 = vst.msk [vmem:[#allocation2 + $0xe0] sm:$0xff] %vm768, %v688
      %799 = vst.msk [vmem:[#allocation2 + $0xe8] sm:$0x3] %vm771, %v689
      %800 = vst.msk [vmem:[#allocation2 + $0xf0] sm:$0xff] %vm768, %v690
      %801 = vst.msk [vmem:[#allocation2 + $0xf8] sm:$0xff] %vm768, %v691
      %802 = vst.msk [vmem:[#allocation2 + $0x100] sm:$0x3] %vm771, %v692
      %803 = vst.msk [vmem:[#allocation2 + $0x108] sm:$0xff] %vm768, %v693
      %804 = vst.msk [vmem:[#allocation2 + $0x110] sm:$0xff] %vm768, %v694
      %805 = vst.msk [vmem:[#allocation2 + $0x118] sm:$0x3] %vm771, %v695
      %806 = vst.msk [vmem:[#allocation2 + $0x120] sm:$0xff] %vm768, %v696
      %807 = vst.msk [vmem:[#allocation2 + $0x128] sm:$0xff] %vm768, %v697
      %808 = vst.msk [vmem:[#allocation2 + $0x130] sm:$0x3] %vm771, %v698
      %809 = vst.msk [vmem:[#allocation2 + $0x138] sm:$0xff] %vm768, %v699
      %810 = vst.msk [vmem:[#allocation2 + $0x140] sm:$0xff] %vm768, %v700
      %811 = vst.msk [vmem:[#allocation2 + $0x148] sm:$0x3] %vm771, %v701
      %812 = vst.msk [vmem:[#allocation2 + $0x150] sm:$0xff] %vm768, %v702
      %813 = vst.msk [vmem:[#allocation2 + $0x158] sm:$0xff] %vm768, %v703
      %814 = vst.msk [vmem:[#allocation2 + $0x160] sm:$0x3] %vm771, %v704
      %815 = vst.msk [vmem:[#allocation2 + $0x168] sm:$0xff] %vm768, %v705
      %816 = vst.msk [vmem:[#allocation2 + $0x170] sm:$0xff] %vm768, %v706
      %817 = vst.msk [vmem:[#allocation2 + $0x178] sm:$0x3] %vm771, %v707
      %818 = vst.msk [vmem:[#allocation2 + $0x180] sm:$0xff] %vm768, %v708
      %819 = vst.msk [vmem:[#allocation2 + $0x188] sm:$0xff] %vm768, %v709
      %820 = vst.msk [vmem:[#allocation2 + $0x190] sm:$0x3] %vm771, %v710
      %821 = vst.msk [vmem:[#allocation2 + $0x198] sm:$0xff] %vm768, %v711
      %822 = vst.msk [vmem:[#allocation2 + $0x1a0] sm:$0xff] %vm768, %v712
      %823 = vst.msk [vmem:[#allocation2 + $0x1a8] sm:$0x3] %vm771, %v713
      %824 = vst.msk [vmem:[#allocation2 + $0x1b0] sm:$0xff] %vm768, %v714
      %825 = vst.msk [vmem:[#allocation2 + $0x1b8] sm:$0xff] %vm768, %v715
      %826 = vst.msk [vmem:[#allocation2 + $0x1c0] sm:$0x3] %vm771, %v716
      %827 = vst.msk [vmem:[#allocation2 + $0x1c8] sm:$0xff] %vm768, %v717
      %828 = vst.msk [vmem:[#allocation2 + $0x1d0] sm:$0xff] %vm768, %v718
      %829 = vst.msk [vmem:[#allocation2 + $0x1d8] sm:$0x3] %vm771, %v719
      %830 = vst.msk [vmem:[#allocation2 + $0x1e0] sm:$0xff] %vm768, %v720
      %831 = vst.msk [vmem:[#allocation2 + $0x1e8] sm:$0xff] %vm768, %v721
      %832 = vst.msk [vmem:[#allocation2 + $0x1f0] sm:$0x3] %vm771, %v722
      %833 = vst.msk [vmem:[#allocation2 + $0x1f8] sm:$0xff] %vm768, %v723
      %834 = vst.msk [vmem:[#allocation2 + $0x200] sm:$0xff] %vm768, %v724
      %835 = vst.msk [vmem:[#allocation2 + $0x208] sm:$0x3] %vm771, %v725
      %836 = vst.msk [vmem:[#allocation2 + $0x210] sm:$0xff] %vm768, %v726
      %837 = vst.msk [vmem:[#allocation2 + $0x218] sm:$0xff] %vm768, %v727
      %838 = vst.msk [vmem:[#allocation2 + $0x220] sm:$0x3] %vm771, %v728
      %839 = vst.msk [vmem:[#allocation2 + $0x228] sm:$0xff] %vm768, %v729
      %840 = vst.msk [vmem:[#allocation2 + $0x230] sm:$0xff] %vm768, %v730
      %841 = vst.msk [vmem:[#allocation2 + $0x238] sm:$0x3] %vm771, %v731
      %842 = vst.msk [vmem:[#allocation2 + $0x240] sm:$0xff] %vm768, %v732
      %843 = vst.msk [vmem:[#allocation2 + $0x248] sm:$0xff] %vm768, %v733
      %844 = vst.msk [vmem:[#allocation2 + $0x250] sm:$0x3] %vm771, %v734
      %845 = vst.msk [vmem:[#allocation2 + $0x258] sm:$0xff] %vm768, %v735
      %846 = vst.msk [vmem:[#allocation2 + $0x260] sm:$0xff] %vm768, %v736
      %847 = vst.msk [vmem:[#allocation2 + $0x268] sm:$0x3] %vm771, %v737
      %848 = vst.msk [vmem:[#allocation2 + $0x270] sm:$0xff] %vm768, %v738
      %849 = vst.msk [vmem:[#allocation2 + $0x278] sm:$0xff] %vm768, %v739
      %850 = vst.msk [vmem:[#allocation2 + $0x280] sm:$0x3] %vm771, %v740
      %851 = vst.msk [vmem:[#allocation2 + $0x288] sm:$0xff] %vm768, %v741
      %852 = vst.msk [vmem:[#allocation2 + $0x290] sm:$0xff] %vm768, %v742
      %853 = vst.msk [vmem:[#allocation2 + $0x298] sm:$0x3] %vm771, %v743
      %854 = vst.msk [vmem:[#allocation2 + $0x2a0] sm:$0xff] %vm768, %v744
      %855 = vst.msk [vmem:[#allocation2 + $0x2a8] sm:$0xff] %vm768, %v745
      %856 = vst.msk [vmem:[#allocation2 + $0x2b0] sm:$0x3] %vm771, %v746
      %857 = vst.msk [vmem:[#allocation2 + $0x2b8] sm:$0xff] %vm768, %v747
      %858 = vst.msk [vmem:[#allocation2 + $0x2c0] sm:$0xff] %vm768, %v748
      %859 = vst.msk [vmem:[#allocation2 + $0x2c8] sm:$0x3] %vm771, %v749
      %860 = vst.msk [vmem:[#allocation2 + $0x2d0] sm:$0xff] %vm768, %v750
      %861 = vst.msk [vmem:[#allocation2 + $0x2d8] sm:$0xff] %vm768, %v751
      %862 = vst.msk [vmem:[#allocation2 + $0x2e0] sm:$0x3] %vm771, %v752
      %863 = vst.msk [vmem:[#allocation2 + $0x2e8] sm:$0xff] %vm768, %v753
      %864 = vst.msk [vmem:[#allocation2 + $0x2f0] sm:$0xff] %vm768, %v754
      %865 = vst.msk [vmem:[#allocation2 + $0x2f8] sm:$0x3] %vm771, %v755
      %866 = vst.msk [vmem:[#allocation2 + $0x300] sm:$0xff] %vm768, %v756
      %867 = vst.msk [vmem:[#allocation2 + $0x308] sm:$0xff] %vm768, %v757
      %868 = vst.msk [vmem:[#allocation2 + $0x310] sm:$0x3] %vm771, %v758
      %869 = vst.msk [vmem:[#allocation2 + $0x318] sm:$0xff] %vm768, %v759
      %870 = vst.msk [vmem:[#allocation2 + $0x320] sm:$0xff] %vm768, %v760
      %871 = vst.msk [vmem:[#allocation2 + $0x328] sm:$0x3] %vm771, %v761
      %872 = vst.msk [vmem:[#allocation2 + $0x330] sm:$0xff] %vm768, %v762
      %873 = vst.msk [vmem:[#allocation2 + $0x338] sm:$0xff] %vm768, %v763
      %874 = vst.msk [vmem:[#allocation2 + $0x340] sm:$0x3] %vm771, %v764
      %875 = vst.msk [vmem:[#allocation2 + $0x348] sm:$0xff] %vm768, %v765
      %876 = vst.msk [vmem:[#allocation2 + $0x350] sm:$0xff] %vm768, %v766
      %877 = vst.msk [vmem:[#allocation2 + $0x358] sm:$0x3] %vm771, %v767
      %v878 = vld [vmem:[%s512] sm:$0x7]
      %v879 = vld [vmem:[%s512 + $0x4] sm:$0x7]
      %v880 = vld [vmem:[%s512 + $0x8] sm:$0x7]
      %v881 = vld [vmem:[#allocation2] sm:$0xff]
      %v882 = vld [vmem:[#allocation2 + $0x8] sm:$0xff]
      %v883 = vld [vmem:[#allocation2 + $0x18] sm:$0xff]
      %v884 = vld [vmem:[#allocation2 + $0x20] sm:$0xff]
      %v885 = vld [vmem:[#allocation2 + $0x30] sm:$0xff]
      %v886 = vld [vmem:[#allocation2 + $0x38] sm:$0xff]
      %v887 = vld [vmem:[#allocation2 + $0x48] sm:$0xff]
      %v888 = vld [vmem:[#allocation2 + $0x50] sm:$0xff]
      %v889 = vld [vmem:[#allocation2 + $0x60] sm:$0xff]
      %v890 = vld [vmem:[#allocation2 + $0x68] sm:$0xff]
      %v891 = vld [vmem:[#allocation2 + $0x78] sm:$0xff]
      %v892 = vld [vmem:[#allocation2 + $0x80] sm:$0xff]
      %v893 = vld [vmem:[#allocation2 + $0x90] sm:$0xff]
      %v894 = vld [vmem:[#allocation2 + $0x98] sm:$0xff]
      %v895 = vld [vmem:[#allocation2 + $0xa8] sm:$0xff]
      %v896 = vld [vmem:[#allocation2 + $0xb0] sm:$0xff]
      %v897 = vld [vmem:[#allocation2 + $0xc0] sm:$0xff]
      %v898 = vld [vmem:[#allocation2 + $0xc8] sm:$0xff]
      %v899 = vld [vmem:[#allocation2 + $0xd8] sm:$0xff]
      %v900 = vld [vmem:[#allocation2 + $0xe0] sm:$0xff]
      %v901 = vld [vmem:[#allocation2 + $0xf0] sm:$0xff]
      %v902 = vld [vmem:[#allocation2 + $0xf8] sm:$0xff]
      %v903 = vld [vmem:[#allocation2 + $0x108] sm:$0xff]
      %v904 = vld [vmem:[#allocation2 + $0x110] sm:$0xff]
      %v905 = vld [vmem:[#allocation2 + $0x120] sm:$0xff]
      %v906 = vld [vmem:[#allocation2 + $0x128] sm:$0xff]
      %v907 = vld [vmem:[#allocation2 + $0x138] sm:$0xff]
      %v908 = vld [vmem:[#allocation2 + $0x140] sm:$0xff]
      %v909 = vld [vmem:[#allocation2 + $0x150] sm:$0xff]
      %v910 = vld [vmem:[#allocation2 + $0x158] sm:$0xff]
      %v911 = vld [vmem:[#allocation2 + $0x168] sm:$0xff]
      %v912 = vld [vmem:[#allocation2 + $0x170] sm:$0xff]
      %v913 = vld [vmem:[#allocation2 + $0x1b0] sm:$0xff]
      %v914 = vld [vmem:[#allocation2 + $0x1b8] sm:$0xff]
      %v915 = vld [vmem:[#allocation2 + $0x1c8] sm:$0xff]
      %v916 = vld [vmem:[#allocation2 + $0x1d0] sm:$0xff]
      %v917 = vld [vmem:[#allocation2 + $0x1e0] sm:$0xff]
      %v918 = vld [vmem:[#allocation2 + $0x1e8] sm:$0xff]
      %v919 = vld [vmem:[#allocation2 + $0x1f8] sm:$0xff]
      %v920 = vld [vmem:[#allocation2 + $0x200] sm:$0xff]
      %v921 = vld [vmem:[#allocation2 + $0x210] sm:$0xff]
      %v922 = vld [vmem:[#allocation2 + $0x218] sm:$0xff]
      %v923 = vld [vmem:[#allocation2 + $0x228] sm:$0xff]
      %v924 = vld [vmem:[#allocation2 + $0x230] sm:$0xff]
      %v925 = vld [vmem:[#allocation2 + $0x240] sm:$0xff]
      %v926 = vld [vmem:[#allocation2 + $0x248] sm:$0xff]
      %v927 = vld [vmem:[#allocation2 + $0x258] sm:$0xff]
      %v928 = vld [vmem:[#allocation2 + $0x260] sm:$0xff]
      %v929 = vld [vmem:[#allocation2 + $0x270] sm:$0xff]
      %v930 = vld [vmem:[#allocation2 + $0x278] sm:$0xff]
      %v931 = vld [vmem:[#allocation2 + $0x288] sm:$0xff]
      %v932 = vld [vmem:[#allocation2 + $0x290] sm:$0xff]
      %v933 = vld [vmem:[#allocation2 + $0x2a0] sm:$0xff]
      %v934 = vld [vmem:[#allocation2 + $0x2a8] sm:$0xff]
      %v935 = vld [vmem:[#allocation2 + $0x2b8] sm:$0xff]
      %v936 = vld [vmem:[#allocation2 + $0x2c0] sm:$0xff]
      %v937 = vld [vmem:[#allocation2 + $0x2d0] sm:$0xff]
      %v938 = vld [vmem:[#allocation2 + $0x2d8] sm:$0xff]
      %v939 = vld [vmem:[#allocation2 + $0x2e8] sm:$0xff]
      %v940 = vld [vmem:[#allocation2 + $0x2f0] sm:$0xff]
      %v941 = vld [vmem:[#allocation2 + $0x300] sm:$0xff]
      %v942 = vld [vmem:[#allocation2 + $0x308] sm:$0xff]
      %v943 = vld [vmem:[#allocation2 + $0x318] sm:$0xff]
      %v944 = vld [vmem:[#allocation2 + $0x320] sm:$0xff]
      %v945 = vperm.slane %v878, 0
      %v946 = vmul.f32 %v881, %v945
      %v947 = vmul.f32 %v882, %v945
      %v948 = vmul.f32 %v883, %v945
      %v949 = vmul.f32 %v884, %v945
      %v950 = vmul.f32 %v885, %v945
      %v951 = vmul.f32 %v886, %v945
      %v952 = vmul.f32 %v887, %v945
      %v953 = vmul.f32 %v888, %v945
      %v954 = vmul.f32 %v889, %v945
      %v955 = vmul.f32 %v890, %v945
      %v956 = vmul.f32 %v891, %v945
      %v957 = vmul.f32 %v892, %v945
      %v958 = vmul.f32 %v893, %v945
      %v959 = vmul.f32 %v894, %v945
      %v960 = vmul.f32 %v895, %v945
      %v961 = vmul.f32 %v896, %v945
      %v962 = vmul.f32 %v897, %v945
      %v963 = vmul.f32 %v898, %v945
      %v964 = vmul.f32 %v899, %v945
      %v965 = vmul.f32 %v900, %v945
      %v966 = vmul.f32 %v901, %v945
      %v967 = vmul.f32 %v902, %v945
      %v968 = vmul.f32 %v903, %v945
      %v969 = vmul.f32 %v904, %v945
      %v970 = vmul.f32 %v905, %v945
      %v971 = vmul.f32 %v906, %v945
      %v972 = vmul.f32 %v907, %v945
      %v973 = vmul.f32 %v908, %v945
      %v974 = vmul.f32 %v909, %v945
      %v975 = vmul.f32 %v910, %v945
      %v976 = vmul.f32 %v911, %v945
      %v977 = vmul.f32 %v912, %v945
      %v978 = vmul.f32 %v913, %v945
      %v979 = vmul.f32 %v914, %v945
      %v980 = vmul.f32 %v915, %v945
      %v981 = vmul.f32 %v916, %v945
      %v982 = vmul.f32 %v917, %v945
      %v983 = vmul.f32 %v918, %v945
      %v984 = vmul.f32 %v919, %v945
      %v985 = vmul.f32 %v920, %v945
      %v986 = vmul.f32 %v921, %v945
      %v987 = vmul.f32 %v922, %v945
      %v988 = vmul.f32 %v923, %v945
      %v989 = vmul.f32 %v924, %v945
      %v990 = vmul.f32 %v925, %v945
      %v991 = vmul.f32 %v926, %v945
      %v992 = vmul.f32 %v927, %v945
      %v993 = vmul.f32 %v928, %v945
      %v994 = vmul.f32 %v929, %v945
      %v995 = vmul.f32 %v930, %v945
      %v996 = vmul.f32 %v931, %v945
      %v997 = vmul.f32 %v932, %v945
      %v998 = vmul.f32 %v933, %v945
      %v999 = vmul.f32 %v934, %v945
      %v1000 = vmul.f32 %v935, %v945
      %v1001 = vmul.f32 %v936, %v945
      %v1002 = vmul.f32 %v937, %v945
      %v1003 = vmul.f32 %v938, %v945
      %v1004 = vmul.f32 %v939, %v945
      %v1005 = vmul.f32 %v940, %v945
      %v1006 = vmul.f32 %v941, %v945
      %v1007 = vmul.f32 %v942, %v945
      %v1008 = vmul.f32 %v943, %v945
      %v1009 = vmul.f32 %v944, %v945
      %v1010 = vadd.f32 %v946, 0.0
      %v1011 = vadd.f32 %v947, 0.0
      %v1012 = vadd.f32 %v948, 0.0
      %v1013 = vadd.f32 %v949, 0.0
      %v1014 = vadd.f32 %v950, 0.0
      %v1015 = vadd.f32 %v951, 0.0
      %v1016 = vadd.f32 %v952, 0.0
      %v1017 = vadd.f32 %v953, 0.0
      %v1018 = vadd.f32 %v954, 0.0
      %v1019 = vadd.f32 %v955, 0.0
      %v1020 = vadd.f32 %v956, 0.0
      %v1021 = vadd.f32 %v957, 0.0
      %v1022 = vadd.f32 %v958, 0.0
      %v1023 = vadd.f32 %v959, 0.0
      %v1024 = vadd.f32 %v960, 0.0
      %v1025 = vadd.f32 %v961, 0.0
      %v1026 = vadd.f32 %v962, 0.0
      %v1027 = vadd.f32 %v963, 0.0
      %v1028 = vadd.f32 %v964, 0.0
      %v1029 = vadd.f32 %v965, 0.0
      %v1030 = vadd.f32 %v966, 0.0
      %v1031 = vadd.f32 %v967, 0.0
      %v1032 = vadd.f32 %v968, 0.0
      %v1033 = vadd.f32 %v969, 0.0
      %v1034 = vadd.f32 %v970, 0.0
      %v1035 = vadd.f32 %v971, 0.0
      %v1036 = vadd.f32 %v972, 0.0
      %v1037 = vadd.f32 %v973, 0.0
      %v1038 = vadd.f32 %v974, 0.0
      %v1039 = vadd.f32 %v975, 0.0
      %v1040 = vadd.f32 %v976, 0.0
      %v1041 = vadd.f32 %v977, 0.0
      %v1042 = vadd.f32 %v978, 0.0
      %v1043 = vadd.f32 %v979, 0.0
      %v1044 = vadd.f32 %v980, 0.0
      %v1045 = vadd.f32 %v981, 0.0
      %v1046 = vadd.f32 %v982, 0.0
      %v1047 = vadd.f32 %v983, 0.0
      %v1048 = vadd.f32 %v984, 0.0
      %v1049 = vadd.f32 %v985, 0.0
      %v1050 = vadd.f32 %v986, 0.0
      %v1051 = vadd.f32 %v987, 0.0
      %v1052 = vadd.f32 %v988, 0.0
      %v1053 = vadd.f32 %v989, 0.0
      %v1054 = vadd.f32 %v990, 0.0
      %v1055 = vadd.f32 %v991, 0.0
      %v1056 = vadd.f32 %v992, 0.0
      %v1057 = vadd.f32 %v993, 0.0
      %v1058 = vadd.f32 %v994, 0.0
      %v1059 = vadd.f32 %v995, 0.0
      %v1060 = vadd.f32 %v996, 0.0
      %v1061 = vadd.f32 %v997, 0.0
      %v1062 = vadd.f32 %v998, 0.0
      %v1063 = vadd.f32 %v999, 0.0
      %v1064 = vadd.f32 %v1000, 0.0
      %v1065 = vadd.f32 %v1001, 0.0
      %v1066 = vadd.f32 %v1002, 0.0
      %v1067 = vadd.f32 %v1003, 0.0
      %v1068 = vadd.f32 %v1004, 0.0
      %v1069 = vadd.f32 %v1005, 0.0
      %v1070 = vadd.f32 %v1006, 0.0
      %v1071 = vadd.f32 %v1007, 0.0
      %v1072 = vadd.f32 %v1008, 0.0
      %v1073 = vadd.f32 %v1009, 0.0
      %v1074 = vld [vmem:[#allocation2 + $0x1] sm:$0xff]
      %v1075 = vld [vmem:[#allocation2 + $0x9] sm:$0xff]
      %v1076 = vld [vmem:[#allocation2 + $0x19] sm:$0xff]
      %v1077 = vld [vmem:[#allocation2 + $0x21] sm:$0xff]
      %v1078 = vld [vmem:[#allocation2 + $0x31] sm:$0xff]
      %v1079 = vld [vmem:[#allocation2 + $0x39] sm:$0xff]
      %v1080 = vld [vmem:[#allocation2 + $0x49] sm:$0xff]
      %v1081 = vld [vmem:[#allocation2 + $0x51] sm:$0xff]
      %v1082 = vld [vmem:[#allocation2 + $0x61] sm:$0xff]
      %v1083 = vld [vmem:[#allocation2 + $0x69] sm:$0xff]
      %v1084 = vld [vmem:[#allocation2 + $0x79] sm:$0xff]
      %v1085 = vld [vmem:[#allocation2 + $0x81] sm:$0xff]
      %v1086 = vld [vmem:[#allocation2 + $0x91] sm:$0xff]
      %v1087 = vld [vmem:[#allocation2 + $0x99] sm:$0xff]
      %v1088 = vld [vmem:[#allocation2 + $0xa9] sm:$0xff]
      %v1089 = vld [vmem:[#allocation2 + $0xb1] sm:$0xff]
      %v1090 = vld [vmem:[#allocation2 + $0xc1] sm:$0xff]
      %v1091 = vld [vmem:[#allocation2 + $0xc9] sm:$0xff]
      %v1092 = vld [vmem:[#allocation2 + $0xd9] sm:$0xff]
      %v1093 = vld [vmem:[#allocation2 + $0xe1] sm:$0xff]
      %v1094 = vld [vmem:[#allocation2 + $0xf1] sm:$0xff]
      %v1095 = vld [vmem:[#allocation2 + $0xf9] sm:$0xff]
      %v1096 = vld [vmem:[#allocation2 + $0x109] sm:$0xff]
      %v1097 = vld [vmem:[#allocation2 + $0x111] sm:$0xff]
      %v1098 = vld [vmem:[#allocation2 + $0x121] sm:$0xff]
      %v1099 = vld [vmem:[#allocation2 + $0x129] sm:$0xff]
      %v1100 = vld [vmem:[#allocation2 + $0x139] sm:$0xff]
      %v1101 = vld [vmem:[#allocation2 + $0x141] sm:$0xff]
      %v1102 = vld [vmem:[#allocation2 + $0x151] sm:$0xff]
      %v1103 = vld [vmem:[#allocation2 + $0x159] sm:$0xff]
      %v1104 = vld [vmem:[#allocation2 + $0x169] sm:$0xff]
      %v1105 = vld [vmem:[#allocation2 + $0x171] sm:$0xff]
      %v1106 = vld [vmem:[#allocation2 + $0x1b1] sm:$0xff]
      %v1107 = vld [vmem:[#allocation2 + $0x1b9] sm:$0xff]
      %v1108 = vld [vmem:[#allocation2 + $0x1c9] sm:$0xff]
      %v1109 = vld [vmem:[#allocation2 + $0x1d1] sm:$0xff]
      %v1110 = vld [vmem:[#allocation2 + $0x1e1] sm:$0xff]
      %v1111 = vld [vmem:[#allocation2 + $0x1e9] sm:$0xff]
      %v1112 = vld [vmem:[#allocation2 + $0x1f9] sm:$0xff]
      %v1113 = vld [vmem:[#allocation2 + $0x201] sm:$0xff]
      %v1114 = vld [vmem:[#allocation2 + $0x211] sm:$0xff]
      %v1115 = vld [vmem:[#allocation2 + $0x219] sm:$0xff]
      %v1116 = vld [vmem:[#allocation2 + $0x229] sm:$0xff]
      %v1117 = vld [vmem:[#allocation2 + $0x231] sm:$0xff]
      %v1118 = vld [vmem:[#allocation2 + $0x241] sm:$0xff]
      %v1119 = vld [vmem:[#allocation2 + $0x249] sm:$0xff]
      %v1120 = vld [vmem:[#allocation2 + $0x259] sm:$0xff]
      %v1121 = vld [vmem:[#allocation2 + $0x261] sm:$0xff]
      %v1122 = vld [vmem:[#allocation2 + $0x271] sm:$0xff]
      %v1123 = vld [vmem:[#allocation2 + $0x279] sm:$0xff]
      %v1124 = vld [vmem:[#allocation2 + $0x289] sm:$0xff]
      %v1125 = vld [vmem:[#allocation2 + $0x291] sm:$0xff]
      %v1126 = vld [vmem:[#allocation2 + $0x2a1] sm:$0xff]
      %v1127 = vld [vmem:[#allocation2 + $0x2a9] sm:$0xff]
      %v1128 = vld [vmem:[#allocation2 + $0x2b9] sm:$0xff]
      %v1129 = vld [vmem:[#allocation2 + $0x2c1] sm:$0xff]
      %v1130 = vld [vmem:[#allocation2 + $0x2d1] sm:$0xff]
      %v1131 = vld [vmem:[#allocation2 + $0x2d9] sm:$0xff]
      %v1132 = vld [vmem:[#allocation2 + $0x2e9] sm:$0xff]
      %v1133 = vld [vmem:[#allocation2 + $0x2f1] sm:$0xff]
      %v1134 = vld [vmem:[#allocation2 + $0x301] sm:$0xff]
      %v1135 = vld [vmem:[#allocation2 + $0x309] sm:$0xff]
      %v1136 = vld [vmem:[#allocation2 + $0x319] sm:$0xff]
      %v1137 = vld [vmem:[#allocation2 + $0x321] sm:$0xff]
      %v1138 = vperm.slane %v878, 1
      %v1139 = vmul.f32 %v1074, %v1138
      %v1140 = vmul.f32 %v1075, %v1138
      %v1141 = vmul.f32 %v1076, %v1138
      %v1142 = vmul.f32 %v1077, %v1138
      %v1143 = vmul.f32 %v1078, %v1138
      %v1144 = vmul.f32 %v1079, %v1138
      %v1145 = vmul.f32 %v1080, %v1138
      %v1146 = vmul.f32 %v1081, %v1138
      %v1147 = vmul.f32 %v1082, %v1138
      %v1148 = vmul.f32 %v1083, %v1138
      %v1149 = vmul.f32 %v1084, %v1138
      %v1150 = vmul.f32 %v1085, %v1138
      %v1151 = vmul.f32 %v1086, %v1138
      %v1152 = vmul.f32 %v1087, %v1138
      %v1153 = vmul.f32 %v1088, %v1138
      %v1154 = vmul.f32 %v1089, %v1138
      %v1155 = vmul.f32 %v1090, %v1138
      %v1156 = vmul.f32 %v1091, %v1138
      %v1157 = vmul.f32 %v1092, %v1138
      %v1158 = vmul.f32 %v1093, %v1138
      %v1159 = vmul.f32 %v1094, %v1138
      %v1160 = vmul.f32 %v1095, %v1138
      %v1161 = vmul.f32 %v1096, %v1138
      %v1162 = vmul.f32 %v1097, %v1138
      %v1163 = vmul.f32 %v1098, %v1138
      %v1164 = vmul.f32 %v1099, %v1138
      %v1165 = vmul.f32 %v1100, %v1138
      %v1166 = vmul.f32 %v1101, %v1138
      %v1167 = vmul.f32 %v1102, %v1138
      %v1168 = vmul.f32 %v1103, %v1138
      %v1169 = vmul.f32 %v1104, %v1138
      %v1170 = vmul.f32 %v1105, %v1138
      %v1171 = vmul.f32 %v1106, %v1138
      %v1172 = vmul.f32 %v1107, %v1138
      %v1173 = vmul.f32 %v1108, %v1138
      %v1174 = vmul.f32 %v1109, %v1138
      %v1175 = vmul.f32 %v1110, %v1138
      %v1176 = vmul.f32 %v1111, %v1138
      %v1177 = vmul.f32 %v1112, %v1138
      %v1178 = vmul.f32 %v1113, %v1138
      %v1179 = vmul.f32 %v1114, %v1138
      %v1180 = vmul.f32 %v1115, %v1138
      %v1181 = vmul.f32 %v1116, %v1138
      %v1182 = vmul.f32 %v1117, %v1138
      %v1183 = vmul.f32 %v1118, %v1138
      %v1184 = vmul.f32 %v1119, %v1138
      %v1185 = vmul.f32 %v1120, %v1138
      %v1186 = vmul.f32 %v1121, %v1138
      %v1187 = vmul.f32 %v1122, %v1138
      %v1188 = vmul.f32 %v1123, %v1138
      %v1189 = vmul.f32 %v1124, %v1138
      %v1190 = vmul.f32 %v1125, %v1138
      %v1191 = vmul.f32 %v1126, %v1138
      %v1192 = vmul.f32 %v1127, %v1138
      %v1193 = vmul.f32 %v1128, %v1138
      %v1194 = vmul.f32 %v1129, %v1138
      %v1195 = vmul.f32 %v1130, %v1138
      %v1196 = vmul.f32 %v1131, %v1138
      %v1197 = vmul.f32 %v1132, %v1138
      %v1198 = vmul.f32 %v1133, %v1138
      %v1199 = vmul.f32 %v1134, %v1138
      %v1200 = vmul.f32 %v1135, %v1138
      %v1201 = vmul.f32 %v1136, %v1138
      %v1202 = vmul.f32 %v1137, %v1138
      %v1203 = vadd.f32 %v1010, %v1139
      %v1204 = vadd.f32 %v1011, %v1140
      %v1205 = vadd.f32 %v1012, %v1141
      %v1206 = vadd.f32 %v1013, %v1142
      %v1207 = vadd.f32 %v1014, %v1143
      %v1208 = vadd.f32 %v1015, %v1144
      %v1209 = vadd.f32 %v1016, %v1145
      %v1210 = vadd.f32 %v1017, %v1146
      %v1211 = vadd.f32 %v1018, %v1147
      %v1212 = vadd.f32 %v1019, %v1148
      %v1213 = vadd.f32 %v1020, %v1149
      %v1214 = vadd.f32 %v1021, %v1150
      %v1215 = vadd.f32 %v1022, %v1151
      %v1216 = vadd.f32 %v1023, %v1152
      %v1217 = vadd.f32 %v1024, %v1153
      %v1218 = vadd.f32 %v1025, %v1154
      %v1219 = vadd.f32 %v1026, %v1155
      %v1220 = vadd.f32 %v1027, %v1156
      %v1221 = vadd.f32 %v1028, %v1157
      %v1222 = vadd.f32 %v1029, %v1158
      %v1223 = vadd.f32 %v1030, %v1159
      %v1224 = vadd.f32 %v1031, %v1160
      %v1225 = vadd.f32 %v1032, %v1161
      %v1226 = vadd.f32 %v1033, %v1162
      %v1227 = vadd.f32 %v1034, %v1163
      %v1228 = vadd.f32 %v1035, %v1164
      %v1229 = vadd.f32 %v1036, %v1165
      %v1230 = vadd.f32 %v1037, %v1166
      %v1231 = vadd.f32 %v1038, %v1167
      %v1232 = vadd.f32 %v1039, %v1168
      %v1233 = vadd.f32 %v1040, %v1169
      %v1234 = vadd.f32 %v1041, %v1170
      %v1235 = vadd.f32 %v1042, %v1171
      %v1236 = vadd.f32 %v1043, %v1172
      %v1237 = vadd.f32 %v1044, %v1173
      %v1238 = vadd.f32 %v1045, %v1174
      %v1239 = vadd.f32 %v1046, %v1175
      %v1240 = vadd.f32 %v1047, %v1176
      %v1241 = vadd.f32 %v1048, %v1177
      %v1242 = vadd.f32 %v1049, %v1178
      %v1243 = vadd.f32 %v1050, %v1179
      %v1244 = vadd.f32 %v1051, %v1180
      %v1245 = vadd.f32 %v1052, %v1181
      %v1246 = vadd.f32 %v1053, %v1182
      %v1247 = vadd.f32 %v1054, %v1183
      %v1248 = vadd.f32 %v1055, %v1184
      %v1249 = vadd.f32 %v1056, %v1185
      %v1250 = vadd.f32 %v1057, %v1186
      %v1251 = vadd.f32 %v1058, %v1187
      %v1252 = vadd.f32 %v1059, %v1188
      %v1253 = vadd.f32 %v1060, %v1189
      %v1254 = vadd.f32 %v1061, %v1190
      %v1255 = vadd.f32 %v1062, %v1191
      %v1256 = vadd.f32 %v1063, %v1192
      %v1257 = vadd.f32 %v1064, %v1193
      %v1258 = vadd.f32 %v1065, %v1194
      %v1259 = vadd.f32 %v1066, %v1195
      %v1260 = vadd.f32 %v1067, %v1196
      %v1261 = vadd.f32 %v1068, %v1197
      %v1262 = vadd.f32 %v1069, %v1198
      %v1263 = vadd.f32 %v1070, %v1199
      %v1264 = vadd.f32 %v1071, %v1200
      %v1265 = vadd.f32 %v1072, %v1201
      %v1266 = vadd.f32 %v1073, %v1202
      %v1267 = vld [vmem:[#allocation2 + $0x2] sm:$0xff]
      %v1268 = vld [vmem:[#allocation2 + $0xa] sm:$0xff]
      %v1269 = vld [vmem:[#allocation2 + $0x1a] sm:$0xff]
      %v1270 = vld [vmem:[#allocation2 + $0x22] sm:$0xff]
      %v1271 = vld [vmem:[#allocation2 + $0x32] sm:$0xff]
      %v1272 = vld [vmem:[#allocation2 + $0x3a] sm:$0xff]
      %v1273 = vld [vmem:[#allocation2 + $0x4a] sm:$0xff]
      %v1274 = vld [vmem:[#allocation2 + $0x52] sm:$0xff]
      %v1275 = vld [vmem:[#allocation2 + $0x62] sm:$0xff]
      %v1276 = vld [vmem:[#allocation2 + $0x6a] sm:$0xff]
      %v1277 = vld [vmem:[#allocation2 + $0x7a] sm:$0xff]
      %v1278 = vld [vmem:[#allocation2 + $0x82] sm:$0xff]
      %v1279 = vld [vmem:[#allocation2 + $0x92] sm:$0xff]
      %v1280 = vld [vmem:[#allocation2 + $0x9a] sm:$0xff]
      %v1281 = vld [vmem:[#allocation2 + $0xaa] sm:$0xff]
      %v1282 = vld [vmem:[#allocation2 + $0xb2] sm:$0xff]
      %v1283 = vld [vmem:[#allocation2 + $0xc2] sm:$0xff]
      %v1284 = vld [vmem:[#allocation2 + $0xca] sm:$0xff]
      %v1285 = vld [vmem:[#allocation2 + $0xda] sm:$0xff]
      %v1286 = vld [vmem:[#allocation2 + $0xe2] sm:$0xff]
      %v1287 = vld [vmem:[#allocation2 + $0xf2] sm:$0xff]
      %v1288 = vld [vmem:[#allocation2 + $0xfa] sm:$0xff]
      %v1289 = vld [vmem:[#allocation2 + $0x10a] sm:$0xff]
      %v1290 = vld [vmem:[#allocation2 + $0x112] sm:$0xff]
      %v1291 = vld [vmem:[#allocation2 + $0x122] sm:$0xff]
      %v1292 = vld [vmem:[#allocation2 + $0x12a] sm:$0xff]
      %v1293 = vld [vmem:[#allocation2 + $0x13a] sm:$0xff]
      %v1294 = vld [vmem:[#allocation2 + $0x142] sm:$0xff]
      %v1295 = vld [vmem:[#allocation2 + $0x152] sm:$0xff]
      %v1296 = vld [vmem:[#allocation2 + $0x15a] sm:$0xff]
      %v1297 = vld [vmem:[#allocation2 + $0x16a] sm:$0xff]
      %v1298 = vld [vmem:[#allocation2 + $0x172] sm:$0xff]
      %v1299 = vld [vmem:[#allocation2 + $0x1b2] sm:$0xff]
      %v1300 = vld [vmem:[#allocation2 + $0x1ba] sm:$0xff]
      %v1301 = vld [vmem:[#allocation2 + $0x1ca] sm:$0xff]
      %v1302 = vld [vmem:[#allocation2 + $0x1d2] sm:$0xff]
      %v1303 = vld [vmem:[#allocation2 + $0x1e2] sm:$0xff]
      %v1304 = vld [vmem:[#allocation2 + $0x1ea] sm:$0xff]
      %v1305 = vld [vmem:[#allocation2 + $0x1fa] sm:$0xff]
      %v1306 = vld [vmem:[#allocation2 + $0x202] sm:$0xff]
      %v1307 = vld [vmem:[#allocation2 + $0x212] sm:$0xff]
      %v1308 = vld [vmem:[#allocation2 + $0x21a] sm:$0xff]
      %v1309 = vld [vmem:[#allocation2 + $0x22a] sm:$0xff]
      %v1310 = vld [vmem:[#allocation2 + $0x232] sm:$0xff]
      %v1311 = vld [vmem:[#allocation2 + $0x242] sm:$0xff]
      %v1312 = vld [vmem:[#allocation2 + $0x24a] sm:$0xff]
      %v1313 = vld [vmem:[#allocation2 + $0x25a] sm:$0xff]
      %v1314 = vld [vmem:[#allocation2 + $0x262] sm:$0xff]
      %v1315 = vld [vmem:[#allocation2 + $0x272] sm:$0xff]
      %v1316 = vld [vmem:[#allocation2 + $0x27a] sm:$0xff]
      %v1317 = vld [vmem:[#allocation2 + $0x28a] sm:$0xff]
      %v1318 = vld [vmem:[#allocation2 + $0x292] sm:$0xff]
      %v1319 = vld [vmem:[#allocation2 + $0x2a2] sm:$0xff]
      %v1320 = vld [vmem:[#allocation2 + $0x2aa] sm:$0xff]
      %v1321 = vld [vmem:[#allocation2 + $0x2ba] sm:$0xff]
      %v1322 = vld [vmem:[#allocation2 + $0x2c2] sm:$0xff]
      %v1323 = vld [vmem:[#allocation2 + $0x2d2] sm:$0xff]
      %v1324 = vld [vmem:[#allocation2 + $0x2da] sm:$0xff]
      %v1325 = vld [vmem:[#allocation2 + $0x2ea] sm:$0xff]
      %v1326 = vld [vmem:[#allocation2 + $0x2f2] sm:$0xff]
      %v1327 = vld [vmem:[#allocation2 + $0x302] sm:$0xff]
      %v1328 = vld [vmem:[#allocation2 + $0x30a] sm:$0xff]
      %v1329 = vld [vmem:[#allocation2 + $0x31a] sm:$0xff]
      %v1330 = vld [vmem:[#allocation2 + $0x322] sm:$0xff]
      %v1331 = vperm.slane %v878, 2
      %v1332 = vmul.f32 %v1267, %v1331
      %v1333 = vmul.f32 %v1268, %v1331
      %v1334 = vmul.f32 %v1269, %v1331
      %v1335 = vmul.f32 %v1270, %v1331
      %v1336 = vmul.f32 %v1271, %v1331
      %v1337 = vmul.f32 %v1272, %v1331
      %v1338 = vmul.f32 %v1273, %v1331
      %v1339 = vmul.f32 %v1274, %v1331
      %v1340 = vmul.f32 %v1275, %v1331
      %v1341 = vmul.f32 %v1276, %v1331
      %v1342 = vmul.f32 %v1277, %v1331
      %v1343 = vmul.f32 %v1278, %v1331
      %v1344 = vmul.f32 %v1279, %v1331
      %v1345 = vmul.f32 %v1280, %v1331
      %v1346 = vmul.f32 %v1281, %v1331
      %v1347 = vmul.f32 %v1282, %v1331
      %v1348 = vmul.f32 %v1283, %v1331
      %v1349 = vmul.f32 %v1284, %v1331
      %v1350 = vmul.f32 %v1285, %v1331
      %v1351 = vmul.f32 %v1286, %v1331
      %v1352 = vmul.f32 %v1287, %v1331
      %v1353 = vmul.f32 %v1288, %v1331
      %v1354 = vmul.f32 %v1289, %v1331
      %v1355 = vmul.f32 %v1290, %v1331
      %v1356 = vmul.f32 %v1291, %v1331
      %v1357 = vmul.f32 %v1292, %v1331
      %v1358 = vmul.f32 %v1293, %v1331
      %v1359 = vmul.f32 %v1294, %v1331
      %v1360 = vmul.f32 %v1295, %v1331
      %v1361 = vmul.f32 %v1296, %v1331
      %v1362 = vmul.f32 %v1297, %v1331
      %v1363 = vmul.f32 %v1298, %v1331
      %v1364 = vmul.f32 %v1299, %v1331
      %v1365 = vmul.f32 %v1300, %v1331
      %v1366 = vmul.f32 %v1301, %v1331
      %v1367 = vmul.f32 %v1302, %v1331
      %v1368 = vmul.f32 %v1303, %v1331
      %v1369 = vmul.f32 %v1304, %v1331
      %v1370 = vmul.f32 %v1305, %v1331
      %v1371 = vmul.f32 %v1306, %v1331
      %v1372 = vmul.f32 %v1307, %v1331
      %v1373 = vmul.f32 %v1308, %v1331
      %v1374 = vmul.f32 %v1309, %v1331
      %v1375 = vmul.f32 %v1310, %v1331
      %v1376 = vmul.f32 %v1311, %v1331
      %v1377 = vmul.f32 %v1312, %v1331
      %v1378 = vmul.f32 %v1313, %v1331
      %v1379 = vmul.f32 %v1314, %v1331
      %v1380 = vmul.f32 %v1315, %v1331
      %v1381 = vmul.f32 %v1316, %v1331
      %v1382 = vmul.f32 %v1317, %v1331
      %v1383 = vmul.f32 %v1318, %v1331
      %v1384 = vmul.f32 %v1319, %v1331
      %v1385 = vmul.f32 %v1320, %v1331
      %v1386 = vmul.f32 %v1321, %v1331
      %v1387 = vmul.f32 %v1322, %v1331
      %v1388 = vmul.f32 %v1323, %v1331
      %v1389 = vmul.f32 %v1324, %v1331
      %v1390 = vmul.f32 %v1325, %v1331
      %v1391 = vmul.f32 %v1326, %v1331
      %v1392 = vmul.f32 %v1327, %v1331
      %v1393 = vmul.f32 %v1328, %v1331
      %v1394 = vmul.f32 %v1329, %v1331
      %v1395 = vmul.f32 %v1330, %v1331
      %v1396 = vadd.f32 %v1203, %v1332
      %v1397 = vadd.f32 %v1204, %v1333
      %v1398 = vadd.f32 %v1205, %v1334
      %v1399 = vadd.f32 %v1206, %v1335
      %v1400 = vadd.f32 %v1207, %v1336
      %v1401 = vadd.f32 %v1208, %v1337
      %v1402 = vadd.f32 %v1209, %v1338
      %v1403 = vadd.f32 %v1210, %v1339
      %v1404 = vadd.f32 %v1211, %v1340
      %v1405 = vadd.f32 %v1212, %v1341
      %v1406 = vadd.f32 %v1213, %v1342
      %v1407 = vadd.f32 %v1214, %v1343
      %v1408 = vadd.f32 %v1215, %v1344
      %v1409 = vadd.f32 %v1216, %v1345
      %v1410 = vadd.f32 %v1217, %v1346
      %v1411 = vadd.f32 %v1218, %v1347
      %v1412 = vadd.f32 %v1219, %v1348
      %v1413 = vadd.f32 %v1220, %v1349
      %v1414 = vadd.f32 %v1221, %v1350
      %v1415 = vadd.f32 %v1222, %v1351
      %v1416 = vadd.f32 %v1223, %v1352
      %v1417 = vadd.f32 %v1224, %v1353
      %v1418 = vadd.f32 %v1225, %v1354
      %v1419 = vadd.f32 %v1226, %v1355
      %v1420 = vadd.f32 %v1227, %v1356
      %v1421 = vadd.f32 %v1228, %v1357
      %v1422 = vadd.f32 %v1229, %v1358
      %v1423 = vadd.f32 %v1230, %v1359
      %v1424 = vadd.f32 %v1231, %v1360
      %v1425 = vadd.f32 %v1232, %v1361
      %v1426 = vadd.f32 %v1233, %v1362
      %v1427 = vadd.f32 %v1234, %v1363
      %v1428 = vadd.f32 %v1235, %v1364
      %v1429 = vadd.f32 %v1236, %v1365
      %v1430 = vadd.f32 %v1237, %v1366
      %v1431 = vadd.f32 %v1238, %v1367
      %v1432 = vadd.f32 %v1239, %v1368
      %v1433 = vadd.f32 %v1240, %v1369
      %v1434 = vadd.f32 %v1241, %v1370
      %v1435 = vadd.f32 %v1242, %v1371
      %v1436 = vadd.f32 %v1243, %v1372
      %v1437 = vadd.f32 %v1244, %v1373
      %v1438 = vadd.f32 %v1245, %v1374
      %v1439 = vadd.f32 %v1246, %v1375
      %v1440 = vadd.f32 %v1247, %v1376
      %v1441 = vadd.f32 %v1248, %v1377
      %v1442 = vadd.f32 %v1249, %v1378
      %v1443 = vadd.f32 %v1250, %v1379
      %v1444 = vadd.f32 %v1251, %v1380
      %v1445 = vadd.f32 %v1252, %v1381
      %v1446 = vadd.f32 %v1253, %v1382
      %v1447 = vadd.f32 %v1254, %v1383
      %v1448 = vadd.f32 %v1255, %v1384
      %v1449 = vadd.f32 %v1256, %v1385
      %v1450 = vadd.f32 %v1257, %v1386
      %v1451 = vadd.f32 %v1258, %v1387
      %v1452 = vadd.f32 %v1259, %v1388
      %v1453 = vadd.f32 %v1260, %v1389
      %v1454 = vadd.f32 %v1261, %v1390
      %v1455 = vadd.f32 %v1262, %v1391
      %v1456 = vadd.f32 %v1263, %v1392
      %v1457 = vadd.f32 %v1264, %v1393
      %v1458 = vadd.f32 %v1265, %v1394
      %v1459 = vadd.f32 %v1266, %v1395
      %s1460 = scalar_lea.vmem [#allocation2], 24
      %v1461 = vld [vmem:[%s1460] sm:$0xff]
      %v1462 = vld [vmem:[%s1460 + $0x8] sm:$0xff]
      %v1463 = vld [vmem:[%s1460 + $0x18] sm:$0xff]
      %v1464 = vld [vmem:[%s1460 + $0x20] sm:$0xff]
      %v1465 = vld [vmem:[%s1460 + $0x30] sm:$0xff]
      %v1466 = vld [vmem:[%s1460 + $0x38] sm:$0xff]
      %v1467 = vld [vmem:[%s1460 + $0x48] sm:$0xff]
      %v1468 = vld [vmem:[%s1460 + $0x50] sm:$0xff]
      %v1469 = vld [vmem:[%s1460 + $0x60] sm:$0xff]
      %v1470 = vld [vmem:[%s1460 + $0x68] sm:$0xff]
      %v1471 = vld [vmem:[%s1460 + $0x78] sm:$0xff]
      %v1472 = vld [vmem:[%s1460 + $0x80] sm:$0xff]
      %v1473 = vld [vmem:[%s1460 + $0x90] sm:$0xff]
      %v1474 = vld [vmem:[%s1460 + $0x98] sm:$0xff]
      %v1475 = vld [vmem:[%s1460 + $0xa8] sm:$0xff]
      %v1476 = vld [vmem:[%s1460 + $0xb0] sm:$0xff]
      %v1477 = vld [vmem:[%s1460 + $0xc0] sm:$0xff]
      %v1478 = vld [vmem:[%s1460 + $0xc8] sm:$0xff]
      %v1479 = vld [vmem:[%s1460 + $0xd8] sm:$0xff]
      %v1480 = vld [vmem:[%s1460 + $0xe0] sm:$0xff]
      %v1481 = vld [vmem:[%s1460 + $0xf0] sm:$0xff]
      %v1482 = vld [vmem:[%s1460 + $0xf8] sm:$0xff]
      %v1483 = vld [vmem:[%s1460 + $0x108] sm:$0xff]
      %v1484 = vld [vmem:[%s1460 + $0x110] sm:$0xff]
      %v1485 = vld [vmem:[%s1460 + $0x120] sm:$0xff]
      %v1486 = vld [vmem:[%s1460 + $0x128] sm:$0xff]
      %v1487 = vld [vmem:[%s1460 + $0x138] sm:$0xff]
      %v1488 = vld [vmem:[%s1460 + $0x140] sm:$0xff]
      %v1489 = vld [vmem:[%s1460 + $0x150] sm:$0xff]
      %v1490 = vld [vmem:[%s1460 + $0x158] sm:$0xff]
      %v1491 = vld [vmem:[%s1460 + $0x168] sm:$0xff]
      %v1492 = vld [vmem:[%s1460 + $0x170] sm:$0xff]
      %v1493 = vld [vmem:[%s1460 + $0x1b0] sm:$0xff]
      %v1494 = vld [vmem:[%s1460 + $0x1b8] sm:$0xff]
      %v1495 = vld [vmem:[%s1460 + $0x1c8] sm:$0xff]
      %v1496 = vld [vmem:[%s1460 + $0x1d0] sm:$0xff]
      %v1497 = vld [vmem:[%s1460 + $0x1e0] sm:$0xff]
      %v1498 = vld [vmem:[%s1460 + $0x1e8] sm:$0xff]
      %v1499 = vld [vmem:[%s1460 + $0x1f8] sm:$0xff]
      %v1500 = vld [vmem:[%s1460 + $0x200] sm:$0xff]
      %v1501 = vld [vmem:[%s1460 + $0x210] sm:$0xff]
      %v1502 = vld [vmem:[%s1460 + $0x218] sm:$0xff]
      %v1503 = vld [vmem:[%s1460 + $0x228] sm:$0xff]
      %v1504 = vld [vmem:[%s1460 + $0x230] sm:$0xff]
      %v1505 = vld [vmem:[%s1460 + $0x240] sm:$0xff]
      %v1506 = vld [vmem:[%s1460 + $0x248] sm:$0xff]
      %v1507 = vld [vmem:[%s1460 + $0x258] sm:$0xff]
      %v1508 = vld [vmem:[%s1460 + $0x260] sm:$0xff]
      %v1509 = vld [vmem:[%s1460 + $0x270] sm:$0xff]
      %v1510 = vld [vmem:[%s1460 + $0x278] sm:$0xff]
      %v1511 = vld [vmem:[%s1460 + $0x288] sm:$0xff]
      %v1512 = vld [vmem:[%s1460 + $0x290] sm:$0xff]
      %v1513 = vld [vmem:[%s1460 + $0x2a0] sm:$0xff]
      %v1514 = vld [vmem:[%s1460 + $0x2a8] sm:$0xff]
      %v1515 = vld [vmem:[%s1460 + $0x2b8] sm:$0xff]
      %v1516 = vld [vmem:[%s1460 + $0x2c0] sm:$0xff]
      %v1517 = vld [vmem:[%s1460 + $0x2d0] sm:$0xff]
      %v1518 = vld [vmem:[%s1460 + $0x2d8] sm:$0xff]
      %v1519 = vld [vmem:[%s1460 + $0x2e8] sm:$0xff]
      %v1520 = vld [vmem:[%s1460 + $0x2f0] sm:$0xff]
      %v1521 = vld [vmem:[%s1460 + $0x300] sm:$0xff]
      %v1522 = vld [vmem:[%s1460 + $0x308] sm:$0xff]
      %v1523 = vld [vmem:[%s1460 + $0x318] sm:$0xff]
      %v1524 = vld [vmem:[%s1460 + $0x320] sm:$0xff]
      %v1525 = vperm.slane %v879, 0
      %v1526 = vmul.f32 %v1461, %v1525
      %v1527 = vmul.f32 %v1462, %v1525
      %v1528 = vmul.f32 %v1463, %v1525
      %v1529 = vmul.f32 %v1464, %v1525
      %v1530 = vmul.f32 %v1465, %v1525
      %v1531 = vmul.f32 %v1466, %v1525
      %v1532 = vmul.f32 %v1467, %v1525
      %v1533 = vmul.f32 %v1468, %v1525
      %v1534 = vmul.f32 %v1469, %v1525
      %v1535 = vmul.f32 %v1470, %v1525
      %v1536 = vmul.f32 %v1471, %v1525
      %v1537 = vmul.f32 %v1472, %v1525
      %v1538 = vmul.f32 %v1473, %v1525
      %v1539 = vmul.f32 %v1474, %v1525
      %v1540 = vmul.f32 %v1475, %v1525
      %v1541 = vmul.f32 %v1476, %v1525
      %v1542 = vmul.f32 %v1477, %v1525
      %v1543 = vmul.f32 %v1478, %v1525
      %v1544 = vmul.f32 %v1479, %v1525
      %v1545 = vmul.f32 %v1480, %v1525
      %v1546 = vmul.f32 %v1481, %v1525
      %v1547 = vmul.f32 %v1482, %v1525
      %v1548 = vmul.f32 %v1483, %v1525
      %v1549 = vmul.f32 %v1484, %v1525
      %v1550 = vmul.f32 %v1485, %v1525
      %v1551 = vmul.f32 %v1486, %v1525
      %v1552 = vmul.f32 %v1487, %v1525
      %v1553 = vmul.f32 %v1488, %v1525
      %v1554 = vmul.f32 %v1489, %v1525
      %v1555 = vmul.f32 %v1490, %v1525
      %v1556 = vmul.f32 %v1491, %v1525
      %v1557 = vmul.f32 %v1492, %v1525
      %v1558 = vmul.f32 %v1493, %v1525
      %v1559 = vmul.f32 %v1494, %v1525
      %v1560 = vmul.f32 %v1495, %v1525
      %v1561 = vmul.f32 %v1496, %v1525
      %v1562 = vmul.f32 %v1497, %v1525
      %v1563 = vmul.f32 %v1498, %v1525
      %v1564 = vmul.f32 %v1499, %v1525
      %v1565 = vmul.f32 %v1500, %v1525
      %v1566 = vmul.f32 %v1501, %v1525
      %v1567 = vmul.f32 %v1502, %v1525
      %v1568 = vmul.f32 %v1503, %v1525
      %v1569 = vmul.f32 %v1504, %v1525
      %v1570 = vmul.f32 %v1505, %v1525
      %v1571 = vmul.f32 %v1506, %v1525
      %v1572 = vmul.f32 %v1507, %v1525
      %v1573 = vmul.f32 %v1508, %v1525
      %v1574 = vmul.f32 %v1509, %v1525
      %v1575 = vmul.f32 %v1510, %v1525
      %v1576 = vmul.f32 %v1511, %v1525
      %v1577 = vmul.f32 %v1512, %v1525
      %v1578 = vmul.f32 %v1513, %v1525
      %v1579 = vmul.f32 %v1514, %v1525
      %v1580 = vmul.f32 %v1515, %v1525
      %v1581 = vmul.f32 %v1516, %v1525
      %v1582 = vmul.f32 %v1517, %v1525
      %v1583 = vmul.f32 %v1518, %v1525
      %v1584 = vmul.f32 %v1519, %v1525
      %v1585 = vmul.f32 %v1520, %v1525
      %v1586 = vmul.f32 %v1521, %v1525
      %v1587 = vmul.f32 %v1522, %v1525
      %v1588 = vmul.f32 %v1523, %v1525
      %v1589 = vmul.f32 %v1524, %v1525
      %v1590 = vadd.f32 %v1396, %v1526
      %v1591 = vadd.f32 %v1397, %v1527
      %v1592 = vadd.f32 %v1398, %v1528
      %v1593 = vadd.f32 %v1399, %v1529
      %v1594 = vadd.f32 %v1400, %v1530
      %v1595 = vadd.f32 %v1401, %v1531
      %v1596 = vadd.f32 %v1402, %v1532
      %v1597 = vadd.f32 %v1403, %v1533
      %v1598 = vadd.f32 %v1404, %v1534
      %v1599 = vadd.f32 %v1405, %v1535
      %v1600 = vadd.f32 %v1406, %v1536
      %v1601 = vadd.f32 %v1407, %v1537
      %v1602 = vadd.f32 %v1408, %v1538
      %v1603 = vadd.f32 %v1409, %v1539
      %v1604 = vadd.f32 %v1410, %v1540
      %v1605 = vadd.f32 %v1411, %v1541
      %v1606 = vadd.f32 %v1412, %v1542
      %v1607 = vadd.f32 %v1413, %v1543
      %v1608 = vadd.f32 %v1414, %v1544
      %v1609 = vadd.f32 %v1415, %v1545
      %v1610 = vadd.f32 %v1416, %v1546
      %v1611 = vadd.f32 %v1417, %v1547
      %v1612 = vadd.f32 %v1418, %v1548
      %v1613 = vadd.f32 %v1419, %v1549
      %v1614 = vadd.f32 %v1420, %v1550
      %v1615 = vadd.f32 %v1421, %v1551
      %v1616 = vadd.f32 %v1422, %v1552
      %v1617 = vadd.f32 %v1423, %v1553
      %v1618 = vadd.f32 %v1424, %v1554
      %v1619 = vadd.f32 %v1425, %v1555
      %v1620 = vadd.f32 %v1426, %v1556
      %v1621 = vadd.f32 %v1427, %v1557
      %v1622 = vadd.f32 %v1428, %v1558
      %v1623 = vadd.f32 %v1429, %v1559
      %v1624 = vadd.f32 %v1430, %v1560
      %v1625 = vadd.f32 %v1431, %v1561
      %v1626 = vadd.f32 %v1432, %v1562
      %v1627 = vadd.f32 %v1433, %v1563
      %v1628 = vadd.f32 %v1434, %v1564
      %v1629 = vadd.f32 %v1435, %v1565
      %v1630 = vadd.f32 %v1436, %v1566
      %v1631 = vadd.f32 %v1437, %v1567
      %v1632 = vadd.f32 %v1438, %v1568
      %v1633 = vadd.f32 %v1439, %v1569
      %v1634 = vadd.f32 %v1440, %v1570
      %v1635 = vadd.f32 %v1441, %v1571
      %v1636 = vadd.f32 %v1442, %v1572
      %v1637 = vadd.f32 %v1443, %v1573
      %v1638 = vadd.f32 %v1444, %v1574
      %v1639 = vadd.f32 %v1445, %v1575
      %v1640 = vadd.f32 %v1446, %v1576
      %v1641 = vadd.f32 %v1447, %v1577
      %v1642 = vadd.f32 %v1448, %v1578
      %v1643 = vadd.f32 %v1449, %v1579
      %v1644 = vadd.f32 %v1450, %v1580
      %v1645 = vadd.f32 %v1451, %v1581
      %v1646 = vadd.f32 %v1452, %v1582
      %v1647 = vadd.f32 %v1453, %v1583
      %v1648 = vadd.f32 %v1454, %v1584
      %v1649 = vadd.f32 %v1455, %v1585
      %v1650 = vadd.f32 %v1456, %v1586
      %v1651 = vadd.f32 %v1457, %v1587
      %v1652 = vadd.f32 %v1458, %v1588
      %v1653 = vadd.f32 %v1459, %v1589
      %v1654 = vld [vmem:[%s1460 + $0x1] sm:$0xff]
      %v1655 = vld [vmem:[%s1460 + $0x9] sm:$0xff]
      %v1656 = vld [vmem:[%s1460 + $0x19] sm:$0xff]
      %v1657 = vld [vmem:[%s1460 + $0x21] sm:$0xff]
      %v1658 = vld [vmem:[%s1460 + $0x31] sm:$0xff]
      %v1659 = vld [vmem:[%s1460 + $0x39] sm:$0xff]
      %v1660 = vld [vmem:[%s1460 + $0x49] sm:$0xff]
      %v1661 = vld [vmem:[%s1460 + $0x51] sm:$0xff]
      %v1662 = vld [vmem:[%s1460 + $0x61] sm:$0xff]
      %v1663 = vld [vmem:[%s1460 + $0x69] sm:$0xff]
      %v1664 = vld [vmem:[%s1460 + $0x79] sm:$0xff]
      %v1665 = vld [vmem:[%s1460 + $0x81] sm:$0xff]
      %v1666 = vld [vmem:[%s1460 + $0x91] sm:$0xff]
      %v1667 = vld [vmem:[%s1460 + $0x99] sm:$0xff]
      %v1668 = vld [vmem:[%s1460 + $0xa9] sm:$0xff]
      %v1669 = vld [vmem:[%s1460 + $0xb1] sm:$0xff]
      %v1670 = vld [vmem:[%s1460 + $0xc1] sm:$0xff]
      %v1671 = vld [vmem:[%s1460 + $0xc9] sm:$0xff]
      %v1672 = vld [vmem:[%s1460 + $0xd9] sm:$0xff]
      %v1673 = vld [vmem:[%s1460 + $0xe1] sm:$0xff]
      %v1674 = vld [vmem:[%s1460 + $0xf1] sm:$0xff]
      %v1675 = vld [vmem:[%s1460 + $0xf9] sm:$0xff]
      %v1676 = vld [vmem:[%s1460 + $0x109] sm:$0xff]
      %v1677 = vld [vmem:[%s1460 + $0x111] sm:$0xff]
      %v1678 = vld [vmem:[%s1460 + $0x121] sm:$0xff]
      %v1679 = vld [vmem:[%s1460 + $0x129] sm:$0xff]
      %v1680 = vld [vmem:[%s1460 + $0x139] sm:$0xff]
      %v1681 = vld [vmem:[%s1460 + $0x141] sm:$0xff]
      %v1682 = vld [vmem:[%s1460 + $0x151] sm:$0xff]
      %v1683 = vld [vmem:[%s1460 + $0x159] sm:$0xff]
      %v1684 = vld [vmem:[%s1460 + $0x169] sm:$0xff]
      %v1685 = vld [vmem:[%s1460 + $0x171] sm:$0xff]
      %v1686 = vld [vmem:[%s1460 + $0x1b1] sm:$0xff]
      %v1687 = vld [vmem:[%s1460 + $0x1b9] sm:$0xff]
      %v1688 = vld [vmem:[%s1460 + $0x1c9] sm:$0xff]
      %v1689 = vld [vmem:[%s1460 + $0x1d1] sm:$0xff]
      %v1690 = vld [vmem:[%s1460 + $0x1e1] sm:$0xff]
      %v1691 = vld [vmem:[%s1460 + $0x1e9] sm:$0xff]
      %v1692 = vld [vmem:[%s1460 + $0x1f9] sm:$0xff]
      %v1693 = vld [vmem:[%s1460 + $0x201] sm:$0xff]
      %v1694 = vld [vmem:[%s1460 + $0x211] sm:$0xff]
      %v1695 = vld [vmem:[%s1460 + $0x219] sm:$0xff]
      %v1696 = vld [vmem:[%s1460 + $0x229] sm:$0xff]
      %v1697 = vld [vmem:[%s1460 + $0x231] sm:$0xff]
      %v1698 = vld [vmem:[%s1460 + $0x241] sm:$0xff]
      %v1699 = vld [vmem:[%s1460 + $0x249] sm:$0xff]
      %v1700 = vld [vmem:[%s1460 + $0x259] sm:$0xff]
      %v1701 = vld [vmem:[%s1460 + $0x261] sm:$0xff]
      %v1702 = vld [vmem:[%s1460 + $0x271] sm:$0xff]
      %v1703 = vld [vmem:[%s1460 + $0x279] sm:$0xff]
      %v1704 = vld [vmem:[%s1460 + $0x289] sm:$0xff]
      %v1705 = vld [vmem:[%s1460 + $0x291] sm:$0xff]
      %v1706 = vld [vmem:[%s1460 + $0x2a1] sm:$0xff]
      %v1707 = vld [vmem:[%s1460 + $0x2a9] sm:$0xff]
      %v1708 = vld [vmem:[%s1460 + $0x2b9] sm:$0xff]
      %v1709 = vld [vmem:[%s1460 + $0x2c1] sm:$0xff]
      %v1710 = vld [vmem:[%s1460 + $0x2d1] sm:$0xff]
      %v1711 = vld [vmem:[%s1460 + $0x2d9] sm:$0xff]
      %v1712 = vld [vmem:[%s1460 + $0x2e9] sm:$0xff]
      %v1713 = vld [vmem:[%s1460 + $0x2f1] sm:$0xff]
      %v1714 = vld [vmem:[%s1460 + $0x301] sm:$0xff]
      %v1715 = vld [vmem:[%s1460 + $0x309] sm:$0xff]
      %v1716 = vld [vmem:[%s1460 + $0x319] sm:$0xff]
      %v1717 = vld [vmem:[%s1460 + $0x321] sm:$0xff]
      %v1718 = vperm.slane %v879, 1
      %v1719 = vmul.f32 %v1654, %v1718
      %v1720 = vmul.f32 %v1655, %v1718
      %v1721 = vmul.f32 %v1656, %v1718
      %v1722 = vmul.f32 %v1657, %v1718
      %v1723 = vmul.f32 %v1658, %v1718
      %v1724 = vmul.f32 %v1659, %v1718
      %v1725 = vmul.f32 %v1660, %v1718
      %v1726 = vmul.f32 %v1661, %v1718
      %v1727 = vmul.f32 %v1662, %v1718
      %v1728 = vmul.f32 %v1663, %v1718
      %v1729 = vmul.f32 %v1664, %v1718
      %v1730 = vmul.f32 %v1665, %v1718
      %v1731 = vmul.f32 %v1666, %v1718
      %v1732 = vmul.f32 %v1667, %v1718
      %v1733 = vmul.f32 %v1668, %v1718
      %v1734 = vmul.f32 %v1669, %v1718
      %v1735 = vmul.f32 %v1670, %v1718
      %v1736 = vmul.f32 %v1671, %v1718
      %v1737 = vmul.f32 %v1672, %v1718
      %v1738 = vmul.f32 %v1673, %v1718
      %v1739 = vmul.f32 %v1674, %v1718
      %v1740 = vmul.f32 %v1675, %v1718
      %v1741 = vmul.f32 %v1676, %v1718
      %v1742 = vmul.f32 %v1677, %v1718
      %v1743 = vmul.f32 %v1678, %v1718
      %v1744 = vmul.f32 %v1679, %v1718
      %v1745 = vmul.f32 %v1680, %v1718
      %v1746 = vmul.f32 %v1681, %v1718
      %v1747 = vmul.f32 %v1682, %v1718
      %v1748 = vmul.f32 %v1683, %v1718
      %v1749 = vmul.f32 %v1684, %v1718
      %v1750 = vmul.f32 %v1685, %v1718
      %v1751 = vmul.f32 %v1686, %v1718
      %v1752 = vmul.f32 %v1687, %v1718
      %v1753 = vmul.f32 %v1688, %v1718
      %v1754 = vmul.f32 %v1689, %v1718
      %v1755 = vmul.f32 %v1690, %v1718
      %v1756 = vmul.f32 %v1691, %v1718
      %v1757 = vmul.f32 %v1692, %v1718
      %v1758 = vmul.f32 %v1693, %v1718
      %v1759 = vmul.f32 %v1694, %v1718
      %v1760 = vmul.f32 %v1695, %v1718
      %v1761 = vmul.f32 %v1696, %v1718
      %v1762 = vmul.f32 %v1697, %v1718
      %v1763 = vmul.f32 %v1698, %v1718
      %v1764 = vmul.f32 %v1699, %v1718
      %v1765 = vmul.f32 %v1700, %v1718
      %v1766 = vmul.f32 %v1701, %v1718
      %v1767 = vmul.f32 %v1702, %v1718
      %v1768 = vmul.f32 %v1703, %v1718
      %v1769 = vmul.f32 %v1704, %v1718
      %v1770 = vmul.f32 %v1705, %v1718
      %v1771 = vmul.f32 %v1706, %v1718
      %v1772 = vmul.f32 %v1707, %v1718
      %v1773 = vmul.f32 %v1708, %v1718
      %v1774 = vmul.f32 %v1709, %v1718
      %v1775 = vmul.f32 %v1710, %v1718
      %v1776 = vmul.f32 %v1711, %v1718
      %v1777 = vmul.f32 %v1712, %v1718
      %v1778 = vmul.f32 %v1713, %v1718
      %v1779 = vmul.f32 %v1714, %v1718
      %v1780 = vmul.f32 %v1715, %v1718
      %v1781 = vmul.f32 %v1716, %v1718
      %v1782 = vmul.f32 %v1717, %v1718
      %v1783 = vadd.f32 %v1590, %v1719
      %v1784 = vadd.f32 %v1591, %v1720
      %v1785 = vadd.f32 %v1592, %v1721
      %v1786 = vadd.f32 %v1593, %v1722
      %v1787 = vadd.f32 %v1594, %v1723
      %v1788 = vadd.f32 %v1595, %v1724
      %v1789 = vadd.f32 %v1596, %v1725
      %v1790 = vadd.f32 %v1597, %v1726
      %v1791 = vadd.f32 %v1598, %v1727
      %v1792 = vadd.f32 %v1599, %v1728
      %v1793 = vadd.f32 %v1600, %v1729
      %v1794 = vadd.f32 %v1601, %v1730
      %v1795 = vadd.f32 %v1602, %v1731
      %v1796 = vadd.f32 %v1603, %v1732
      %v1797 = vadd.f32 %v1604, %v1733
      %v1798 = vadd.f32 %v1605, %v1734
      %v1799 = vadd.f32 %v1606, %v1735
      %v1800 = vadd.f32 %v1607, %v1736
      %v1801 = vadd.f32 %v1608, %v1737
      %v1802 = vadd.f32 %v1609, %v1738
      %v1803 = vadd.f32 %v1610, %v1739
      %v1804 = vadd.f32 %v1611, %v1740
      %v1805 = vadd.f32 %v1612, %v1741
      %v1806 = vadd.f32 %v1613, %v1742
      %v1807 = vadd.f32 %v1614, %v1743
      %v1808 = vadd.f32 %v1615, %v1744
      %v1809 = vadd.f32 %v1616, %v1745
      %v1810 = vadd.f32 %v1617, %v1746
      %v1811 = vadd.f32 %v1618, %v1747
      %v1812 = vadd.f32 %v1619, %v1748
      %v1813 = vadd.f32 %v1620, %v1749
      %v1814 = vadd.f32 %v1621, %v1750
      %v1815 = vadd.f32 %v1622, %v1751
      %v1816 = vadd.f32 %v1623, %v1752
      %v1817 = vadd.f32 %v1624, %v1753
      %v1818 = vadd.f32 %v1625, %v1754
      %v1819 = vadd.f32 %v1626, %v1755
      %v1820 = vadd.f32 %v1627, %v1756
      %v1821 = vadd.f32 %v1628, %v1757
      %v1822 = vadd.f32 %v1629, %v1758
      %v1823 = vadd.f32 %v1630, %v1759
      %v1824 = vadd.f32 %v1631, %v1760
      %v1825 = vadd.f32 %v1632, %v1761
      %v1826 = vadd.f32 %v1633, %v1762
      %v1827 = vadd.f32 %v1634, %v1763
      %v1828 = vadd.f32 %v1635, %v1764
      %v1829 = vadd.f32 %v1636, %v1765
      %v1830 = vadd.f32 %v1637, %v1766
      %v1831 = vadd.f32 %v1638, %v1767
      %v1832 = vadd.f32 %v1639, %v1768
      %v1833 = vadd.f32 %v1640, %v1769
      %v1834 = vadd.f32 %v1641, %v1770
      %v1835 = vadd.f32 %v1642, %v1771
      %v1836 = vadd.f32 %v1643, %v1772
      %v1837 = vadd.f32 %v1644, %v1773
      %v1838 = vadd.f32 %v1645, %v1774
      %v1839 = vadd.f32 %v1646, %v1775
      %v1840 = vadd.f32 %v1647, %v1776
      %v1841 = vadd.f32 %v1648, %v1777
      %v1842 = vadd.f32 %v1649, %v1778
      %v1843 = vadd.f32 %v1650, %v1779
      %v1844 = vadd.f32 %v1651, %v1780
      %v1845 = vadd.f32 %v1652, %v1781
      %v1846 = vadd.f32 %v1653, %v1782
      %v1847 = vld [vmem:[%s1460 + $0x2] sm:$0xff]
      %v1848 = vld [vmem:[%s1460 + $0xa] sm:$0xff]
      %v1849 = vld [vmem:[%s1460 + $0x1a] sm:$0xff]
      %v1850 = vld [vmem:[%s1460 + $0x22] sm:$0xff]
      %v1851 = vld [vmem:[%s1460 + $0x32] sm:$0xff]
      %v1852 = vld [vmem:[%s1460 + $0x3a] sm:$0xff]
      %v1853 = vld [vmem:[%s1460 + $0x4a] sm:$0xff]
      %v1854 = vld [vmem:[%s1460 + $0x52] sm:$0xff]
      %v1855 = vld [vmem:[%s1460 + $0x62] sm:$0xff]
      %v1856 = vld [vmem:[%s1460 + $0x6a] sm:$0xff]
      %v1857 = vld [vmem:[%s1460 + $0x7a] sm:$0xff]
      %v1858 = vld [vmem:[%s1460 + $0x82] sm:$0xff]
      %v1859 = vld [vmem:[%s1460 + $0x92] sm:$0xff]
      %v1860 = vld [vmem:[%s1460 + $0x9a] sm:$0xff]
      %v1861 = vld [vmem:[%s1460 + $0xaa] sm:$0xff]
      %v1862 = vld [vmem:[%s1460 + $0xb2] sm:$0xff]
      %v1863 = vld [vmem:[%s1460 + $0xc2] sm:$0xff]
      %v1864 = vld [vmem:[%s1460 + $0xca] sm:$0xff]
      %v1865 = vld [vmem:[%s1460 + $0xda] sm:$0xff]
      %v1866 = vld [vmem:[%s1460 + $0xe2] sm:$0xff]
      %v1867 = vld [vmem:[%s1460 + $0xf2] sm:$0xff]
      %v1868 = vld [vmem:[%s1460 + $0xfa] sm:$0xff]
      %v1869 = vld [vmem:[%s1460 + $0x10a] sm:$0xff]
      %v1870 = vld [vmem:[%s1460 + $0x112] sm:$0xff]
      %v1871 = vld [vmem:[%s1460 + $0x122] sm:$0xff]
      %v1872 = vld [vmem:[%s1460 + $0x12a] sm:$0xff]
      %v1873 = vld [vmem:[%s1460 + $0x13a] sm:$0xff]
      %v1874 = vld [vmem:[%s1460 + $0x142] sm:$0xff]
      %v1875 = vld [vmem:[%s1460 + $0x152] sm:$0xff]
      %v1876 = vld [vmem:[%s1460 + $0x15a] sm:$0xff]
      %v1877 = vld [vmem:[%s1460 + $0x16a] sm:$0xff]
      %v1878 = vld [vmem:[%s1460 + $0x172] sm:$0xff]
      %v1879 = vld [vmem:[%s1460 + $0x1b2] sm:$0xff]
      %v1880 = vld [vmem:[%s1460 + $0x1ba] sm:$0xff]
      %v1881 = vld [vmem:[%s1460 + $0x1ca] sm:$0xff]
      %v1882 = vld [vmem:[%s1460 + $0x1d2] sm:$0xff]
      %v1883 = vld [vmem:[%s1460 + $0x1e2] sm:$0xff]
      %v1884 = vld [vmem:[%s1460 + $0x1ea] sm:$0xff]
      %v1885 = vld [vmem:[%s1460 + $0x1fa] sm:$0xff]
      %v1886 = vld [vmem:[%s1460 + $0x202] sm:$0xff]
      %v1887 = vld [vmem:[%s1460 + $0x212] sm:$0xff]
      %v1888 = vld [vmem:[%s1460 + $0x21a] sm:$0xff]
      %v1889 = vld [vmem:[%s1460 + $0x22a] sm:$0xff]
      %v1890 = vld [vmem:[%s1460 + $0x232] sm:$0xff]
      %v1891 = vld [vmem:[%s1460 + $0x242] sm:$0xff]
      %v1892 = vld [vmem:[%s1460 + $0x24a] sm:$0xff]
      %v1893 = vld [vmem:[%s1460 + $0x25a] sm:$0xff]
      %v1894 = vld [vmem:[%s1460 + $0x262] sm:$0xff]
      %v1895 = vld [vmem:[%s1460 + $0x272] sm:$0xff]
      %v1896 = vld [vmem:[%s1460 + $0x27a] sm:$0xff]
      %v1897 = vld [vmem:[%s1460 + $0x28a] sm:$0xff]
      %v1898 = vld [vmem:[%s1460 + $0x292] sm:$0xff]
      %v1899 = vld [vmem:[%s1460 + $0x2a2] sm:$0xff]
      %v1900 = vld [vmem:[%s1460 + $0x2aa] sm:$0xff]
      %v1901 = vld [vmem:[%s1460 + $0x2ba] sm:$0xff]
      %v1902 = vld [vmem:[%s1460 + $0x2c2] sm:$0xff]
      %v1903 = vld [vmem:[%s1460 + $0x2d2] sm:$0xff]
      %v1904 = vld [vmem:[%s1460 + $0x2da] sm:$0xff]
      %v1905 = vld [vmem:[%s1460 + $0x2ea] sm:$0xff]
      %v1906 = vld [vmem:[%s1460 + $0x2f2] sm:$0xff]
      %v1907 = vld [vmem:[%s1460 + $0x302] sm:$0xff]
      %v1908 = vld [vmem:[%s1460 + $0x30a] sm:$0xff]
      %v1909 = vld [vmem:[%s1460 + $0x31a] sm:$0xff]
      %v1910 = vld [vmem:[%s1460 + $0x322] sm:$0xff]
      %v1911 = vperm.slane %v879, 2
      %v1912 = vmul.f32 %v1847, %v1911
      %v1913 = vmul.f32 %v1848, %v1911
      %v1914 = vmul.f32 %v1849, %v1911
      %v1915 = vmul.f32 %v1850, %v1911
      %v1916 = vmul.f32 %v1851, %v1911
      %v1917 = vmul.f32 %v1852, %v1911
      %v1918 = vmul.f32 %v1853, %v1911
      %v1919 = vmul.f32 %v1854, %v1911
      %v1920 = vmul.f32 %v1855, %v1911
      %v1921 = vmul.f32 %v1856, %v1911
      %v1922 = vmul.f32 %v1857, %v1911
      %v1923 = vmul.f32 %v1858, %v1911
      %v1924 = vmul.f32 %v1859, %v1911
      %v1925 = vmul.f32 %v1860, %v1911
      %v1926 = vmul.f32 %v1861, %v1911
      %v1927 = vmul.f32 %v1862, %v1911
      %v1928 = vmul.f32 %v1863, %v1911
      %v1929 = vmul.f32 %v1864, %v1911
      %v1930 = vmul.f32 %v1865, %v1911
      %v1931 = vmul.f32 %v1866, %v1911
      %v1932 = vmul.f32 %v1867, %v1911
      %v1933 = vmul.f32 %v1868, %v1911
      %v1934 = vmul.f32 %v1869, %v1911
      %v1935 = vmul.f32 %v1870, %v1911
      %v1936 = vmul.f32 %v1871, %v1911
      %v1937 = vmul.f32 %v1872, %v1911
      %v1938 = vmul.f32 %v1873, %v1911
      %v1939 = vmul.f32 %v1874, %v1911
      %v1940 = vmul.f32 %v1875, %v1911
      %v1941 = vmul.f32 %v1876, %v1911
      %v1942 = vmul.f32 %v1877, %v1911
      %v1943 = vmul.f32 %v1878, %v1911
      %v1944 = vmul.f32 %v1879, %v1911
      %v1945 = vmul.f32 %v1880, %v1911
      %v1946 = vmul.f32 %v1881, %v1911
      %v1947 = vmul.f32 %v1882, %v1911
      %v1948 = vmul.f32 %v1883, %v1911
      %v1949 = vmul.f32 %v1884, %v1911
      %v1950 = vmul.f32 %v1885, %v1911
      %v1951 = vmul.f32 %v1886, %v1911
      %v1952 = vmul.f32 %v1887, %v1911
      %v1953 = vmul.f32 %v1888, %v1911
      %v1954 = vmul.f32 %v1889, %v1911
      %v1955 = vmul.f32 %v1890, %v1911
      %v1956 = vmul.f32 %v1891, %v1911
      %v1957 = vmul.f32 %v1892, %v1911
      %v1958 = vmul.f32 %v1893, %v1911
      %v1959 = vmul.f32 %v1894, %v1911
      %v1960 = vmul.f32 %v1895, %v1911
      %v1961 = vmul.f32 %v1896, %v1911
      %v1962 = vmul.f32 %v1897, %v1911
      %v1963 = vmul.f32 %v1898, %v1911
      %v1964 = vmul.f32 %v1899, %v1911
      %v1965 = vmul.f32 %v1900, %v1911
      %v1966 = vmul.f32 %v1901, %v1911
      %v1967 = vmul.f32 %v1902, %v1911
      %v1968 = vmul.f32 %v1903, %v1911
      %v1969 = vmul.f32 %v1904, %v1911
      %v1970 = vmul.f32 %v1905, %v1911
      %v1971 = vmul.f32 %v1906, %v1911
      %v1972 = vmul.f32 %v1907, %v1911
      %v1973 = vmul.f32 %v1908, %v1911
      %v1974 = vmul.f32 %v1909, %v1911
      %v1975 = vmul.f32 %v1910, %v1911
      %v1976 = vadd.f32 %v1783, %v1912
      %v1977 = vadd.f32 %v1784, %v1913
      %v1978 = vadd.f32 %v1785, %v1914
      %v1979 = vadd.f32 %v1786, %v1915
      %v1980 = vadd.f32 %v1787, %v1916
      %v1981 = vadd.f32 %v1788, %v1917
      %v1982 = vadd.f32 %v1789, %v1918
      %v1983 = vadd.f32 %v1790, %v1919
      %v1984 = vadd.f32 %v1791, %v1920
      %v1985 = vadd.f32 %v1792, %v1921
      %v1986 = vadd.f32 %v1793, %v1922
      %v1987 = vadd.f32 %v1794, %v1923
      %v1988 = vadd.f32 %v1795, %v1924
      %v1989 = vadd.f32 %v1796, %v1925
      %v1990 = vadd.f32 %v1797, %v1926
      %v1991 = vadd.f32 %v1798, %v1927
      %v1992 = vadd.f32 %v1799, %v1928
      %v1993 = vadd.f32 %v1800, %v1929
      %v1994 = vadd.f32 %v1801, %v1930
      %v1995 = vadd.f32 %v1802, %v1931
      %v1996 = vadd.f32 %v1803, %v1932
      %v1997 = vadd.f32 %v1804, %v1933
      %v1998 = vadd.f32 %v1805, %v1934
      %v1999 = vadd.f32 %v1806, %v1935
      %v2000 = vadd.f32 %v1807, %v1936
      %v2001 = vadd.f32 %v1808, %v1937
      %v2002 = vadd.f32 %v1809, %v1938
      %v2003 = vadd.f32 %v1810, %v1939
      %v2004 = vadd.f32 %v1811, %v1940
      %v2005 = vadd.f32 %v1812, %v1941
      %v2006 = vadd.f32 %v1813, %v1942
      %v2007 = vadd.f32 %v1814, %v1943
      %v2008 = vadd.f32 %v1815, %v1944
      %v2009 = vadd.f32 %v1816, %v1945
      %v2010 = vadd.f32 %v1817, %v1946
      %v2011 = vadd.f32 %v1818, %v1947
      %v2012 = vadd.f32 %v1819, %v1948
      %v2013 = vadd.f32 %v1820, %v1949
      %v2014 = vadd.f32 %v1821, %v1950
      %v2015 = vadd.f32 %v1822, %v1951
      %v2016 = vadd.f32 %v1823, %v1952
      %v2017 = vadd.f32 %v1824, %v1953
      %v2018 = vadd.f32 %v1825, %v1954
      %v2019 = vadd.f32 %v1826, %v1955
      %v2020 = vadd.f32 %v1827, %v1956
      %v2021 = vadd.f32 %v1828, %v1957
      %v2022 = vadd.f32 %v1829, %v1958
      %v2023 = vadd.f32 %v1830, %v1959
      %v2024 = vadd.f32 %v1831, %v1960
      %v2025 = vadd.f32 %v1832, %v1961
      %v2026 = vadd.f32 %v1833, %v1962
      %v2027 = vadd.f32 %v1834, %v1963
      %v2028 = vadd.f32 %v1835, %v1964
      %v2029 = vadd.f32 %v1836, %v1965
      %v2030 = vadd.f32 %v1837, %v1966
      %v2031 = vadd.f32 %v1838, %v1967
      %v2032 = vadd.f32 %v1839, %v1968
      %v2033 = vadd.f32 %v1840, %v1969
      %v2034 = vadd.f32 %v1841, %v1970
      %v2035 = vadd.f32 %v1842, %v1971
      %v2036 = vadd.f32 %v1843, %v1972
      %v2037 = vadd.f32 %v1844, %v1973
      %v2038 = vadd.f32 %v1845, %v1974
      %v2039 = vadd.f32 %v1846, %v1975
      %s2040 = scalar_lea.vmem [#allocation2], 48
      %v2041 = vld [vmem:[%s2040] sm:$0xff]
      %v2042 = vld [vmem:[%s2040 + $0x8] sm:$0xff]
      %v2043 = vld [vmem:[%s2040 + $0x18] sm:$0xff]
      %v2044 = vld [vmem:[%s2040 + $0x20] sm:$0xff]
      %v2045 = vld [vmem:[%s2040 + $0x30] sm:$0xff]
      %v2046 = vld [vmem:[%s2040 + $0x38] sm:$0xff]
      %v2047 = vld [vmem:[%s2040 + $0x48] sm:$0xff]
      %v2048 = vld [vmem:[%s2040 + $0x50] sm:$0xff]
      %v2049 = vld [vmem:[%s2040 + $0x60] sm:$0xff]
      %v2050 = vld [vmem:[%s2040 + $0x68] sm:$0xff]
      %v2051 = vld [vmem:[%s2040 + $0x78] sm:$0xff]
      %v2052 = vld [vmem:[%s2040 + $0x80] sm:$0xff]
      %v2053 = vld [vmem:[%s2040 + $0x90] sm:$0xff]
      %v2054 = vld [vmem:[%s2040 + $0x98] sm:$0xff]
      %v2055 = vld [vmem:[%s2040 + $0xa8] sm:$0xff]
      %v2056 = vld [vmem:[%s2040 + $0xb0] sm:$0xff]
      %v2057 = vld [vmem:[%s2040 + $0xc0] sm:$0xff]
      %v2058 = vld [vmem:[%s2040 + $0xc8] sm:$0xff]
      %v2059 = vld [vmem:[%s2040 + $0xd8] sm:$0xff]
      %v2060 = vld [vmem:[%s2040 + $0xe0] sm:$0xff]
      %v2061 = vld [vmem:[%s2040 + $0xf0] sm:$0xff]
      %v2062 = vld [vmem:[%s2040 + $0xf8] sm:$0xff]
      %v2063 = vld [vmem:[%s2040 + $0x108] sm:$0xff]
      %v2064 = vld [vmem:[%s2040 + $0x110] sm:$0xff]
      %v2065 = vld [vmem:[%s2040 + $0x120] sm:$0xff]
      %v2066 = vld [vmem:[%s2040 + $0x128] sm:$0xff]
      %v2067 = vld [vmem:[%s2040 + $0x138] sm:$0xff]
      %v2068 = vld [vmem:[%s2040 + $0x140] sm:$0xff]
      %v2069 = vld [vmem:[%s2040 + $0x150] sm:$0xff]
      %v2070 = vld [vmem:[%s2040 + $0x158] sm:$0xff]
      %v2071 = vld [vmem:[%s2040 + $0x168] sm:$0xff]
      %v2072 = vld [vmem:[%s2040 + $0x170] sm:$0xff]
      %v2073 = vld [vmem:[%s2040 + $0x1b0] sm:$0xff]
      %v2074 = vld [vmem:[%s2040 + $0x1b8] sm:$0xff]
      %v2075 = vld [vmem:[%s2040 + $0x1c8] sm:$0xff]
      %v2076 = vld [vmem:[%s2040 + $0x1d0] sm:$0xff]
      %v2077 = vld [vmem:[%s2040 + $0x1e0] sm:$0xff]
      %v2078 = vld [vmem:[%s2040 + $0x1e8] sm:$0xff]
      %v2079 = vld [vmem:[%s2040 + $0x1f8] sm:$0xff]
      %v2080 = vld [vmem:[%s2040 + $0x200] sm:$0xff]
      %v2081 = vld [vmem:[%s2040 + $0x210] sm:$0xff]
      %v2082 = vld [vmem:[%s2040 + $0x218] sm:$0xff]
      %v2083 = vld [vmem:[%s2040 + $0x228] sm:$0xff]
      %v2084 = vld [vmem:[%s2040 + $0x230] sm:$0xff]
      %v2085 = vld [vmem:[%s2040 + $0x240] sm:$0xff]
      %v2086 = vld [vmem:[%s2040 + $0x248] sm:$0xff]
      %v2087 = vld [vmem:[%s2040 + $0x258] sm:$0xff]
      %v2088 = vld [vmem:[%s2040 + $0x260] sm:$0xff]
      %v2089 = vld [vmem:[%s2040 + $0x270] sm:$0xff]
      %v2090 = vld [vmem:[%s2040 + $0x278] sm:$0xff]
      %v2091 = vld [vmem:[%s2040 + $0x288] sm:$0xff]
      %v2092 = vld [vmem:[%s2040 + $0x290] sm:$0xff]
      %v2093 = vld [vmem:[%s2040 + $0x2a0] sm:$0xff]
      %v2094 = vld [vmem:[%s2040 + $0x2a8] sm:$0xff]
      %v2095 = vld [vmem:[%s2040 + $0x2b8] sm:$0xff]
      %v2096 = vld [vmem:[%s2040 + $0x2c0] sm:$0xff]
      %v2097 = vld [vmem:[%s2040 + $0x2d0] sm:$0xff]
      %v2098 = vld [vmem:[%s2040 + $0x2d8] sm:$0xff]
      %v2099 = vld [vmem:[%s2040 + $0x2e8] sm:$0xff]
      %v2100 = vld [vmem:[%s2040 + $0x2f0] sm:$0xff]
      %v2101 = vld [vmem:[%s2040 + $0x300] sm:$0xff]
      %v2102 = vld [vmem:[%s2040 + $0x308] sm:$0xff]
      %v2103 = vld [vmem:[%s2040 + $0x318] sm:$0xff]
      %v2104 = vld [vmem:[%s2040 + $0x320] sm:$0xff]
      %v2105 = vperm.slane %v880, 0
      %v2106 = vmul.f32 %v2041, %v2105
      %v2107 = vmul.f32 %v2042, %v2105
      %v2108 = vmul.f32 %v2043, %v2105
      %v2109 = vmul.f32 %v2044, %v2105
      %v2110 = vmul.f32 %v2045, %v2105
      %v2111 = vmul.f32 %v2046, %v2105
      %v2112 = vmul.f32 %v2047, %v2105
      %v2113 = vmul.f32 %v2048, %v2105
      %v2114 = vmul.f32 %v2049, %v2105
      %v2115 = vmul.f32 %v2050, %v2105
      %v2116 = vmul.f32 %v2051, %v2105
      %v2117 = vmul.f32 %v2052, %v2105
      %v2118 = vmul.f32 %v2053, %v2105
      %v2119 = vmul.f32 %v2054, %v2105
      %v2120 = vmul.f32 %v2055, %v2105
      %v2121 = vmul.f32 %v2056, %v2105
      %v2122 = vmul.f32 %v2057, %v2105
      %v2123 = vmul.f32 %v2058, %v2105
      %v2124 = vmul.f32 %v2059, %v2105
      %v2125 = vmul.f32 %v2060, %v2105
      %v2126 = vmul.f32 %v2061, %v2105
      %v2127 = vmul.f32 %v2062, %v2105
      %v2128 = vmul.f32 %v2063, %v2105
      %v2129 = vmul.f32 %v2064, %v2105
      %v2130 = vmul.f32 %v2065, %v2105
      %v2131 = vmul.f32 %v2066, %v2105
      %v2132 = vmul.f32 %v2067, %v2105
      %v2133 = vmul.f32 %v2068, %v2105
      %v2134 = vmul.f32 %v2069, %v2105
      %v2135 = vmul.f32 %v2070, %v2105
      %v2136 = vmul.f32 %v2071, %v2105
      %v2137 = vmul.f32 %v2072, %v2105
      %v2138 = vmul.f32 %v2073, %v2105
      %v2139 = vmul.f32 %v2074, %v2105
      %v2140 = vmul.f32 %v2075, %v2105
      %v2141 = vmul.f32 %v2076, %v2105
      %v2142 = vmul.f32 %v2077, %v2105
      %v2143 = vmul.f32 %v2078, %v2105
      %v2144 = vmul.f32 %v2079, %v2105
      %v2145 = vmul.f32 %v2080, %v2105
      %v2146 = vmul.f32 %v2081, %v2105
      %v2147 = vmul.f32 %v2082, %v2105
      %v2148 = vmul.f32 %v2083, %v2105
      %v2149 = vmul.f32 %v2084, %v2105
      %v2150 = vmul.f32 %v2085, %v2105
      %v2151 = vmul.f32 %v2086, %v2105
      %v2152 = vmul.f32 %v2087, %v2105
      %v2153 = vmul.f32 %v2088, %v2105
      %v2154 = vmul.f32 %v2089, %v2105
      %v2155 = vmul.f32 %v2090, %v2105
      %v2156 = vmul.f32 %v2091, %v2105
      %v2157 = vmul.f32 %v2092, %v2105
      %v2158 = vmul.f32 %v2093, %v2105
      %v2159 = vmul.f32 %v2094, %v2105
      %v2160 = vmul.f32 %v2095, %v2105
      %v2161 = vmul.f32 %v2096, %v2105
      %v2162 = vmul.f32 %v2097, %v2105
      %v2163 = vmul.f32 %v2098, %v2105
      %v2164 = vmul.f32 %v2099, %v2105
      %v2165 = vmul.f32 %v2100, %v2105
      %v2166 = vmul.f32 %v2101, %v2105
      %v2167 = vmul.f32 %v2102, %v2105
      %v2168 = vmul.f32 %v2103, %v2105
      %v2169 = vmul.f32 %v2104, %v2105
      %v2170 = vadd.f32 %v1976, %v2106
      %v2171 = vadd.f32 %v1977, %v2107
      %v2172 = vadd.f32 %v1978, %v2108
      %v2173 = vadd.f32 %v1979, %v2109
      %v2174 = vadd.f32 %v1980, %v2110
      %v2175 = vadd.f32 %v1981, %v2111
      %v2176 = vadd.f32 %v1982, %v2112
      %v2177 = vadd.f32 %v1983, %v2113
      %v2178 = vadd.f32 %v1984, %v2114
      %v2179 = vadd.f32 %v1985, %v2115
      %v2180 = vadd.f32 %v1986, %v2116
      %v2181 = vadd.f32 %v1987, %v2117
      %v2182 = vadd.f32 %v1988, %v2118
      %v2183 = vadd.f32 %v1989, %v2119
      %v2184 = vadd.f32 %v1990, %v2120
      %v2185 = vadd.f32 %v1991, %v2121
      %v2186 = vadd.f32 %v1992, %v2122
      %v2187 = vadd.f32 %v1993, %v2123
      %v2188 = vadd.f32 %v1994, %v2124
      %v2189 = vadd.f32 %v1995, %v2125
      %v2190 = vadd.f32 %v1996, %v2126
      %v2191 = vadd.f32 %v1997, %v2127
      %v2192 = vadd.f32 %v1998, %v2128
      %v2193 = vadd.f32 %v1999, %v2129
      %v2194 = vadd.f32 %v2000, %v2130
      %v2195 = vadd.f32 %v2001, %v2131
      %v2196 = vadd.f32 %v2002, %v2132
      %v2197 = vadd.f32 %v2003, %v2133
      %v2198 = vadd.f32 %v2004, %v2134
      %v2199 = vadd.f32 %v2005, %v2135
      %v2200 = vadd.f32 %v2006, %v2136
      %v2201 = vadd.f32 %v2007, %v2137
      %v2202 = vadd.f32 %v2008, %v2138
      %v2203 = vadd.f32 %v2009, %v2139
      %v2204 = vadd.f32 %v2010, %v2140
      %v2205 = vadd.f32 %v2011, %v2141
      %v2206 = vadd.f32 %v2012, %v2142
      %v2207 = vadd.f32 %v2013, %v2143
      %v2208 = vadd.f32 %v2014, %v2144
      %v2209 = vadd.f32 %v2015, %v2145
      %v2210 = vadd.f32 %v2016, %v2146
      %v2211 = vadd.f32 %v2017, %v2147
      %v2212 = vadd.f32 %v2018, %v2148
      %v2213 = vadd.f32 %v2019, %v2149
      %v2214 = vadd.f32 %v2020, %v2150
      %v2215 = vadd.f32 %v2021, %v2151
      %v2216 = vadd.f32 %v2022, %v2152
      %v2217 = vadd.f32 %v2023, %v2153
      %v2218 = vadd.f32 %v2024, %v2154
      %v2219 = vadd.f32 %v2025, %v2155
      %v2220 = vadd.f32 %v2026, %v2156
      %v2221 = vadd.f32 %v2027, %v2157
      %v2222 = vadd.f32 %v2028, %v2158
      %v2223 = vadd.f32 %v2029, %v2159
      %v2224 = vadd.f32 %v2030, %v2160
      %v2225 = vadd.f32 %v2031, %v2161
      %v2226 = vadd.f32 %v2032, %v2162
      %v2227 = vadd.f32 %v2033, %v2163
      %v2228 = vadd.f32 %v2034, %v2164
      %v2229 = vadd.f32 %v2035, %v2165
      %v2230 = vadd.f32 %v2036, %v2166
      %v2231 = vadd.f32 %v2037, %v2167
      %v2232 = vadd.f32 %v2038, %v2168
      %v2233 = vadd.f32 %v2039, %v2169
      %v2234 = vld [vmem:[%s2040 + $0x1] sm:$0xff]
      %v2235 = vld [vmem:[%s2040 + $0x9] sm:$0xff]
      %v2236 = vld [vmem:[%s2040 + $0x19] sm:$0xff]
      %v2237 = vld [vmem:[%s2040 + $0x21] sm:$0xff]
      %v2238 = vld [vmem:[%s2040 + $0x31] sm:$0xff]
      %v2239 = vld [vmem:[%s2040 + $0x39] sm:$0xff]
      %v2240 = vld [vmem:[%s2040 + $0x49] sm:$0xff]
      %v2241 = vld [vmem:[%s2040 + $0x51] sm:$0xff]
      %v2242 = vld [vmem:[%s2040 + $0x61] sm:$0xff]
      %v2243 = vld [vmem:[%s2040 + $0x69] sm:$0xff]
      %v2244 = vld [vmem:[%s2040 + $0x79] sm:$0xff]
      %v2245 = vld [vmem:[%s2040 + $0x81] sm:$0xff]
      %v2246 = vld [vmem:[%s2040 + $0x91] sm:$0xff]
      %v2247 = vld [vmem:[%s2040 + $0x99] sm:$0xff]
      %v2248 = vld [vmem:[%s2040 + $0xa9] sm:$0xff]
      %v2249 = vld [vmem:[%s2040 + $0xb1] sm:$0xff]
      %v2250 = vld [vmem:[%s2040 + $0xc1] sm:$0xff]
      %v2251 = vld [vmem:[%s2040 + $0xc9] sm:$0xff]
      %v2252 = vld [vmem:[%s2040 + $0xd9] sm:$0xff]
      %v2253 = vld [vmem:[%s2040 + $0xe1] sm:$0xff]
      %v2254 = vld [vmem:[%s2040 + $0xf1] sm:$0xff]
      %v2255 = vld [vmem:[%s2040 + $0xf9] sm:$0xff]
      %v2256 = vld [vmem:[%s2040 + $0x109] sm:$0xff]
      %v2257 = vld [vmem:[%s2040 + $0x111] sm:$0xff]
      %v2258 = vld [vmem:[%s2040 + $0x121] sm:$0xff]
      %v2259 = vld [vmem:[%s2040 + $0x129] sm:$0xff]
      %v2260 = vld [vmem:[%s2040 + $0x139] sm:$0xff]
      %v2261 = vld [vmem:[%s2040 + $0x141] sm:$0xff]
      %v2262 = vld [vmem:[%s2040 + $0x151] sm:$0xff]
      %v2263 = vld [vmem:[%s2040 + $0x159] sm:$0xff]
      %v2264 = vld [vmem:[%s2040 + $0x169] sm:$0xff]
      %v2265 = vld [vmem:[%s2040 + $0x171] sm:$0xff]
      %v2266 = vld [vmem:[%s2040 + $0x1b1] sm:$0xff]
      %v2267 = vld [vmem:[%s2040 + $0x1b9] sm:$0xff]
      %v2268 = vld [vmem:[%s2040 + $0x1c9] sm:$0xff]
      %v2269 = vld [vmem:[%s2040 + $0x1d1] sm:$0xff]
      %v2270 = vld [vmem:[%s2040 + $0x1e1] sm:$0xff]
      %v2271 = vld [vmem:[%s2040 + $0x1e9] sm:$0xff]
      %v2272 = vld [vmem:[%s2040 + $0x1f9] sm:$0xff]
      %v2273 = vld [vmem:[%s2040 + $0x201] sm:$0xff]
      %v2274 = vld [vmem:[%s2040 + $0x211] sm:$0xff]
      %v2275 = vld [vmem:[%s2040 + $0x219] sm:$0xff]
      %v2276 = vld [vmem:[%s2040 + $0x229] sm:$0xff]
      %v2277 = vld [vmem:[%s2040 + $0x231] sm:$0xff]
      %v2278 = vld [vmem:[%s2040 + $0x241] sm:$0xff]
      %v2279 = vld [vmem:[%s2040 + $0x249] sm:$0xff]
      %v2280 = vld [vmem:[%s2040 + $0x259] sm:$0xff]
      %v2281 = vld [vmem:[%s2040 + $0x261] sm:$0xff]
      %v2282 = vld [vmem:[%s2040 + $0x271] sm:$0xff]
      %v2283 = vld [vmem:[%s2040 + $0x279] sm:$0xff]
      %v2284 = vld [vmem:[%s2040 + $0x289] sm:$0xff]
      %v2285 = vld [vmem:[%s2040 + $0x291] sm:$0xff]
      %v2286 = vld [vmem:[%s2040 + $0x2a1] sm:$0xff]
      %v2287 = vld [vmem:[%s2040 + $0x2a9] sm:$0xff]
      %v2288 = vld [vmem:[%s2040 + $0x2b9] sm:$0xff]
      %v2289 = vld [vmem:[%s2040 + $0x2c1] sm:$0xff]
      %v2290 = vld [vmem:[%s2040 + $0x2d1] sm:$0xff]
      %v2291 = vld [vmem:[%s2040 + $0x2d9] sm:$0xff]
      %v2292 = vld [vmem:[%s2040 + $0x2e9] sm:$0xff]
      %v2293 = vld [vmem:[%s2040 + $0x2f1] sm:$0xff]
      %v2294 = vld [vmem:[%s2040 + $0x301] sm:$0xff]
      %v2295 = vld [vmem:[%s2040 + $0x309] sm:$0xff]
      %v2296 = vld [vmem:[%s2040 + $0x319] sm:$0xff]
      %v2297 = vld [vmem:[%s2040 + $0x321] sm:$0xff]
      %v2298 = vperm.slane %v880, 1
      %v2299 = vmul.f32 %v2234, %v2298
      %v2300 = vmul.f32 %v2235, %v2298
      %v2301 = vmul.f32 %v2236, %v2298
      %v2302 = vmul.f32 %v2237, %v2298
      %v2303 = vmul.f32 %v2238, %v2298
      %v2304 = vmul.f32 %v2239, %v2298
      %v2305 = vmul.f32 %v2240, %v2298
      %v2306 = vmul.f32 %v2241, %v2298
      %v2307 = vmul.f32 %v2242, %v2298
      %v2308 = vmul.f32 %v2243, %v2298
      %v2309 = vmul.f32 %v2244, %v2298
      %v2310 = vmul.f32 %v2245, %v2298
      %v2311 = vmul.f32 %v2246, %v2298
      %v2312 = vmul.f32 %v2247, %v2298
      %v2313 = vmul.f32 %v2248, %v2298
      %v2314 = vmul.f32 %v2249, %v2298
      %v2315 = vmul.f32 %v2250, %v2298
      %v2316 = vmul.f32 %v2251, %v2298
      %v2317 = vmul.f32 %v2252, %v2298
      %v2318 = vmul.f32 %v2253, %v2298
      %v2319 = vmul.f32 %v2254, %v2298
      %v2320 = vmul.f32 %v2255, %v2298
      %v2321 = vmul.f32 %v2256, %v2298
      %v2322 = vmul.f32 %v2257, %v2298
      %v2323 = vmul.f32 %v2258, %v2298
      %v2324 = vmul.f32 %v2259, %v2298
      %v2325 = vmul.f32 %v2260, %v2298
      %v2326 = vmul.f32 %v2261, %v2298
      %v2327 = vmul.f32 %v2262, %v2298
      %v2328 = vmul.f32 %v2263, %v2298
      %v2329 = vmul.f32 %v2264, %v2298
      %v2330 = vmul.f32 %v2265, %v2298
      %v2331 = vmul.f32 %v2266, %v2298
      %v2332 = vmul.f32 %v2267, %v2298
      %v2333 = vmul.f32 %v2268, %v2298
      %v2334 = vmul.f32 %v2269, %v2298
      %v2335 = vmul.f32 %v2270, %v2298
      %v2336 = vmul.f32 %v2271, %v2298
      %v2337 = vmul.f32 %v2272, %v2298
      %v2338 = vmul.f32 %v2273, %v2298
      %v2339 = vmul.f32 %v2274, %v2298
      %v2340 = vmul.f32 %v2275, %v2298
      %v2341 = vmul.f32 %v2276, %v2298
      %v2342 = vmul.f32 %v2277, %v2298
      %v2343 = vmul.f32 %v2278, %v2298
      %v2344 = vmul.f32 %v2279, %v2298
      %v2345 = vmul.f32 %v2280, %v2298
      %v2346 = vmul.f32 %v2281, %v2298
      %v2347 = vmul.f32 %v2282, %v2298
      %v2348 = vmul.f32 %v2283, %v2298
      %v2349 = vmul.f32 %v2284, %v2298
      %v2350 = vmul.f32 %v2285, %v2298
      %v2351 = vmul.f32 %v2286, %v2298
      %v2352 = vmul.f32 %v2287, %v2298
      %v2353 = vmul.f32 %v2288, %v2298
      %v2354 = vmul.f32 %v2289, %v2298
      %v2355 = vmul.f32 %v2290, %v2298
      %v2356 = vmul.f32 %v2291, %v2298
      %v2357 = vmul.f32 %v2292, %v2298
      %v2358 = vmul.f32 %v2293, %v2298
      %v2359 = vmul.f32 %v2294, %v2298
      %v2360 = vmul.f32 %v2295, %v2298
      %v2361 = vmul.f32 %v2296, %v2298
      %v2362 = vmul.f32 %v2297, %v2298
      %v2363 = vadd.f32 %v2170, %v2299
      %v2364 = vadd.f32 %v2171, %v2300
      %v2365 = vadd.f32 %v2172, %v2301
      %v2366 = vadd.f32 %v2173, %v2302
      %v2367 = vadd.f32 %v2174, %v2303
      %v2368 = vadd.f32 %v2175, %v2304
      %v2369 = vadd.f32 %v2176, %v2305
      %v2370 = vadd.f32 %v2177, %v2306
      %v2371 = vadd.f32 %v2178, %v2307
      %v2372 = vadd.f32 %v2179, %v2308
      %v2373 = vadd.f32 %v2180, %v2309
      %v2374 = vadd.f32 %v2181, %v2310
      %v2375 = vadd.f32 %v2182, %v2311
      %v2376 = vadd.f32 %v2183, %v2312
      %v2377 = vadd.f32 %v2184, %v2313
      %v2378 = vadd.f32 %v2185, %v2314
      %v2379 = vadd.f32 %v2186, %v2315
      %v2380 = vadd.f32 %v2187, %v2316
      %v2381 = vadd.f32 %v2188, %v2317
      %v2382 = vadd.f32 %v2189, %v2318
      %v2383 = vadd.f32 %v2190, %v2319
      %v2384 = vadd.f32 %v2191, %v2320
      %v2385 = vadd.f32 %v2192, %v2321
      %v2386 = vadd.f32 %v2193, %v2322
      %v2387 = vadd.f32 %v2194, %v2323
      %v2388 = vadd.f32 %v2195, %v2324
      %v2389 = vadd.f32 %v2196, %v2325
      %v2390 = vadd.f32 %v2197, %v2326
      %v2391 = vadd.f32 %v2198, %v2327
      %v2392 = vadd.f32 %v2199, %v2328
      %v2393 = vadd.f32 %v2200, %v2329
      %v2394 = vadd.f32 %v2201, %v2330
      %v2395 = vadd.f32 %v2202, %v2331
      %v2396 = vadd.f32 %v2203, %v2332
      %v2397 = vadd.f32 %v2204, %v2333
      %v2398 = vadd.f32 %v2205, %v2334
      %v2399 = vadd.f32 %v2206, %v2335
      %v2400 = vadd.f32 %v2207, %v2336
      %v2401 = vadd.f32 %v2208, %v2337
      %v2402 = vadd.f32 %v2209, %v2338
      %v2403 = vadd.f32 %v2210, %v2339
      %v2404 = vadd.f32 %v2211, %v2340
      %v2405 = vadd.f32 %v2212, %v2341
      %v2406 = vadd.f32 %v2213, %v2342
      %v2407 = vadd.f32 %v2214, %v2343
      %v2408 = vadd.f32 %v2215, %v2344
      %v2409 = vadd.f32 %v2216, %v2345
      %v2410 = vadd.f32 %v2217, %v2346
      %v2411 = vadd.f32 %v2218, %v2347
      %v2412 = vadd.f32 %v2219, %v2348
      %v2413 = vadd.f32 %v2220, %v2349
      %v2414 = vadd.f32 %v2221, %v2350
      %v2415 = vadd.f32 %v2222, %v2351
      %v2416 = vadd.f32 %v2223, %v2352
      %v2417 = vadd.f32 %v2224, %v2353
      %v2418 = vadd.f32 %v2225, %v2354
      %v2419 = vadd.f32 %v2226, %v2355
      %v2420 = vadd.f32 %v2227, %v2356
      %v2421 = vadd.f32 %v2228, %v2357
      %v2422 = vadd.f32 %v2229, %v2358
      %v2423 = vadd.f32 %v2230, %v2359
      %v2424 = vadd.f32 %v2231, %v2360
      %v2425 = vadd.f32 %v2232, %v2361
      %v2426 = vadd.f32 %v2233, %v2362
      %v2427 = vld [vmem:[%s2040 + $0x2] sm:$0xff]
      %v2428 = vld [vmem:[%s2040 + $0xa] sm:$0xff]
      %v2429 = vld [vmem:[%s2040 + $0x1a] sm:$0xff]
      %v2430 = vld [vmem:[%s2040 + $0x22] sm:$0xff]
      %v2431 = vld [vmem:[%s2040 + $0x32] sm:$0xff]
      %v2432 = vld [vmem:[%s2040 + $0x3a] sm:$0xff]
      %v2433 = vld [vmem:[%s2040 + $0x4a] sm:$0xff]
      %v2434 = vld [vmem:[%s2040 + $0x52] sm:$0xff]
      %v2435 = vld [vmem:[%s2040 + $0x62] sm:$0xff]
      %v2436 = vld [vmem:[%s2040 + $0x6a] sm:$0xff]
      %v2437 = vld [vmem:[%s2040 + $0x7a] sm:$0xff]
      %v2438 = vld [vmem:[%s2040 + $0x82] sm:$0xff]
      %v2439 = vld [vmem:[%s2040 + $0x92] sm:$0xff]
      %v2440 = vld [vmem:[%s2040 + $0x9a] sm:$0xff]
      %v2441 = vld [vmem:[%s2040 + $0xaa] sm:$0xff]
      %v2442 = vld [vmem:[%s2040 + $0xb2] sm:$0xff]
      %v2443 = vld [vmem:[%s2040 + $0xc2] sm:$0xff]
      %v2444 = vld [vmem:[%s2040 + $0xca] sm:$0xff]
      %v2445 = vld [vmem:[%s2040 + $0xda] sm:$0xff]
      %v2446 = vld [vmem:[%s2040 + $0xe2] sm:$0xff]
      %v2447 = vld [vmem:[%s2040 + $0xf2] sm:$0xff]
      %v2448 = vld [vmem:[%s2040 + $0xfa] sm:$0xff]
      %v2449 = vld [vmem:[%s2040 + $0x10a] sm:$0xff]
      %v2450 = vld [vmem:[%s2040 + $0x112] sm:$0xff]
      %v2451 = vld [vmem:[%s2040 + $0x122] sm:$0xff]
      %v2452 = vld [vmem:[%s2040 + $0x12a] sm:$0xff]
      %v2453 = vld [vmem:[%s2040 + $0x13a] sm:$0xff]
      %v2454 = vld [vmem:[%s2040 + $0x142] sm:$0xff]
      %v2455 = vld [vmem:[%s2040 + $0x152] sm:$0xff]
      %v2456 = vld [vmem:[%s2040 + $0x15a] sm:$0xff]
      %v2457 = vld [vmem:[%s2040 + $0x16a] sm:$0xff]
      %v2458 = vld [vmem:[%s2040 + $0x172] sm:$0xff]
      %v2459 = vld [vmem:[%s2040 + $0x1b2] sm:$0xff]
      %v2460 = vld [vmem:[%s2040 + $0x1ba] sm:$0xff]
      %v2461 = vld [vmem:[%s2040 + $0x1ca] sm:$0xff]
      %v2462 = vld [vmem:[%s2040 + $0x1d2] sm:$0xff]
      %v2463 = vld [vmem:[%s2040 + $0x1e2] sm:$0xff]
      %v2464 = vld [vmem:[%s2040 + $0x1ea] sm:$0xff]
      %v2465 = vld [vmem:[%s2040 + $0x1fa] sm:$0xff]
      %v2466 = vld [vmem:[%s2040 + $0x202] sm:$0xff]
      %v2467 = vld [vmem:[%s2040 + $0x212] sm:$0xff]
      %v2468 = vld [vmem:[%s2040 + $0x21a] sm:$0xff]
      %v2469 = vld [vmem:[%s2040 + $0x22a] sm:$0xff]
      %v2470 = vld [vmem:[%s2040 + $0x232] sm:$0xff]
      %v2471 = vld [vmem:[%s2040 + $0x242] sm:$0xff]
      %v2472 = vld [vmem:[%s2040 + $0x24a] sm:$0xff]
      %v2473 = vld [vmem:[%s2040 + $0x25a] sm:$0xff]
      %v2474 = vld [vmem:[%s2040 + $0x262] sm:$0xff]
      %v2475 = vld [vmem:[%s2040 + $0x272] sm:$0xff]
      %v2476 = vld [vmem:[%s2040 + $0x27a] sm:$0xff]
      %v2477 = vld [vmem:[%s2040 + $0x28a] sm:$0xff]
      %v2478 = vld [vmem:[%s2040 + $0x292] sm:$0xff]
      %v2479 = vld [vmem:[%s2040 + $0x2a2] sm:$0xff]
      %v2480 = vld [vmem:[%s2040 + $0x2aa] sm:$0xff]
      %v2481 = vld [vmem:[%s2040 + $0x2ba] sm:$0xff]
      %v2482 = vld [vmem:[%s2040 + $0x2c2] sm:$0xff]
      %v2483 = vld [vmem:[%s2040 + $0x2d2] sm:$0xff]
      %v2484 = vld [vmem:[%s2040 + $0x2da] sm:$0xff]
      %v2485 = vld [vmem:[%s2040 + $0x2ea] sm:$0xff]
      %v2486 = vld [vmem:[%s2040 + $0x2f2] sm:$0xff]
      %v2487 = vld [vmem:[%s2040 + $0x302] sm:$0xff]
      %v2488 = vld [vmem:[%s2040 + $0x30a] sm:$0xff]
      %v2489 = vld [vmem:[%s2040 + $0x31a] sm:$0xff]
      %v2490 = vld [vmem:[%s2040 + $0x322] sm:$0xff]
      %v2491 = vperm.slane %v880, 2
      %v2492 = vmul.f32 %v2427, %v2491
      %v2493 = vmul.f32 %v2428, %v2491
      %v2494 = vmul.f32 %v2429, %v2491
      %v2495 = vmul.f32 %v2430, %v2491
      %v2496 = vmul.f32 %v2431, %v2491
      %v2497 = vmul.f32 %v2432, %v2491
      %v2498 = vmul.f32 %v2433, %v2491
      %v2499 = vmul.f32 %v2434, %v2491
      %v2500 = vmul.f32 %v2435, %v2491
      %v2501 = vmul.f32 %v2436, %v2491
      %v2502 = vmul.f32 %v2437, %v2491
      %v2503 = vmul.f32 %v2438, %v2491
      %v2504 = vmul.f32 %v2439, %v2491
      %v2505 = vmul.f32 %v2440, %v2491
      %v2506 = vmul.f32 %v2441, %v2491
      %v2507 = vmul.f32 %v2442, %v2491
      %v2508 = vmul.f32 %v2443, %v2491
      %v2509 = vmul.f32 %v2444, %v2491
      %v2510 = vmul.f32 %v2445, %v2491
      %v2511 = vmul.f32 %v2446, %v2491
      %v2512 = vmul.f32 %v2447, %v2491
      %v2513 = vmul.f32 %v2448, %v2491
      %v2514 = vmul.f32 %v2449, %v2491
      %v2515 = vmul.f32 %v2450, %v2491
      %v2516 = vmul.f32 %v2451, %v2491
      %v2517 = vmul.f32 %v2452, %v2491
      %v2518 = vmul.f32 %v2453, %v2491
      %v2519 = vmul.f32 %v2454, %v2491
      %v2520 = vmul.f32 %v2455, %v2491
      %v2521 = vmul.f32 %v2456, %v2491
      %v2522 = vmul.f32 %v2457, %v2491
      %v2523 = vmul.f32 %v2458, %v2491
      %v2524 = vmul.f32 %v2459, %v2491
      %v2525 = vmul.f32 %v2460, %v2491
      %v2526 = vmul.f32 %v2461, %v2491
      %v2527 = vmul.f32 %v2462, %v2491
      %v2528 = vmul.f32 %v2463, %v2491
      %v2529 = vmul.f32 %v2464, %v2491
      %v2530 = vmul.f32 %v2465, %v2491
      %v2531 = vmul.f32 %v2466, %v2491
      %v2532 = vmul.f32 %v2467, %v2491
      %v2533 = vmul.f32 %v2468, %v2491
      %v2534 = vmul.f32 %v2469, %v2491
      %v2535 = vmul.f32 %v2470, %v2491
      %v2536 = vmul.f32 %v2471, %v2491
      %v2537 = vmul.f32 %v2472, %v2491
      %v2538 = vmul.f32 %v2473, %v2491
      %v2539 = vmul.f32 %v2474, %v2491
      %v2540 = vmul.f32 %v2475, %v2491
      %v2541 = vmul.f32 %v2476, %v2491
      %v2542 = vmul.f32 %v2477, %v2491
      %v2543 = vmul.f32 %v2478, %v2491
      %v2544 = vmul.f32 %v2479, %v2491
      %v2545 = vmul.f32 %v2480, %v2491
      %v2546 = vmul.f32 %v2481, %v2491
      %v2547 = vmul.f32 %v2482, %v2491
      %v2548 = vmul.f32 %v2483, %v2491
      %v2549 = vmul.f32 %v2484, %v2491
      %v2550 = vmul.f32 %v2485, %v2491
      %v2551 = vmul.f32 %v2486, %v2491
      %v2552 = vmul.f32 %v2487, %v2491
      %v2553 = vmul.f32 %v2488, %v2491
      %v2554 = vmul.f32 %v2489, %v2491
      %v2555 = vmul.f32 %v2490, %v2491
      %v2556 = vadd.f32 %v2363, %v2492
      %v2557 = vadd.f32 %v2364, %v2493
      %v2558 = vadd.f32 %v2365, %v2494
      %v2559 = vadd.f32 %v2366, %v2495
      %v2560 = vadd.f32 %v2367, %v2496
      %v2561 = vadd.f32 %v2368, %v2497
      %v2562 = vadd.f32 %v2369, %v2498
      %v2563 = vadd.f32 %v2370, %v2499
      %v2564 = vadd.f32 %v2371, %v2500
      %v2565 = vadd.f32 %v2372, %v2501
      %v2566 = vadd.f32 %v2373, %v2502
      %v2567 = vadd.f32 %v2374, %v2503
      %v2568 = vadd.f32 %v2375, %v2504
      %v2569 = vadd.f32 %v2376, %v2505
      %v2570 = vadd.f32 %v2377, %v2506
      %v2571 = vadd.f32 %v2378, %v2507
      %v2572 = vadd.f32 %v2379, %v2508
      %v2573 = vadd.f32 %v2380, %v2509
      %v2574 = vadd.f32 %v2381, %v2510
      %v2575 = vadd.f32 %v2382, %v2511
      %v2576 = vadd.f32 %v2383, %v2512
      %v2577 = vadd.f32 %v2384, %v2513
      %v2578 = vadd.f32 %v2385, %v2514
      %v2579 = vadd.f32 %v2386, %v2515
      %v2580 = vadd.f32 %v2387, %v2516
      %v2581 = vadd.f32 %v2388, %v2517
      %v2582 = vadd.f32 %v2389, %v2518
      %v2583 = vadd.f32 %v2390, %v2519
      %v2584 = vadd.f32 %v2391, %v2520
      %v2585 = vadd.f32 %v2392, %v2521
      %v2586 = vadd.f32 %v2393, %v2522
      %v2587 = vadd.f32 %v2394, %v2523
      %v2588 = vadd.f32 %v2395, %v2524
      %v2589 = vadd.f32 %v2396, %v2525
      %v2590 = vadd.f32 %v2397, %v2526
      %v2591 = vadd.f32 %v2398, %v2527
      %v2592 = vadd.f32 %v2399, %v2528
      %v2593 = vadd.f32 %v2400, %v2529
      %v2594 = vadd.f32 %v2401, %v2530
      %v2595 = vadd.f32 %v2402, %v2531
      %v2596 = vadd.f32 %v2403, %v2532
      %v2597 = vadd.f32 %v2404, %v2533
      %v2598 = vadd.f32 %v2405, %v2534
      %v2599 = vadd.f32 %v2406, %v2535
      %v2600 = vadd.f32 %v2407, %v2536
      %v2601 = vadd.f32 %v2408, %v2537
      %v2602 = vadd.f32 %v2409, %v2538
      %v2603 = vadd.f32 %v2410, %v2539
      %v2604 = vadd.f32 %v2411, %v2540
      %v2605 = vadd.f32 %v2412, %v2541
      %v2606 = vadd.f32 %v2413, %v2542
      %v2607 = vadd.f32 %v2414, %v2543
      %v2608 = vadd.f32 %v2415, %v2544
      %v2609 = vadd.f32 %v2416, %v2545
      %v2610 = vadd.f32 %v2417, %v2546
      %v2611 = vadd.f32 %v2418, %v2547
      %v2612 = vadd.f32 %v2419, %v2548
      %v2613 = vadd.f32 %v2420, %v2549
      %v2614 = vadd.f32 %v2421, %v2550
      %v2615 = vadd.f32 %v2422, %v2551
      %v2616 = vadd.f32 %v2423, %v2552
      %v2617 = vadd.f32 %v2424, %v2553
      %v2618 = vadd.f32 %v2425, %v2554
      %v2619 = vadd.f32 %v2426, %v2555
      %v2620 = vpack.c.bf16 %v2557, %v2556
      %v2621 = vpack.c.bf16 %v2559, %v2558
      %v2622 = vpack.c.bf16 %v2561, %v2560
      %v2623 = vpack.c.bf16 %v2563, %v2562
      %v2624 = vpack.c.bf16 %v2565, %v2564
      %v2625 = vpack.c.bf16 %v2567, %v2566
      %v2626 = vpack.c.bf16 %v2569, %v2568
      %v2627 = vpack.c.bf16 %v2571, %v2570
      %v2628 = vpack.c.bf16 %v2573, %v2572
      %v2629 = vpack.c.bf16 %v2575, %v2574
      %v2630 = vpack.c.bf16 %v2577, %v2576
      %v2631 = vpack.c.bf16 %v2579, %v2578
      %v2632 = vpack.c.bf16 %v2581, %v2580
      %v2633 = vpack.c.bf16 %v2583, %v2582
      %v2634 = vpack.c.bf16 %v2585, %v2584
      %v2635 = vpack.c.bf16 %v2587, %v2586
      %v2636 = vpack.c.bf16 %v2589, %v2588
      %v2637 = vpack.c.bf16 %v2591, %v2590
      %v2638 = vpack.c.bf16 %v2593, %v2592
      %v2639 = vpack.c.bf16 %v2595, %v2594
      %v2640 = vpack.c.bf16 %v2597, %v2596
      %v2641 = vpack.c.bf16 %v2599, %v2598
      %v2642 = vpack.c.bf16 %v2601, %v2600
      %v2643 = vpack.c.bf16 %v2603, %v2602
      %v2644 = vpack.c.bf16 %v2605, %v2604
      %v2645 = vpack.c.bf16 %v2607, %v2606
      %v2646 = vpack.c.bf16 %v2609, %v2608
      %v2647 = vpack.c.bf16 %v2611, %v2610
      %v2648 = vpack.c.bf16 %v2613, %v2612
      %v2649 = vpack.c.bf16 %v2615, %v2614
      %v2650 = vpack.c.bf16 %v2617, %v2616
      %v2651 = vpack.c.bf16 %v2619, %v2618
      %v2652 = vld [vmem:[%s516] sm:$0xf]
      %v2654 = vsel %vm768, %v2620, 0
      %v2657 = vsel %vm768, %v2621, 0
      %v2660 = vsel %vm768, %v2622, 0
      %v2663 = vsel %vm768, %v2623, 0
      %v2666 = vsel %vm768, %v2624, 0
      %v2669 = vsel %vm768, %v2625, 0
      %v2672 = vsel %vm768, %v2626, 0
      %v2675 = vsel %vm768, %v2627, 0
      %v2678 = vsel %vm768, %v2628, 0
      %v2681 = vsel %vm768, %v2629, 0
      %v2684 = vsel %vm768, %v2630, 0
      %v2687 = vsel %vm768, %v2631, 0
      %v2690 = vsel %vm768, %v2632, 0
      %v2693 = vsel %vm768, %v2633, 0
      %v2696 = vsel %vm768, %v2634, 0
      %v2699 = vsel %vm768, %v2635, 0
      %v2702 = vsel %vm768, %v2636, 0
      %v2705 = vsel %vm768, %v2637, 0
      %v2708 = vsel %vm768, %v2638, 0
      %v2711 = vsel %vm768, %v2639, 0
      %v2714 = vsel %vm768, %v2640, 0
      %v2717 = vsel %vm768, %v2641, 0
      %v2720 = vsel %vm768, %v2642, 0
      %v2723 = vsel %vm768, %v2643, 0
      %v2726 = vsel %vm768, %v2644, 0
      %v2729 = vsel %vm768, %v2645, 0
      %v2732 = vsel %vm768, %v2646, 0
      %v2735 = vsel %vm768, %v2647, 0
      %v2738 = vsel %vm768, %v2648, 0
      %v2741 = vsel %vm768, %v2649, 0
      %v2744 = vsel %vm768, %v2650, 0
      %v2747 = vsel %vm768, %v2651, 0
      %vm2749 = vcmask 1043456
      %v2751 = vsel %vm2749, %v2652, 0
      %2753 = vmatpush.bf16.msra.mxu0 0
      %2754 = vmatpush.bf16.msra.mxu0 0
      %2755 = vmatpush.bf16.msra.mxu0 0
      %2756 = vmatpush.bf16.msra.mxu0 0
      %2757 = vmatpush.bf16.msra.mxu0 0
      %2758 = vmatpush.bf16.msra.mxu0 0
      %2759 = vmatpush.bf16.msra.mxu0 0
      %2760 = vmatpush.bf16.msra.mxu0 %v2751
      %2761 = vmatmul.bf16.gmra.mxu0 %v2654
      %v2762 = vpop.f32.mrf.mxu0
      %v2763 = vadd.f32 0.0, %v2762
      %v2764 = vpop.f32.mrf.mxu0
      %v2765 = vadd.f32 0.0, %v2764
      %2766 = vmatmul.bf16.gmra.mxu0 %v2657
      %v2767 = vpop.f32.mrf.mxu0
      %v2768 = vadd.f32 0.0, %v2767
      %v2769 = vpop.f32.mrf.mxu0
      %v2770 = vadd.f32 0.0, %v2769
      %2771 = vmatmul.bf16.gmra.mxu0 %v2660
      %v2772 = vpop.f32.mrf.mxu0
      %v2773 = vadd.f32 0.0, %v2772
      %v2774 = vpop.f32.mrf.mxu0
      %v2775 = vadd.f32 0.0, %v2774
      %2776 = vmatmul.bf16.gmra.mxu0 %v2663
      %v2777 = vpop.f32.mrf.mxu0
      %v2778 = vadd.f32 0.0, %v2777
      %v2779 = vpop.f32.mrf.mxu0
      %v2780 = vadd.f32 0.0, %v2779
      %2781 = vmatmul.bf16.gmra.mxu0 %v2666
      %v2782 = vpop.f32.mrf.mxu0
      %v2783 = vadd.f32 0.0, %v2782
      %v2784 = vpop.f32.mrf.mxu0
      %v2785 = vadd.f32 0.0, %v2784
      %2786 = vmatmul.bf16.gmra.mxu0 %v2669
      %v2787 = vpop.f32.mrf.mxu0
      %v2788 = vadd.f32 0.0, %v2787
      %v2789 = vpop.f32.mrf.mxu0
      %v2790 = vadd.f32 0.0, %v2789
      %2791 = vmatmul.bf16.gmra.mxu0 %v2672
      %v2792 = vpop.f32.mrf.mxu0
      %v2793 = vadd.f32 0.0, %v2792
      %v2794 = vpop.f32.mrf.mxu0
      %v2795 = vadd.f32 0.0, %v2794
      %2796 = vmatmul.bf16.gmra.mxu0 %v2675
      %v2797 = vpop.f32.mrf.mxu0
      %v2798 = vadd.f32 0.0, %v2797
      %v2799 = vpop.f32.mrf.mxu0
      %v2800 = vadd.f32 0.0, %v2799
      %2801 = vmatmul.bf16.gmra.mxu0 %v2678
      %v2802 = vpop.f32.mrf.mxu0
      %v2803 = vadd.f32 0.0, %v2802
      %v2804 = vpop.f32.mrf.mxu0
      %v2805 = vadd.f32 0.0, %v2804
      %2806 = vmatmul.bf16.gmra.mxu0 %v2681
      %v2807 = vpop.f32.mrf.mxu0
      %v2808 = vadd.f32 0.0, %v2807
      %v2809 = vpop.f32.mrf.mxu0
      %v2810 = vadd.f32 0.0, %v2809
      %2811 = vmatmul.bf16.gmra.mxu0 %v2684
      %v2812 = vpop.f32.mrf.mxu0
      %v2813 = vadd.f32 0.0, %v2812
      %v2814 = vpop.f32.mrf.mxu0
      %v2815 = vadd.f32 0.0, %v2814
      %2816 = vmatmul.bf16.gmra.mxu0 %v2687
      %v2817 = vpop.f32.mrf.mxu0
      %v2818 = vadd.f32 0.0, %v2817
      %v2819 = vpop.f32.mrf.mxu0
      %v2820 = vadd.f32 0.0, %v2819
      %2821 = vmatmul.bf16.gmra.mxu0 %v2690
      %v2822 = vpop.f32.mrf.mxu0
      %v2823 = vadd.f32 0.0, %v2822
      %v2824 = vpop.f32.mrf.mxu0
      %v2825 = vadd.f32 0.0, %v2824
      %2826 = vmatmul.bf16.gmra.mxu0 %v2693
      %v2827 = vpop.f32.mrf.mxu0
      %v2828 = vadd.f32 0.0, %v2827
      %v2829 = vpop.f32.mrf.mxu0
      %v2830 = vadd.f32 0.0, %v2829
      %2831 = vmatmul.bf16.gmra.mxu0 %v2696
      %v2832 = vpop.f32.mrf.mxu0
      %v2833 = vadd.f32 0.0, %v2832
      %v2834 = vpop.f32.mrf.mxu0
      %v2835 = vadd.f32 0.0, %v2834
      %2836 = vmatmul.bf16.gmra.mxu0 %v2699
      %v2837 = vpop.f32.mrf.mxu0
      %v2838 = vadd.f32 0.0, %v2837
      %v2839 = vpop.f32.mrf.mxu0
      %v2840 = vadd.f32 0.0, %v2839
      %2841 = vmatmul.bf16.gmra.mxu0 %v2702
      %v2842 = vpop.f32.mrf.mxu0
      %v2843 = vadd.f32 0.0, %v2842
      %v2844 = vpop.f32.mrf.mxu0
      %v2845 = vadd.f32 0.0, %v2844
      %2846 = vmatmul.bf16.gmra.mxu0 %v2705
      %v2847 = vpop.f32.mrf.mxu0
      %v2848 = vadd.f32 0.0, %v2847
      %v2849 = vpop.f32.mrf.mxu0
      %v2850 = vadd.f32 0.0, %v2849
      %2851 = vmatmul.bf16.gmra.mxu0 %v2708
      %v2852 = vpop.f32.mrf.mxu0
      %v2853 = vadd.f32 0.0, %v2852
      %v2854 = vpop.f32.mrf.mxu0
      %v2855 = vadd.f32 0.0, %v2854
      %2856 = vmatmul.bf16.gmra.mxu0 %v2711
      %v2857 = vpop.f32.mrf.mxu0
      %v2858 = vadd.f32 0.0, %v2857
      %v2859 = vpop.f32.mrf.mxu0
      %v2860 = vadd.f32 0.0, %v2859
      %2861 = vmatmul.bf16.gmra.mxu0 %v2714
      %v2862 = vpop.f32.mrf.mxu0
      %v2863 = vadd.f32 0.0, %v2862
      %v2864 = vpop.f32.mrf.mxu0
      %v2865 = vadd.f32 0.0, %v2864
      %2866 = vmatmul.bf16.gmra.mxu0 %v2717
      %v2867 = vpop.f32.mrf.mxu0
      %v2868 = vadd.f32 0.0, %v2867
      %v2869 = vpop.f32.mrf.mxu0
      %v2870 = vadd.f32 0.0, %v2869
      %2871 = vmatmul.bf16.gmra.mxu0 %v2720
      %v2872 = vpop.f32.mrf.mxu0
      %v2873 = vadd.f32 0.0, %v2872
      %v2874 = vpop.f32.mrf.mxu0
      %v2875 = vadd.f32 0.0, %v2874
      %2876 = vmatmul.bf16.gmra.mxu0 %v2723
      %v2877 = vpop.f32.mrf.mxu0
      %v2878 = vadd.f32 0.0, %v2877
      %v2879 = vpop.f32.mrf.mxu0
      %v2880 = vadd.f32 0.0, %v2879
      %2881 = vmatmul.bf16.gmra.mxu0 %v2726
      %v2882 = vpop.f32.mrf.mxu0
      %v2883 = vadd.f32 0.0, %v2882
      %v2884 = vpop.f32.mrf.mxu0
      %v2885 = vadd.f32 0.0, %v2884
      %2886 = vmatmul.bf16.gmra.mxu0 %v2729
      %v2887 = vpop.f32.mrf.mxu0
      %v2888 = vadd.f32 0.0, %v2887
      %v2889 = vpop.f32.mrf.mxu0
      %v2890 = vadd.f32 0.0, %v2889
      %2891 = vmatmul.bf16.gmra.mxu0 %v2732
      %v2892 = vpop.f32.mrf.mxu0
      %v2893 = vadd.f32 0.0, %v2892
      %v2894 = vpop.f32.mrf.mxu0
      %v2895 = vadd.f32 0.0, %v2894
      %2896 = vmatmul.bf16.gmra.mxu0 %v2735
      %v2897 = vpop.f32.mrf.mxu0
      %v2898 = vadd.f32 0.0, %v2897
      %v2899 = vpop.f32.mrf.mxu0
      %v2900 = vadd.f32 0.0, %v2899
      %2901 = vmatmul.bf16.gmra.mxu0 %v2738
      %v2902 = vpop.f32.mrf.mxu0
      %v2903 = vadd.f32 0.0, %v2902
      %v2904 = vpop.f32.mrf.mxu0
      %v2905 = vadd.f32 0.0, %v2904
      %2906 = vmatmul.bf16.gmra.mxu0 %v2741
      %v2907 = vpop.f32.mrf.mxu0
      %v2908 = vadd.f32 0.0, %v2907
      %v2909 = vpop.f32.mrf.mxu0
      %v2910 = vadd.f32 0.0, %v2909
      %2911 = vmatmul.bf16.gmra.mxu0 %v2744
      %v2912 = vpop.f32.mrf.mxu0
      %v2913 = vadd.f32 0.0, %v2912
      %v2914 = vpop.f32.mrf.mxu0
      %v2915 = vadd.f32 0.0, %v2914
      %2916 = vmatmul.bf16.gmra.mxu0 %v2747
      %v2917 = vpop.f32.mrf.mxu0
      %v2918 = vadd.f32 0.0, %v2917
      %v2919 = vpop.f32.mrf.mxu0
      %v2920 = vadd.f32 0.0, %v2919
      %2921 = vdwg.mxu0
      %v2922 = vsel %vm768, %v2763, 0.0
      %v2923 = vsel %vm768, %v2765, 0.0
      %v2924 = vadd.f32 %v2922, %v2923
      %v2925 = vsel %vm768, %v2768, 0.0
      %v2926 = vadd.f32 %v2924, %v2925
      %v2927 = vsel %vm768, %v2770, 0.0
      %v2928 = vadd.f32 %v2926, %v2927
      %v2929 = vsel %vm768, %v2773, 0.0
      %v2930 = vadd.f32 %v2928, %v2929
      %v2931 = vsel %vm768, %v2775, 0.0
      %v2932 = vadd.f32 %v2930, %v2931
      %v2933 = vsel %vm768, %v2778, 0.0
      %v2934 = vadd.f32 %v2932, %v2933
      %v2935 = vsel %vm768, %v2780, 0.0
      %v2936 = vadd.f32 %v2934, %v2935
      %v2937 = vsel %vm768, %v2783, 0.0
      %v2938 = vadd.f32 %v2936, %v2937
      %v2939 = vsel %vm768, %v2785, 0.0
      %v2940 = vadd.f32 %v2938, %v2939
      %v2941 = vsel %vm768, %v2788, 0.0
      %v2942 = vadd.f32 %v2940, %v2941
      %v2943 = vsel %vm768, %v2790, 0.0
      %v2944 = vadd.f32 %v2942, %v2943
      %v2945 = vsel %vm768, %v2793, 0.0
      %v2946 = vadd.f32 %v2944, %v2945
      %v2947 = vsel %vm768, %v2795, 0.0
      %v2948 = vadd.f32 %v2946, %v2947
      %v2949 = vsel %vm768, %v2798, 0.0
      %v2950 = vadd.f32 %v2948, %v2949
      %v2951 = vsel %vm768, %v2800, 0.0
      %v2952 = vadd.f32 %v2950, %v2951
      %v2953 = vsel %vm768, %v2803, 0.0
      %v2954 = vadd.f32 %v2952, %v2953
      %v2955 = vsel %vm768, %v2805, 0.0
      %v2956 = vadd.f32 %v2954, %v2955
      %v2957 = vsel %vm768, %v2808, 0.0
      %v2958 = vadd.f32 %v2956, %v2957
      %v2959 = vsel %vm768, %v2810, 0.0
      %v2960 = vadd.f32 %v2958, %v2959
      %v2961 = vsel %vm768, %v2813, 0.0
      %v2962 = vadd.f32 %v2960, %v2961
      %v2963 = vsel %vm768, %v2815, 0.0
      %v2964 = vadd.f32 %v2962, %v2963
      %v2965 = vsel %vm768, %v2818, 0.0
      %v2966 = vadd.f32 %v2964, %v2965
      %v2967 = vsel %vm768, %v2820, 0.0
      %v2968 = vadd.f32 %v2966, %v2967
      %v2969 = vsel %vm768, %v2823, 0.0
      %v2970 = vadd.f32 %v2968, %v2969
      %v2971 = vsel %vm768, %v2825, 0.0
      %v2972 = vadd.f32 %v2970, %v2971
      %v2973 = vsel %vm768, %v2828, 0.0
      %v2974 = vadd.f32 %v2972, %v2973
      %v2975 = vsel %vm768, %v2830, 0.0
      %v2976 = vadd.f32 %v2974, %v2975
      %v2977 = vsel %vm768, %v2833, 0.0
      %v2978 = vadd.f32 %v2976, %v2977
      %v2979 = vsel %vm768, %v2835, 0.0
      %v2980 = vadd.f32 %v2978, %v2979
      %v2981 = vsel %vm768, %v2838, 0.0
      %v2982 = vadd.f32 %v2980, %v2981
      %v2983 = vsel %vm768, %v2840, 0.0
      %v2984 = vadd.f32 %v2982, %v2983
      %v2985 = vsel %vm768, %v2843, 0.0
      %v2986 = vadd.f32 %v2984, %v2985
      %v2987 = vsel %vm768, %v2845, 0.0
      %v2988 = vadd.f32 %v2986, %v2987
      %v2989 = vsel %vm768, %v2848, 0.0
      %v2990 = vadd.f32 %v2988, %v2989
      %v2991 = vsel %vm768, %v2850, 0.0
      %v2992 = vadd.f32 %v2990, %v2991
      %v2993 = vsel %vm768, %v2853, 0.0
      %v2994 = vadd.f32 %v2992, %v2993
      %v2995 = vsel %vm768, %v2855, 0.0
      %v2996 = vadd.f32 %v2994, %v2995
      %v2997 = vsel %vm768, %v2858, 0.0
      %v2998 = vadd.f32 %v2996, %v2997
      %v2999 = vsel %vm768, %v2860, 0.0
      %v3000 = vadd.f32 %v2998, %v2999
      %v3001 = vsel %vm768, %v2863, 0.0
      %v3002 = vadd.f32 %v3000, %v3001
      %v3003 = vsel %vm768, %v2865, 0.0
      %v3004 = vadd.f32 %v3002, %v3003
      %v3005 = vsel %vm768, %v2868, 0.0
      %v3006 = vadd.f32 %v3004, %v3005
      %v3007 = vsel %vm768, %v2870, 0.0
      %v3008 = vadd.f32 %v3006, %v3007
      %v3009 = vsel %vm768, %v2873, 0.0
      %v3010 = vadd.f32 %v3008, %v3009
      %v3011 = vsel %vm768, %v2875, 0.0
      %v3012 = vadd.f32 %v3010, %v3011
      %v3013 = vsel %vm768, %v2878, 0.0
      %v3014 = vadd.f32 %v3012, %v3013
      %v3015 = vsel %vm768, %v2880, 0.0
      %v3016 = vadd.f32 %v3014, %v3015
      %v3017 = vsel %vm768, %v2883, 0.0
      %v3018 = vadd.f32 %v3016, %v3017
      %v3019 = vsel %vm768, %v2885, 0.0
      %v3020 = vadd.f32 %v3018, %v3019
      %v3021 = vsel %vm768, %v2888, 0.0
      %v3022 = vadd.f32 %v3020, %v3021
      %v3023 = vsel %vm768, %v2890, 0.0
      %v3024 = vadd.f32 %v3022, %v3023
      %v3025 = vsel %vm768, %v2893, 0.0
      %v3026 = vadd.f32 %v3024, %v3025
      %v3027 = vsel %vm768, %v2895, 0.0
      %v3028 = vadd.f32 %v3026, %v3027
      %v3029 = vsel %vm768, %v2898, 0.0
      %v3030 = vadd.f32 %v3028, %v3029
      %v3031 = vsel %vm768, %v2900, 0.0
      %v3032 = vadd.f32 %v3030, %v3031
      %v3033 = vsel %vm768, %v2903, 0.0
      %v3034 = vadd.f32 %v3032, %v3033
      %v3035 = vsel %vm768, %v2905, 0.0
      %v3036 = vadd.f32 %v3034, %v3035
      %v3037 = vsel %vm768, %v2908, 0.0
      %v3038 = vadd.f32 %v3036, %v3037
      %v3039 = vsel %vm768, %v2910, 0.0
      %v3040 = vadd.f32 %v3038, %v3039
      %v3041 = vsel %vm768, %v2913, 0.0
      %v3042 = vadd.f32 %v3040, %v3041
      %v3043 = vsel %vm768, %v2915, 0.0
      %v3044 = vadd.f32 %v3042, %v3043
      %v3045 = vsel %vm768, %v2918, 0.0
      %v3046 = vadd.f32 %v3044, %v3045
      %v3047 = vsel %vm768, %v2920, 0.0
      %v3048 = vadd.f32 %v3046, %v3047
      %v3049 = vrot.slane %v3048, 4
      %v3050 = vadd.f32 %v3048, %v3049
      %v3051 = vrot.slane %v3050, 2
      %v3052 = vadd.f32 %v3050, %v3051
      %v3053 = vrot.slane %v3052, 1
      %v3054 = vadd.f32 %v3052, %v3053
      %v3055 = vmul.f32 %v3054, 0.001953125
      %v3056 = vmul.f32 %v2763, %v2763
      %v3057 = vmul.f32 %v2765, %v2765
      %v3058 = vmul.f32 %v2768, %v2768
      %v3059 = vmul.f32 %v2770, %v2770
      %v3060 = vmul.f32 %v2773, %v2773
      %v3061 = vmul.f32 %v2775, %v2775
      %v3062 = vmul.f32 %v2778, %v2778
      %v3063 = vmul.f32 %v2780, %v2780
      %v3064 = vmul.f32 %v2783, %v2783
      %v3065 = vmul.f32 %v2785, %v2785
      %v3066 = vmul.f32 %v2788, %v2788
      %v3067 = vmul.f32 %v2790, %v2790
      %v3068 = vmul.f32 %v2793, %v2793
      %v3069 = vmul.f32 %v2795, %v2795
      %v3070 = vmul.f32 %v2798, %v2798
      %v3071 = vmul.f32 %v2800, %v2800
      %v3072 = vmul.f32 %v2803, %v2803
      %v3073 = vmul.f32 %v2805, %v2805
      %v3074 = vmul.f32 %v2808, %v2808
      %v3075 = vmul.f32 %v2810, %v2810
      %v3076 = vmul.f32 %v2813, %v2813
      %v3077 = vmul.f32 %v2815, %v2815
      %v3078 = vmul.f32 %v2818, %v2818
      %v3079 = vmul.f32 %v2820, %v2820
      %v3080 = vmul.f32 %v2823, %v2823
      %v3081 = vmul.f32 %v2825, %v2825
      %v3082 = vmul.f32 %v2828, %v2828
      %v3083 = vmul.f32 %v2830, %v2830
      %v3084 = vmul.f32 %v2833, %v2833
      %v3085 = vmul.f32 %v2835, %v2835
      %v3086 = vmul.f32 %v2838, %v2838
      %v3087 = vmul.f32 %v2840, %v2840
      %v3088 = vmul.f32 %v2843, %v2843
      %v3089 = vmul.f32 %v2845, %v2845
      %v3090 = vmul.f32 %v2848, %v2848
      %v3091 = vmul.f32 %v2850, %v2850
      %v3092 = vmul.f32 %v2853, %v2853
      %v3093 = vmul.f32 %v2855, %v2855
      %v3094 = vmul.f32 %v2858, %v2858
      %v3095 = vmul.f32 %v2860, %v2860
      %v3096 = vmul.f32 %v2863, %v2863
      %v3097 = vmul.f32 %v2865, %v2865
      %v3098 = vmul.f32 %v2868, %v2868
      %v3099 = vmul.f32 %v2870, %v2870
      %v3100 = vmul.f32 %v2873, %v2873
      %v3101 = vmul.f32 %v2875, %v2875
      %v3102 = vmul.f32 %v2878, %v2878
      %v3103 = vmul.f32 %v2880, %v2880
      %v3104 = vmul.f32 %v2883, %v2883
      %v3105 = vmul.f32 %v2885, %v2885
      %v3106 = vmul.f32 %v2888, %v2888
      %v3107 = vmul.f32 %v2890, %v2890
      %v3108 = vmul.f32 %v2893, %v2893
      %v3109 = vmul.f32 %v2895, %v2895
      %v3110 = vmul.f32 %v2898, %v2898
      %v3111 = vmul.f32 %v2900, %v2900
      %v3112 = vmul.f32 %v2903, %v2903
      %v3113 = vmul.f32 %v2905, %v2905
      %v3114 = vmul.f32 %v2908, %v2908
      %v3115 = vmul.f32 %v2910, %v2910
      %v3116 = vmul.f32 %v2913, %v2913
      %v3117 = vmul.f32 %v2915, %v2915
      %v3118 = vmul.f32 %v2918, %v2918
      %v3119 = vmul.f32 %v2920, %v2920
      %v3120 = vsel %vm768, %v3056, 0.0
      %v3121 = vsel %vm768, %v3057, 0.0
      %v3122 = vadd.f32 %v3120, %v3121
      %v3123 = vsel %vm768, %v3058, 0.0
      %v3124 = vadd.f32 %v3122, %v3123
      %v3125 = vsel %vm768, %v3059, 0.0
      %v3126 = vadd.f32 %v3124, %v3125
      %v3127 = vsel %vm768, %v3060, 0.0
      %v3128 = vadd.f32 %v3126, %v3127
      %v3129 = vsel %vm768, %v3061, 0.0
      %v3130 = vadd.f32 %v3128, %v3129
      %v3131 = vsel %vm768, %v3062, 0.0
      %v3132 = vadd.f32 %v3130, %v3131
      %v3133 = vsel %vm768, %v3063, 0.0
      %v3134 = vadd.f32 %v3132, %v3133
      %v3135 = vsel %vm768, %v3064, 0.0
      %v3136 = vadd.f32 %v3134, %v3135
      %v3137 = vsel %vm768, %v3065, 0.0
      %v3138 = vadd.f32 %v3136, %v3137
      %v3139 = vsel %vm768, %v3066, 0.0
      %v3140 = vadd.f32 %v3138, %v3139
      %v3141 = vsel %vm768, %v3067, 0.0
      %v3142 = vadd.f32 %v3140, %v3141
      %v3143 = vsel %vm768, %v3068, 0.0
      %v3144 = vadd.f32 %v3142, %v3143
      %v3145 = vsel %vm768, %v3069, 0.0
      %v3146 = vadd.f32 %v3144, %v3145
      %v3147 = vsel %vm768, %v3070, 0.0
      %v3148 = vadd.f32 %v3146, %v3147
      %v3149 = vsel %vm768, %v3071, 0.0
      %v3150 = vadd.f32 %v3148, %v3149
      %v3151 = vsel %vm768, %v3072, 0.0
      %v3152 = vadd.f32 %v3150, %v3151
      %v3153 = vsel %vm768, %v3073, 0.0
      %v3154 = vadd.f32 %v3152, %v3153
      %v3155 = vsel %vm768, %v3074, 0.0
      %v3156 = vadd.f32 %v3154, %v3155
      %v3157 = vsel %vm768, %v3075, 0.0
      %v3158 = vadd.f32 %v3156, %v3157
      %v3159 = vsel %vm768, %v3076, 0.0
      %v3160 = vadd.f32 %v3158, %v3159
      %v3161 = vsel %vm768, %v3077, 0.0
      %v3162 = vadd.f32 %v3160, %v3161
      %v3163 = vsel %vm768, %v3078, 0.0
      %v3164 = vadd.f32 %v3162, %v3163
      %v3165 = vsel %vm768, %v3079, 0.0
      %v3166 = vadd.f32 %v3164, %v3165
      %v3167 = vsel %vm768, %v3080, 0.0
      %v3168 = vadd.f32 %v3166, %v3167
      %v3169 = vsel %vm768, %v3081, 0.0
      %v3170 = vadd.f32 %v3168, %v3169
      %v3171 = vsel %vm768, %v3082, 0.0
      %v3172 = vadd.f32 %v3170, %v3171
      %v3173 = vsel %vm768, %v3083, 0.0
      %v3174 = vadd.f32 %v3172, %v3173
      %v3175 = vsel %vm768, %v3084, 0.0
      %v3176 = vadd.f32 %v3174, %v3175
      %v3177 = vsel %vm768, %v3085, 0.0
      %v3178 = vadd.f32 %v3176, %v3177
      %v3179 = vsel %vm768, %v3086, 0.0
      %v3180 = vadd.f32 %v3178, %v3179
      %v3181 = vsel %vm768, %v3087, 0.0
      %v3182 = vadd.f32 %v3180, %v3181
      %v3183 = vsel %vm768, %v3088, 0.0
      %v3184 = vadd.f32 %v3182, %v3183
      %v3185 = vsel %vm768, %v3089, 0.0
      %v3186 = vadd.f32 %v3184, %v3185
      %v3187 = vsel %vm768, %v3090, 0.0
      %v3188 = vadd.f32 %v3186, %v3187
      %v3189 = vsel %vm768, %v3091, 0.0
      %v3190 = vadd.f32 %v3188, %v3189
      %v3191 = vsel %vm768, %v3092, 0.0
      %v3192 = vadd.f32 %v3190, %v3191
      %v3193 = vsel %vm768, %v3093, 0.0
      %v3194 = vadd.f32 %v3192, %v3193
      %v3195 = vsel %vm768, %v3094, 0.0
      %v3196 = vadd.f32 %v3194, %v3195
      %v3197 = vsel %vm768, %v3095, 0.0
      %v3198 = vadd.f32 %v3196, %v3197
      %v3199 = vsel %vm768, %v3096, 0.0
      %v3200 = vadd.f32 %v3198, %v3199
      %v3201 = vsel %vm768, %v3097, 0.0
      %v3202 = vadd.f32 %v3200, %v3201
      %v3203 = vsel %vm768, %v3098, 0.0
      %v3204 = vadd.f32 %v3202, %v3203
      %v3205 = vsel %vm768, %v3099, 0.0
      %v3206 = vadd.f32 %v3204, %v3205
      %v3207 = vsel %vm768, %v3100, 0.0
      %v3208 = vadd.f32 %v3206, %v3207
      %v3209 = vsel %vm768, %v3101, 0.0
      %v3210 = vadd.f32 %v3208, %v3209
      %v3211 = vsel %vm768, %v3102, 0.0
      %v3212 = vadd.f32 %v3210, %v3211
      %v3213 = vsel %vm768, %v3103, 0.0
      %v3214 = vadd.f32 %v3212, %v3213
      %v3215 = vsel %vm768, %v3104, 0.0
      %v3216 = vadd.f32 %v3214, %v3215
      %v3217 = vsel %vm768, %v3105, 0.0
      %v3218 = vadd.f32 %v3216, %v3217
      %v3219 = vsel %vm768, %v3106, 0.0
      %v3220 = vadd.f32 %v3218, %v3219
      %v3221 = vsel %vm768, %v3107, 0.0
      %v3222 = vadd.f32 %v3220, %v3221
      %v3223 = vsel %vm768, %v3108, 0.0
      %v3224 = vadd.f32 %v3222, %v3223
      %v3225 = vsel %vm768, %v3109, 0.0
      %v3226 = vadd.f32 %v3224, %v3225
      %v3227 = vsel %vm768, %v3110, 0.0
      %v3228 = vadd.f32 %v3226, %v3227
      %v3229 = vsel %vm768, %v3111, 0.0
      %v3230 = vadd.f32 %v3228, %v3229
      %v3231 = vsel %vm768, %v3112, 0.0
      %v3232 = vadd.f32 %v3230, %v3231
      %v3233 = vsel %vm768, %v3113, 0.0
      %v3234 = vadd.f32 %v3232, %v3233
      %v3235 = vsel %vm768, %v3114, 0.0
      %v3236 = vadd.f32 %v3234, %v3235
      %v3237 = vsel %vm768, %v3115, 0.0
      %v3238 = vadd.f32 %v3236, %v3237
      %v3239 = vsel %vm768, %v3116, 0.0
      %v3240 = vadd.f32 %v3238, %v3239
      %v3241 = vsel %vm768, %v3117, 0.0
      %v3242 = vadd.f32 %v3240, %v3241
      %v3243 = vsel %vm768, %v3118, 0.0
      %v3244 = vadd.f32 %v3242, %v3243
      %v3245 = vsel %vm768, %v3119, 0.0
      %v3246 = vadd.f32 %v3244, %v3245
      %v3247 = vrot.slane %v3246, 4
      %v3248 = vadd.f32 %v3246, %v3247
      %v3249 = vrot.slane %v3248, 2
      %v3250 = vadd.f32 %v3248, %v3249
      %v3251 = vrot.slane %v3250, 1
      %v3252 = vadd.f32 %v3250, %v3251
      %v3253 = vmul.f32 %v3252, 0.001953125
      %v3254 = vmul.f32 %v3055, %v3055
      %v3255 = vsub.f32 %v3253, %v3254
      %v3256 = vsub.f32 %v2763, %v3055
      %v3257 = vsub.f32 %v2765, %v3055
      %v3258 = vsub.f32 %v2768, %v3055
      %v3259 = vsub.f32 %v2770, %v3055
      %v3260 = vsub.f32 %v2773, %v3055
      %v3261 = vsub.f32 %v2775, %v3055
      %v3262 = vsub.f32 %v2778, %v3055
      %v3263 = vsub.f32 %v2780, %v3055
      %v3264 = vsub.f32 %v2783, %v3055
      %v3265 = vsub.f32 %v2785, %v3055
      %v3266 = vsub.f32 %v2788, %v3055
      %v3267 = vsub.f32 %v2790, %v3055
      %v3268 = vsub.f32 %v2793, %v3055
      %v3269 = vsub.f32 %v2795, %v3055
      %v3270 = vsub.f32 %v2798, %v3055
      %v3271 = vsub.f32 %v2800, %v3055
      %v3272 = vsub.f32 %v2803, %v3055
      %v3273 = vsub.f32 %v2805, %v3055
      %v3274 = vsub.f32 %v2808, %v3055
      %v3275 = vsub.f32 %v2810, %v3055
      %v3276 = vsub.f32 %v2813, %v3055
      %v3277 = vsub.f32 %v2815, %v3055
      %v3278 = vsub.f32 %v2818, %v3055
      %v3279 = vsub.f32 %v2820, %v3055
      %v3280 = vsub.f32 %v2823, %v3055
      %v3281 = vsub.f32 %v2825, %v3055
      %v3282 = vsub.f32 %v2828, %v3055
      %v3283 = vsub.f32 %v2830, %v3055
      %v3284 = vsub.f32 %v2833, %v3055
      %v3285 = vsub.f32 %v2835, %v3055
      %v3286 = vsub.f32 %v2838, %v3055
      %v3287 = vsub.f32 %v2840, %v3055
      %v3288 = vsub.f32 %v2843, %v3055
      %v3289 = vsub.f32 %v2845, %v3055
      %v3290 = vsub.f32 %v2848, %v3055
      %v3291 = vsub.f32 %v2850, %v3055
      %v3292 = vsub.f32 %v2853, %v3055
      %v3293 = vsub.f32 %v2855, %v3055
      %v3294 = vsub.f32 %v2858, %v3055
      %v3295 = vsub.f32 %v2860, %v3055
      %v3296 = vsub.f32 %v2863, %v3055
      %v3297 = vsub.f32 %v2865, %v3055
      %v3298 = vsub.f32 %v2868, %v3055
      %v3299 = vsub.f32 %v2870, %v3055
      %v3300 = vsub.f32 %v2873, %v3055
      %v3301 = vsub.f32 %v2875, %v3055
      %v3302 = vsub.f32 %v2878, %v3055
      %v3303 = vsub.f32 %v2880, %v3055
      %v3304 = vsub.f32 %v2883, %v3055
      %v3305 = vsub.f32 %v2885, %v3055
      %v3306 = vsub.f32 %v2888, %v3055
      %v3307 = vsub.f32 %v2890, %v3055
      %v3308 = vsub.f32 %v2893, %v3055
      %v3309 = vsub.f32 %v2895, %v3055
      %v3310 = vsub.f32 %v2898, %v3055
      %v3311 = vsub.f32 %v2900, %v3055
      %v3312 = vsub.f32 %v2903, %v3055
      %v3313 = vsub.f32 %v2905, %v3055
      %v3314 = vsub.f32 %v2908, %v3055
      %v3315 = vsub.f32 %v2910, %v3055
      %v3316 = vsub.f32 %v2913, %v3055
      %v3317 = vsub.f32 %v2915, %v3055
      %v3318 = vsub.f32 %v2918, %v3055
      %v3319 = vsub.f32 %v2920, %v3055
      %v3320 = vld [vmem:[%s519] sm:$0x1]
      %v3321 = vadd.f32 %v3255, 1e-05
      %v3322 = vrsqrt.pop %v3321
      %v3323 = vmul.f32 %v3322, %v3321
      %v3324 = vmul.f32 %v3323, %v3322
      %v3325 = vmul.f32 0.5, %v3324
      %v3326 = vsub.f32 1.5, %v3325
      %v3327 = vmul.f32 %v3322, %v3326
      %vm3328 = vweird.f32 %v3321
      %vm3329 = vweird.f32 %v3322
      %vm3330 = vmor %vm3328, %vm3329
      %v3331 = vsel %vm3330, %v3322, %v3327
      %v3332 = vmul.f32 %v3320, %v3331
      %v3334 = vperm.slane %v3332, 0
      %v3336 = vmul.f32 %v3256, %v3334
      %v3337 = vmul.f32 %v3257, %v3334
      %v3338 = vmul.f32 %v3258, %v3334
      %v3339 = vmul.f32 %v3259, %v3334
      %v3340 = vmul.f32 %v3260, %v3334
      %v3341 = vmul.f32 %v3261, %v3334
      %v3342 = vmul.f32 %v3262, %v3334
      %v3343 = vmul.f32 %v3263, %v3334
      %v3344 = vmul.f32 %v3264, %v3334
      %v3345 = vmul.f32 %v3265, %v3334
      %v3346 = vmul.f32 %v3266, %v3334
      %v3347 = vmul.f32 %v3267, %v3334
      %v3348 = vmul.f32 %v3268, %v3334
      %v3349 = vmul.f32 %v3269, %v3334
      %v3350 = vmul.f32 %v3270, %v3334
      %v3351 = vmul.f32 %v3271, %v3334
      %v3352 = vmul.f32 %v3272, %v3334
      %v3353 = vmul.f32 %v3273, %v3334
      %v3354 = vmul.f32 %v3274, %v3334
      %v3355 = vmul.f32 %v3275, %v3334
      %v3356 = vmul.f32 %v3276, %v3334
      %v3357 = vmul.f32 %v3277, %v3334
      %v3358 = vmul.f32 %v3278, %v3334
      %v3359 = vmul.f32 %v3279, %v3334
      %v3360 = vmul.f32 %v3280, %v3334
      %v3361 = vmul.f32 %v3281, %v3334
      %v3362 = vmul.f32 %v3282, %v3334
      %v3363 = vmul.f32 %v3283, %v3334
      %v3364 = vmul.f32 %v3284, %v3334
      %v3365 = vmul.f32 %v3285, %v3334
      %v3366 = vmul.f32 %v3286, %v3334
      %v3367 = vmul.f32 %v3287, %v3334
      %v3368 = vmul.f32 %v3288, %v3334
      %v3369 = vmul.f32 %v3289, %v3334
      %v3370 = vmul.f32 %v3290, %v3334
      %v3371 = vmul.f32 %v3291, %v3334
      %v3372 = vmul.f32 %v3292, %v3334
      %v3373 = vmul.f32 %v3293, %v3334
      %v3374 = vmul.f32 %v3294, %v3334
      %v3375 = vmul.f32 %v3295, %v3334
      %v3376 = vmul.f32 %v3296, %v3334
      %v3377 = vmul.f32 %v3297, %v3334
      %v3378 = vmul.f32 %v3298, %v3334
      %v3379 = vmul.f32 %v3299, %v3334
      %v3380 = vmul.f32 %v3300, %v3334
      %v3381 = vmul.f32 %v3301, %v3334
      %v3382 = vmul.f32 %v3302, %v3334
      %v3383 = vmul.f32 %v3303, %v3334
      %v3384 = vmul.f32 %v3304, %v3334
      %v3385 = vmul.f32 %v3305, %v3334
      %v3386 = vmul.f32 %v3306, %v3334
      %v3387 = vmul.f32 %v3307, %v3334
      %v3388 = vmul.f32 %v3308, %v3334
      %v3389 = vmul.f32 %v3309, %v3334
      %v3390 = vmul.f32 %v3310, %v3334
      %v3391 = vmul.f32 %v3311, %v3334
      %v3392 = vmul.f32 %v3312, %v3334
      %v3393 = vmul.f32 %v3313, %v3334
      %v3394 = vmul.f32 %v3314, %v3334
      %v3395 = vmul.f32 %v3315, %v3334
      %v3396 = vmul.f32 %v3316, %v3334
      %v3397 = vmul.f32 %v3317, %v3334
      %v3398 = vmul.f32 %v3318, %v3334
      %v3399 = vmul.f32 %v3319, %v3334
      %v3400 = vld [vmem:[%s522] sm:$0x1]
      %v3402 = vperm.slane %v3400, 0
      %v3404 = vadd.f32 %v3336, %v3402
      %v3405 = vadd.f32 %v3337, %v3402
      %v3406 = vadd.f32 %v3338, %v3402
      %v3407 = vadd.f32 %v3339, %v3402
      %v3408 = vadd.f32 %v3340, %v3402
      %v3409 = vadd.f32 %v3341, %v3402
      %v3410 = vadd.f32 %v3342, %v3402
      %v3411 = vadd.f32 %v3343, %v3402
      %v3412 = vadd.f32 %v3344, %v3402
      %v3413 = vadd.f32 %v3345, %v3402
      %v3414 = vadd.f32 %v3346, %v3402
      %v3415 = vadd.f32 %v3347, %v3402
      %v3416 = vadd.f32 %v3348, %v3402
      %v3417 = vadd.f32 %v3349, %v3402
      %v3418 = vadd.f32 %v3350, %v3402
      %v3419 = vadd.f32 %v3351, %v3402
      %v3420 = vadd.f32 %v3352, %v3402
      %v3421 = vadd.f32 %v3353, %v3402
      %v3422 = vadd.f32 %v3354, %v3402
      %v3423 = vadd.f32 %v3355, %v3402
      %v3424 = vadd.f32 %v3356, %v3402
      %v3425 = vadd.f32 %v3357, %v3402
      %v3426 = vadd.f32 %v3358, %v3402
      %v3427 = vadd.f32 %v3359, %v3402
      %v3428 = vadd.f32 %v3360, %v3402
      %v3429 = vadd.f32 %v3361, %v3402
      %v3430 = vadd.f32 %v3362, %v3402
      %v3431 = vadd.f32 %v3363, %v3402
      %v3432 = vadd.f32 %v3364, %v3402
      %v3433 = vadd.f32 %v3365, %v3402
      %v3434 = vadd.f32 %v3366, %v3402
      %v3435 = vadd.f32 %v3367, %v3402
      %v3436 = vadd.f32 %v3368, %v3402
      %v3437 = vadd.f32 %v3369, %v3402
      %v3438 = vadd.f32 %v3370, %v3402
      %v3439 = vadd.f32 %v3371, %v3402
      %v3440 = vadd.f32 %v3372, %v3402
      %v3441 = vadd.f32 %v3373, %v3402
      %v3442 = vadd.f32 %v3374, %v3402
      %v3443 = vadd.f32 %v3375, %v3402
      %v3444 = vadd.f32 %v3376, %v3402
      %v3445 = vadd.f32 %v3377, %v3402
      %v3446 = vadd.f32 %v3378, %v3402
      %v3447 = vadd.f32 %v3379, %v3402
      %v3448 = vadd.f32 %v3380, %v3402
      %v3449 = vadd.f32 %v3381, %v3402
      %v3450 = vadd.f32 %v3382, %v3402
      %v3451 = vadd.f32 %v3383, %v3402
      %v3452 = vadd.f32 %v3384, %v3402
      %v3453 = vadd.f32 %v3385, %v3402
      %v3454 = vadd.f32 %v3386, %v3402
      %v3455 = vadd.f32 %v3387, %v3402
      %v3456 = vadd.f32 %v3388, %v3402
      %v3457 = vadd.f32 %v3389, %v3402
      %v3458 = vadd.f32 %v3390, %v3402
      %v3459 = vadd.f32 %v3391, %v3402
      %v3460 = vadd.f32 %v3392, %v3402
      %v3461 = vadd.f32 %v3393, %v3402
      %v3462 = vadd.f32 %v3394, %v3402
      %v3463 = vadd.f32 %v3395, %v3402
      %v3464 = vadd.f32 %v3396, %v3402
      %v3465 = vadd.f32 %v3397, %v3402
      %v3466 = vadd.f32 %v3398, %v3402
      %v3467 = vadd.f32 %v3399, %v3402
      %v3468 = vmax.f32 %v3404, 0.0
      %v3469 = vmax.f32 %v3405, 0.0
      %v3470 = vmax.f32 %v3406, 0.0
      %v3471 = vmax.f32 %v3407, 0.0
      %v3472 = vmax.f32 %v3408, 0.0
      %v3473 = vmax.f32 %v3409, 0.0
      %v3474 = vmax.f32 %v3410, 0.0
      %v3475 = vmax.f32 %v3411, 0.0
      %v3476 = vmax.f32 %v3412, 0.0
      %v3477 = vmax.f32 %v3413, 0.0
      %v3478 = vmax.f32 %v3414, 0.0
      %v3479 = vmax.f32 %v3415, 0.0
      %v3480 = vmax.f32 %v3416, 0.0
      %v3481 = vmax.f32 %v3417, 0.0
      %v3482 = vmax.f32 %v3418, 0.0
      %v3483 = vmax.f32 %v3419, 0.0
      %v3484 = vmax.f32 %v3420, 0.0
      %v3485 = vmax.f32 %v3421, 0.0
      %v3486 = vmax.f32 %v3422, 0.0
      %v3487 = vmax.f32 %v3423, 0.0
      %v3488 = vmax.f32 %v3424, 0.0
      %v3489 = vmax.f32 %v3425, 0.0
      %v3490 = vmax.f32 %v3426, 0.0
      %v3491 = vmax.f32 %v3427, 0.0
      %v3492 = vmax.f32 %v3428, 0.0
      %v3493 = vmax.f32 %v3429, 0.0
      %v3494 = vmax.f32 %v3430, 0.0
      %v3495 = vmax.f32 %v3431, 0.0
      %v3496 = vmax.f32 %v3432, 0.0
      %v3497 = vmax.f32 %v3433, 0.0
      %v3498 = vmax.f32 %v3434, 0.0
      %v3499 = vmax.f32 %v3435, 0.0
      %v3500 = vmax.f32 %v3436, 0.0
      %v3501 = vmax.f32 %v3437, 0.0
      %v3502 = vmax.f32 %v3438, 0.0
      %v3503 = vmax.f32 %v3439, 0.0
      %v3504 = vmax.f32 %v3440, 0.0
      %v3505 = vmax.f32 %v3441, 0.0
      %v3506 = vmax.f32 %v3442, 0.0
      %v3507 = vmax.f32 %v3443, 0.0
      %v3508 = vmax.f32 %v3444, 0.0
      %v3509 = vmax.f32 %v3445, 0.0
      %v3510 = vmax.f32 %v3446, 0.0
      %v3511 = vmax.f32 %v3447, 0.0
      %v3512 = vmax.f32 %v3448, 0.0
      %v3513 = vmax.f32 %v3449, 0.0
      %v3514 = vmax.f32 %v3450, 0.0
      %v3515 = vmax.f32 %v3451, 0.0
      %v3516 = vmax.f32 %v3452, 0.0
      %v3517 = vmax.f32 %v3453, 0.0
      %v3518 = vmax.f32 %v3454, 0.0
      %v3519 = vmax.f32 %v3455, 0.0
      %v3520 = vmax.f32 %v3456, 0.0
      %v3521 = vmax.f32 %v3457, 0.0
      %v3522 = vmax.f32 %v3458, 0.0
      %v3523 = vmax.f32 %v3459, 0.0
      %v3524 = vmax.f32 %v3460, 0.0
      %v3525 = vmax.f32 %v3461, 0.0
      %v3526 = vmax.f32 %v3462, 0.0
      %v3527 = vmax.f32 %v3463, 0.0
      %v3528 = vmax.f32 %v3464, 0.0
      %v3529 = vmax.f32 %v3465, 0.0
      %v3530 = vmax.f32 %v3466, 0.0
      %v3531 = vmax.f32 %v3467, 0.0
      %3532 = vst.msk [vmem:[#allocation3] sm:$0xff] %vm768, 0.0
      %3533 = vst.msk [vmem:[#allocation3 + $0x8] sm:$0xff] %vm768, 0.0
      %3534 = vst.msk [vmem:[#allocation3 + $0x10] sm:$0x3] %vm771, 0.0
      %3535 = vst.msk [vmem:[#allocation3 + $0x1b0] sm:$0xff] %vm768, 0.0
      %3536 = vst.msk [vmem:[#allocation3 + $0x1b8] sm:$0xff] %vm768, 0.0
      %3537 = vst.msk [vmem:[#allocation3 + $0x1c0] sm:$0x3] %vm771, 0.0
      %s3538 = scalar_lea.vmem [#allocation3], 408
      %3539 = vst.msk [vmem:[%s3538] sm:$0xff] %vm768, 0.0
      %3540 = vst.msk [vmem:[%s3538 + $0x8] sm:$0xff] %vm768, 0.0
      %3541 = vst.msk [vmem:[%s3538 + $0x10] sm:$0x3] %vm771, 0.0
      %3542 = vst.msk [vmem:[%s3538 + $0x1b0] sm:$0xff] %vm768, 0.0
      %3543 = vst.msk [vmem:[%s3538 + $0x1b8] sm:$0xff] %vm768, 0.0
      %3544 = vst.msk [vmem:[%s3538 + $0x1c0] sm:$0x3] %vm771, 0.0
      %vm3545 = vcmask 57344
      %3546 = vst.msk [vmem:[#allocation3] sm:$0x1] %vm3545, 0.0
      %3547 = vst.msk [vmem:[#allocation3 + $0x18] sm:$0x1] %vm3545, 0.0
      %3548 = vst.msk [vmem:[#allocation3 + $0x30] sm:$0x1] %vm3545, 0.0
      %3549 = vst.msk [vmem:[#allocation3 + $0x48] sm:$0x1] %vm3545, 0.0
      %3550 = vst.msk [vmem:[#allocation3 + $0x60] sm:$0x1] %vm3545, 0.0
      %3551 = vst.msk [vmem:[#allocation3 + $0x78] sm:$0x1] %vm3545, 0.0
      %3552 = vst.msk [vmem:[#allocation3 + $0x90] sm:$0x1] %vm3545, 0.0
      %3553 = vst.msk [vmem:[#allocation3 + $0xa8] sm:$0x1] %vm3545, 0.0
      %3554 = vst.msk [vmem:[#allocation3 + $0xc0] sm:$0x1] %vm3545, 0.0
      %3555 = vst.msk [vmem:[#allocation3 + $0xd8] sm:$0x1] %vm3545, 0.0
      %3556 = vst.msk [vmem:[#allocation3 + $0xf0] sm:$0x1] %vm3545, 0.0
      %3557 = vst.msk [vmem:[#allocation3 + $0x108] sm:$0x1] %vm3545, 0.0
      %3558 = vst.msk [vmem:[#allocation3 + $0x120] sm:$0x1] %vm3545, 0.0
      %3559 = vst.msk [vmem:[#allocation3 + $0x138] sm:$0x1] %vm3545, 0.0
      %3560 = vst.msk [vmem:[#allocation3 + $0x150] sm:$0x1] %vm3545, 0.0
      %3561 = vst.msk [vmem:[#allocation3 + $0x168] sm:$0x1] %vm3545, 0.0
      %3562 = vst.msk [vmem:[#allocation3 + $0x180] sm:$0x1] %vm3545, 0.0
      %3563 = vst.msk [vmem:[#allocation3 + $0x198] sm:$0x1] %vm3545, 0.0
      %3564 = vst.msk [vmem:[#allocation3 + $0x1b0] sm:$0x1] %vm3545, 0.0
      %3565 = vst.msk [vmem:[#allocation3 + $0x1c8] sm:$0x1] %vm3545, 0.0
      %3566 = vst.msk [vmem:[#allocation3 + $0x1e0] sm:$0x1] %vm3545, 0.0
      %3567 = vst.msk [vmem:[#allocation3 + $0x1f8] sm:$0x1] %vm3545, 0.0
      %3568 = vst.msk [vmem:[#allocation3 + $0x210] sm:$0x1] %vm3545, 0.0
      %3569 = vst.msk [vmem:[#allocation3 + $0x228] sm:$0x1] %vm3545, 0.0
      %3570 = vst.msk [vmem:[#allocation3 + $0x240] sm:$0x1] %vm3545, 0.0
      %3571 = vst.msk [vmem:[#allocation3 + $0x258] sm:$0x1] %vm3545, 0.0
      %3572 = vst.msk [vmem:[#allocation3 + $0x270] sm:$0x1] %vm3545, 0.0
      %3573 = vst.msk [vmem:[#allocation3 + $0x288] sm:$0x1] %vm3545, 0.0
      %3574 = vst.msk [vmem:[#allocation3 + $0x2a0] sm:$0x1] %vm3545, 0.0
      %3575 = vst.msk [vmem:[#allocation3 + $0x2b8] sm:$0x1] %vm3545, 0.0
      %3576 = vst.msk [vmem:[#allocation3 + $0x2d0] sm:$0x1] %vm3545, 0.0
      %3577 = vst.msk [vmem:[#allocation3 + $0x2e8] sm:$0x1] %vm3545, 0.0
      %3578 = vst.msk [vmem:[#allocation3 + $0x300] sm:$0x1] %vm3545, 0.0
      %3579 = vst.msk [vmem:[#allocation3 + $0x318] sm:$0x1] %vm3545, 0.0
      %3580 = vst.msk [vmem:[#allocation3 + $0x330] sm:$0x1] %vm3545, 0.0
      %3581 = vst.msk [vmem:[#allocation3 + $0x348] sm:$0x1] %vm3545, 0.0
      %3582 = vst.msk [vmem:[#allocation3 + $0x11] sm:$0x1] %vm3545, 0.0
      %3583 = vst.msk [vmem:[#allocation3 + $0x29] sm:$0x1] %vm3545, 0.0
      %3584 = vst.msk [vmem:[#allocation3 + $0x41] sm:$0x1] %vm3545, 0.0
      %3585 = vst.msk [vmem:[#allocation3 + $0x59] sm:$0x1] %vm3545, 0.0
      %3586 = vst.msk [vmem:[#allocation3 + $0x71] sm:$0x1] %vm3545, 0.0
      %3587 = vst.msk [vmem:[#allocation3 + $0x89] sm:$0x1] %vm3545, 0.0
      %3588 = vst.msk [vmem:[#allocation3 + $0xa1] sm:$0x1] %vm3545, 0.0
      %3589 = vst.msk [vmem:[#allocation3 + $0xb9] sm:$0x1] %vm3545, 0.0
      %3590 = vst.msk [vmem:[#allocation3 + $0xd1] sm:$0x1] %vm3545, 0.0
      %3591 = vst.msk [vmem:[#allocation3 + $0xe9] sm:$0x1] %vm3545, 0.0
      %3592 = vst.msk [vmem:[#allocation3 + $0x101] sm:$0x1] %vm3545, 0.0
      %3593 = vst.msk [vmem:[#allocation3 + $0x119] sm:$0x1] %vm3545, 0.0
      %3594 = vst.msk [vmem:[#allocation3 + $0x131] sm:$0x1] %vm3545, 0.0
      %3595 = vst.msk [vmem:[#allocation3 + $0x149] sm:$0x1] %vm3545, 0.0
      %3596 = vst.msk [vmem:[#allocation3 + $0x161] sm:$0x1] %vm3545, 0.0
      %3597 = vst.msk [vmem:[#allocation3 + $0x179] sm:$0x1] %vm3545, 0.0
      %3598 = vst.msk [vmem:[#allocation3 + $0x191] sm:$0x1] %vm3545, 0.0
      %3599 = vst.msk [vmem:[#allocation3 + $0x1a9] sm:$0x1] %vm3545, 0.0
      %3600 = vst.msk [vmem:[#allocation3 + $0x1c1] sm:$0x1] %vm3545, 0.0
      %3601 = vst.msk [vmem:[#allocation3 + $0x1d9] sm:$0x1] %vm3545, 0.0
      %3602 = vst.msk [vmem:[#allocation3 + $0x1f1] sm:$0x1] %vm3545, 0.0
      %3603 = vst.msk [vmem:[#allocation3 + $0x209] sm:$0x1] %vm3545, 0.0
      %3604 = vst.msk [vmem:[#allocation3 + $0x221] sm:$0x1] %vm3545, 0.0
      %3605 = vst.msk [vmem:[#allocation3 + $0x239] sm:$0x1] %vm3545, 0.0
      %3606 = vst.msk [vmem:[#allocation3 + $0x251] sm:$0x1] %vm3545, 0.0
      %3607 = vst.msk [vmem:[#allocation3 + $0x269] sm:$0x1] %vm3545, 0.0
      %3608 = vst.msk [vmem:[#allocation3 + $0x281] sm:$0x1] %vm3545, 0.0
      %3609 = vst.msk [vmem:[#allocation3 + $0x299] sm:$0x1] %vm3545, 0.0
      %3610 = vst.msk [vmem:[#allocation3 + $0x2b1] sm:$0x1] %vm3545, 0.0
      %3611 = vst.msk [vmem:[#allocation3 + $0x2c9] sm:$0x1] %vm3545, 0.0
      %3612 = vst.msk [vmem:[#allocation3 + $0x2e1] sm:$0x1] %vm3545, 0.0
      %3613 = vst.msk [vmem:[#allocation3 + $0x2f9] sm:$0x1] %vm3545, 0.0
      %3614 = vst.msk [vmem:[#allocation3 + $0x311] sm:$0x1] %vm3545, 0.0
      %3615 = vst.msk [vmem:[#allocation3 + $0x329] sm:$0x1] %vm3545, 0.0
      %3616 = vst.msk [vmem:[#allocation3 + $0x341] sm:$0x1] %vm3545, 0.0
      %3617 = vst.msk [vmem:[#allocation3 + $0x359] sm:$0x1] %vm3545, 0.0
      %s3618 = scalar_lea.vmem [#allocation3], 24
      %3619 = vst.msk [vmem:[%s3618 + $0x1] sm:$0xff] %vm768, %v3468
      %3620 = vst.msk [vmem:[%s3618 + $0x9] sm:$0xff] %vm768, %v3469
      %3621 = vst.msk [vmem:[%s3618 + $0x19] sm:$0xff] %vm768, %v3470
      %3622 = vst.msk [vmem:[%s3618 + $0x21] sm:$0xff] %vm768, %v3471
      %3623 = vst.msk [vmem:[%s3618 + $0x31] sm:$0xff] %vm768, %v3472
      %3624 = vst.msk [vmem:[%s3618 + $0x39] sm:$0xff] %vm768, %v3473
      %3625 = vst.msk [vmem:[%s3618 + $0x49] sm:$0xff] %vm768, %v3474
      %3626 = vst.msk [vmem:[%s3618 + $0x51] sm:$0xff] %vm768, %v3475
      %3627 = vst.msk [vmem:[%s3618 + $0x61] sm:$0xff] %vm768, %v3476
      %3628 = vst.msk [vmem:[%s3618 + $0x69] sm:$0xff] %vm768, %v3477
      %3629 = vst.msk [vmem:[%s3618 + $0x79] sm:$0xff] %vm768, %v3478
      %3630 = vst.msk [vmem:[%s3618 + $0x81] sm:$0xff] %vm768, %v3479
      %3631 = vst.msk [vmem:[%s3618 + $0x91] sm:$0xff] %vm768, %v3480
      %3632 = vst.msk [vmem:[%s3618 + $0x99] sm:$0xff] %vm768, %v3481
      %3633 = vst.msk [vmem:[%s3618 + $0xa9] sm:$0xff] %vm768, %v3482
      %3634 = vst.msk [vmem:[%s3618 + $0xb1] sm:$0xff] %vm768, %v3483
      %3635 = vst.msk [vmem:[%s3618 + $0xc1] sm:$0xff] %vm768, %v3484
      %3636 = vst.msk [vmem:[%s3618 + $0xc9] sm:$0xff] %vm768, %v3485
      %3637 = vst.msk [vmem:[%s3618 + $0xd9] sm:$0xff] %vm768, %v3486
      %3638 = vst.msk [vmem:[%s3618 + $0xe1] sm:$0xff] %vm768, %v3487
      %3639 = vst.msk [vmem:[%s3618 + $0xf1] sm:$0xff] %vm768, %v3488
      %3640 = vst.msk [vmem:[%s3618 + $0xf9] sm:$0xff] %vm768, %v3489
      %3641 = vst.msk [vmem:[%s3618 + $0x109] sm:$0xff] %vm768, %v3490
      %3642 = vst.msk [vmem:[%s3618 + $0x111] sm:$0xff] %vm768, %v3491
      %3643 = vst.msk [vmem:[%s3618 + $0x121] sm:$0xff] %vm768, %v3492
      %3644 = vst.msk [vmem:[%s3618 + $0x129] sm:$0xff] %vm768, %v3493
      %3645 = vst.msk [vmem:[%s3618 + $0x139] sm:$0xff] %vm768, %v3494
      %3646 = vst.msk [vmem:[%s3618 + $0x141] sm:$0xff] %vm768, %v3495
      %3647 = vst.msk [vmem:[%s3618 + $0x151] sm:$0xff] %vm768, %v3496
      %3648 = vst.msk [vmem:[%s3618 + $0x159] sm:$0xff] %vm768, %v3497
      %3649 = vst.msk [vmem:[%s3618 + $0x169] sm:$0xff] %vm768, %v3498
      %3650 = vst.msk [vmem:[%s3618 + $0x171] sm:$0xff] %vm768, %v3499
      %3651 = vst.msk [vmem:[%s3618 + $0x1b1] sm:$0xff] %vm768, %v3500
      %3652 = vst.msk [vmem:[%s3618 + $0x1b9] sm:$0xff] %vm768, %v3501
      %3653 = vst.msk [vmem:[%s3618 + $0x1c9] sm:$0xff] %vm768, %v3502
      %3654 = vst.msk [vmem:[%s3618 + $0x1d1] sm:$0xff] %vm768, %v3503
      %3655 = vst.msk [vmem:[%s3618 + $0x1e1] sm:$0xff] %vm768, %v3504
      %3656 = vst.msk [vmem:[%s3618 + $0x1e9] sm:$0xff] %vm768, %v3505
      %3657 = vst.msk [vmem:[%s3618 + $0x1f9] sm:$0xff] %vm768, %v3506
      %3658 = vst.msk [vmem:[%s3618 + $0x201] sm:$0xff] %vm768, %v3507
      %3659 = vst.msk [vmem:[%s3618 + $0x211] sm:$0xff] %vm768, %v3508
      %3660 = vst.msk [vmem:[%s3618 + $0x219] sm:$0xff] %vm768, %v3509
      %3661 = vst.msk [vmem:[%s3618 + $0x229] sm:$0xff] %vm768, %v3510
      %3662 = vst.msk [vmem:[%s3618 + $0x231] sm:$0xff] %vm768, %v3511
      %3663 = vst.msk [vmem:[%s3618 + $0x241] sm:$0xff] %vm768, %v3512
      %3664 = vst.msk [vmem:[%s3618 + $0x249] sm:$0xff] %vm768, %v3513
      %3665 = vst.msk [vmem:[%s3618 + $0x259] sm:$0xff] %vm768, %v3514
      %3666 = vst.msk [vmem:[%s3618 + $0x261] sm:$0xff] %vm768, %v3515
      %3667 = vst.msk [vmem:[%s3618 + $0x271] sm:$0xff] %vm768, %v3516
      %3668 = vst.msk [vmem:[%s3618 + $0x279] sm:$0xff] %vm768, %v3517
      %3669 = vst.msk [vmem:[%s3618 + $0x289] sm:$0xff] %vm768, %v3518
      %3670 = vst.msk [vmem:[%s3618 + $0x291] sm:$0xff] %vm768, %v3519
      %3671 = vst.msk [vmem:[%s3618 + $0x2a1] sm:$0xff] %vm768, %v3520
      %3672 = vst.msk [vmem:[%s3618 + $0x2a9] sm:$0xff] %vm768, %v3521
      %3673 = vst.msk [vmem:[%s3618 + $0x2b9] sm:$0xff] %vm768, %v3522
      %3674 = vst.msk [vmem:[%s3618 + $0x2c1] sm:$0xff] %vm768, %v3523
      %3675 = vst.msk [vmem:[%s3618 + $0x2d1] sm:$0xff] %vm768, %v3524
      %3676 = vst.msk [vmem:[%s3618 + $0x2d9] sm:$0xff] %vm768, %v3525
      %3677 = vst.msk [vmem:[%s3618 + $0x2e9] sm:$0xff] %vm768, %v3526
      %3678 = vst.msk [vmem:[%s3618 + $0x2f1] sm:$0xff] %vm768, %v3527
      %3679 = vst.msk [vmem:[%s3618 + $0x301] sm:$0xff] %vm768, %v3528
      %3680 = vst.msk [vmem:[%s3618 + $0x309] sm:$0xff] %vm768, %v3529
      %3681 = vst.msk [vmem:[%s3618 + $0x319] sm:$0xff] %vm768, %v3530
      %3682 = vst.msk [vmem:[%s3618 + $0x321] sm:$0xff] %vm768, %v3531
      %v3683 = vld [vmem:[%s527] sm:$0x7]
      %v3684 = vld [vmem:[%s527 + $0x4] sm:$0x7]
      %v3685 = vld [vmem:[%s527 + $0x8] sm:$0x7]
      %v3686 = vld [vmem:[#allocation3] sm:$0xff]
      %v3687 = vld [vmem:[#allocation3 + $0x8] sm:$0xff]
      %v3688 = vld [vmem:[#allocation3 + $0x18] sm:$0xff]
      %v3689 = vld [vmem:[#allocation3 + $0x20] sm:$0xff]
      %v3690 = vld [vmem:[#allocation3 + $0x30] sm:$0xff]
      %v3691 = vld [vmem:[#allocation3 + $0x38] sm:$0xff]
      %v3692 = vld [vmem:[#allocation3 + $0x48] sm:$0xff]
      %v3693 = vld [vmem:[#allocation3 + $0x50] sm:$0xff]
      %v3694 = vld [vmem:[#allocation3 + $0x60] sm:$0xff]
      %v3695 = vld [vmem:[#allocation3 + $0x68] sm:$0xff]
      %v3696 = vld [vmem:[#allocation3 + $0x78] sm:$0xff]
      %v3697 = vld [vmem:[#allocation3 + $0x80] sm:$0xff]
      %v3698 = vld [vmem:[#allocation3 + $0x90] sm:$0xff]
      %v3699 = vld [vmem:[#allocation3 + $0x98] sm:$0xff]
      %v3700 = vld [vmem:[#allocation3 + $0xa8] sm:$0xff]
      %v3701 = vld [vmem:[#allocation3 + $0xb0] sm:$0xff]
      %v3702 = vld [vmem:[#allocation3 + $0xc0] sm:$0xff]
      %v3703 = vld [vmem:[#allocation3 + $0xc8] sm:$0xff]
      %v3704 = vld [vmem:[#allocation3 + $0xd8] sm:$0xff]
      %v3705 = vld [vmem:[#allocation3 + $0xe0] sm:$0xff]
      %v3706 = vld [vmem:[#allocation3 + $0xf0] sm:$0xff]
      %v3707 = vld [vmem:[#allocation3 + $0xf8] sm:$0xff]
      %v3708 = vld [vmem:[#allocation3 + $0x108] sm:$0xff]
      %v3709 = vld [vmem:[#allocation3 + $0x110] sm:$0xff]
      %v3710 = vld [vmem:[#allocation3 + $0x120] sm:$0xff]
      %v3711 = vld [vmem:[#allocation3 + $0x128] sm:$0xff]
      %v3712 = vld [vmem:[#allocation3 + $0x138] sm:$0xff]
      %v3713 = vld [vmem:[#allocation3 + $0x140] sm:$0xff]
      %v3714 = vld [vmem:[#allocation3 + $0x150] sm:$0xff]
      %v3715 = vld [vmem:[#allocation3 + $0x158] sm:$0xff]
      %v3716 = vld [vmem:[#allocation3 + $0x168] sm:$0xff]
      %v3717 = vld [vmem:[#allocation3 + $0x170] sm:$0xff]
      %v3718 = vld [vmem:[#allocation3 + $0x1b0] sm:$0xff]
      %v3719 = vld [vmem:[#allocation3 + $0x1b8] sm:$0xff]
      %v3720 = vld [vmem:[#allocation3 + $0x1c8] sm:$0xff]
      %v3721 = vld [vmem:[#allocation3 + $0x1d0] sm:$0xff]
      %v3722 = vld [vmem:[#allocation3 + $0x1e0] sm:$0xff]
      %v3723 = vld [vmem:[#allocation3 + $0x1e8] sm:$0xff]
      %v3724 = vld [vmem:[#allocation3 + $0x1f8] sm:$0xff]
      %v3725 = vld [vmem:[#allocation3 + $0x200] sm:$0xff]
      %v3726 = vld [vmem:[#allocation3 + $0x210] sm:$0xff]
      %v3727 = vld [vmem:[#allocation3 + $0x218] sm:$0xff]
      %v3728 = vld [vmem:[#allocation3 + $0x228] sm:$0xff]
      %v3729 = vld [vmem:[#allocation3 + $0x230] sm:$0xff]
      %v3730 = vld [vmem:[#allocation3 + $0x240] sm:$0xff]
      %v3731 = vld [vmem:[#allocation3 + $0x248] sm:$0xff]
      %v3732 = vld [vmem:[#allocation3 + $0x258] sm:$0xff]
      %v3733 = vld [vmem:[#allocation3 + $0x260] sm:$0xff]
      %v3734 = vld [vmem:[#allocation3 + $0x270] sm:$0xff]
      %v3735 = vld [vmem:[#allocation3 + $0x278] sm:$0xff]
      %v3736 = vld [vmem:[#allocation3 + $0x288] sm:$0xff]
      %v3737 = vld [vmem:[#allocation3 + $0x290] sm:$0xff]
      %v3738 = vld [vmem:[#allocation3 + $0x2a0] sm:$0xff]
      %v3739 = vld [vmem:[#allocation3 + $0x2a8] sm:$0xff]
      %v3740 = vld [vmem:[#allocation3 + $0x2b8] sm:$0xff]
      %v3741 = vld [vmem:[#allocation3 + $0x2c0] sm:$0xff]
      %v3742 = vld [vmem:[#allocation3 + $0x2d0] sm:$0xff]
      %v3743 = vld [vmem:[#allocation3 + $0x2d8] sm:$0xff]
      %v3744 = vld [vmem:[#allocation3 + $0x2e8] sm:$0xff]
      %v3745 = vld [vmem:[#allocation3 + $0x2f0] sm:$0xff]
      %v3746 = vld [vmem:[#allocation3 + $0x300] sm:$0xff]
      %v3747 = vld [vmem:[#allocation3 + $0x308] sm:$0xff]
      %v3748 = vld [vmem:[#allocation3 + $0x318] sm:$0xff]
      %v3749 = vld [vmem:[#allocation3 + $0x320] sm:$0xff]
      %v3750 = vperm.slane %v3683, 0
      %v3751 = vmul.f32 %v3686, %v3750
      %v3752 = vmul.f32 %v3687, %v3750
      %v3753 = vmul.f32 %v3688, %v3750
      %v3754 = vmul.f32 %v3689, %v3750
      %v3755 = vmul.f32 %v3690, %v3750
      %v3756 = vmul.f32 %v3691, %v3750
      %v3757 = vmul.f32 %v3692, %v3750
      %v3758 = vmul.f32 %v3693, %v3750
      %v3759 = vmul.f32 %v3694, %v3750
      %v3760 = vmul.f32 %v3695, %v3750
      %v3761 = vmul.f32 %v3696, %v3750
      %v3762 = vmul.f32 %v3697, %v3750
      %v3763 = vmul.f32 %v3698, %v3750
      %v3764 = vmul.f32 %v3699, %v3750
      %v3765 = vmul.f32 %v3700, %v3750
      %v3766 = vmul.f32 %v3701, %v3750
      %v3767 = vmul.f32 %v3702, %v3750
      %v3768 = vmul.f32 %v3703, %v3750
      %v3769 = vmul.f32 %v3704, %v3750
      %v3770 = vmul.f32 %v3705, %v3750
      %v3771 = vmul.f32 %v3706, %v3750
      %v3772 = vmul.f32 %v3707, %v3750
      %v3773 = vmul.f32 %v3708, %v3750
      %v3774 = vmul.f32 %v3709, %v3750
      %v3775 = vmul.f32 %v3710, %v3750
      %v3776 = vmul.f32 %v3711, %v3750
      %v3777 = vmul.f32 %v3712, %v3750
      %v3778 = vmul.f32 %v3713, %v3750
      %v3779 = vmul.f32 %v3714, %v3750
      %v3780 = vmul.f32 %v3715, %v3750
      %v3781 = vmul.f32 %v3716, %v3750
      %v3782 = vmul.f32 %v3717, %v3750
      %v3783 = vmul.f32 %v3718, %v3750
      %v3784 = vmul.f32 %v3719, %v3750
      %v3785 = vmul.f32 %v3720, %v3750
      %v3786 = vmul.f32 %v3721, %v3750
      %v3787 = vmul.f32 %v3722, %v3750
      %v3788 = vmul.f32 %v3723, %v3750
      %v3789 = vmul.f32 %v3724, %v3750
      %v3790 = vmul.f32 %v3725, %v3750
      %v3791 = vmul.f32 %v3726, %v3750
      %v3792 = vmul.f32 %v3727, %v3750
      %v3793 = vmul.f32 %v3728, %v3750
      %v3794 = vmul.f32 %v3729, %v3750
      %v3795 = vmul.f32 %v3730, %v3750
      %v3796 = vmul.f32 %v3731, %v3750
      %v3797 = vmul.f32 %v3732, %v3750
      %v3798 = vmul.f32 %v3733, %v3750
      %v3799 = vmul.f32 %v3734, %v3750
      %v3800 = vmul.f32 %v3735, %v3750
      %v3801 = vmul.f32 %v3736, %v3750
      %v3802 = vmul.f32 %v3737, %v3750
      %v3803 = vmul.f32 %v3738, %v3750
      %v3804 = vmul.f32 %v3739, %v3750
      %v3805 = vmul.f32 %v3740, %v3750
      %v3806 = vmul.f32 %v3741, %v3750
      %v3807 = vmul.f32 %v3742, %v3750
      %v3808 = vmul.f32 %v3743, %v3750
      %v3809 = vmul.f32 %v3744, %v3750
      %v3810 = vmul.f32 %v3745, %v3750
      %v3811 = vmul.f32 %v3746, %v3750
      %v3812 = vmul.f32 %v3747, %v3750
      %v3813 = vmul.f32 %v3748, %v3750
      %v3814 = vmul.f32 %v3749, %v3750
      %v3815 = vadd.f32 %v3751, 0.0
      %v3816 = vadd.f32 %v3752, 0.0
      %v3817 = vadd.f32 %v3753, 0.0
      %v3818 = vadd.f32 %v3754, 0.0
      %v3819 = vadd.f32 %v3755, 0.0
      %v3820 = vadd.f32 %v3756, 0.0
      %v3821 = vadd.f32 %v3757, 0.0
      %v3822 = vadd.f32 %v3758, 0.0
      %v3823 = vadd.f32 %v3759, 0.0
      %v3824 = vadd.f32 %v3760, 0.0
      %v3825 = vadd.f32 %v3761, 0.0
      %v3826 = vadd.f32 %v3762, 0.0
      %v3827 = vadd.f32 %v3763, 0.0
      %v3828 = vadd.f32 %v3764, 0.0
      %v3829 = vadd.f32 %v3765, 0.0
      %v3830 = vadd.f32 %v3766, 0.0
      %v3831 = vadd.f32 %v3767, 0.0
      %v3832 = vadd.f32 %v3768, 0.0
      %v3833 = vadd.f32 %v3769, 0.0
      %v3834 = vadd.f32 %v3770, 0.0
      %v3835 = vadd.f32 %v3771, 0.0
      %v3836 = vadd.f32 %v3772, 0.0
      %v3837 = vadd.f32 %v3773, 0.0
      %v3838 = vadd.f32 %v3774, 0.0
      %v3839 = vadd.f32 %v3775, 0.0
      %v3840 = vadd.f32 %v3776, 0.0
      %v3841 = vadd.f32 %v3777, 0.0
      %v3842 = vadd.f32 %v3778, 0.0
      %v3843 = vadd.f32 %v3779, 0.0
      %v3844 = vadd.f32 %v3780, 0.0
      %v3845 = vadd.f32 %v3781, 0.0
      %v3846 = vadd.f32 %v3782, 0.0
      %v3847 = vadd.f32 %v3783, 0.0
      %v3848 = vadd.f32 %v3784, 0.0
      %v3849 = vadd.f32 %v3785, 0.0
      %v3850 = vadd.f32 %v3786, 0.0
      %v3851 = vadd.f32 %v3787, 0.0
      %v3852 = vadd.f32 %v3788, 0.0
      %v3853 = vadd.f32 %v3789, 0.0
      %v3854 = vadd.f32 %v3790, 0.0
      %v3855 = vadd.f32 %v3791, 0.0
      %v3856 = vadd.f32 %v3792, 0.0
      %v3857 = vadd.f32 %v3793, 0.0
      %v3858 = vadd.f32 %v3794, 0.0
      %v3859 = vadd.f32 %v3795, 0.0
      %v3860 = vadd.f32 %v3796, 0.0
      %v3861 = vadd.f32 %v3797, 0.0
      %v3862 = vadd.f32 %v3798, 0.0
      %v3863 = vadd.f32 %v3799, 0.0
      %v3864 = vadd.f32 %v3800, 0.0
      %v3865 = vadd.f32 %v3801, 0.0
      %v3866 = vadd.f32 %v3802, 0.0
      %v3867 = vadd.f32 %v3803, 0.0
      %v3868 = vadd.f32 %v3804, 0.0
      %v3869 = vadd.f32 %v3805, 0.0
      %v3870 = vadd.f32 %v3806, 0.0
      %v3871 = vadd.f32 %v3807, 0.0
      %v3872 = vadd.f32 %v3808, 0.0
      %v3873 = vadd.f32 %v3809, 0.0
      %v3874 = vadd.f32 %v3810, 0.0
      %v3875 = vadd.f32 %v3811, 0.0
      %v3876 = vadd.f32 %v3812, 0.0
      %v3877 = vadd.f32 %v3813, 0.0
      %v3878 = vadd.f32 %v3814, 0.0
      %v3879 = vld [vmem:[#allocation3 + $0x1] sm:$0xff]
      %v3880 = vld [vmem:[#allocation3 + $0x9] sm:$0xff]
      %v3881 = vld [vmem:[#allocation3 + $0x19] sm:$0xff]
      %v3882 = vld [vmem:[#allocation3 + $0x21] sm:$0xff]
      %v3883 = vld [vmem:[#allocation3 + $0x31] sm:$0xff]
      %v3884 = vld [vmem:[#allocation3 + $0x39] sm:$0xff]
      %v3885 = vld [vmem:[#allocation3 + $0x49] sm:$0xff]
      %v3886 = vld [vmem:[#allocation3 + $0x51] sm:$0xff]
      %v3887 = vld [vmem:[#allocation3 + $0x61] sm:$0xff]
      %v3888 = vld [vmem:[#allocation3 + $0x69] sm:$0xff]
      %v3889 = vld [vmem:[#allocation3 + $0x79] sm:$0xff]
      %v3890 = vld [vmem:[#allocation3 + $0x81] sm:$0xff]
      %v3891 = vld [vmem:[#allocation3 + $0x91] sm:$0xff]
      %v3892 = vld [vmem:[#allocation3 + $0x99] sm:$0xff]
      %v3893 = vld [vmem:[#allocation3 + $0xa9] sm:$0xff]
      %v3894 = vld [vmem:[#allocation3 + $0xb1] sm:$0xff]
      %v3895 = vld [vmem:[#allocation3 + $0xc1] sm:$0xff]
      %v3896 = vld [vmem:[#allocation3 + $0xc9] sm:$0xff]
      %v3897 = vld [vmem:[#allocation3 + $0xd9] sm:$0xff]
      %v3898 = vld [vmem:[#allocation3 + $0xe1] sm:$0xff]
      %v3899 = vld [vmem:[#allocation3 + $0xf1] sm:$0xff]
      %v3900 = vld [vmem:[#allocation3 + $0xf9] sm:$0xff]
      %v3901 = vld [vmem:[#allocation3 + $0x109] sm:$0xff]
      %v3902 = vld [vmem:[#allocation3 + $0x111] sm:$0xff]
      %v3903 = vld [vmem:[#allocation3 + $0x121] sm:$0xff]
      %v3904 = vld [vmem:[#allocation3 + $0x129] sm:$0xff]
      %v3905 = vld [vmem:[#allocation3 + $0x139] sm:$0xff]
      %v3906 = vld [vmem:[#allocation3 + $0x141] sm:$0xff]
      %v3907 = vld [vmem:[#allocation3 + $0x151] sm:$0xff]
      %v3908 = vld [vmem:[#allocation3 + $0x159] sm:$0xff]
      %v3909 = vld [vmem:[#allocation3 + $0x169] sm:$0xff]
      %v3910 = vld [vmem:[#allocation3 + $0x171] sm:$0xff]
      %v3911 = vld [vmem:[#allocation3 + $0x1b1] sm:$0xff]
      %v3912 = vld [vmem:[#allocation3 + $0x1b9] sm:$0xff]
      %v3913 = vld [vmem:[#allocation3 + $0x1c9] sm:$0xff]
      %v3914 = vld [vmem:[#allocation3 + $0x1d1] sm:$0xff]
      %v3915 = vld [vmem:[#allocation3 + $0x1e1] sm:$0xff]
      %v3916 = vld [vmem:[#allocation3 + $0x1e9] sm:$0xff]
      %v3917 = vld [vmem:[#allocation3 + $0x1f9] sm:$0xff]
      %v3918 = vld [vmem:[#allocation3 + $0x201] sm:$0xff]
      %v3919 = vld [vmem:[#allocation3 + $0x211] sm:$0xff]
      %v3920 = vld [vmem:[#allocation3 + $0x219] sm:$0xff]
      %v3921 = vld [vmem:[#allocation3 + $0x229] sm:$0xff]
      %v3922 = vld [vmem:[#allocation3 + $0x231] sm:$0xff]
      %v3923 = vld [vmem:[#allocation3 + $0x241] sm:$0xff]
      %v3924 = vld [vmem:[#allocation3 + $0x249] sm:$0xff]
      %v3925 = vld [vmem:[#allocation3 + $0x259] sm:$0xff]
      %v3926 = vld [vmem:[#allocation3 + $0x261] sm:$0xff]
      %v3927 = vld [vmem:[#allocation3 + $0x271] sm:$0xff]
      %v3928 = vld [vmem:[#allocation3 + $0x279] sm:$0xff]
      %v3929 = vld [vmem:[#allocation3 + $0x289] sm:$0xff]
      %v3930 = vld [vmem:[#allocation3 + $0x291] sm:$0xff]
      %v3931 = vld [vmem:[#allocation3 + $0x2a1] sm:$0xff]
      %v3932 = vld [vmem:[#allocation3 + $0x2a9] sm:$0xff]
      %v3933 = vld [vmem:[#allocation3 + $0x2b9] sm:$0xff]
      %v3934 = vld [vmem:[#allocation3 + $0x2c1] sm:$0xff]
      %v3935 = vld [vmem:[#allocation3 + $0x2d1] sm:$0xff]
      %v3936 = vld [vmem:[#allocation3 + $0x2d9] sm:$0xff]
      %v3937 = vld [vmem:[#allocation3 + $0x2e9] sm:$0xff]
      %v3938 = vld [vmem:[#allocation3 + $0x2f1] sm:$0xff]
      %v3939 = vld [vmem:[#allocation3 + $0x301] sm:$0xff]
      %v3940 = vld [vmem:[#allocation3 + $0x309] sm:$0xff]
      %v3941 = vld [vmem:[#allocation3 + $0x319] sm:$0xff]
      %v3942 = vld [vmem:[#allocation3 + $0x321] sm:$0xff]
      %v3943 = vperm.slane %v3683, 1
      %v3944 = vmul.f32 %v3879, %v3943
      %v3945 = vmul.f32 %v3880, %v3943
      %v3946 = vmul.f32 %v3881, %v3943
      %v3947 = vmul.f32 %v3882, %v3943
      %v3948 = vmul.f32 %v3883, %v3943
      %v3949 = vmul.f32 %v3884, %v3943
      %v3950 = vmul.f32 %v3885, %v3943
      %v3951 = vmul.f32 %v3886, %v3943
      %v3952 = vmul.f32 %v3887, %v3943
      %v3953 = vmul.f32 %v3888, %v3943
      %v3954 = vmul.f32 %v3889, %v3943
      %v3955 = vmul.f32 %v3890, %v3943
      %v3956 = vmul.f32 %v3891, %v3943
      %v3957 = vmul.f32 %v3892, %v3943
      %v3958 = vmul.f32 %v3893, %v3943
      %v3959 = vmul.f32 %v3894, %v3943
      %v3960 = vmul.f32 %v3895, %v3943
      %v3961 = vmul.f32 %v3896, %v3943
      %v3962 = vmul.f32 %v3897, %v3943
      %v3963 = vmul.f32 %v3898, %v3943
      %v3964 = vmul.f32 %v3899, %v3943
      %v3965 = vmul.f32 %v3900, %v3943
      %v3966 = vmul.f32 %v3901, %v3943
      %v3967 = vmul.f32 %v3902, %v3943
      %v3968 = vmul.f32 %v3903, %v3943
      %v3969 = vmul.f32 %v3904, %v3943
      %v3970 = vmul.f32 %v3905, %v3943
      %v3971 = vmul.f32 %v3906, %v3943
      %v3972 = vmul.f32 %v3907, %v3943
      %v3973 = vmul.f32 %v3908, %v3943
      %v3974 = vmul.f32 %v3909, %v3943
      %v3975 = vmul.f32 %v3910, %v3943
      %v3976 = vmul.f32 %v3911, %v3943
      %v3977 = vmul.f32 %v3912, %v3943
      %v3978 = vmul.f32 %v3913, %v3943
      %v3979 = vmul.f32 %v3914, %v3943
      %v3980 = vmul.f32 %v3915, %v3943
      %v3981 = vmul.f32 %v3916, %v3943
      %v3982 = vmul.f32 %v3917, %v3943
      %v3983 = vmul.f32 %v3918, %v3943
      %v3984 = vmul.f32 %v3919, %v3943
      %v3985 = vmul.f32 %v3920, %v3943
      %v3986 = vmul.f32 %v3921, %v3943
      %v3987 = vmul.f32 %v3922, %v3943
      %v3988 = vmul.f32 %v3923, %v3943
      %v3989 = vmul.f32 %v3924, %v3943
      %v3990 = vmul.f32 %v3925, %v3943
      %v3991 = vmul.f32 %v3926, %v3943
      %v3992 = vmul.f32 %v3927, %v3943
      %v3993 = vmul.f32 %v3928, %v3943
      %v3994 = vmul.f32 %v3929, %v3943
      %v3995 = vmul.f32 %v3930, %v3943
      %v3996 = vmul.f32 %v3931, %v3943
      %v3997 = vmul.f32 %v3932, %v3943
      %v3998 = vmul.f32 %v3933, %v3943
      %v3999 = vmul.f32 %v3934, %v3943
      %v4000 = vmul.f32 %v3935, %v3943
      %v4001 = vmul.f32 %v3936, %v3943
      %v4002 = vmul.f32 %v3937, %v3943
      %v4003 = vmul.f32 %v3938, %v3943
      %v4004 = vmul.f32 %v3939, %v3943
      %v4005 = vmul.f32 %v3940, %v3943
      %v4006 = vmul.f32 %v3941, %v3943
      %v4007 = vmul.f32 %v3942, %v3943
      %v4008 = vadd.f32 %v3815, %v3944
      %v4009 = vadd.f32 %v3816, %v3945
      %v4010 = vadd.f32 %v3817, %v3946
      %v4011 = vadd.f32 %v3818, %v3947
      %v4012 = vadd.f32 %v3819, %v3948
      %v4013 = vadd.f32 %v3820, %v3949
      %v4014 = vadd.f32 %v3821, %v3950
      %v4015 = vadd.f32 %v3822, %v3951
      %v4016 = vadd.f32 %v3823, %v3952
      %v4017 = vadd.f32 %v3824, %v3953
      %v4018 = vadd.f32 %v3825, %v3954
      %v4019 = vadd.f32 %v3826, %v3955
      %v4020 = vadd.f32 %v3827, %v3956
      %v4021 = vadd.f32 %v3828, %v3957
      %v4022 = vadd.f32 %v3829, %v3958
      %v4023 = vadd.f32 %v3830, %v3959
      %v4024 = vadd.f32 %v3831, %v3960
      %v4025 = vadd.f32 %v3832, %v3961
      %v4026 = vadd.f32 %v3833, %v3962
      %v4027 = vadd.f32 %v3834, %v3963
      %v4028 = vadd.f32 %v3835, %v3964
      %v4029 = vadd.f32 %v3836, %v3965
      %v4030 = vadd.f32 %v3837, %v3966
      %v4031 = vadd.f32 %v3838, %v3967
      %v4032 = vadd.f32 %v3839, %v3968
      %v4033 = vadd.f32 %v3840, %v3969
      %v4034 = vadd.f32 %v3841, %v3970
      %v4035 = vadd.f32 %v3842, %v3971
      %v4036 = vadd.f32 %v3843, %v3972
      %v4037 = vadd.f32 %v3844, %v3973
      %v4038 = vadd.f32 %v3845, %v3974
      %v4039 = vadd.f32 %v3846, %v3975
      %v4040 = vadd.f32 %v3847, %v3976
      %v4041 = vadd.f32 %v3848, %v3977
      %v4042 = vadd.f32 %v3849, %v3978
      %v4043 = vadd.f32 %v3850, %v3979
      %v4044 = vadd.f32 %v3851, %v3980
      %v4045 = vadd.f32 %v3852, %v3981
      %v4046 = vadd.f32 %v3853, %v3982
      %v4047 = vadd.f32 %v3854, %v3983
      %v4048 = vadd.f32 %v3855, %v3984
      %v4049 = vadd.f32 %v3856, %v3985
      %v4050 = vadd.f32 %v3857, %v3986
      %v4051 = vadd.f32 %v3858, %v3987
      %v4052 = vadd.f32 %v3859, %v3988
      %v4053 = vadd.f32 %v3860, %v3989
      %v4054 = vadd.f32 %v3861, %v3990
      %v4055 = vadd.f32 %v3862, %v3991
      %v4056 = vadd.f32 %v3863, %v3992
      %v4057 = vadd.f32 %v3864, %v3993
      %v4058 = vadd.f32 %v3865, %v3994
      %v4059 = vadd.f32 %v3866, %v3995
      %v4060 = vadd.f32 %v3867, %v3996
      %v4061 = vadd.f32 %v3868, %v3997
      %v4062 = vadd.f32 %v3869, %v3998
      %v4063 = vadd.f32 %v3870, %v3999
      %v4064 = vadd.f32 %v3871, %v4000
      %v4065 = vadd.f32 %v3872, %v4001
      %v4066 = vadd.f32 %v3873, %v4002
      %v4067 = vadd.f32 %v3874, %v4003
      %v4068 = vadd.f32 %v3875, %v4004
      %v4069 = vadd.f32 %v3876, %v4005
      %v4070 = vadd.f32 %v3877, %v4006
      %v4071 = vadd.f32 %v3878, %v4007
      %v4072 = vld [vmem:[#allocation3 + $0x2] sm:$0xff]
      %v4073 = vld [vmem:[#allocation3 + $0xa] sm:$0xff]
      %v4074 = vld [vmem:[#allocation3 + $0x1a] sm:$0xff]
      %v4075 = vld [vmem:[#allocation3 + $0x22] sm:$0xff]
      %v4076 = vld [vmem:[#allocation3 + $0x32] sm:$0xff]
      %v4077 = vld [vmem:[#allocation3 + $0x3a] sm:$0xff]
      %v4078 = vld [vmem:[#allocation3 + $0x4a] sm:$0xff]
      %v4079 = vld [vmem:[#allocation3 + $0x52] sm:$0xff]
      %v4080 = vld [vmem:[#allocation3 + $0x62] sm:$0xff]
      %v4081 = vld [vmem:[#allocation3 + $0x6a] sm:$0xff]
      %v4082 = vld [vmem:[#allocation3 + $0x7a] sm:$0xff]
      %v4083 = vld [vmem:[#allocation3 + $0x82] sm:$0xff]
      %v4084 = vld [vmem:[#allocation3 + $0x92] sm:$0xff]
      %v4085 = vld [vmem:[#allocation3 + $0x9a] sm:$0xff]
      %v4086 = vld [vmem:[#allocation3 + $0xaa] sm:$0xff]
      %v4087 = vld [vmem:[#allocation3 + $0xb2] sm:$0xff]
      %v4088 = vld [vmem:[#allocation3 + $0xc2] sm:$0xff]
      %v4089 = vld [vmem:[#allocation3 + $0xca] sm:$0xff]
      %v4090 = vld [vmem:[#allocation3 + $0xda] sm:$0xff]
      %v4091 = vld [vmem:[#allocation3 + $0xe2] sm:$0xff]
      %v4092 = vld [vmem:[#allocation3 + $0xf2] sm:$0xff]
      %v4093 = vld [vmem:[#allocation3 + $0xfa] sm:$0xff]
      %v4094 = vld [vmem:[#allocation3 + $0x10a] sm:$0xff]
      %v4095 = vld [vmem:[#allocation3 + $0x112] sm:$0xff]
      %v4096 = vld [vmem:[#allocation3 + $0x122] sm:$0xff]
      %v4097 = vld [vmem:[#allocation3 + $0x12a] sm:$0xff]
      %v4098 = vld [vmem:[#allocation3 + $0x13a] sm:$0xff]
      %v4099 = vld [vmem:[#allocation3 + $0x142] sm:$0xff]
      %v4100 = vld [vmem:[#allocation3 + $0x152] sm:$0xff]
      %v4101 = vld [vmem:[#allocation3 + $0x15a] sm:$0xff]
      %v4102 = vld [vmem:[#allocation3 + $0x16a] sm:$0xff]
      %v4103 = vld [vmem:[#allocation3 + $0x172] sm:$0xff]
      %v4104 = vld [vmem:[#allocation3 + $0x1b2] sm:$0xff]
      %v4105 = vld [vmem:[#allocation3 + $0x1ba] sm:$0xff]
      %v4106 = vld [vmem:[#allocation3 + $0x1ca] sm:$0xff]
      %v4107 = vld [vmem:[#allocation3 + $0x1d2] sm:$0xff]
      %v4108 = vld [vmem:[#allocation3 + $0x1e2] sm:$0xff]
      %v4109 = vld [vmem:[#allocation3 + $0x1ea] sm:$0xff]
      %v4110 = vld [vmem:[#allocation3 + $0x1fa] sm:$0xff]
      %v4111 = vld [vmem:[#allocation3 + $0x202] sm:$0xff]
      %v4112 = vld [vmem:[#allocation3 + $0x212] sm:$0xff]
      %v4113 = vld [vmem:[#allocation3 + $0x21a] sm:$0xff]
      %v4114 = vld [vmem:[#allocation3 + $0x22a] sm:$0xff]
      %v4115 = vld [vmem:[#allocation3 + $0x232] sm:$0xff]
      %v4116 = vld [vmem:[#allocation3 + $0x242] sm:$0xff]
      %v4117 = vld [vmem:[#allocation3 + $0x24a] sm:$0xff]
      %v4118 = vld [vmem:[#allocation3 + $0x25a] sm:$0xff]
      %v4119 = vld [vmem:[#allocation3 + $0x262] sm:$0xff]
      %v4120 = vld [vmem:[#allocation3 + $0x272] sm:$0xff]
      %v4121 = vld [vmem:[#allocation3 + $0x27a] sm:$0xff]
      %v4122 = vld [vmem:[#allocation3 + $0x28a] sm:$0xff]
      %v4123 = vld [vmem:[#allocation3 + $0x292] sm:$0xff]
      %v4124 = vld [vmem:[#allocation3 + $0x2a2] sm:$0xff]
      %v4125 = vld [vmem:[#allocation3 + $0x2aa] sm:$0xff]
      %v4126 = vld [vmem:[#allocation3 + $0x2ba] sm:$0xff]
      %v4127 = vld [vmem:[#allocation3 + $0x2c2] sm:$0xff]
      %v4128 = vld [vmem:[#allocation3 + $0x2d2] sm:$0xff]
      %v4129 = vld [vmem:[#allocation3 + $0x2da] sm:$0xff]
      %v4130 = vld [vmem:[#allocation3 + $0x2ea] sm:$0xff]
      %v4131 = vld [vmem:[#allocation3 + $0x2f2] sm:$0xff]
      %v4132 = vld [vmem:[#allocation3 + $0x302] sm:$0xff]
      %v4133 = vld [vmem:[#allocation3 + $0x30a] sm:$0xff]
      %v4134 = vld [vmem:[#allocation3 + $0x31a] sm:$0xff]
      %v4135 = vld [vmem:[#allocation3 + $0x322] sm:$0xff]
      %v4136 = vperm.slane %v3683, 2
      %v4137 = vmul.f32 %v4072, %v4136
      %v4138 = vmul.f32 %v4073, %v4136
      %v4139 = vmul.f32 %v4074, %v4136
      %v4140 = vmul.f32 %v4075, %v4136
      %v4141 = vmul.f32 %v4076, %v4136
      %v4142 = vmul.f32 %v4077, %v4136
      %v4143 = vmul.f32 %v4078, %v4136
      %v4144 = vmul.f32 %v4079, %v4136
      %v4145 = vmul.f32 %v4080, %v4136
      %v4146 = vmul.f32 %v4081, %v4136
      %v4147 = vmul.f32 %v4082, %v4136
      %v4148 = vmul.f32 %v4083, %v4136
      %v4149 = vmul.f32 %v4084, %v4136
      %v4150 = vmul.f32 %v4085, %v4136
      %v4151 = vmul.f32 %v4086, %v4136
      %v4152 = vmul.f32 %v4087, %v4136
      %v4153 = vmul.f32 %v4088, %v4136
      %v4154 = vmul.f32 %v4089, %v4136
      %v4155 = vmul.f32 %v4090, %v4136
      %v4156 = vmul.f32 %v4091, %v4136
      %v4157 = vmul.f32 %v4092, %v4136
      %v4158 = vmul.f32 %v4093, %v4136
      %v4159 = vmul.f32 %v4094, %v4136
      %v4160 = vmul.f32 %v4095, %v4136
      %v4161 = vmul.f32 %v4096, %v4136
      %v4162 = vmul.f32 %v4097, %v4136
      %v4163 = vmul.f32 %v4098, %v4136
      %v4164 = vmul.f32 %v4099, %v4136
      %v4165 = vmul.f32 %v4100, %v4136
      %v4166 = vmul.f32 %v4101, %v4136
      %v4167 = vmul.f32 %v4102, %v4136
      %v4168 = vmul.f32 %v4103, %v4136
      %v4169 = vmul.f32 %v4104, %v4136
      %v4170 = vmul.f32 %v4105, %v4136
      %v4171 = vmul.f32 %v4106, %v4136
      %v4172 = vmul.f32 %v4107, %v4136
      %v4173 = vmul.f32 %v4108, %v4136
      %v4174 = vmul.f32 %v4109, %v4136
      %v4175 = vmul.f32 %v4110, %v4136
      %v4176 = vmul.f32 %v4111, %v4136
      %v4177 = vmul.f32 %v4112, %v4136
      %v4178 = vmul.f32 %v4113, %v4136
      %v4179 = vmul.f32 %v4114, %v4136
      %v4180 = vmul.f32 %v4115, %v4136
      %v4181 = vmul.f32 %v4116, %v4136
      %v4182 = vmul.f32 %v4117, %v4136
      %v4183 = vmul.f32 %v4118, %v4136
      %v4184 = vmul.f32 %v4119, %v4136
      %v4185 = vmul.f32 %v4120, %v4136
      %v4186 = vmul.f32 %v4121, %v4136
      %v4187 = vmul.f32 %v4122, %v4136
      %v4188 = vmul.f32 %v4123, %v4136
      %v4189 = vmul.f32 %v4124, %v4136
      %v4190 = vmul.f32 %v4125, %v4136
      %v4191 = vmul.f32 %v4126, %v4136
      %v4192 = vmul.f32 %v4127, %v4136
      %v4193 = vmul.f32 %v4128, %v4136
      %v4194 = vmul.f32 %v4129, %v4136
      %v4195 = vmul.f32 %v4130, %v4136
      %v4196 = vmul.f32 %v4131, %v4136
      %v4197 = vmul.f32 %v4132, %v4136
      %v4198 = vmul.f32 %v4133, %v4136
      %v4199 = vmul.f32 %v4134, %v4136
      %v4200 = vmul.f32 %v4135, %v4136
      %v4201 = vadd.f32 %v4008, %v4137
      %v4202 = vadd.f32 %v4009, %v4138
      %v4203 = vadd.f32 %v4010, %v4139
      %v4204 = vadd.f32 %v4011, %v4140
      %v4205 = vadd.f32 %v4012, %v4141
      %v4206 = vadd.f32 %v4013, %v4142
      %v4207 = vadd.f32 %v4014, %v4143
      %v4208 = vadd.f32 %v4015, %v4144
      %v4209 = vadd.f32 %v4016, %v4145
      %v4210 = vadd.f32 %v4017, %v4146
      %v4211 = vadd.f32 %v4018, %v4147
      %v4212 = vadd.f32 %v4019, %v4148
      %v4213 = vadd.f32 %v4020, %v4149
      %v4214 = vadd.f32 %v4021, %v4150
      %v4215 = vadd.f32 %v4022, %v4151
      %v4216 = vadd.f32 %v4023, %v4152
      %v4217 = vadd.f32 %v4024, %v4153
      %v4218 = vadd.f32 %v4025, %v4154
      %v4219 = vadd.f32 %v4026, %v4155
      %v4220 = vadd.f32 %v4027, %v4156
      %v4221 = vadd.f32 %v4028, %v4157
      %v4222 = vadd.f32 %v4029, %v4158
      %v4223 = vadd.f32 %v4030, %v4159
      %v4224 = vadd.f32 %v4031, %v4160
      %v4225 = vadd.f32 %v4032, %v4161
      %v4226 = vadd.f32 %v4033, %v4162
      %v4227 = vadd.f32 %v4034, %v4163
      %v4228 = vadd.f32 %v4035, %v4164
      %v4229 = vadd.f32 %v4036, %v4165
      %v4230 = vadd.f32 %v4037, %v4166
      %v4231 = vadd.f32 %v4038, %v4167
      %v4232 = vadd.f32 %v4039, %v4168
      %v4233 = vadd.f32 %v4040, %v4169
      %v4234 = vadd.f32 %v4041, %v4170
      %v4235 = vadd.f32 %v4042, %v4171
      %v4236 = vadd.f32 %v4043, %v4172
      %v4237 = vadd.f32 %v4044, %v4173
      %v4238 = vadd.f32 %v4045, %v4174
      %v4239 = vadd.f32 %v4046, %v4175
      %v4240 = vadd.f32 %v4047, %v4176
      %v4241 = vadd.f32 %v4048, %v4177
      %v4242 = vadd.f32 %v4049, %v4178
      %v4243 = vadd.f32 %v4050, %v4179
      %v4244 = vadd.f32 %v4051, %v4180
      %v4245 = vadd.f32 %v4052, %v4181
      %v4246 = vadd.f32 %v4053, %v4182
      %v4247 = vadd.f32 %v4054, %v4183
      %v4248 = vadd.f32 %v4055, %v4184
      %v4249 = vadd.f32 %v4056, %v4185
      %v4250 = vadd.f32 %v4057, %v4186
      %v4251 = vadd.f32 %v4058, %v4187
      %v4252 = vadd.f32 %v4059, %v4188
      %v4253 = vadd.f32 %v4060, %v4189
      %v4254 = vadd.f32 %v4061, %v4190
      %v4255 = vadd.f32 %v4062, %v4191
      %v4256 = vadd.f32 %v4063, %v4192
      %v4257 = vadd.f32 %v4064, %v4193
      %v4258 = vadd.f32 %v4065, %v4194
      %v4259 = vadd.f32 %v4066, %v4195
      %v4260 = vadd.f32 %v4067, %v4196
      %v4261 = vadd.f32 %v4068, %v4197
      %v4262 = vadd.f32 %v4069, %v4198
      %v4263 = vadd.f32 %v4070, %v4199
      %v4264 = vadd.f32 %v4071, %v4200
      %v4265 = vld [vmem:[%s3618] sm:$0xff]
      %v4266 = vld [vmem:[%s3618 + $0x8] sm:$0xff]
      %v4267 = vld [vmem:[%s3618 + $0x18] sm:$0xff]
      %v4268 = vld [vmem:[%s3618 + $0x20] sm:$0xff]
      %v4269 = vld [vmem:[%s3618 + $0x30] sm:$0xff]
      %v4270 = vld [vmem:[%s3618 + $0x38] sm:$0xff]
      %v4271 = vld [vmem:[%s3618 + $0x48] sm:$0xff]
      %v4272 = vld [vmem:[%s3618 + $0x50] sm:$0xff]
      %v4273 = vld [vmem:[%s3618 + $0x60] sm:$0xff]
      %v4274 = vld [vmem:[%s3618 + $0x68] sm:$0xff]
      %v4275 = vld [vmem:[%s3618 + $0x78] sm:$0xff]
      %v4276 = vld [vmem:[%s3618 + $0x80] sm:$0xff]
      %v4277 = vld [vmem:[%s3618 + $0x90] sm:$0xff]
      %v4278 = vld [vmem:[%s3618 + $0x98] sm:$0xff]
      %v4279 = vld [vmem:[%s3618 + $0xa8] sm:$0xff]
      %v4280 = vld [vmem:[%s3618 + $0xb0] sm:$0xff]
      %v4281 = vld [vmem:[%s3618 + $0xc0] sm:$0xff]
      %v4282 = vld [vmem:[%s3618 + $0xc8] sm:$0xff]
      %v4283 = vld [vmem:[%s3618 + $0xd8] sm:$0xff]
      %v4284 = vld [vmem:[%s3618 + $0xe0] sm:$0xff]
      %v4285 = vld [vmem:[%s3618 + $0xf0] sm:$0xff]
      %v4286 = vld [vmem:[%s3618 + $0xf8] sm:$0xff]
      %v4287 = vld [vmem:[%s3618 + $0x108] sm:$0xff]
      %v4288 = vld [vmem:[%s3618 + $0x110] sm:$0xff]
      %v4289 = vld [vmem:[%s3618 + $0x120] sm:$0xff]
      %v4290 = vld [vmem:[%s3618 + $0x128] sm:$0xff]
      %v4291 = vld [vmem:[%s3618 + $0x138] sm:$0xff]
      %v4292 = vld [vmem:[%s3618 + $0x140] sm:$0xff]
      %v4293 = vld [vmem:[%s3618 + $0x150] sm:$0xff]
      %v4294 = vld [vmem:[%s3618 + $0x158] sm:$0xff]
      %v4295 = vld [vmem:[%s3618 + $0x168] sm:$0xff]
      %v4296 = vld [vmem:[%s3618 + $0x170] sm:$0xff]
      %v4297 = vld [vmem:[%s3618 + $0x1b0] sm:$0xff]
      %v4298 = vld [vmem:[%s3618 + $0x1b8] sm:$0xff]
      %v4299 = vld [vmem:[%s3618 + $0x1c8] sm:$0xff]
      %v4300 = vld [vmem:[%s3618 + $0x1d0] sm:$0xff]
      %v4301 = vld [vmem:[%s3618 + $0x1e0] sm:$0xff]
      %v4302 = vld [vmem:[%s3618 + $0x1e8] sm:$0xff]
      %v4303 = vld [vmem:[%s3618 + $0x1f8] sm:$0xff]
      %v4304 = vld [vmem:[%s3618 + $0x200] sm:$0xff]
      %v4305 = vld [vmem:[%s3618 + $0x210] sm:$0xff]
      %v4306 = vld [vmem:[%s3618 + $0x218] sm:$0xff]
      %v4307 = vld [vmem:[%s3618 + $0x228] sm:$0xff]
      %v4308 = vld [vmem:[%s3618 + $0x230] sm:$0xff]
      %v4309 = vld [vmem:[%s3618 + $0x240] sm:$0xff]
      %v4310 = vld [vmem:[%s3618 + $0x248] sm:$0xff]
      %v4311 = vld [vmem:[%s3618 + $0x258] sm:$0xff]
      %v4312 = vld [vmem:[%s3618 + $0x260] sm:$0xff]
      %v4313 = vld [vmem:[%s3618 + $0x270] sm:$0xff]
      %v4314 = vld [vmem:[%s3618 + $0x278] sm:$0xff]
      %v4315 = vld [vmem:[%s3618 + $0x288] sm:$0xff]
      %v4316 = vld [vmem:[%s3618 + $0x290] sm:$0xff]
      %v4317 = vld [vmem:[%s3618 + $0x2a0] sm:$0xff]
      %v4318 = vld [vmem:[%s3618 + $0x2a8] sm:$0xff]
      %v4319 = vld [vmem:[%s3618 + $0x2b8] sm:$0xff]
      %v4320 = vld [vmem:[%s3618 + $0x2c0] sm:$0xff]
      %v4321 = vld [vmem:[%s3618 + $0x2d0] sm:$0xff]
      %v4322 = vld [vmem:[%s3618 + $0x2d8] sm:$0xff]
      %v4323 = vld [vmem:[%s3618 + $0x2e8] sm:$0xff]
      %v4324 = vld [vmem:[%s3618 + $0x2f0] sm:$0xff]
      %v4325 = vld [vmem:[%s3618 + $0x300] sm:$0xff]
      %v4326 = vld [vmem:[%s3618 + $0x308] sm:$0xff]
      %v4327 = vld [vmem:[%s3618 + $0x318] sm:$0xff]
      %v4328 = vld [vmem:[%s3618 + $0x320] sm:$0xff]
      %v4329 = vperm.slane %v3684, 0
      %v4330 = vmul.f32 %v4265, %v4329
      %v4331 = vmul.f32 %v4266, %v4329
      %v4332 = vmul.f32 %v4267, %v4329
      %v4333 = vmul.f32 %v4268, %v4329
      %v4334 = vmul.f32 %v4269, %v4329
      %v4335 = vmul.f32 %v4270, %v4329
      %v4336 = vmul.f32 %v4271, %v4329
      %v4337 = vmul.f32 %v4272, %v4329
      %v4338 = vmul.f32 %v4273, %v4329
      %v4339 = vmul.f32 %v4274, %v4329
      %v4340 = vmul.f32 %v4275, %v4329
      %v4341 = vmul.f32 %v4276, %v4329
      %v4342 = vmul.f32 %v4277, %v4329
      %v4343 = vmul.f32 %v4278, %v4329
      %v4344 = vmul.f32 %v4279, %v4329
      %v4345 = vmul.f32 %v4280, %v4329
      %v4346 = vmul.f32 %v4281, %v4329
      %v4347 = vmul.f32 %v4282, %v4329
      %v4348 = vmul.f32 %v4283, %v4329
      %v4349 = vmul.f32 %v4284, %v4329
      %v4350 = vmul.f32 %v4285, %v4329
      %v4351 = vmul.f32 %v4286, %v4329
      %v4352 = vmul.f32 %v4287, %v4329
      %v4353 = vmul.f32 %v4288, %v4329
      %v4354 = vmul.f32 %v4289, %v4329
      %v4355 = vmul.f32 %v4290, %v4329
      %v4356 = vmul.f32 %v4291, %v4329
      %v4357 = vmul.f32 %v4292, %v4329
      %v4358 = vmul.f32 %v4293, %v4329
      %v4359 = vmul.f32 %v4294, %v4329
      %v4360 = vmul.f32 %v4295, %v4329
      %v4361 = vmul.f32 %v4296, %v4329
      %v4362 = vmul.f32 %v4297, %v4329
      %v4363 = vmul.f32 %v4298, %v4329
      %v4364 = vmul.f32 %v4299, %v4329
      %v4365 = vmul.f32 %v4300, %v4329
      %v4366 = vmul.f32 %v4301, %v4329
      %v4367 = vmul.f32 %v4302, %v4329
      %v4368 = vmul.f32 %v4303, %v4329
      %v4369 = vmul.f32 %v4304, %v4329
      %v4370 = vmul.f32 %v4305, %v4329
      %v4371 = vmul.f32 %v4306, %v4329
      %v4372 = vmul.f32 %v4307, %v4329
      %v4373 = vmul.f32 %v4308, %v4329
      %v4374 = vmul.f32 %v4309, %v4329
      %v4375 = vmul.f32 %v4310, %v4329
      %v4376 = vmul.f32 %v4311, %v4329
      %v4377 = vmul.f32 %v4312, %v4329
      %v4378 = vmul.f32 %v4313, %v4329
      %v4379 = vmul.f32 %v4314, %v4329
      %v4380 = vmul.f32 %v4315, %v4329
      %v4381 = vmul.f32 %v4316, %v4329
      %v4382 = vmul.f32 %v4317, %v4329
      %v4383 = vmul.f32 %v4318, %v4329
      %v4384 = vmul.f32 %v4319, %v4329
      %v4385 = vmul.f32 %v4320, %v4329
      %v4386 = vmul.f32 %v4321, %v4329
      %v4387 = vmul.f32 %v4322, %v4329
      %v4388 = vmul.f32 %v4323, %v4329
      %v4389 = vmul.f32 %v4324, %v4329
      %v4390 = vmul.f32 %v4325, %v4329
      %v4391 = vmul.f32 %v4326, %v4329
      %v4392 = vmul.f32 %v4327, %v4329
      %v4393 = vmul.f32 %v4328, %v4329
      %v4394 = vadd.f32 %v4201, %v4330
      %v4395 = vadd.f32 %v4202, %v4331
      %v4396 = vadd.f32 %v4203, %v4332
      %v4397 = vadd.f32 %v4204, %v4333
      %v4398 = vadd.f32 %v4205, %v4334
      %v4399 = vadd.f32 %v4206, %v4335
      %v4400 = vadd.f32 %v4207, %v4336
      %v4401 = vadd.f32 %v4208, %v4337
      %v4402 = vadd.f32 %v4209, %v4338
      %v4403 = vadd.f32 %v4210, %v4339
      %v4404 = vadd.f32 %v4211, %v4340
      %v4405 = vadd.f32 %v4212, %v4341
      %v4406 = vadd.f32 %v4213, %v4342
      %v4407 = vadd.f32 %v4214, %v4343
      %v4408 = vadd.f32 %v4215, %v4344
      %v4409 = vadd.f32 %v4216, %v4345
      %v4410 = vadd.f32 %v4217, %v4346
      %v4411 = vadd.f32 %v4218, %v4347
      %v4412 = vadd.f32 %v4219, %v4348
      %v4413 = vadd.f32 %v4220, %v4349
      %v4414 = vadd.f32 %v4221, %v4350
      %v4415 = vadd.f32 %v4222, %v4351
      %v4416 = vadd.f32 %v4223, %v4352
      %v4417 = vadd.f32 %v4224, %v4353
      %v4418 = vadd.f32 %v4225, %v4354
      %v4419 = vadd.f32 %v4226, %v4355
      %v4420 = vadd.f32 %v4227, %v4356
      %v4421 = vadd.f32 %v4228, %v4357
      %v4422 = vadd.f32 %v4229, %v4358
      %v4423 = vadd.f32 %v4230, %v4359
      %v4424 = vadd.f32 %v4231, %v4360
      %v4425 = vadd.f32 %v4232, %v4361
      %v4426 = vadd.f32 %v4233, %v4362
      %v4427 = vadd.f32 %v4234, %v4363
      %v4428 = vadd.f32 %v4235, %v4364
      %v4429 = vadd.f32 %v4236, %v4365
      %v4430 = vadd.f32 %v4237, %v4366
      %v4431 = vadd.f32 %v4238, %v4367
      %v4432 = vadd.f32 %v4239, %v4368
      %v4433 = vadd.f32 %v4240, %v4369
      %v4434 = vadd.f32 %v4241, %v4370
      %v4435 = vadd.f32 %v4242, %v4371
      %v4436 = vadd.f32 %v4243, %v4372
      %v4437 = vadd.f32 %v4244, %v4373
      %v4438 = vadd.f32 %v4245, %v4374
      %v4439 = vadd.f32 %v4246, %v4375
      %v4440 = vadd.f32 %v4247, %v4376
      %v4441 = vadd.f32 %v4248, %v4377
      %v4442 = vadd.f32 %v4249, %v4378
      %v4443 = vadd.f32 %v4250, %v4379
      %v4444 = vadd.f32 %v4251, %v4380
      %v4445 = vadd.f32 %v4252, %v4381
      %v4446 = vadd.f32 %v4253, %v4382
      %v4447 = vadd.f32 %v4254, %v4383
      %v4448 = vadd.f32 %v4255, %v4384
      %v4449 = vadd.f32 %v4256, %v4385
      %v4450 = vadd.f32 %v4257, %v4386
      %v4451 = vadd.f32 %v4258, %v4387
      %v4452 = vadd.f32 %v4259, %v4388
      %v4453 = vadd.f32 %v4260, %v4389
      %v4454 = vadd.f32 %v4261, %v4390
      %v4455 = vadd.f32 %v4262, %v4391
      %v4456 = vadd.f32 %v4263, %v4392
      %v4457 = vadd.f32 %v4264, %v4393
      %v4458 = vld [vmem:[%s3618 + $0x1] sm:$0xff]
      %v4459 = vld [vmem:[%s3618 + $0x9] sm:$0xff]
      %v4460 = vld [vmem:[%s3618 + $0x19] sm:$0xff]
      %v4461 = vld [vmem:[%s3618 + $0x21] sm:$0xff]
      %v4462 = vld [vmem:[%s3618 + $0x31] sm:$0xff]
      %v4463 = vld [vmem:[%s3618 + $0x39] sm:$0xff]
      %v4464 = vld [vmem:[%s3618 + $0x49] sm:$0xff]
      %v4465 = vld [vmem:[%s3618 + $0x51] sm:$0xff]
      %v4466 = vld [vmem:[%s3618 + $0x61] sm:$0xff]
      %v4467 = vld [vmem:[%s3618 + $0x69] sm:$0xff]
      %v4468 = vld [vmem:[%s3618 + $0x79] sm:$0xff]
      %v4469 = vld [vmem:[%s3618 + $0x81] sm:$0xff]
      %v4470 = vld [vmem:[%s3618 + $0x91] sm:$0xff]
      %v4471 = vld [vmem:[%s3618 + $0x99] sm:$0xff]
      %v4472 = vld [vmem:[%s3618 + $0xa9] sm:$0xff]
      %v4473 = vld [vmem:[%s3618 + $0xb1] sm:$0xff]
      %v4474 = vld [vmem:[%s3618 + $0xc1] sm:$0xff]
      %v4475 = vld [vmem:[%s3618 + $0xc9] sm:$0xff]
      %v4476 = vld [vmem:[%s3618 + $0xd9] sm:$0xff]
      %v4477 = vld [vmem:[%s3618 + $0xe1] sm:$0xff]
      %v4478 = vld [vmem:[%s3618 + $0xf1] sm:$0xff]
      %v4479 = vld [vmem:[%s3618 + $0xf9] sm:$0xff]
      %v4480 = vld [vmem:[%s3618 + $0x109] sm:$0xff]
      %v4481 = vld [vmem:[%s3618 + $0x111] sm:$0xff]
      %v4482 = vld [vmem:[%s3618 + $0x121] sm:$0xff]
      %v4483 = vld [vmem:[%s3618 + $0x129] sm:$0xff]
      %v4484 = vld [vmem:[%s3618 + $0x139] sm:$0xff]
      %v4485 = vld [vmem:[%s3618 + $0x141] sm:$0xff]
      %v4486 = vld [vmem:[%s3618 + $0x151] sm:$0xff]
      %v4487 = vld [vmem:[%s3618 + $0x159] sm:$0xff]
      %v4488 = vld [vmem:[%s3618 + $0x169] sm:$0xff]
      %v4489 = vld [vmem:[%s3618 + $0x171] sm:$0xff]
      %v4490 = vld [vmem:[%s3618 + $0x1b1] sm:$0xff]
      %v4491 = vld [vmem:[%s3618 + $0x1b9] sm:$0xff]
      %v4492 = vld [vmem:[%s3618 + $0x1c9] sm:$0xff]
      %v4493 = vld [vmem:[%s3618 + $0x1d1] sm:$0xff]
      %v4494 = vld [vmem:[%s3618 + $0x1e1] sm:$0xff]
      %v4495 = vld [vmem:[%s3618 + $0x1e9] sm:$0xff]
      %v4496 = vld [vmem:[%s3618 + $0x1f9] sm:$0xff]
      %v4497 = vld [vmem:[%s3618 + $0x201] sm:$0xff]
      %v4498 = vld [vmem:[%s3618 + $0x211] sm:$0xff]
      %v4499 = vld [vmem:[%s3618 + $0x219] sm:$0xff]
      %v4500 = vld [vmem:[%s3618 + $0x229] sm:$0xff]
      %v4501 = vld [vmem:[%s3618 + $0x231] sm:$0xff]
      %v4502 = vld [vmem:[%s3618 + $0x241] sm:$0xff]
      %v4503 = vld [vmem:[%s3618 + $0x249] sm:$0xff]
      %v4504 = vld [vmem:[%s3618 + $0x259] sm:$0xff]
      %v4505 = vld [vmem:[%s3618 + $0x261] sm:$0xff]
      %v4506 = vld [vmem:[%s3618 + $0x271] sm:$0xff]
      %v4507 = vld [vmem:[%s3618 + $0x279] sm:$0xff]
      %v4508 = vld [vmem:[%s3618 + $0x289] sm:$0xff]
      %v4509 = vld [vmem:[%s3618 + $0x291] sm:$0xff]
      %v4510 = vld [vmem:[%s3618 + $0x2a1] sm:$0xff]
      %v4511 = vld [vmem:[%s3618 + $0x2a9] sm:$0xff]
      %v4512 = vld [vmem:[%s3618 + $0x2b9] sm:$0xff]
      %v4513 = vld [vmem:[%s3618 + $0x2c1] sm:$0xff]
      %v4514 = vld [vmem:[%s3618 + $0x2d1] sm:$0xff]
      %v4515 = vld [vmem:[%s3618 + $0x2d9] sm:$0xff]
      %v4516 = vld [vmem:[%s3618 + $0x2e9] sm:$0xff]
      %v4517 = vld [vmem:[%s3618 + $0x2f1] sm:$0xff]
      %v4518 = vld [vmem:[%s3618 + $0x301] sm:$0xff]
      %v4519 = vld [vmem:[%s3618 + $0x309] sm:$0xff]
      %v4520 = vld [vmem:[%s3618 + $0x319] sm:$0xff]
      %v4521 = vld [vmem:[%s3618 + $0x321] sm:$0xff]
      %v4522 = vperm.slane %v3684, 1
      %v4523 = vmul.f32 %v4458, %v4522
      %v4524 = vmul.f32 %v4459, %v4522
      %v4525 = vmul.f32 %v4460, %v4522
      %v4526 = vmul.f32 %v4461, %v4522
      %v4527 = vmul.f32 %v4462, %v4522
      %v4528 = vmul.f32 %v4463, %v4522
      %v4529 = vmul.f32 %v4464, %v4522
      %v4530 = vmul.f32 %v4465, %v4522
      %v4531 = vmul.f32 %v4466, %v4522
      %v4532 = vmul.f32 %v4467, %v4522
      %v4533 = vmul.f32 %v4468, %v4522
      %v4534 = vmul.f32 %v4469, %v4522
      %v4535 = vmul.f32 %v4470, %v4522
      %v4536 = vmul.f32 %v4471, %v4522
      %v4537 = vmul.f32 %v4472, %v4522
      %v4538 = vmul.f32 %v4473, %v4522
      %v4539 = vmul.f32 %v4474, %v4522
      %v4540 = vmul.f32 %v4475, %v4522
      %v4541 = vmul.f32 %v4476, %v4522
      %v4542 = vmul.f32 %v4477, %v4522
      %v4543 = vmul.f32 %v4478, %v4522
      %v4544 = vmul.f32 %v4479, %v4522
      %v4545 = vmul.f32 %v4480, %v4522
      %v4546 = vmul.f32 %v4481, %v4522
      %v4547 = vmul.f32 %v4482, %v4522
      %v4548 = vmul.f32 %v4483, %v4522
      %v4549 = vmul.f32 %v4484, %v4522
      %v4550 = vmul.f32 %v4485, %v4522
      %v4551 = vmul.f32 %v4486, %v4522
      %v4552 = vmul.f32 %v4487, %v4522
      %v4553 = vmul.f32 %v4488, %v4522
      %v4554 = vmul.f32 %v4489, %v4522
      %v4555 = vmul.f32 %v4490, %v4522
      %v4556 = vmul.f32 %v4491, %v4522
      %v4557 = vmul.f32 %v4492, %v4522
      %v4558 = vmul.f32 %v4493, %v4522
      %v4559 = vmul.f32 %v4494, %v4522
      %v4560 = vmul.f32 %v4495, %v4522
      %v4561 = vmul.f32 %v4496, %v4522
      %v4562 = vmul.f32 %v4497, %v4522
      %v4563 = vmul.f32 %v4498, %v4522
      %v4564 = vmul.f32 %v4499, %v4522
      %v4565 = vmul.f32 %v4500, %v4522
      %v4566 = vmul.f32 %v4501, %v4522
      %v4567 = vmul.f32 %v4502, %v4522
      %v4568 = vmul.f32 %v4503, %v4522
      %v4569 = vmul.f32 %v4504, %v4522
      %v4570 = vmul.f32 %v4505, %v4522
      %v4571 = vmul.f32 %v4506, %v4522
      %v4572 = vmul.f32 %v4507, %v4522
      %v4573 = vmul.f32 %v4508, %v4522
      %v4574 = vmul.f32 %v4509, %v4522
      %v4575 = vmul.f32 %v4510, %v4522
      %v4576 = vmul.f32 %v4511, %v4522
      %v4577 = vmul.f32 %v4512, %v4522
      %v4578 = vmul.f32 %v4513, %v4522
      %v4579 = vmul.f32 %v4514, %v4522
      %v4580 = vmul.f32 %v4515, %v4522
      %v4581 = vmul.f32 %v4516, %v4522
      %v4582 = vmul.f32 %v4517, %v4522
      %v4583 = vmul.f32 %v4518, %v4522
      %v4584 = vmul.f32 %v4519, %v4522
      %v4585 = vmul.f32 %v4520, %v4522
      %v4586 = vmul.f32 %v4521, %v4522
      %v4587 = vadd.f32 %v4394, %v4523
      %v4588 = vadd.f32 %v4395, %v4524
      %v4589 = vadd.f32 %v4396, %v4525
      %v4590 = vadd.f32 %v4397, %v4526
      %v4591 = vadd.f32 %v4398, %v4527
      %v4592 = vadd.f32 %v4399, %v4528
      %v4593 = vadd.f32 %v4400, %v4529
      %v4594 = vadd.f32 %v4401, %v4530
      %v4595 = vadd.f32 %v4402, %v4531
      %v4596 = vadd.f32 %v4403, %v4532
      %v4597 = vadd.f32 %v4404, %v4533
      %v4598 = vadd.f32 %v4405, %v4534
      %v4599 = vadd.f32 %v4406, %v4535
      %v4600 = vadd.f32 %v4407, %v4536
      %v4601 = vadd.f32 %v4408, %v4537
      %v4602 = vadd.f32 %v4409, %v4538
      %v4603 = vadd.f32 %v4410, %v4539
      %v4604 = vadd.f32 %v4411, %v4540
      %v4605 = vadd.f32 %v4412, %v4541
      %v4606 = vadd.f32 %v4413, %v4542
      %v4607 = vadd.f32 %v4414, %v4543
      %v4608 = vadd.f32 %v4415, %v4544
      %v4609 = vadd.f32 %v4416, %v4545
      %v4610 = vadd.f32 %v4417, %v4546
      %v4611 = vadd.f32 %v4418, %v4547
      %v4612 = vadd.f32 %v4419, %v4548
      %v4613 = vadd.f32 %v4420, %v4549
      %v4614 = vadd.f32 %v4421, %v4550
      %v4615 = vadd.f32 %v4422, %v4551
      %v4616 = vadd.f32 %v4423, %v4552
      %v4617 = vadd.f32 %v4424, %v4553
      %v4618 = vadd.f32 %v4425, %v4554
      %v4619 = vadd.f32 %v4426, %v4555
      %v4620 = vadd.f32 %v4427, %v4556
      %v4621 = vadd.f32 %v4428, %v4557
      %v4622 = vadd.f32 %v4429, %v4558
      %v4623 = vadd.f32 %v4430, %v4559
      %v4624 = vadd.f32 %v4431, %v4560
      %v4625 = vadd.f32 %v4432, %v4561
      %v4626 = vadd.f32 %v4433, %v4562
      %v4627 = vadd.f32 %v4434, %v4563
      %v4628 = vadd.f32 %v4435, %v4564
      %v4629 = vadd.f32 %v4436, %v4565
      %v4630 = vadd.f32 %v4437, %v4566
      %v4631 = vadd.f32 %v4438, %v4567
      %v4632 = vadd.f32 %v4439, %v4568
      %v4633 = vadd.f32 %v4440, %v4569
      %v4634 = vadd.f32 %v4441, %v4570
      %v4635 = vadd.f32 %v4442, %v4571
      %v4636 = vadd.f32 %v4443, %v4572
      %v4637 = vadd.f32 %v4444, %v4573
      %v4638 = vadd.f32 %v4445, %v4574
      %v4639 = vadd.f32 %v4446, %v4575
      %v4640 = vadd.f32 %v4447, %v4576
      %v4641 = vadd.f32 %v4448, %v4577
      %v4642 = vadd.f32 %v4449, %v4578
      %v4643 = vadd.f32 %v4450, %v4579
      %v4644 = vadd.f32 %v4451, %v4580
      %v4645 = vadd.f32 %v4452, %v4581
      %v4646 = vadd.f32 %v4453, %v4582
      %v4647 = vadd.f32 %v4454, %v4583
      %v4648 = vadd.f32 %v4455, %v4584
      %v4649 = vadd.f32 %v4456, %v4585
      %v4650 = vadd.f32 %v4457, %v4586
      %v4651 = vld [vmem:[%s3618 + $0x2] sm:$0xff]
      %v4652 = vld [vmem:[%s3618 + $0xa] sm:$0xff]
      %v4653 = vld [vmem:[%s3618 + $0x1a] sm:$0xff]
      %v4654 = vld [vmem:[%s3618 + $0x22] sm:$0xff]
      %v4655 = vld [vmem:[%s3618 + $0x32] sm:$0xff]
      %v4656 = vld [vmem:[%s3618 + $0x3a] sm:$0xff]
      %v4657 = vld [vmem:[%s3618 + $0x4a] sm:$0xff]
      %v4658 = vld [vmem:[%s3618 + $0x52] sm:$0xff]
      %v4659 = vld [vmem:[%s3618 + $0x62] sm:$0xff]
      %v4660 = vld [vmem:[%s3618 + $0x6a] sm:$0xff]
      %v4661 = vld [vmem:[%s3618 + $0x7a] sm:$0xff]
      %v4662 = vld [vmem:[%s3618 + $0x82] sm:$0xff]
      %v4663 = vld [vmem:[%s3618 + $0x92] sm:$0xff]
      %v4664 = vld [vmem:[%s3618 + $0x9a] sm:$0xff]
      %v4665 = vld [vmem:[%s3618 + $0xaa] sm:$0xff]
      %v4666 = vld [vmem:[%s3618 + $0xb2] sm:$0xff]
      %v4667 = vld [vmem:[%s3618 + $0xc2] sm:$0xff]
      %v4668 = vld [vmem:[%s3618 + $0xca] sm:$0xff]
      %v4669 = vld [vmem:[%s3618 + $0xda] sm:$0xff]
      %v4670 = vld [vmem:[%s3618 + $0xe2] sm:$0xff]
      %v4671 = vld [vmem:[%s3618 + $0xf2] sm:$0xff]
      %v4672 = vld [vmem:[%s3618 + $0xfa] sm:$0xff]
      %v4673 = vld [vmem:[%s3618 + $0x10a] sm:$0xff]
      %v4674 = vld [vmem:[%s3618 + $0x112] sm:$0xff]
      %v4675 = vld [vmem:[%s3618 + $0x122] sm:$0xff]
      %v4676 = vld [vmem:[%s3618 + $0x12a] sm:$0xff]
      %v4677 = vld [vmem:[%s3618 + $0x13a] sm:$0xff]
      %v4678 = vld [vmem:[%s3618 + $0x142] sm:$0xff]
      %v4679 = vld [vmem:[%s3618 + $0x152] sm:$0xff]
      %v4680 = vld [vmem:[%s3618 + $0x15a] sm:$0xff]
      %v4681 = vld [vmem:[%s3618 + $0x16a] sm:$0xff]
      %v4682 = vld [vmem:[%s3618 + $0x172] sm:$0xff]
      %v4683 = vld [vmem:[%s3618 + $0x1b2] sm:$0xff]
      %v4684 = vld [vmem:[%s3618 + $0x1ba] sm:$0xff]
      %v4685 = vld [vmem:[%s3618 + $0x1ca] sm:$0xff]
      %v4686 = vld [vmem:[%s3618 + $0x1d2] sm:$0xff]
      %v4687 = vld [vmem:[%s3618 + $0x1e2] sm:$0xff]
      %v4688 = vld [vmem:[%s3618 + $0x1ea] sm:$0xff]
      %v4689 = vld [vmem:[%s3618 + $0x1fa] sm:$0xff]
      %v4690 = vld [vmem:[%s3618 + $0x202] sm:$0xff]
      %v4691 = vld [vmem:[%s3618 + $0x212] sm:$0xff]
      %v4692 = vld [vmem:[%s3618 + $0x21a] sm:$0xff]
      %v4693 = vld [vmem:[%s3618 + $0x22a] sm:$0xff]
      %v4694 = vld [vmem:[%s3618 + $0x232] sm:$0xff]
      %v4695 = vld [vmem:[%s3618 + $0x242] sm:$0xff]
      %v4696 = vld [vmem:[%s3618 + $0x24a] sm:$0xff]
      %v4697 = vld [vmem:[%s3618 + $0x25a] sm:$0xff]
      %v4698 = vld [vmem:[%s3618 + $0x262] sm:$0xff]
      %v4699 = vld [vmem:[%s3618 + $0x272] sm:$0xff]
      %v4700 = vld [vmem:[%s3618 + $0x27a] sm:$0xff]
      %v4701 = vld [vmem:[%s3618 + $0x28a] sm:$0xff]
      %v4702 = vld [vmem:[%s3618 + $0x292] sm:$0xff]
      %v4703 = vld [vmem:[%s3618 + $0x2a2] sm:$0xff]
      %v4704 = vld [vmem:[%s3618 + $0x2aa] sm:$0xff]
      %v4705 = vld [vmem:[%s3618 + $0x2ba] sm:$0xff]
      %v4706 = vld [vmem:[%s3618 + $0x2c2] sm:$0xff]
      %v4707 = vld [vmem:[%s3618 + $0x2d2] sm:$0xff]
      %v4708 = vld [vmem:[%s3618 + $0x2da] sm:$0xff]
      %v4709 = vld [vmem:[%s3618 + $0x2ea] sm:$0xff]
      %v4710 = vld [vmem:[%s3618 + $0x2f2] sm:$0xff]
      %v4711 = vld [vmem:[%s3618 + $0x302] sm:$0xff]
      %v4712 = vld [vmem:[%s3618 + $0x30a] sm:$0xff]
      %v4713 = vld [vmem:[%s3618 + $0x31a] sm:$0xff]
      %v4714 = vld [vmem:[%s3618 + $0x322] sm:$0xff]
      %v4715 = vperm.slane %v3684, 2
      %v4716 = vmul.f32 %v4651, %v4715
      %v4717 = vmul.f32 %v4652, %v4715
      %v4718 = vmul.f32 %v4653, %v4715
      %v4719 = vmul.f32 %v4654, %v4715
      %v4720 = vmul.f32 %v4655, %v4715
      %v4721 = vmul.f32 %v4656, %v4715
      %v4722 = vmul.f32 %v4657, %v4715
      %v4723 = vmul.f32 %v4658, %v4715
      %v4724 = vmul.f32 %v4659, %v4715
      %v4725 = vmul.f32 %v4660, %v4715
      %v4726 = vmul.f32 %v4661, %v4715
      %v4727 = vmul.f32 %v4662, %v4715
      %v4728 = vmul.f32 %v4663, %v4715
      %v4729 = vmul.f32 %v4664, %v4715
      %v4730 = vmul.f32 %v4665, %v4715
      %v4731 = vmul.f32 %v4666, %v4715
      %v4732 = vmul.f32 %v4667, %v4715
      %v4733 = vmul.f32 %v4668, %v4715
      %v4734 = vmul.f32 %v4669, %v4715
      %v4735 = vmul.f32 %v4670, %v4715
      %v4736 = vmul.f32 %v4671, %v4715
      %v4737 = vmul.f32 %v4672, %v4715
      %v4738 = vmul.f32 %v4673, %v4715
      %v4739 = vmul.f32 %v4674, %v4715
      %v4740 = vmul.f32 %v4675, %v4715
      %v4741 = vmul.f32 %v4676, %v4715
      %v4742 = vmul.f32 %v4677, %v4715
      %v4743 = vmul.f32 %v4678, %v4715
      %v4744 = vmul.f32 %v4679, %v4715
      %v4745 = vmul.f32 %v4680, %v4715
      %v4746 = vmul.f32 %v4681, %v4715
      %v4747 = vmul.f32 %v4682, %v4715
      %v4748 = vmul.f32 %v4683, %v4715
      %v4749 = vmul.f32 %v4684, %v4715
      %v4750 = vmul.f32 %v4685, %v4715
      %v4751 = vmul.f32 %v4686, %v4715
      %v4752 = vmul.f32 %v4687, %v4715
      %v4753 = vmul.f32 %v4688, %v4715
      %v4754 = vmul.f32 %v4689, %v4715
      %v4755 = vmul.f32 %v4690, %v4715
      %v4756 = vmul.f32 %v4691, %v4715
      %v4757 = vmul.f32 %v4692, %v4715
      %v4758 = vmul.f32 %v4693, %v4715
      %v4759 = vmul.f32 %v4694, %v4715
      %v4760 = vmul.f32 %v4695, %v4715
      %v4761 = vmul.f32 %v4696, %v4715
      %v4762 = vmul.f32 %v4697, %v4715
      %v4763 = vmul.f32 %v4698, %v4715
      %v4764 = vmul.f32 %v4699, %v4715
      %v4765 = vmul.f32 %v4700, %v4715
      %v4766 = vmul.f32 %v4701, %v4715
      %v4767 = vmul.f32 %v4702, %v4715
      %v4768 = vmul.f32 %v4703, %v4715
      %v4769 = vmul.f32 %v4704, %v4715
      %v4770 = vmul.f32 %v4705, %v4715
      %v4771 = vmul.f32 %v4706, %v4715
      %v4772 = vmul.f32 %v4707, %v4715
      %v4773 = vmul.f32 %v4708, %v4715
      %v4774 = vmul.f32 %v4709, %v4715
      %v4775 = vmul.f32 %v4710, %v4715
      %v4776 = vmul.f32 %v4711, %v4715
      %v4777 = vmul.f32 %v4712, %v4715
      %v4778 = vmul.f32 %v4713, %v4715
      %v4779 = vmul.f32 %v4714, %v4715
      %v4780 = vadd.f32 %v4587, %v4716
      %v4781 = vadd.f32 %v4588, %v4717
      %v4782 = vadd.f32 %v4589, %v4718
      %v4783 = vadd.f32 %v4590, %v4719
      %v4784 = vadd.f32 %v4591, %v4720
      %v4785 = vadd.f32 %v4592, %v4721
      %v4786 = vadd.f32 %v4593, %v4722
      %v4787 = vadd.f32 %v4594, %v4723
      %v4788 = vadd.f32 %v4595, %v4724
      %v4789 = vadd.f32 %v4596, %v4725
      %v4790 = vadd.f32 %v4597, %v4726
      %v4791 = vadd.f32 %v4598, %v4727
      %v4792 = vadd.f32 %v4599, %v4728
      %v4793 = vadd.f32 %v4600, %v4729
      %v4794 = vadd.f32 %v4601, %v4730
      %v4795 = vadd.f32 %v4602, %v4731
      %v4796 = vadd.f32 %v4603, %v4732
      %v4797 = vadd.f32 %v4604, %v4733
      %v4798 = vadd.f32 %v4605, %v4734
      %v4799 = vadd.f32 %v4606, %v4735
      %v4800 = vadd.f32 %v4607, %v4736
      %v4801 = vadd.f32 %v4608, %v4737
      %v4802 = vadd.f32 %v4609, %v4738
      %v4803 = vadd.f32 %v4610, %v4739
      %v4804 = vadd.f32 %v4611, %v4740
      %v4805 = vadd.f32 %v4612, %v4741
      %v4806 = vadd.f32 %v4613, %v4742
      %v4807 = vadd.f32 %v4614, %v4743
      %v4808 = vadd.f32 %v4615, %v4744
      %v4809 = vadd.f32 %v4616, %v4745
      %v4810 = vadd.f32 %v4617, %v4746
      %v4811 = vadd.f32 %v4618, %v4747
      %v4812 = vadd.f32 %v4619, %v4748
      %v4813 = vadd.f32 %v4620, %v4749
      %v4814 = vadd.f32 %v4621, %v4750
      %v4815 = vadd.f32 %v4622, %v4751
      %v4816 = vadd.f32 %v4623, %v4752
      %v4817 = vadd.f32 %v4624, %v4753
      %v4818 = vadd.f32 %v4625, %v4754
      %v4819 = vadd.f32 %v4626, %v4755
      %v4820 = vadd.f32 %v4627, %v4756
      %v4821 = vadd.f32 %v4628, %v4757
      %v4822 = vadd.f32 %v4629, %v4758
      %v4823 = vadd.f32 %v4630, %v4759
      %v4824 = vadd.f32 %v4631, %v4760
      %v4825 = vadd.f32 %v4632, %v4761
      %v4826 = vadd.f32 %v4633, %v4762
      %v4827 = vadd.f32 %v4634, %v4763
      %v4828 = vadd.f32 %v4635, %v4764
      %v4829 = vadd.f32 %v4636, %v4765
      %v4830 = vadd.f32 %v4637, %v4766
      %v4831 = vadd.f32 %v4638, %v4767
      %v4832 = vadd.f32 %v4639, %v4768
      %v4833 = vadd.f32 %v4640, %v4769
      %v4834 = vadd.f32 %v4641, %v4770
      %v4835 = vadd.f32 %v4642, %v4771
      %v4836 = vadd.f32 %v4643, %v4772
      %v4837 = vadd.f32 %v4644, %v4773
      %v4838 = vadd.f32 %v4645, %v4774
      %v4839 = vadd.f32 %v4646, %v4775
      %v4840 = vadd.f32 %v4647, %v4776
      %v4841 = vadd.f32 %v4648, %v4777
      %v4842 = vadd.f32 %v4649, %v4778
      %v4843 = vadd.f32 %v4650, %v4779
      %s4844 = scalar_lea.vmem [#allocation3], 48
      %v4845 = vld [vmem:[%s4844] sm:$0xff]
      %v4846 = vld [vmem:[%s4844 + $0x8] sm:$0xff]
      %v4847 = vld [vmem:[%s4844 + $0x18] sm:$0xff]
      %v4848 = vld [vmem:[%s4844 + $0x20] sm:$0xff]
      %v4849 = vld [vmem:[%s4844 + $0x30] sm:$0xff]
      %v4850 = vld [vmem:[%s4844 + $0x38] sm:$0xff]
      %v4851 = vld [vmem:[%s4844 + $0x48] sm:$0xff]
      %v4852 = vld [vmem:[%s4844 + $0x50] sm:$0xff]
      %v4853 = vld [vmem:[%s4844 + $0x60] sm:$0xff]
      %v4854 = vld [vmem:[%s4844 + $0x68] sm:$0xff]
      %v4855 = vld [vmem:[%s4844 + $0x78] sm:$0xff]
      %v4856 = vld [vmem:[%s4844 + $0x80] sm:$0xff]
      %v4857 = vld [vmem:[%s4844 + $0x90] sm:$0xff]
      %v4858 = vld [vmem:[%s4844 + $0x98] sm:$0xff]
      %v4859 = vld [vmem:[%s4844 + $0xa8] sm:$0xff]
      %v4860 = vld [vmem:[%s4844 + $0xb0] sm:$0xff]
      %v4861 = vld [vmem:[%s4844 + $0xc0] sm:$0xff]
      %v4862 = vld [vmem:[%s4844 + $0xc8] sm:$0xff]
      %v4863 = vld [vmem:[%s4844 + $0xd8] sm:$0xff]
      %v4864 = vld [vmem:[%s4844 + $0xe0] sm:$0xff]
      %v4865 = vld [vmem:[%s4844 + $0xf0] sm:$0xff]
      %v4866 = vld [vmem:[%s4844 + $0xf8] sm:$0xff]
      %v4867 = vld [vmem:[%s4844 + $0x108] sm:$0xff]
      %v4868 = vld [vmem:[%s4844 + $0x110] sm:$0xff]
      %v4869 = vld [vmem:[%s4844 + $0x120] sm:$0xff]
      %v4870 = vld [vmem:[%s4844 + $0x128] sm:$0xff]
      %v4871 = vld [vmem:[%s4844 + $0x138] sm:$0xff]
      %v4872 = vld [vmem:[%s4844 + $0x140] sm:$0xff]
      %v4873 = vld [vmem:[%s4844 + $0x150] sm:$0xff]
      %v4874 = vld [vmem:[%s4844 + $0x158] sm:$0xff]
      %v4875 = vld [vmem:[%s4844 + $0x168] sm:$0xff]
      %v4876 = vld [vmem:[%s4844 + $0x170] sm:$0xff]
      %v4877 = vld [vmem:[%s4844 + $0x1b0] sm:$0xff]
      %v4878 = vld [vmem:[%s4844 + $0x1b8] sm:$0xff]
      %v4879 = vld [vmem:[%s4844 + $0x1c8] sm:$0xff]
      %v4880 = vld [vmem:[%s4844 + $0x1d0] sm:$0xff]
      %v4881 = vld [vmem:[%s4844 + $0x1e0] sm:$0xff]
      %v4882 = vld [vmem:[%s4844 + $0x1e8] sm:$0xff]
      %v4883 = vld [vmem:[%s4844 + $0x1f8] sm:$0xff]
      %v4884 = vld [vmem:[%s4844 + $0x200] sm:$0xff]
      %v4885 = vld [vmem:[%s4844 + $0x210] sm:$0xff]
      %v4886 = vld [vmem:[%s4844 + $0x218] sm:$0xff]
      %v4887 = vld [vmem:[%s4844 + $0x228] sm:$0xff]
      %v4888 = vld [vmem:[%s4844 + $0x230] sm:$0xff]
      %v4889 = vld [vmem:[%s4844 + $0x240] sm:$0xff]
      %v4890 = vld [vmem:[%s4844 + $0x248] sm:$0xff]
      %v4891 = vld [vmem:[%s4844 + $0x258] sm:$0xff]
      %v4892 = vld [vmem:[%s4844 + $0x260] sm:$0xff]
      %v4893 = vld [vmem:[%s4844 + $0x270] sm:$0xff]
      %v4894 = vld [vmem:[%s4844 + $0x278] sm:$0xff]
      %v4895 = vld [vmem:[%s4844 + $0x288] sm:$0xff]
      %v4896 = vld [vmem:[%s4844 + $0x290] sm:$0xff]
      %v4897 = vld [vmem:[%s4844 + $0x2a0] sm:$0xff]
      %v4898 = vld [vmem:[%s4844 + $0x2a8] sm:$0xff]
      %v4899 = vld [vmem:[%s4844 + $0x2b8] sm:$0xff]
      %v4900 = vld [vmem:[%s4844 + $0x2c0] sm:$0xff]
      %v4901 = vld [vmem:[%s4844 + $0x2d0] sm:$0xff]
      %v4902 = vld [vmem:[%s4844 + $0x2d8] sm:$0xff]
      %v4903 = vld [vmem:[%s4844 + $0x2e8] sm:$0xff]
      %v4904 = vld [vmem:[%s4844 + $0x2f0] sm:$0xff]
      %v4905 = vld [vmem:[%s4844 + $0x300] sm:$0xff]
      %v4906 = vld [vmem:[%s4844 + $0x308] sm:$0xff]
      %v4907 = vld [vmem:[%s4844 + $0x318] sm:$0xff]
      %v4908 = vld [vmem:[%s4844 + $0x320] sm:$0xff]
      %v4909 = vperm.slane %v3685, 0
      %v4910 = vmul.f32 %v4845, %v4909
      %v4911 = vmul.f32 %v4846, %v4909
      %v4912 = vmul.f32 %v4847, %v4909
      %v4913 = vmul.f32 %v4848, %v4909
      %v4914 = vmul.f32 %v4849, %v4909
      %v4915 = vmul.f32 %v4850, %v4909
      %v4916 = vmul.f32 %v4851, %v4909
      %v4917 = vmul.f32 %v4852, %v4909
      %v4918 = vmul.f32 %v4853, %v4909
      %v4919 = vmul.f32 %v4854, %v4909
      %v4920 = vmul.f32 %v4855, %v4909
      %v4921 = vmul.f32 %v4856, %v4909
      %v4922 = vmul.f32 %v4857, %v4909
      %v4923 = vmul.f32 %v4858, %v4909
      %v4924 = vmul.f32 %v4859, %v4909
      %v4925 = vmul.f32 %v4860, %v4909
      %v4926 = vmul.f32 %v4861, %v4909
      %v4927 = vmul.f32 %v4862, %v4909
      %v4928 = vmul.f32 %v4863, %v4909
      %v4929 = vmul.f32 %v4864, %v4909
      %v4930 = vmul.f32 %v4865, %v4909
      %v4931 = vmul.f32 %v4866, %v4909
      %v4932 = vmul.f32 %v4867, %v4909
      %v4933 = vmul.f32 %v4868, %v4909
      %v4934 = vmul.f32 %v4869, %v4909
      %v4935 = vmul.f32 %v4870, %v4909
      %v4936 = vmul.f32 %v4871, %v4909
      %v4937 = vmul.f32 %v4872, %v4909
      %v4938 = vmul.f32 %v4873, %v4909
      %v4939 = vmul.f32 %v4874, %v4909
      %v4940 = vmul.f32 %v4875, %v4909
      %v4941 = vmul.f32 %v4876, %v4909
      %v4942 = vmul.f32 %v4877, %v4909
      %v4943 = vmul.f32 %v4878, %v4909
      %v4944 = vmul.f32 %v4879, %v4909
      %v4945 = vmul.f32 %v4880, %v4909
      %v4946 = vmul.f32 %v4881, %v4909
      %v4947 = vmul.f32 %v4882, %v4909
      %v4948 = vmul.f32 %v4883, %v4909
      %v4949 = vmul.f32 %v4884, %v4909
      %v4950 = vmul.f32 %v4885, %v4909
      %v4951 = vmul.f32 %v4886, %v4909
      %v4952 = vmul.f32 %v4887, %v4909
      %v4953 = vmul.f32 %v4888, %v4909
      %v4954 = vmul.f32 %v4889, %v4909
      %v4955 = vmul.f32 %v4890, %v4909
      %v4956 = vmul.f32 %v4891, %v4909
      %v4957 = vmul.f32 %v4892, %v4909
      %v4958 = vmul.f32 %v4893, %v4909
      %v4959 = vmul.f32 %v4894, %v4909
      %v4960 = vmul.f32 %v4895, %v4909
      %v4961 = vmul.f32 %v4896, %v4909
      %v4962 = vmul.f32 %v4897, %v4909
      %v4963 = vmul.f32 %v4898, %v4909
      %v4964 = vmul.f32 %v4899, %v4909
      %v4965 = vmul.f32 %v4900, %v4909
      %v4966 = vmul.f32 %v4901, %v4909
      %v4967 = vmul.f32 %v4902, %v4909
      %v4968 = vmul.f32 %v4903, %v4909
      %v4969 = vmul.f32 %v4904, %v4909
      %v4970 = vmul.f32 %v4905, %v4909
      %v4971 = vmul.f32 %v4906, %v4909
      %v4972 = vmul.f32 %v4907, %v4909
      %v4973 = vmul.f32 %v4908, %v4909
      %v4974 = vadd.f32 %v4780, %v4910
      %v4975 = vadd.f32 %v4781, %v4911
      %v4976 = vadd.f32 %v4782, %v4912
      %v4977 = vadd.f32 %v4783, %v4913
      %v4978 = vadd.f32 %v4784, %v4914
      %v4979 = vadd.f32 %v4785, %v4915
      %v4980 = vadd.f32 %v4786, %v4916
      %v4981 = vadd.f32 %v4787, %v4917
      %v4982 = vadd.f32 %v4788, %v4918
      %v4983 = vadd.f32 %v4789, %v4919
      %v4984 = vadd.f32 %v4790, %v4920
      %v4985 = vadd.f32 %v4791, %v4921
      %v4986 = vadd.f32 %v4792, %v4922
      %v4987 = vadd.f32 %v4793, %v4923
      %v4988 = vadd.f32 %v4794, %v4924
      %v4989 = vadd.f32 %v4795, %v4925
      %v4990 = vadd.f32 %v4796, %v4926
      %v4991 = vadd.f32 %v4797, %v4927
      %v4992 = vadd.f32 %v4798, %v4928
      %v4993 = vadd.f32 %v4799, %v4929
      %v4994 = vadd.f32 %v4800, %v4930
      %v4995 = vadd.f32 %v4801, %v4931
      %v4996 = vadd.f32 %v4802, %v4932
      %v4997 = vadd.f32 %v4803, %v4933
      %v4998 = vadd.f32 %v4804, %v4934
      %v4999 = vadd.f32 %v4805, %v4935
      %v5000 = vadd.f32 %v4806, %v4936
      %v5001 = vadd.f32 %v4807, %v4937
      %v5002 = vadd.f32 %v4808, %v4938
      %v5003 = vadd.f32 %v4809, %v4939
      %v5004 = vadd.f32 %v4810, %v4940
      %v5005 = vadd.f32 %v4811, %v4941
      %v5006 = vadd.f32 %v4812, %v4942
      %v5007 = vadd.f32 %v4813, %v4943
      %v5008 = vadd.f32 %v4814, %v4944
      %v5009 = vadd.f32 %v4815, %v4945
      %v5010 = vadd.f32 %v4816, %v4946
      %v5011 = vadd.f32 %v4817, %v4947
      %v5012 = vadd.f32 %v4818, %v4948
      %v5013 = vadd.f32 %v4819, %v4949
      %v5014 = vadd.f32 %v4820, %v4950
      %v5015 = vadd.f32 %v4821, %v4951
      %v5016 = vadd.f32 %v4822, %v4952
      %v5017 = vadd.f32 %v4823, %v4953
      %v5018 = vadd.f32 %v4824, %v4954
      %v5019 = vadd.f32 %v4825, %v4955
      %v5020 = vadd.f32 %v4826, %v4956
      %v5021 = vadd.f32 %v4827, %v4957
      %v5022 = vadd.f32 %v4828, %v4958
      %v5023 = vadd.f32 %v4829, %v4959
      %v5024 = vadd.f32 %v4830, %v4960
      %v5025 = vadd.f32 %v4831, %v4961
      %v5026 = vadd.f32 %v4832, %v4962
      %v5027 = vadd.f32 %v4833, %v4963
      %v5028 = vadd.f32 %v4834, %v4964
      %v5029 = vadd.f32 %v4835, %v4965
      %v5030 = vadd.f32 %v4836, %v4966
      %v5031 = vadd.f32 %v4837, %v4967
      %v5032 = vadd.f32 %v4838, %v4968
      %v5033 = vadd.f32 %v4839, %v4969
      %v5034 = vadd.f32 %v4840, %v4970
      %v5035 = vadd.f32 %v4841, %v4971
      %v5036 = vadd.f32 %v4842, %v4972
      %v5037 = vadd.f32 %v4843, %v4973
      %v5038 = vld [vmem:[%s4844 + $0x1] sm:$0xff]
      %v5039 = vld [vmem:[%s4844 + $0x9] sm:$0xff]
      %v5040 = vld [vmem:[%s4844 + $0x19] sm:$0xff]
      %v5041 = vld [vmem:[%s4844 + $0x21] sm:$0xff]
      %v5042 = vld [vmem:[%s4844 + $0x31] sm:$0xff]
      %v5043 = vld [vmem:[%s4844 + $0x39] sm:$0xff]
      %v5044 = vld [vmem:[%s4844 + $0x49] sm:$0xff]
      %v5045 = vld [vmem:[%s4844 + $0x51] sm:$0xff]
      %v5046 = vld [vmem:[%s4844 + $0x61] sm:$0xff]
      %v5047 = vld [vmem:[%s4844 + $0x69] sm:$0xff]
      %v5048 = vld [vmem:[%s4844 + $0x79] sm:$0xff]
      %v5049 = vld [vmem:[%s4844 + $0x81] sm:$0xff]
      %v5050 = vld [vmem:[%s4844 + $0x91] sm:$0xff]
      %v5051 = vld [vmem:[%s4844 + $0x99] sm:$0xff]
      %v5052 = vld [vmem:[%s4844 + $0xa9] sm:$0xff]
      %v5053 = vld [vmem:[%s4844 + $0xb1] sm:$0xff]
      %v5054 = vld [vmem:[%s4844 + $0xc1] sm:$0xff]
      %v5055 = vld [vmem:[%s4844 + $0xc9] sm:$0xff]
      %v5056 = vld [vmem:[%s4844 + $0xd9] sm:$0xff]
      %v5057 = vld [vmem:[%s4844 + $0xe1] sm:$0xff]
      %v5058 = vld [vmem:[%s4844 + $0xf1] sm:$0xff]
      %v5059 = vld [vmem:[%s4844 + $0xf9] sm:$0xff]
      %v5060 = vld [vmem:[%s4844 + $0x109] sm:$0xff]
      %v5061 = vld [vmem:[%s4844 + $0x111] sm:$0xff]
      %v5062 = vld [vmem:[%s4844 + $0x121] sm:$0xff]
      %v5063 = vld [vmem:[%s4844 + $0x129] sm:$0xff]
      %v5064 = vld [vmem:[%s4844 + $0x139] sm:$0xff]
      %v5065 = vld [vmem:[%s4844 + $0x141] sm:$0xff]
      %v5066 = vld [vmem:[%s4844 + $0x151] sm:$0xff]
      %v5067 = vld [vmem:[%s4844 + $0x159] sm:$0xff]
      %v5068 = vld [vmem:[%s4844 + $0x169] sm:$0xff]
      %v5069 = vld [vmem:[%s4844 + $0x171] sm:$0xff]
      %v5070 = vld [vmem:[%s4844 + $0x1b1] sm:$0xff]
      %v5071 = vld [vmem:[%s4844 + $0x1b9] sm:$0xff]
      %v5072 = vld [vmem:[%s4844 + $0x1c9] sm:$0xff]
      %v5073 = vld [vmem:[%s4844 + $0x1d1] sm:$0xff]
      %v5074 = vld [vmem:[%s4844 + $0x1e1] sm:$0xff]
      %v5075 = vld [vmem:[%s4844 + $0x1e9] sm:$0xff]
      %v5076 = vld [vmem:[%s4844 + $0x1f9] sm:$0xff]
      %v5077 = vld [vmem:[%s4844 + $0x201] sm:$0xff]
      %v5078 = vld [vmem:[%s4844 + $0x211] sm:$0xff]
      %v5079 = vld [vmem:[%s4844 + $0x219] sm:$0xff]
      %v5080 = vld [vmem:[%s4844 + $0x229] sm:$0xff]
      %v5081 = vld [vmem:[%s4844 + $0x231] sm:$0xff]
      %v5082 = vld [vmem:[%s4844 + $0x241] sm:$0xff]
      %v5083 = vld [vmem:[%s4844 + $0x249] sm:$0xff]
      %v5084 = vld [vmem:[%s4844 + $0x259] sm:$0xff]
      %v5085 = vld [vmem:[%s4844 + $0x261] sm:$0xff]
      %v5086 = vld [vmem:[%s4844 + $0x271] sm:$0xff]
      %v5087 = vld [vmem:[%s4844 + $0x279] sm:$0xff]
      %v5088 = vld [vmem:[%s4844 + $0x289] sm:$0xff]
      %v5089 = vld [vmem:[%s4844 + $0x291] sm:$0xff]
      %v5090 = vld [vmem:[%s4844 + $0x2a1] sm:$0xff]
      %v5091 = vld [vmem:[%s4844 + $0x2a9] sm:$0xff]
      %v5092 = vld [vmem:[%s4844 + $0x2b9] sm:$0xff]
      %v5093 = vld [vmem:[%s4844 + $0x2c1] sm:$0xff]
      %v5094 = vld [vmem:[%s4844 + $0x2d1] sm:$0xff]
      %v5095 = vld [vmem:[%s4844 + $0x2d9] sm:$0xff]
      %v5096 = vld [vmem:[%s4844 + $0x2e9] sm:$0xff]
      %v5097 = vld [vmem:[%s4844 + $0x2f1] sm:$0xff]
      %v5098 = vld [vmem:[%s4844 + $0x301] sm:$0xff]
      %v5099 = vld [vmem:[%s4844 + $0x309] sm:$0xff]
      %v5100 = vld [vmem:[%s4844 + $0x319] sm:$0xff]
      %v5101 = vld [vmem:[%s4844 + $0x321] sm:$0xff]
      %v5102 = vperm.slane %v3685, 1
      %v5103 = vmul.f32 %v5038, %v5102
      %v5104 = vmul.f32 %v5039, %v5102
      %v5105 = vmul.f32 %v5040, %v5102
      %v5106 = vmul.f32 %v5041, %v5102
      %v5107 = vmul.f32 %v5042, %v5102
      %v5108 = vmul.f32 %v5043, %v5102
      %v5109 = vmul.f32 %v5044, %v5102
      %v5110 = vmul.f32 %v5045, %v5102
      %v5111 = vmul.f32 %v5046, %v5102
      %v5112 = vmul.f32 %v5047, %v5102
      %v5113 = vmul.f32 %v5048, %v5102
      %v5114 = vmul.f32 %v5049, %v5102
      %v5115 = vmul.f32 %v5050, %v5102
      %v5116 = vmul.f32 %v5051, %v5102
      %v5117 = vmul.f32 %v5052, %v5102
      %v5118 = vmul.f32 %v5053, %v5102
      %v5119 = vmul.f32 %v5054, %v5102
      %v5120 = vmul.f32 %v5055, %v5102
      %v5121 = vmul.f32 %v5056, %v5102
      %v5122 = vmul.f32 %v5057, %v5102
      %v5123 = vmul.f32 %v5058, %v5102
      %v5124 = vmul.f32 %v5059, %v5102
      %v5125 = vmul.f32 %v5060, %v5102
      %v5126 = vmul.f32 %v5061, %v5102
      %v5127 = vmul.f32 %v5062, %v5102
      %v5128 = vmul.f32 %v5063, %v5102
      %v5129 = vmul.f32 %v5064, %v5102
      %v5130 = vmul.f32 %v5065, %v5102
      %v5131 = vmul.f32 %v5066, %v5102
      %v5132 = vmul.f32 %v5067, %v5102
      %v5133 = vmul.f32 %v5068, %v5102
      %v5134 = vmul.f32 %v5069, %v5102
      %v5135 = vmul.f32 %v5070, %v5102
      %v5136 = vmul.f32 %v5071, %v5102
      %v5137 = vmul.f32 %v5072, %v5102
      %v5138 = vmul.f32 %v5073, %v5102
      %v5139 = vmul.f32 %v5074, %v5102
      %v5140 = vmul.f32 %v5075, %v5102
      %v5141 = vmul.f32 %v5076, %v5102
      %v5142 = vmul.f32 %v5077, %v5102
      %v5143 = vmul.f32 %v5078, %v5102
      %v5144 = vmul.f32 %v5079, %v5102
      %v5145 = vmul.f32 %v5080, %v5102
      %v5146 = vmul.f32 %v5081, %v5102
      %v5147 = vmul.f32 %v5082, %v5102
      %v5148 = vmul.f32 %v5083, %v5102
      %v5149 = vmul.f32 %v5084, %v5102
      %v5150 = vmul.f32 %v5085, %v5102
      %v5151 = vmul.f32 %v5086, %v5102
      %v5152 = vmul.f32 %v5087, %v5102
      %v5153 = vmul.f32 %v5088, %v5102
      %v5154 = vmul.f32 %v5089, %v5102
      %v5155 = vmul.f32 %v5090, %v5102
      %v5156 = vmul.f32 %v5091, %v5102
      %v5157 = vmul.f32 %v5092, %v5102
      %v5158 = vmul.f32 %v5093, %v5102
      %v5159 = vmul.f32 %v5094, %v5102
      %v5160 = vmul.f32 %v5095, %v5102
      %v5161 = vmul.f32 %v5096, %v5102
      %v5162 = vmul.f32 %v5097, %v5102
      %v5163 = vmul.f32 %v5098, %v5102
      %v5164 = vmul.f32 %v5099, %v5102
      %v5165 = vmul.f32 %v5100, %v5102
      %v5166 = vmul.f32 %v5101, %v5102
      %v5167 = vadd.f32 %v4974, %v5103
      %v5168 = vadd.f32 %v4975, %v5104
      %v5169 = vadd.f32 %v4976, %v5105
      %v5170 = vadd.f32 %v4977, %v5106
      %v5171 = vadd.f32 %v4978, %v5107
      %v5172 = vadd.f32 %v4979, %v5108
      %v5173 = vadd.f32 %v4980, %v5109
      %v5174 = vadd.f32 %v4981, %v5110
      %v5175 = vadd.f32 %v4982, %v5111
      %v5176 = vadd.f32 %v4983, %v5112
      %v5177 = vadd.f32 %v4984, %v5113
      %v5178 = vadd.f32 %v4985, %v5114
      %v5179 = vadd.f32 %v4986, %v5115
      %v5180 = vadd.f32 %v4987, %v5116
      %v5181 = vadd.f32 %v4988, %v5117
      %v5182 = vadd.f32 %v4989, %v5118
      %v5183 = vadd.f32 %v4990, %v5119
      %v5184 = vadd.f32 %v4991, %v5120
      %v5185 = vadd.f32 %v4992, %v5121
      %v5186 = vadd.f32 %v4993, %v5122
      %v5187 = vadd.f32 %v4994, %v5123
      %v5188 = vadd.f32 %v4995, %v5124
      %v5189 = vadd.f32 %v4996, %v5125
      %v5190 = vadd.f32 %v4997, %v5126
      %v5191 = vadd.f32 %v4998, %v5127
      %v5192 = vadd.f32 %v4999, %v5128
      %v5193 = vadd.f32 %v5000, %v5129
      %v5194 = vadd.f32 %v5001, %v5130
      %v5195 = vadd.f32 %v5002, %v5131
      %v5196 = vadd.f32 %v5003, %v5132
      %v5197 = vadd.f32 %v5004, %v5133
      %v5198 = vadd.f32 %v5005, %v5134
      %v5199 = vadd.f32 %v5006, %v5135
      %v5200 = vadd.f32 %v5007, %v5136
      %v5201 = vadd.f32 %v5008, %v5137
      %v5202 = vadd.f32 %v5009, %v5138
      %v5203 = vadd.f32 %v5010, %v5139
      %v5204 = vadd.f32 %v5011, %v5140
      %v5205 = vadd.f32 %v5012, %v5141
      %v5206 = vadd.f32 %v5013, %v5142
      %v5207 = vadd.f32 %v5014, %v5143
      %v5208 = vadd.f32 %v5015, %v5144
      %v5209 = vadd.f32 %v5016, %v5145
      %v5210 = vadd.f32 %v5017, %v5146
      %v5211 = vadd.f32 %v5018, %v5147
      %v5212 = vadd.f32 %v5019, %v5148
      %v5213 = vadd.f32 %v5020, %v5149
      %v5214 = vadd.f32 %v5021, %v5150
      %v5215 = vadd.f32 %v5022, %v5151
      %v5216 = vadd.f32 %v5023, %v5152
      %v5217 = vadd.f32 %v5024, %v5153
      %v5218 = vadd.f32 %v5025, %v5154
      %v5219 = vadd.f32 %v5026, %v5155
      %v5220 = vadd.f32 %v5027, %v5156
      %v5221 = vadd.f32 %v5028, %v5157
      %v5222 = vadd.f32 %v5029, %v5158
      %v5223 = vadd.f32 %v5030, %v5159
      %v5224 = vadd.f32 %v5031, %v5160
      %v5225 = vadd.f32 %v5032, %v5161
      %v5226 = vadd.f32 %v5033, %v5162
      %v5227 = vadd.f32 %v5034, %v5163
      %v5228 = vadd.f32 %v5035, %v5164
      %v5229 = vadd.f32 %v5036, %v5165
      %v5230 = vadd.f32 %v5037, %v5166
      %v5231 = vld [vmem:[%s4844 + $0x2] sm:$0xff]
      %v5232 = vld [vmem:[%s4844 + $0xa] sm:$0xff]
      %v5233 = vld [vmem:[%s4844 + $0x1a] sm:$0xff]
      %v5234 = vld [vmem:[%s4844 + $0x22] sm:$0xff]
      %v5235 = vld [vmem:[%s4844 + $0x32] sm:$0xff]
      %v5236 = vld [vmem:[%s4844 + $0x3a] sm:$0xff]
      %v5237 = vld [vmem:[%s4844 + $0x4a] sm:$0xff]
      %v5238 = vld [vmem:[%s4844 + $0x52] sm:$0xff]
      %v5239 = vld [vmem:[%s4844 + $0x62] sm:$0xff]
      %v5240 = vld [vmem:[%s4844 + $0x6a] sm:$0xff]
      %v5241 = vld [vmem:[%s4844 + $0x7a] sm:$0xff]
      %v5242 = vld [vmem:[%s4844 + $0x82] sm:$0xff]
      %v5243 = vld [vmem:[%s4844 + $0x92] sm:$0xff]
      %v5244 = vld [vmem:[%s4844 + $0x9a] sm:$0xff]
      %v5245 = vld [vmem:[%s4844 + $0xaa] sm:$0xff]
      %v5246 = vld [vmem:[%s4844 + $0xb2] sm:$0xff]
      %v5247 = vld [vmem:[%s4844 + $0xc2] sm:$0xff]
      %v5248 = vld [vmem:[%s4844 + $0xca] sm:$0xff]
      %v5249 = vld [vmem:[%s4844 + $0xda] sm:$0xff]
      %v5250 = vld [vmem:[%s4844 + $0xe2] sm:$0xff]
      %v5251 = vld [vmem:[%s4844 + $0xf2] sm:$0xff]
      %v5252 = vld [vmem:[%s4844 + $0xfa] sm:$0xff]
      %v5253 = vld [vmem:[%s4844 + $0x10a] sm:$0xff]
      %v5254 = vld [vmem:[%s4844 + $0x112] sm:$0xff]
      %v5255 = vld [vmem:[%s4844 + $0x122] sm:$0xff]
      %v5256 = vld [vmem:[%s4844 + $0x12a] sm:$0xff]
      %v5257 = vld [vmem:[%s4844 + $0x13a] sm:$0xff]
      %v5258 = vld [vmem:[%s4844 + $0x142] sm:$0xff]
      %v5259 = vld [vmem:[%s4844 + $0x152] sm:$0xff]
      %v5260 = vld [vmem:[%s4844 + $0x15a] sm:$0xff]
      %v5261 = vld [vmem:[%s4844 + $0x16a] sm:$0xff]
      %v5262 = vld [vmem:[%s4844 + $0x172] sm:$0xff]
      %v5263 = vld [vmem:[%s4844 + $0x1b2] sm:$0xff]
      %v5264 = vld [vmem:[%s4844 + $0x1ba] sm:$0xff]
      %v5265 = vld [vmem:[%s4844 + $0x1ca] sm:$0xff]
      %v5266 = vld [vmem:[%s4844 + $0x1d2] sm:$0xff]
      %v5267 = vld [vmem:[%s4844 + $0x1e2] sm:$0xff]
      %v5268 = vld [vmem:[%s4844 + $0x1ea] sm:$0xff]
      %v5269 = vld [vmem:[%s4844 + $0x1fa] sm:$0xff]
      %v5270 = vld [vmem:[%s4844 + $0x202] sm:$0xff]
      %v5271 = vld [vmem:[%s4844 + $0x212] sm:$0xff]
      %v5272 = vld [vmem:[%s4844 + $0x21a] sm:$0xff]
      %v5273 = vld [vmem:[%s4844 + $0x22a] sm:$0xff]
      %v5274 = vld [vmem:[%s4844 + $0x232] sm:$0xff]
      %v5275 = vld [vmem:[%s4844 + $0x242] sm:$0xff]
      %v5276 = vld [vmem:[%s4844 + $0x24a] sm:$0xff]
      %v5277 = vld [vmem:[%s4844 + $0x25a] sm:$0xff]
      %v5278 = vld [vmem:[%s4844 + $0x262] sm:$0xff]
      %v5279 = vld [vmem:[%s4844 + $0x272] sm:$0xff]
      %v5280 = vld [vmem:[%s4844 + $0x27a] sm:$0xff]
      %v5281 = vld [vmem:[%s4844 + $0x28a] sm:$0xff]
      %v5282 = vld [vmem:[%s4844 + $0x292] sm:$0xff]
      %v5283 = vld [vmem:[%s4844 + $0x2a2] sm:$0xff]
      %v5284 = vld [vmem:[%s4844 + $0x2aa] sm:$0xff]
      %v5285 = vld [vmem:[%s4844 + $0x2ba] sm:$0xff]
      %v5286 = vld [vmem:[%s4844 + $0x2c2] sm:$0xff]
      %v5287 = vld [vmem:[%s4844 + $0x2d2] sm:$0xff]
      %v5288 = vld [vmem:[%s4844 + $0x2da] sm:$0xff]
      %v5289 = vld [vmem:[%s4844 + $0x2ea] sm:$0xff]
      %v5290 = vld [vmem:[%s4844 + $0x2f2] sm:$0xff]
      %v5291 = vld [vmem:[%s4844 + $0x302] sm:$0xff]
      %v5292 = vld [vmem:[%s4844 + $0x30a] sm:$0xff]
      %v5293 = vld [vmem:[%s4844 + $0x31a] sm:$0xff]
      %v5294 = vld [vmem:[%s4844 + $0x322] sm:$0xff]
      %v5295 = vperm.slane %v3685, 2
      %v5296 = vmul.f32 %v5231, %v5295
      %v5297 = vmul.f32 %v5232, %v5295
      %v5298 = vmul.f32 %v5233, %v5295
      %v5299 = vmul.f32 %v5234, %v5295
      %v5300 = vmul.f32 %v5235, %v5295
      %v5301 = vmul.f32 %v5236, %v5295
      %v5302 = vmul.f32 %v5237, %v5295
      %v5303 = vmul.f32 %v5238, %v5295
      %v5304 = vmul.f32 %v5239, %v5295
      %v5305 = vmul.f32 %v5240, %v5295
      %v5306 = vmul.f32 %v5241, %v5295
      %v5307 = vmul.f32 %v5242, %v5295
      %v5308 = vmul.f32 %v5243, %v5295
      %v5309 = vmul.f32 %v5244, %v5295
      %v5310 = vmul.f32 %v5245, %v5295
      %v5311 = vmul.f32 %v5246, %v5295
      %v5312 = vmul.f32 %v5247, %v5295
      %v5313 = vmul.f32 %v5248, %v5295
      %v5314 = vmul.f32 %v5249, %v5295
      %v5315 = vmul.f32 %v5250, %v5295
      %v5316 = vmul.f32 %v5251, %v5295
      %v5317 = vmul.f32 %v5252, %v5295
      %v5318 = vmul.f32 %v5253, %v5295
      %v5319 = vmul.f32 %v5254, %v5295
      %v5320 = vmul.f32 %v5255, %v5295
      %v5321 = vmul.f32 %v5256, %v5295
      %v5322 = vmul.f32 %v5257, %v5295
      %v5323 = vmul.f32 %v5258, %v5295
      %v5324 = vmul.f32 %v5259, %v5295
      %v5325 = vmul.f32 %v5260, %v5295
      %v5326 = vmul.f32 %v5261, %v5295
      %v5327 = vmul.f32 %v5262, %v5295
      %v5328 = vmul.f32 %v5263, %v5295
      %v5329 = vmul.f32 %v5264, %v5295
      %v5330 = vmul.f32 %v5265, %v5295
      %v5331 = vmul.f32 %v5266, %v5295
      %v5332 = vmul.f32 %v5267, %v5295
      %v5333 = vmul.f32 %v5268, %v5295
      %v5334 = vmul.f32 %v5269, %v5295
      %v5335 = vmul.f32 %v5270, %v5295
      %v5336 = vmul.f32 %v5271, %v5295
      %v5337 = vmul.f32 %v5272, %v5295
      %v5338 = vmul.f32 %v5273, %v5295
      %v5339 = vmul.f32 %v5274, %v5295
      %v5340 = vmul.f32 %v5275, %v5295
      %v5341 = vmul.f32 %v5276, %v5295
      %v5342 = vmul.f32 %v5277, %v5295
      %v5343 = vmul.f32 %v5278, %v5295
      %v5344 = vmul.f32 %v5279, %v5295
      %v5345 = vmul.f32 %v5280, %v5295
      %v5346 = vmul.f32 %v5281, %v5295
      %v5347 = vmul.f32 %v5282, %v5295
      %v5348 = vmul.f32 %v5283, %v5295
      %v5349 = vmul.f32 %v5284, %v5295
      %v5350 = vmul.f32 %v5285, %v5295
      %v5351 = vmul.f32 %v5286, %v5295
      %v5352 = vmul.f32 %v5287, %v5295
      %v5353 = vmul.f32 %v5288, %v5295
      %v5354 = vmul.f32 %v5289, %v5295
      %v5355 = vmul.f32 %v5290, %v5295
      %v5356 = vmul.f32 %v5291, %v5295
      %v5357 = vmul.f32 %v5292, %v5295
      %v5358 = vmul.f32 %v5293, %v5295
      %v5359 = vmul.f32 %v5294, %v5295
      %v5360 = vadd.f32 %v5167, %v5296
      %v5361 = vadd.f32 %v5168, %v5297
      %v5362 = vadd.f32 %v5169, %v5298
      %v5363 = vadd.f32 %v5170, %v5299
      %v5364 = vadd.f32 %v5171, %v5300
      %v5365 = vadd.f32 %v5172, %v5301
      %v5366 = vadd.f32 %v5173, %v5302
      %v5367 = vadd.f32 %v5174, %v5303
      %v5368 = vadd.f32 %v5175, %v5304
      %v5369 = vadd.f32 %v5176, %v5305
      %v5370 = vadd.f32 %v5177, %v5306
      %v5371 = vadd.f32 %v5178, %v5307
      %v5372 = vadd.f32 %v5179, %v5308
      %v5373 = vadd.f32 %v5180, %v5309
      %v5374 = vadd.f32 %v5181, %v5310
      %v5375 = vadd.f32 %v5182, %v5311
      %v5376 = vadd.f32 %v5183, %v5312
      %v5377 = vadd.f32 %v5184, %v5313
      %v5378 = vadd.f32 %v5185, %v5314
      %v5379 = vadd.f32 %v5186, %v5315
      %v5380 = vadd.f32 %v5187, %v5316
      %v5381 = vadd.f32 %v5188, %v5317
      %v5382 = vadd.f32 %v5189, %v5318
      %v5383 = vadd.f32 %v5190, %v5319
      %v5384 = vadd.f32 %v5191, %v5320
      %v5385 = vadd.f32 %v5192, %v5321
      %v5386 = vadd.f32 %v5193, %v5322
      %v5387 = vadd.f32 %v5194, %v5323
      %v5388 = vadd.f32 %v5195, %v5324
      %v5389 = vadd.f32 %v5196, %v5325
      %v5390 = vadd.f32 %v5197, %v5326
      %v5391 = vadd.f32 %v5198, %v5327
      %v5392 = vadd.f32 %v5199, %v5328
      %v5393 = vadd.f32 %v5200, %v5329
      %v5394 = vadd.f32 %v5201, %v5330
      %v5395 = vadd.f32 %v5202, %v5331
      %v5396 = vadd.f32 %v5203, %v5332
      %v5397 = vadd.f32 %v5204, %v5333
      %v5398 = vadd.f32 %v5205, %v5334
      %v5399 = vadd.f32 %v5206, %v5335
      %v5400 = vadd.f32 %v5207, %v5336
      %v5401 = vadd.f32 %v5208, %v5337
      %v5402 = vadd.f32 %v5209, %v5338
      %v5403 = vadd.f32 %v5210, %v5339
      %v5404 = vadd.f32 %v5211, %v5340
      %v5405 = vadd.f32 %v5212, %v5341
      %v5406 = vadd.f32 %v5213, %v5342
      %v5407 = vadd.f32 %v5214, %v5343
      %v5408 = vadd.f32 %v5215, %v5344
      %v5409 = vadd.f32 %v5216, %v5345
      %v5410 = vadd.f32 %v5217, %v5346
      %v5411 = vadd.f32 %v5218, %v5347
      %v5412 = vadd.f32 %v5219, %v5348
      %v5413 = vadd.f32 %v5220, %v5349
      %v5414 = vadd.f32 %v5221, %v5350
      %v5415 = vadd.f32 %v5222, %v5351
      %v5416 = vadd.f32 %v5223, %v5352
      %v5417 = vadd.f32 %v5224, %v5353
      %v5418 = vadd.f32 %v5225, %v5354
      %v5419 = vadd.f32 %v5226, %v5355
      %v5420 = vadd.f32 %v5227, %v5356
      %v5421 = vadd.f32 %v5228, %v5357
      %v5422 = vadd.f32 %v5229, %v5358
      %v5423 = vadd.f32 %v5230, %v5359
      %v5424 = vpack.c.bf16 %v5361, %v5360
      %v5425 = vpack.c.bf16 %v5363, %v5362
      %v5426 = vpack.c.bf16 %v5365, %v5364
      %v5427 = vpack.c.bf16 %v5367, %v5366
      %v5428 = vpack.c.bf16 %v5369, %v5368
      %v5429 = vpack.c.bf16 %v5371, %v5370
      %v5430 = vpack.c.bf16 %v5373, %v5372
      %v5431 = vpack.c.bf16 %v5375, %v5374
      %v5432 = vpack.c.bf16 %v5377, %v5376
      %v5433 = vpack.c.bf16 %v5379, %v5378
      %v5434 = vpack.c.bf16 %v5381, %v5380
      %v5435 = vpack.c.bf16 %v5383, %v5382
      %v5436 = vpack.c.bf16 %v5385, %v5384
      %v5437 = vpack.c.bf16 %v5387, %v5386
      %v5438 = vpack.c.bf16 %v5389, %v5388
      %v5439 = vpack.c.bf16 %v5391, %v5390
      %v5440 = vpack.c.bf16 %v5393, %v5392
      %v5441 = vpack.c.bf16 %v5395, %v5394
      %v5442 = vpack.c.bf16 %v5397, %v5396
      %v5443 = vpack.c.bf16 %v5399, %v5398
      %v5444 = vpack.c.bf16 %v5401, %v5400
      %v5445 = vpack.c.bf16 %v5403, %v5402
      %v5446 = vpack.c.bf16 %v5405, %v5404
      %v5447 = vpack.c.bf16 %v5407, %v5406
      %v5448 = vpack.c.bf16 %v5409, %v5408
      %v5449 = vpack.c.bf16 %v5411, %v5410
      %v5450 = vpack.c.bf16 %v5413, %v5412
      %v5451 = vpack.c.bf16 %v5415, %v5414
      %v5452 = vpack.c.bf16 %v5417, %v5416
      %v5453 = vpack.c.bf16 %v5419, %v5418
      %v5454 = vpack.c.bf16 %v5421, %v5420
      %v5455 = vpack.c.bf16 %v5423, %v5422
      %v5456 = vld [vmem:[%s531] sm:$0xf]
      %v5458 = vsel %vm768, %v5424, 0
      %v5461 = vsel %vm768, %v5425, 0
      %v5464 = vsel %vm768, %v5426, 0
      %v5467 = vsel %vm768, %v5427, 0
      %v5470 = vsel %vm768, %v5428, 0
      %v5473 = vsel %vm768, %v5429, 0
      %v5476 = vsel %vm768, %v5430, 0
      %v5479 = vsel %vm768, %v5431, 0
      %v5482 = vsel %vm768, %v5432, 0
      %v5485 = vsel %vm768, %v5433, 0
      %v5488 = vsel %vm768, %v5434, 0
      %v5491 = vsel %vm768, %v5435, 0
      %v5494 = vsel %vm768, %v5436, 0
      %v5497 = vsel %vm768, %v5437, 0
      %v5500 = vsel %vm768, %v5438, 0
      %v5503 = vsel %vm768, %v5439, 0
      %v5506 = vsel %vm768, %v5440, 0
      %v5509 = vsel %vm768, %v5441, 0
      %v5512 = vsel %vm768, %v5442, 0
      %v5515 = vsel %vm768, %v5443, 0
      %v5518 = vsel %vm768, %v5444, 0
      %v5521 = vsel %vm768, %v5445, 0
      %v5524 = vsel %vm768, %v5446, 0
      %v5527 = vsel %vm768, %v5447, 0
      %v5530 = vsel %vm768, %v5448, 0
      %v5533 = vsel %vm768, %v5449, 0
      %v5536 = vsel %vm768, %v5450, 0
      %v5539 = vsel %vm768, %v5451, 0
      %v5542 = vsel %vm768, %v5452, 0
      %v5545 = vsel %vm768, %v5453, 0
      %v5548 = vsel %vm768, %v5454, 0
      %v5551 = vsel %vm768, %v5455, 0
      %v5554 = vsel %vm2749, %v5456, 0
      %5556 = vmatpush.bf16.msra.mxu0 0
      %5557 = vmatpush.bf16.msra.mxu0 0
      %5558 = vmatpush.bf16.msra.mxu0 0
      %5559 = vmatpush.bf16.msra.mxu0 0
      %5560 = vmatpush.bf16.msra.mxu0 0
      %5561 = vmatpush.bf16.msra.mxu0 0
      %5562 = vmatpush.bf16.msra.mxu0 0
      %5563 = vmatpush.bf16.msra.mxu0 %v5554
      %5564 = vmatmul.bf16.gmra.mxu0 %v5458
      %v5565 = vpop.f32.mrf.mxu0
      %v5566 = vadd.f32 0.0, %v5565
      %v5567 = vpop.f32.mrf.mxu0
      %v5568 = vadd.f32 0.0, %v5567
      %5569 = vmatmul.bf16.gmra.mxu0 %v5461
      %v5570 = vpop.f32.mrf.mxu0
      %v5571 = vadd.f32 0.0, %v5570
      %v5572 = vpop.f32.mrf.mxu0
      %v5573 = vadd.f32 0.0, %v5572
      %5574 = vmatmul.bf16.gmra.mxu0 %v5464
      %v5575 = vpop.f32.mrf.mxu0
      %v5576 = vadd.f32 0.0, %v5575
      %v5577 = vpop.f32.mrf.mxu0
      %v5578 = vadd.f32 0.0, %v5577
      %5579 = vmatmul.bf16.gmra.mxu0 %v5467
      %v5580 = vpop.f32.mrf.mxu0
      %v5581 = vadd.f32 0.0, %v5580
      %v5582 = vpop.f32.mrf.mxu0
      %v5583 = vadd.f32 0.0, %v5582
      %5584 = vmatmul.bf16.gmra.mxu0 %v5470
      %v5585 = vpop.f32.mrf.mxu0
      %v5586 = vadd.f32 0.0, %v5585
      %v5587 = vpop.f32.mrf.mxu0
      %v5588 = vadd.f32 0.0, %v5587
      %5589 = vmatmul.bf16.gmra.mxu0 %v5473
      %v5590 = vpop.f32.mrf.mxu0
      %v5591 = vadd.f32 0.0, %v5590
      %v5592 = vpop.f32.mrf.mxu0
      %v5593 = vadd.f32 0.0, %v5592
      %5594 = vmatmul.bf16.gmra.mxu0 %v5476
      %v5595 = vpop.f32.mrf.mxu0
      %v5596 = vadd.f32 0.0, %v5595
      %v5597 = vpop.f32.mrf.mxu0
      %v5598 = vadd.f32 0.0, %v5597
      %5599 = vmatmul.bf16.gmra.mxu0 %v5479
      %v5600 = vpop.f32.mrf.mxu0
      %v5601 = vadd.f32 0.0, %v5600
      %v5602 = vpop.f32.mrf.mxu0
      %v5603 = vadd.f32 0.0, %v5602
      %5604 = vmatmul.bf16.gmra.mxu0 %v5482
      %v5605 = vpop.f32.mrf.mxu0
      %v5606 = vadd.f32 0.0, %v5605
      %v5607 = vpop.f32.mrf.mxu0
      %v5608 = vadd.f32 0.0, %v5607
      %5609 = vmatmul.bf16.gmra.mxu0 %v5485
      %v5610 = vpop.f32.mrf.mxu0
      %v5611 = vadd.f32 0.0, %v5610
      %v5612 = vpop.f32.mrf.mxu0
      %v5613 = vadd.f32 0.0, %v5612
      %5614 = vmatmul.bf16.gmra.mxu0 %v5488
      %v5615 = vpop.f32.mrf.mxu0
      %v5616 = vadd.f32 0.0, %v5615
      %v5617 = vpop.f32.mrf.mxu0
      %v5618 = vadd.f32 0.0, %v5617
      %5619 = vmatmul.bf16.gmra.mxu0 %v5491
      %v5620 = vpop.f32.mrf.mxu0
      %v5621 = vadd.f32 0.0, %v5620
      %v5622 = vpop.f32.mrf.mxu0
      %v5623 = vadd.f32 0.0, %v5622
      %5624 = vmatmul.bf16.gmra.mxu0 %v5494
      %v5625 = vpop.f32.mrf.mxu0
      %v5626 = vadd.f32 0.0, %v5625
      %v5627 = vpop.f32.mrf.mxu0
      %v5628 = vadd.f32 0.0, %v5627
      %5629 = vmatmul.bf16.gmra.mxu0 %v5497
      %v5630 = vpop.f32.mrf.mxu0
      %v5631 = vadd.f32 0.0, %v5630
      %v5632 = vpop.f32.mrf.mxu0
      %v5633 = vadd.f32 0.0, %v5632
      %5634 = vmatmul.bf16.gmra.mxu0 %v5500
      %v5635 = vpop.f32.mrf.mxu0
      %v5636 = vadd.f32 0.0, %v5635
      %v5637 = vpop.f32.mrf.mxu0
      %v5638 = vadd.f32 0.0, %v5637
      %5639 = vmatmul.bf16.gmra.mxu0 %v5503
      %v5640 = vpop.f32.mrf.mxu0
      %v5641 = vadd.f32 0.0, %v5640
      %v5642 = vpop.f32.mrf.mxu0
      %v5643 = vadd.f32 0.0, %v5642
      %5644 = vmatmul.bf16.gmra.mxu0 %v5506
      %v5645 = vpop.f32.mrf.mxu0
      %v5646 = vadd.f32 0.0, %v5645
      %v5647 = vpop.f32.mrf.mxu0
      %v5648 = vadd.f32 0.0, %v5647
      %5649 = vmatmul.bf16.gmra.mxu0 %v5509
      %v5650 = vpop.f32.mrf.mxu0
      %v5651 = vadd.f32 0.0, %v5650
      %v5652 = vpop.f32.mrf.mxu0
      %v5653 = vadd.f32 0.0, %v5652
      %5654 = vmatmul.bf16.gmra.mxu0 %v5512
      %v5655 = vpop.f32.mrf.mxu0
      %v5656 = vadd.f32 0.0, %v5655
      %v5657 = vpop.f32.mrf.mxu0
      %v5658 = vadd.f32 0.0, %v5657
      %5659 = vmatmul.bf16.gmra.mxu0 %v5515
      %v5660 = vpop.f32.mrf.mxu0
      %v5661 = vadd.f32 0.0, %v5660
      %v5662 = vpop.f32.mrf.mxu0
      %v5663 = vadd.f32 0.0, %v5662
      %5664 = vmatmul.bf16.gmra.mxu0 %v5518
      %v5665 = vpop.f32.mrf.mxu0
      %v5666 = vadd.f32 0.0, %v5665
      %v5667 = vpop.f32.mrf.mxu0
      %v5668 = vadd.f32 0.0, %v5667
      %5669 = vmatmul.bf16.gmra.mxu0 %v5521
      %v5670 = vpop.f32.mrf.mxu0
      %v5671 = vadd.f32 0.0, %v5670
      %v5672 = vpop.f32.mrf.mxu0
      %v5673 = vadd.f32 0.0, %v5672
      %5674 = vmatmul.bf16.gmra.mxu0 %v5524
      %v5675 = vpop.f32.mrf.mxu0
      %v5676 = vadd.f32 0.0, %v5675
      %v5677 = vpop.f32.mrf.mxu0
      %v5678 = vadd.f32 0.0, %v5677
      %5679 = vmatmul.bf16.gmra.mxu0 %v5527
      %v5680 = vpop.f32.mrf.mxu0
      %v5681 = vadd.f32 0.0, %v5680
      %v5682 = vpop.f32.mrf.mxu0
      %v5683 = vadd.f32 0.0, %v5682
      %5684 = vmatmul.bf16.gmra.mxu0 %v5530
      %v5685 = vpop.f32.mrf.mxu0
      %v5686 = vadd.f32 0.0, %v5685
      %v5687 = vpop.f32.mrf.mxu0
      %v5688 = vadd.f32 0.0, %v5687
      %5689 = vmatmul.bf16.gmra.mxu0 %v5533
      %v5690 = vpop.f32.mrf.mxu0
      %v5691 = vadd.f32 0.0, %v5690
      %v5692 = vpop.f32.mrf.mxu0
      %v5693 = vadd.f32 0.0, %v5692
      %5694 = vmatmul.bf16.gmra.mxu0 %v5536
      %v5695 = vpop.f32.mrf.mxu0
      %v5696 = vadd.f32 0.0, %v5695
      %v5697 = vpop.f32.mrf.mxu0
      %v5698 = vadd.f32 0.0, %v5697
      %5699 = vmatmul.bf16.gmra.mxu0 %v5539
      %v5700 = vpop.f32.mrf.mxu0
      %v5701 = vadd.f32 0.0, %v5700
      %v5702 = vpop.f32.mrf.mxu0
      %v5703 = vadd.f32 0.0, %v5702
      %5704 = vmatmul.bf16.gmra.mxu0 %v5542
      %v5705 = vpop.f32.mrf.mxu0
      %v5706 = vadd.f32 0.0, %v5705
      %v5707 = vpop.f32.mrf.mxu0
      %v5708 = vadd.f32 0.0, %v5707
      %5709 = vmatmul.bf16.gmra.mxu0 %v5545
      %v5710 = vpop.f32.mrf.mxu0
      %v5711 = vadd.f32 0.0, %v5710
      %v5712 = vpop.f32.mrf.mxu0
      %v5713 = vadd.f32 0.0, %v5712
      %5714 = vmatmul.bf16.gmra.mxu0 %v5548
      %v5715 = vpop.f32.mrf.mxu0
      %v5716 = vadd.f32 0.0, %v5715
      %v5717 = vpop.f32.mrf.mxu0
      %v5718 = vadd.f32 0.0, %v5717
      %5719 = vmatmul.bf16.gmra.mxu0 %v5551
      %v5720 = vpop.f32.mrf.mxu0
      %v5721 = vadd.f32 0.0, %v5720
      %v5722 = vpop.f32.mrf.mxu0
      %v5723 = vadd.f32 0.0, %v5722
      %5724 = vdwg.mxu0
      %v5725 = vsel %vm768, %v5566, 0.0
      %v5726 = vsel %vm768, %v5568, 0.0
      %v5727 = vadd.f32 %v5725, %v5726
      %v5728 = vsel %vm768, %v5571, 0.0
      %v5729 = vadd.f32 %v5727, %v5728
      %v5730 = vsel %vm768, %v5573, 0.0
      %v5731 = vadd.f32 %v5729, %v5730
      %v5732 = vsel %vm768, %v5576, 0.0
      %v5733 = vadd.f32 %v5731, %v5732
      %v5734 = vsel %vm768, %v5578, 0.0
      %v5735 = vadd.f32 %v5733, %v5734
      %v5736 = vsel %vm768, %v5581, 0.0
      %v5737 = vadd.f32 %v5735, %v5736
      %v5738 = vsel %vm768, %v5583, 0.0
      %v5739 = vadd.f32 %v5737, %v5738
      %v5740 = vsel %vm768, %v5586, 0.0
      %v5741 = vadd.f32 %v5739, %v5740
      %v5742 = vsel %vm768, %v5588, 0.0
      %v5743 = vadd.f32 %v5741, %v5742
      %v5744 = vsel %vm768, %v5591, 0.0
      %v5745 = vadd.f32 %v5743, %v5744
      %v5746 = vsel %vm768, %v5593, 0.0
      %v5747 = vadd.f32 %v5745, %v5746
      %v5748 = vsel %vm768, %v5596, 0.0
      %v5749 = vadd.f32 %v5747, %v5748
      %v5750 = vsel %vm768, %v5598, 0.0
      %v5751 = vadd.f32 %v5749, %v5750
      %v5752 = vsel %vm768, %v5601, 0.0
      %v5753 = vadd.f32 %v5751, %v5752
      %v5754 = vsel %vm768, %v5603, 0.0
      %v5755 = vadd.f32 %v5753, %v5754
      %v5756 = vsel %vm768, %v5606, 0.0
      %v5757 = vadd.f32 %v5755, %v5756
      %v5758 = vsel %vm768, %v5608, 0.0
      %v5759 = vadd.f32 %v5757, %v5758
      %v5760 = vsel %vm768, %v5611, 0.0
      %v5761 = vadd.f32 %v5759, %v5760
      %v5762 = vsel %vm768, %v5613, 0.0
      %v5763 = vadd.f32 %v5761, %v5762
      %v5764 = vsel %vm768, %v5616, 0.0
      %v5765 = vadd.f32 %v5763, %v5764
      %v5766 = vsel %vm768, %v5618, 0.0
      %v5767 = vadd.f32 %v5765, %v5766
      %v5768 = vsel %vm768, %v5621, 0.0
      %v5769 = vadd.f32 %v5767, %v5768
      %v5770 = vsel %vm768, %v5623, 0.0
      %v5771 = vadd.f32 %v5769, %v5770
      %v5772 = vsel %vm768, %v5626, 0.0
      %v5773 = vadd.f32 %v5771, %v5772
      %v5774 = vsel %vm768, %v5628, 0.0
      %v5775 = vadd.f32 %v5773, %v5774
      %v5776 = vsel %vm768, %v5631, 0.0
      %v5777 = vadd.f32 %v5775, %v5776
      %v5778 = vsel %vm768, %v5633, 0.0
      %v5779 = vadd.f32 %v5777, %v5778
      %v5780 = vsel %vm768, %v5636, 0.0
      %v5781 = vadd.f32 %v5779, %v5780
      %v5782 = vsel %vm768, %v5638, 0.0
      %v5783 = vadd.f32 %v5781, %v5782
      %v5784 = vsel %vm768, %v5641, 0.0
      %v5785 = vadd.f32 %v5783, %v5784
      %v5786 = vsel %vm768, %v5643, 0.0
      %v5787 = vadd.f32 %v5785, %v5786
      %v5788 = vsel %vm768, %v5646, 0.0
      %v5789 = vadd.f32 %v5787, %v5788
      %v5790 = vsel %vm768, %v5648, 0.0
      %v5791 = vadd.f32 %v5789, %v5790
      %v5792 = vsel %vm768, %v5651, 0.0
      %v5793 = vadd.f32 %v5791, %v5792
      %v5794 = vsel %vm768, %v5653, 0.0
      %v5795 = vadd.f32 %v5793, %v5794
      %v5796 = vsel %vm768, %v5656, 0.0
      %v5797 = vadd.f32 %v5795, %v5796
      %v5798 = vsel %vm768, %v5658, 0.0
      %v5799 = vadd.f32 %v5797, %v5798
      %v5800 = vsel %vm768, %v5661, 0.0
      %v5801 = vadd.f32 %v5799, %v5800
      %v5802 = vsel %vm768, %v5663, 0.0
      %v5803 = vadd.f32 %v5801, %v5802
      %v5804 = vsel %vm768, %v5666, 0.0
      %v5805 = vadd.f32 %v5803, %v5804
      %v5806 = vsel %vm768, %v5668, 0.0
      %v5807 = vadd.f32 %v5805, %v5806
      %v5808 = vsel %vm768, %v5671, 0.0
      %v5809 = vadd.f32 %v5807, %v5808
      %v5810 = vsel %vm768, %v5673, 0.0
      %v5811 = vadd.f32 %v5809, %v5810
      %v5812 = vsel %vm768, %v5676, 0.0
      %v5813 = vadd.f32 %v5811, %v5812
      %v5814 = vsel %vm768, %v5678, 0.0
      %v5815 = vadd.f32 %v5813, %v5814
      %v5816 = vsel %vm768, %v5681, 0.0
      %v5817 = vadd.f32 %v5815, %v5816
      %v5818 = vsel %vm768, %v5683, 0.0
      %v5819 = vadd.f32 %v5817, %v5818
      %v5820 = vsel %vm768, %v5686, 0.0
      %v5821 = vadd.f32 %v5819, %v5820
      %v5822 = vsel %vm768, %v5688, 0.0
      %v5823 = vadd.f32 %v5821, %v5822
      %v5824 = vsel %vm768, %v5691, 0.0
      %v5825 = vadd.f32 %v5823, %v5824
      %v5826 = vsel %vm768, %v5693, 0.0
      %v5827 = vadd.f32 %v5825, %v5826
      %v5828 = vsel %vm768, %v5696, 0.0
      %v5829 = vadd.f32 %v5827, %v5828
      %v5830 = vsel %vm768, %v5698, 0.0
      %v5831 = vadd.f32 %v5829, %v5830
      %v5832 = vsel %vm768, %v5701, 0.0
      %v5833 = vadd.f32 %v5831, %v5832
      %v5834 = vsel %vm768, %v5703, 0.0
      %v5835 = vadd.f32 %v5833, %v5834
      %v5836 = vsel %vm768, %v5706, 0.0
      %v5837 = vadd.f32 %v5835, %v5836
      %v5838 = vsel %vm768, %v5708, 0.0
      %v5839 = vadd.f32 %v5837, %v5838
      %v5840 = vsel %vm768, %v5711, 0.0
      %v5841 = vadd.f32 %v5839, %v5840
      %v5842 = vsel %vm768, %v5713, 0.0
      %v5843 = vadd.f32 %v5841, %v5842
      %v5844 = vsel %vm768, %v5716, 0.0
      %v5845 = vadd.f32 %v5843, %v5844
      %v5846 = vsel %vm768, %v5718, 0.0
      %v5847 = vadd.f32 %v5845, %v5846
      %v5848 = vsel %vm768, %v5721, 0.0
      %v5849 = vadd.f32 %v5847, %v5848
      %v5850 = vsel %vm768, %v5723, 0.0
      %v5851 = vadd.f32 %v5849, %v5850
      %v5852 = vrot.slane %v5851, 4
      %v5853 = vadd.f32 %v5851, %v5852
      %v5854 = vrot.slane %v5853, 2
      %v5855 = vadd.f32 %v5853, %v5854
      %v5856 = vrot.slane %v5855, 1
      %v5857 = vadd.f32 %v5855, %v5856
      %v5858 = vmul.f32 %v5857, 0.001953125
      %v5859 = vmul.f32 %v5566, %v5566
      %v5860 = vmul.f32 %v5568, %v5568
      %v5861 = vmul.f32 %v5571, %v5571
      %v5862 = vmul.f32 %v5573, %v5573
      %v5863 = vmul.f32 %v5576, %v5576
      %v5864 = vmul.f32 %v5578, %v5578
      %v5865 = vmul.f32 %v5581, %v5581
      %v5866 = vmul.f32 %v5583, %v5583
      %v5867 = vmul.f32 %v5586, %v5586
      %v5868 = vmul.f32 %v5588, %v5588
      %v5869 = vmul.f32 %v5591, %v5591
      %v5870 = vmul.f32 %v5593, %v5593
      %v5871 = vmul.f32 %v5596, %v5596
      %v5872 = vmul.f32 %v5598, %v5598
      %v5873 = vmul.f32 %v5601, %v5601
      %v5874 = vmul.f32 %v5603, %v5603
      %v5875 = vmul.f32 %v5606, %v5606
      %v5876 = vmul.f32 %v5608, %v5608
      %v5877 = vmul.f32 %v5611, %v5611
      %v5878 = vmul.f32 %v5613, %v5613
      %v5879 = vmul.f32 %v5616, %v5616
      %v5880 = vmul.f32 %v5618, %v5618
      %v5881 = vmul.f32 %v5621, %v5621
      %v5882 = vmul.f32 %v5623, %v5623
      %v5883 = vmul.f32 %v5626, %v5626
      %v5884 = vmul.f32 %v5628, %v5628
      %v5885 = vmul.f32 %v5631, %v5631
      %v5886 = vmul.f32 %v5633, %v5633
      %v5887 = vmul.f32 %v5636, %v5636
      %v5888 = vmul.f32 %v5638, %v5638
      %v5889 = vmul.f32 %v5641, %v5641
      %v5890 = vmul.f32 %v5643, %v5643
      %v5891 = vmul.f32 %v5646, %v5646
      %v5892 = vmul.f32 %v5648, %v5648
      %v5893 = vmul.f32 %v5651, %v5651
      %v5894 = vmul.f32 %v5653, %v5653
      %v5895 = vmul.f32 %v5656, %v5656
      %v5896 = vmul.f32 %v5658, %v5658
      %v5897 = vmul.f32 %v5661, %v5661
      %v5898 = vmul.f32 %v5663, %v5663
      %v5899 = vmul.f32 %v5666, %v5666
      %v5900 = vmul.f32 %v5668, %v5668
      %v5901 = vmul.f32 %v5671, %v5671
      %v5902 = vmul.f32 %v5673, %v5673
      %v5903 = vmul.f32 %v5676, %v5676
      %v5904 = vmul.f32 %v5678, %v5678
      %v5905 = vmul.f32 %v5681, %v5681
      %v5906 = vmul.f32 %v5683, %v5683
      %v5907 = vmul.f32 %v5686, %v5686
      %v5908 = vmul.f32 %v5688, %v5688
      %v5909 = vmul.f32 %v5691, %v5691
      %v5910 = vmul.f32 %v5693, %v5693
      %v5911 = vmul.f32 %v5696, %v5696
      %v5912 = vmul.f32 %v5698, %v5698
      %v5913 = vmul.f32 %v5701, %v5701
      %v5914 = vmul.f32 %v5703, %v5703
      %v5915 = vmul.f32 %v5706, %v5706
      %v5916 = vmul.f32 %v5708, %v5708
      %v5917 = vmul.f32 %v5711, %v5711
      %v5918 = vmul.f32 %v5713, %v5713
      %v5919 = vmul.f32 %v5716, %v5716
      %v5920 = vmul.f32 %v5718, %v5718
      %v5921 = vmul.f32 %v5721, %v5721
      %v5922 = vmul.f32 %v5723, %v5723
      %v5923 = vsel %vm768, %v5859, 0.0
      %v5924 = vsel %vm768, %v5860, 0.0
      %v5925 = vadd.f32 %v5923, %v5924
      %v5926 = vsel %vm768, %v5861, 0.0
      %v5927 = vadd.f32 %v5925, %v5926
      %v5928 = vsel %vm768, %v5862, 0.0
      %v5929 = vadd.f32 %v5927, %v5928
      %v5930 = vsel %vm768, %v5863, 0.0
      %v5931 = vadd.f32 %v5929, %v5930
      %v5932 = vsel %vm768, %v5864, 0.0
      %v5933 = vadd.f32 %v5931, %v5932
      %v5934 = vsel %vm768, %v5865, 0.0
      %v5935 = vadd.f32 %v5933, %v5934
      %v5936 = vsel %vm768, %v5866, 0.0
      %v5937 = vadd.f32 %v5935, %v5936
      %v5938 = vsel %vm768, %v5867, 0.0
      %v5939 = vadd.f32 %v5937, %v5938
      %v5940 = vsel %vm768, %v5868, 0.0
      %v5941 = vadd.f32 %v5939, %v5940
      %v5942 = vsel %vm768, %v5869, 0.0
      %v5943 = vadd.f32 %v5941, %v5942
      %v5944 = vsel %vm768, %v5870, 0.0
      %v5945 = vadd.f32 %v5943, %v5944
      %v5946 = vsel %vm768, %v5871, 0.0
      %v5947 = vadd.f32 %v5945, %v5946
      %v5948 = vsel %vm768, %v5872, 0.0
      %v5949 = vadd.f32 %v5947, %v5948
      %v5950 = vsel %vm768, %v5873, 0.0
      %v5951 = vadd.f32 %v5949, %v5950
      %v5952 = vsel %vm768, %v5874, 0.0
      %v5953 = vadd.f32 %v5951, %v5952
      %v5954 = vsel %vm768, %v5875, 0.0
      %v5955 = vadd.f32 %v5953, %v5954
      %v5956 = vsel %vm768, %v5876, 0.0
      %v5957 = vadd.f32 %v5955, %v5956
      %v5958 = vsel %vm768, %v5877, 0.0
      %v5959 = vadd.f32 %v5957, %v5958
      %v5960 = vsel %vm768, %v5878, 0.0
      %v5961 = vadd.f32 %v5959, %v5960
      %v5962 = vsel %vm768, %v5879, 0.0
      %v5963 = vadd.f32 %v5961, %v5962
      %v5964 = vsel %vm768, %v5880, 0.0
      %v5965 = vadd.f32 %v5963, %v5964
      %v5966 = vsel %vm768, %v5881, 0.0
      %v5967 = vadd.f32 %v5965, %v5966
      %v5968 = vsel %vm768, %v5882, 0.0
      %v5969 = vadd.f32 %v5967, %v5968
      %v5970 = vsel %vm768, %v5883, 0.0
      %v5971 = vadd.f32 %v5969, %v5970
      %v5972 = vsel %vm768, %v5884, 0.0
      %v5973 = vadd.f32 %v5971, %v5972
      %v5974 = vsel %vm768, %v5885, 0.0
      %v5975 = vadd.f32 %v5973, %v5974
      %v5976 = vsel %vm768, %v5886, 0.0
      %v5977 = vadd.f32 %v5975, %v5976
      %v5978 = vsel %vm768, %v5887, 0.0
      %v5979 = vadd.f32 %v5977, %v5978
      %v5980 = vsel %vm768, %v5888, 0.0
      %v5981 = vadd.f32 %v5979, %v5980
      %v5982 = vsel %vm768, %v5889, 0.0
      %v5983 = vadd.f32 %v5981, %v5982
      %v5984 = vsel %vm768, %v5890, 0.0
      %v5985 = vadd.f32 %v5983, %v5984
      %v5986 = vsel %vm768, %v5891, 0.0
      %v5987 = vadd.f32 %v5985, %v5986
      %v5988 = vsel %vm768, %v5892, 0.0
      %v5989 = vadd.f32 %v5987, %v5988
      %v5990 = vsel %vm768, %v5893, 0.0
      %v5991 = vadd.f32 %v5989, %v5990
      %v5992 = vsel %vm768, %v5894, 0.0
      %v5993 = vadd.f32 %v5991, %v5992
      %v5994 = vsel %vm768, %v5895, 0.0
      %v5995 = vadd.f32 %v5993, %v5994
      %v5996 = vsel %vm768, %v5896, 0.0
      %v5997 = vadd.f32 %v5995, %v5996
      %v5998 = vsel %vm768, %v5897, 0.0
      %v5999 = vadd.f32 %v5997, %v5998
      %v6000 = vsel %vm768, %v5898, 0.0
      %v6001 = vadd.f32 %v5999, %v6000
      %v6002 = vsel %vm768, %v5899, 0.0
      %v6003 = vadd.f32 %v6001, %v6002
      %v6004 = vsel %vm768, %v5900, 0.0
      %v6005 = vadd.f32 %v6003, %v6004
      %v6006 = vsel %vm768, %v5901, 0.0
      %v6007 = vadd.f32 %v6005, %v6006
      %v6008 = vsel %vm768, %v5902, 0.0
      %v6009 = vadd.f32 %v6007, %v6008
      %v6010 = vsel %vm768, %v5903, 0.0
      %v6011 = vadd.f32 %v6009, %v6010
      %v6012 = vsel %vm768, %v5904, 0.0
      %v6013 = vadd.f32 %v6011, %v6012
      %v6014 = vsel %vm768, %v5905, 0.0
      %v6015 = vadd.f32 %v6013, %v6014
      %v6016 = vsel %vm768, %v5906, 0.0
      %v6017 = vadd.f32 %v6015, %v6016
      %v6018 = vsel %vm768, %v5907, 0.0
      %v6019 = vadd.f32 %v6017, %v6018
      %v6020 = vsel %vm768, %v5908, 0.0
      %v6021 = vadd.f32 %v6019, %v6020
      %v6022 = vsel %vm768, %v5909, 0.0
      %v6023 = vadd.f32 %v6021, %v6022
      %v6024 = vsel %vm768, %v5910, 0.0
      %v6025 = vadd.f32 %v6023, %v6024
      %v6026 = vsel %vm768, %v5911, 0.0
      %v6027 = vadd.f32 %v6025, %v6026
      %v6028 = vsel %vm768, %v5912, 0.0
      %v6029 = vadd.f32 %v6027, %v6028
      %v6030 = vsel %vm768, %v5913, 0.0
      %v6031 = vadd.f32 %v6029, %v6030
      %v6032 = vsel %vm768, %v5914, 0.0
      %v6033 = vadd.f32 %v6031, %v6032
      %v6034 = vsel %vm768, %v5915, 0.0
      %v6035 = vadd.f32 %v6033, %v6034
      %v6036 = vsel %vm768, %v5916, 0.0
      %v6037 = vadd.f32 %v6035, %v6036
      %v6038 = vsel %vm768, %v5917, 0.0
      %v6039 = vadd.f32 %v6037, %v6038
      %v6040 = vsel %vm768, %v5918, 0.0
      %v6041 = vadd.f32 %v6039, %v6040
      %v6042 = vsel %vm768, %v5919, 0.0
      %v6043 = vadd.f32 %v6041, %v6042
      %v6044 = vsel %vm768, %v5920, 0.0
      %v6045 = vadd.f32 %v6043, %v6044
      %v6046 = vsel %vm768, %v5921, 0.0
      %v6047 = vadd.f32 %v6045, %v6046
      %v6048 = vsel %vm768, %v5922, 0.0
      %v6049 = vadd.f32 %v6047, %v6048
      %v6050 = vrot.slane %v6049, 4
      %v6051 = vadd.f32 %v6049, %v6050
      %v6052 = vrot.slane %v6051, 2
      %v6053 = vadd.f32 %v6051, %v6052
      %v6054 = vrot.slane %v6053, 1
      %v6055 = vadd.f32 %v6053, %v6054
      %v6056 = vmul.f32 %v6055, 0.001953125
      %v6057 = vmul.f32 %v5858, %v5858
      %v6058 = vsub.f32 %v6056, %v6057
      %v6059 = vsub.f32 %v5566, %v5858
      %v6060 = vsub.f32 %v5568, %v5858
      %v6061 = vsub.f32 %v5571, %v5858
      %v6062 = vsub.f32 %v5573, %v5858
      %v6063 = vsub.f32 %v5576, %v5858
      %v6064 = vsub.f32 %v5578, %v5858
      %v6065 = vsub.f32 %v5581, %v5858
      %v6066 = vsub.f32 %v5583, %v5858
      %v6067 = vsub.f32 %v5586, %v5858
      %v6068 = vsub.f32 %v5588, %v5858
      %v6069 = vsub.f32 %v5591, %v5858
      %v6070 = vsub.f32 %v5593, %v5858
      %v6071 = vsub.f32 %v5596, %v5858
      %v6072 = vsub.f32 %v5598, %v5858
      %v6073 = vsub.f32 %v5601, %v5858
      %v6074 = vsub.f32 %v5603, %v5858
      %v6075 = vsub.f32 %v5606, %v5858
      %v6076 = vsub.f32 %v5608, %v5858
      %v6077 = vsub.f32 %v5611, %v5858
      %v6078 = vsub.f32 %v5613, %v5858
      %v6079 = vsub.f32 %v5616, %v5858
      %v6080 = vsub.f32 %v5618, %v5858
      %v6081 = vsub.f32 %v5621, %v5858
      %v6082 = vsub.f32 %v5623, %v5858
      %v6083 = vsub.f32 %v5626, %v5858
      %v6084 = vsub.f32 %v5628, %v5858
      %v6085 = vsub.f32 %v5631, %v5858
      %v6086 = vsub.f32 %v5633, %v5858
      %v6087 = vsub.f32 %v5636, %v5858
      %v6088 = vsub.f32 %v5638, %v5858
      %v6089 = vsub.f32 %v5641, %v5858
      %v6090 = vsub.f32 %v5643, %v5858
      %v6091 = vsub.f32 %v5646, %v5858
      %v6092 = vsub.f32 %v5648, %v5858
      %v6093 = vsub.f32 %v5651, %v5858
      %v6094 = vsub.f32 %v5653, %v5858
      %v6095 = vsub.f32 %v5656, %v5858
      %v6096 = vsub.f32 %v5658, %v5858
      %v6097 = vsub.f32 %v5661, %v5858
      %v6098 = vsub.f32 %v5663, %v5858
      %v6099 = vsub.f32 %v5666, %v5858
      %v6100 = vsub.f32 %v5668, %v5858
      %v6101 = vsub.f32 %v5671, %v5858
      %v6102 = vsub.f32 %v5673, %v5858
      %v6103 = vsub.f32 %v5676, %v5858
      %v6104 = vsub.f32 %v5678, %v5858
      %v6105 = vsub.f32 %v5681, %v5858
      %v6106 = vsub.f32 %v5683, %v5858
      %v6107 = vsub.f32 %v5686, %v5858
      %v6108 = vsub.f32 %v5688, %v5858
      %v6109 = vsub.f32 %v5691, %v5858
      %v6110 = vsub.f32 %v5693, %v5858
      %v6111 = vsub.f32 %v5696, %v5858
      %v6112 = vsub.f32 %v5698, %v5858
      %v6113 = vsub.f32 %v5701, %v5858
      %v6114 = vsub.f32 %v5703, %v5858
      %v6115 = vsub.f32 %v5706, %v5858
      %v6116 = vsub.f32 %v5708, %v5858
      %v6117 = vsub.f32 %v5711, %v5858
      %v6118 = vsub.f32 %v5713, %v5858
      %v6119 = vsub.f32 %v5716, %v5858
      %v6120 = vsub.f32 %v5718, %v5858
      %v6121 = vsub.f32 %v5721, %v5858
      %v6122 = vsub.f32 %v5723, %v5858
      %v6123 = vld [vmem:[%s534] sm:$0x1]
      %v6124 = vadd.f32 %v6058, 1e-05
      %v6125 = vrsqrt.pop %v6124
      %v6126 = vmul.f32 %v6125, %v6124
      %v6127 = vmul.f32 %v6126, %v6125
      %v6128 = vmul.f32 0.5, %v6127
      %v6129 = vsub.f32 1.5, %v6128
      %v6130 = vmul.f32 %v6125, %v6129
      %vm6131 = vweird.f32 %v6124
      %vm6132 = vweird.f32 %v6125
      %vm6133 = vmor %vm6131, %vm6132
      %v6134 = vsel %vm6133, %v6125, %v6130
      %v6135 = vmul.f32 %v6123, %v6134
      %v6137 = vperm.slane %v6135, 0
      %v6139 = vmul.f32 %v6059, %v6137
      %v6140 = vmul.f32 %v6060, %v6137
      %v6141 = vmul.f32 %v6061, %v6137
      %v6142 = vmul.f32 %v6062, %v6137
      %v6143 = vmul.f32 %v6063, %v6137
      %v6144 = vmul.f32 %v6064, %v6137
      %v6145 = vmul.f32 %v6065, %v6137
      %v6146 = vmul.f32 %v6066, %v6137
      %v6147 = vmul.f32 %v6067, %v6137
      %v6148 = vmul.f32 %v6068, %v6137
      %v6149 = vmul.f32 %v6069, %v6137
      %v6150 = vmul.f32 %v6070, %v6137
      %v6151 = vmul.f32 %v6071, %v6137
      %v6152 = vmul.f32 %v6072, %v6137
      %v6153 = vmul.f32 %v6073, %v6137
      %v6154 = vmul.f32 %v6074, %v6137
      %v6155 = vmul.f32 %v6075, %v6137
      %v6156 = vmul.f32 %v6076, %v6137
      %v6157 = vmul.f32 %v6077, %v6137
      %v6158 = vmul.f32 %v6078, %v6137
      %v6159 = vmul.f32 %v6079, %v6137
      %v6160 = vmul.f32 %v6080, %v6137
      %v6161 = vmul.f32 %v6081, %v6137
      %v6162 = vmul.f32 %v6082, %v6137
      %v6163 = vmul.f32 %v6083, %v6137
      %v6164 = vmul.f32 %v6084, %v6137
      %v6165 = vmul.f32 %v6085, %v6137
      %v6166 = vmul.f32 %v6086, %v6137
      %v6167 = vmul.f32 %v6087, %v6137
      %v6168 = vmul.f32 %v6088, %v6137
      %v6169 = vmul.f32 %v6089, %v6137
      %v6170 = vmul.f32 %v6090, %v6137
      %v6171 = vmul.f32 %v6091, %v6137
      %v6172 = vmul.f32 %v6092, %v6137
      %v6173 = vmul.f32 %v6093, %v6137
      %v6174 = vmul.f32 %v6094, %v6137
      %v6175 = vmul.f32 %v6095, %v6137
      %v6176 = vmul.f32 %v6096, %v6137
      %v6177 = vmul.f32 %v6097, %v6137
      %v6178 = vmul.f32 %v6098, %v6137
      %v6179 = vmul.f32 %v6099, %v6137
      %v6180 = vmul.f32 %v6100, %v6137
      %v6181 = vmul.f32 %v6101, %v6137
      %v6182 = vmul.f32 %v6102, %v6137
      %v6183 = vmul.f32 %v6103, %v6137
      %v6184 = vmul.f32 %v6104, %v6137
      %v6185 = vmul.f32 %v6105, %v6137
      %v6186 = vmul.f32 %v6106, %v6137
      %v6187 = vmul.f32 %v6107, %v6137
      %v6188 = vmul.f32 %v6108, %v6137
      %v6189 = vmul.f32 %v6109, %v6137
      %v6190 = vmul.f32 %v6110, %v6137
      %v6191 = vmul.f32 %v6111, %v6137
      %v6192 = vmul.f32 %v6112, %v6137
      %v6193 = vmul.f32 %v6113, %v6137
      %v6194 = vmul.f32 %v6114, %v6137
      %v6195 = vmul.f32 %v6115, %v6137
      %v6196 = vmul.f32 %v6116, %v6137
      %v6197 = vmul.f32 %v6117, %v6137
      %v6198 = vmul.f32 %v6118, %v6137
      %v6199 = vmul.f32 %v6119, %v6137
      %v6200 = vmul.f32 %v6120, %v6137
      %v6201 = vmul.f32 %v6121, %v6137
      %v6202 = vmul.f32 %v6122, %v6137
      %v6203 = vld [vmem:[%s537] sm:$0x1]
      %v6205 = vperm.slane %v6203, 0
      %v6207 = vadd.f32 %v6139, %v6205
      %v6208 = vadd.f32 %v6140, %v6205
      %v6209 = vadd.f32 %v6141, %v6205
      %v6210 = vadd.f32 %v6142, %v6205
      %v6211 = vadd.f32 %v6143, %v6205
      %v6212 = vadd.f32 %v6144, %v6205
      %v6213 = vadd.f32 %v6145, %v6205
      %v6214 = vadd.f32 %v6146, %v6205
      %v6215 = vadd.f32 %v6147, %v6205
      %v6216 = vadd.f32 %v6148, %v6205
      %v6217 = vadd.f32 %v6149, %v6205
      %v6218 = vadd.f32 %v6150, %v6205
      %v6219 = vadd.f32 %v6151, %v6205
      %v6220 = vadd.f32 %v6152, %v6205
      %v6221 = vadd.f32 %v6153, %v6205
      %v6222 = vadd.f32 %v6154, %v6205
      %v6223 = vadd.f32 %v6155, %v6205
      %v6224 = vadd.f32 %v6156, %v6205
      %v6225 = vadd.f32 %v6157, %v6205
      %v6226 = vadd.f32 %v6158, %v6205
      %v6227 = vadd.f32 %v6159, %v6205
      %v6228 = vadd.f32 %v6160, %v6205
      %v6229 = vadd.f32 %v6161, %v6205
      %v6230 = vadd.f32 %v6162, %v6205
      %v6231 = vadd.f32 %v6163, %v6205
      %v6232 = vadd.f32 %v6164, %v6205
      %v6233 = vadd.f32 %v6165, %v6205
      %v6234 = vadd.f32 %v6166, %v6205
      %v6235 = vadd.f32 %v6167, %v6205
      %v6236 = vadd.f32 %v6168, %v6205
      %v6237 = vadd.f32 %v6169, %v6205
      %v6238 = vadd.f32 %v6170, %v6205
      %v6239 = vadd.f32 %v6171, %v6205
      %v6240 = vadd.f32 %v6172, %v6205
      %v6241 = vadd.f32 %v6173, %v6205
      %v6242 = vadd.f32 %v6174, %v6205
      %v6243 = vadd.f32 %v6175, %v6205
      %v6244 = vadd.f32 %v6176, %v6205
      %v6245 = vadd.f32 %v6177, %v6205
      %v6246 = vadd.f32 %v6178, %v6205
      %v6247 = vadd.f32 %v6179, %v6205
      %v6248 = vadd.f32 %v6180, %v6205
      %v6249 = vadd.f32 %v6181, %v6205
      %v6250 = vadd.f32 %v6182, %v6205
      %v6251 = vadd.f32 %v6183, %v6205
      %v6252 = vadd.f32 %v6184, %v6205
      %v6253 = vadd.f32 %v6185, %v6205
      %v6254 = vadd.f32 %v6186, %v6205
      %v6255 = vadd.f32 %v6187, %v6205
      %v6256 = vadd.f32 %v6188, %v6205
      %v6257 = vadd.f32 %v6189, %v6205
      %v6258 = vadd.f32 %v6190, %v6205
      %v6259 = vadd.f32 %v6191, %v6205
      %v6260 = vadd.f32 %v6192, %v6205
      %v6261 = vadd.f32 %v6193, %v6205
      %v6262 = vadd.f32 %v6194, %v6205
      %v6263 = vadd.f32 %v6195, %v6205
      %v6264 = vadd.f32 %v6196, %v6205
      %v6265 = vadd.f32 %v6197, %v6205
      %v6266 = vadd.f32 %v6198, %v6205
      %v6267 = vadd.f32 %v6199, %v6205
      %v6268 = vadd.f32 %v6200, %v6205
      %v6269 = vadd.f32 %v6201, %v6205
      %v6270 = vadd.f32 %v6202, %v6205
      %v6271 = vsel %vm768, %v6207, 0.0
      %v6272 = vsel %vm768, %v6208, 0.0
      %v6273 = vadd.f32 %v6271, %v6272
      %v6274 = vsel %vm768, %v6209, 0.0
      %v6275 = vadd.f32 %v6273, %v6274
      %v6276 = vsel %vm768, %v6210, 0.0
      %v6277 = vadd.f32 %v6275, %v6276
      %v6278 = vsel %vm768, %v6211, 0.0
      %v6279 = vadd.f32 %v6277, %v6278
      %v6280 = vsel %vm768, %v6212, 0.0
      %v6281 = vadd.f32 %v6279, %v6280
      %v6282 = vsel %vm768, %v6213, 0.0
      %v6283 = vadd.f32 %v6281, %v6282
      %v6284 = vsel %vm768, %v6214, 0.0
      %v6285 = vadd.f32 %v6283, %v6284
      %v6286 = vsel %vm768, %v6215, 0.0
      %v6287 = vadd.f32 %v6285, %v6286
      %v6288 = vsel %vm768, %v6216, 0.0
      %v6289 = vadd.f32 %v6287, %v6288
      %v6290 = vsel %vm768, %v6217, 0.0
      %v6291 = vadd.f32 %v6289, %v6290
      %v6292 = vsel %vm768, %v6218, 0.0
      %v6293 = vadd.f32 %v6291, %v6292
      %v6294 = vsel %vm768, %v6219, 0.0
      %v6295 = vadd.f32 %v6293, %v6294
      %v6296 = vsel %vm768, %v6220, 0.0
      %v6297 = vadd.f32 %v6295, %v6296
      %v6298 = vsel %vm768, %v6221, 0.0
      %v6299 = vadd.f32 %v6297, %v6298
      %v6300 = vsel %vm768, %v6222, 0.0
      %v6301 = vadd.f32 %v6299, %v6300
      %v6302 = vsel %vm768, %v6223, 0.0
      %v6303 = vadd.f32 %v6301, %v6302
      %v6304 = vsel %vm768, %v6224, 0.0
      %v6305 = vadd.f32 %v6303, %v6304
      %v6306 = vsel %vm768, %v6225, 0.0
      %v6307 = vadd.f32 %v6305, %v6306
      %v6308 = vsel %vm768, %v6226, 0.0
      %v6309 = vadd.f32 %v6307, %v6308
      %v6310 = vsel %vm768, %v6227, 0.0
      %v6311 = vadd.f32 %v6309, %v6310
      %v6312 = vsel %vm768, %v6228, 0.0
      %v6313 = vadd.f32 %v6311, %v6312
      %v6314 = vsel %vm768, %v6229, 0.0
      %v6315 = vadd.f32 %v6313, %v6314
      %v6316 = vsel %vm768, %v6230, 0.0
      %v6317 = vadd.f32 %v6315, %v6316
      %v6318 = vsel %vm768, %v6231, 0.0
      %v6319 = vadd.f32 %v6317, %v6318
      %v6320 = vsel %vm768, %v6232, 0.0
      %v6321 = vadd.f32 %v6319, %v6320
      %v6322 = vsel %vm768, %v6233, 0.0
      %v6323 = vadd.f32 %v6321, %v6322
      %v6324 = vsel %vm768, %v6234, 0.0
      %v6325 = vadd.f32 %v6323, %v6324
      %v6326 = vsel %vm768, %v6235, 0.0
      %v6327 = vadd.f32 %v6325, %v6326
      %v6328 = vsel %vm768, %v6236, 0.0
      %v6329 = vadd.f32 %v6327, %v6328
      %v6330 = vsel %vm768, %v6237, 0.0
      %v6331 = vadd.f32 %v6329, %v6330
      %v6332 = vsel %vm768, %v6238, 0.0
      %v6333 = vadd.f32 %v6331, %v6332
      %v6334 = vrot.slane %v6333, 4
      %v6335 = vadd.f32 %v6333, %v6334
      %v6336 = vrot.slane %v6335, 2
      %v6337 = vadd.f32 %v6335, %v6336
      %v6338 = vrot.slane %v6337, 1
      %v6339 = vadd.f32 %v6337, %v6338
      %v6340 = vsel %vm768, %v6239, 0.0
      %v6341 = vsel %vm768, %v6240, 0.0
      %v6342 = vadd.f32 %v6340, %v6341
      %v6343 = vsel %vm768, %v6241, 0.0
      %v6344 = vadd.f32 %v6342, %v6343
      %v6345 = vsel %vm768, %v6242, 0.0
      %v6346 = vadd.f32 %v6344, %v6345
      %v6347 = vsel %vm768, %v6243, 0.0
      %v6348 = vadd.f32 %v6346, %v6347
      %v6349 = vsel %vm768, %v6244, 0.0
      %v6350 = vadd.f32 %v6348, %v6349
      %v6351 = vsel %vm768, %v6245, 0.0
      %v6352 = vadd.f32 %v6350, %v6351
      %v6353 = vsel %vm768, %v6246, 0.0
      %v6354 = vadd.f32 %v6352, %v6353
      %v6355 = vsel %vm768, %v6247, 0.0
      %v6356 = vadd.f32 %v6354, %v6355
      %v6357 = vsel %vm768, %v6248, 0.0
      %v6358 = vadd.f32 %v6356, %v6357
      %v6359 = vsel %vm768, %v6249, 0.0
      %v6360 = vadd.f32 %v6358, %v6359
      %v6361 = vsel %vm768, %v6250, 0.0
      %v6362 = vadd.f32 %v6360, %v6361
      %v6363 = vsel %vm768, %v6251, 0.0
      %v6364 = vadd.f32 %v6362, %v6363
      %v6365 = vsel %vm768, %v6252, 0.0
      %v6366 = vadd.f32 %v6364, %v6365
      %v6367 = vsel %vm768, %v6253, 0.0
      %v6368 = vadd.f32 %v6366, %v6367
      %v6369 = vsel %vm768, %v6254, 0.0
      %v6370 = vadd.f32 %v6368, %v6369
      %v6371 = vsel %vm768, %v6255, 0.0
      %v6372 = vadd.f32 %v6370, %v6371
      %v6373 = vsel %vm768, %v6256, 0.0
      %v6374 = vadd.f32 %v6372, %v6373
      %v6375 = vsel %vm768, %v6257, 0.0
      %v6376 = vadd.f32 %v6374, %v6375
      %v6377 = vsel %vm768, %v6258, 0.0
      %v6378 = vadd.f32 %v6376, %v6377
      %v6379 = vsel %vm768, %v6259, 0.0
      %v6380 = vadd.f32 %v6378, %v6379
      %v6381 = vsel %vm768, %v6260, 0.0
      %v6382 = vadd.f32 %v6380, %v6381
      %v6383 = vsel %vm768, %v6261, 0.0
      %v6384 = vadd.f32 %v6382, %v6383
      %v6385 = vsel %vm768, %v6262, 0.0
      %v6386 = vadd.f32 %v6384, %v6385
      %v6387 = vsel %vm768, %v6263, 0.0
      %v6388 = vadd.f32 %v6386, %v6387
      %v6389 = vsel %vm768, %v6264, 0.0
      %v6390 = vadd.f32 %v6388, %v6389
      %v6391 = vsel %vm768, %v6265, 0.0
      %v6392 = vadd.f32 %v6390, %v6391
      %v6393 = vsel %vm768, %v6266, 0.0
      %v6394 = vadd.f32 %v6392, %v6393
      %v6395 = vsel %vm768, %v6267, 0.0
      %v6396 = vadd.f32 %v6394, %v6395
      %v6397 = vsel %vm768, %v6268, 0.0
      %v6398 = vadd.f32 %v6396, %v6397
      %v6399 = vsel %vm768, %v6269, 0.0
      %v6400 = vadd.f32 %v6398, %v6399
      %v6401 = vsel %vm768, %v6270, 0.0
      %v6402 = vadd.f32 %v6400, %v6401
      %v6403 = vrot.slane %v6402, 4
      %v6404 = vadd.f32 %v6402, %v6403
      %v6405 = vrot.slane %v6404, 2
      %v6406 = vadd.f32 %v6404, %v6405
      %v6407 = vrot.slane %v6406, 1
      %v6408 = vadd.f32 %v6406, %v6407
      %v6409 = vrcp.pop 256.0
      %v6410 = vmul.f32 256.0, %v6409
      %v6411 = vsub.f32 1.0, %v6410
      %v6412 = vmul.f32 %v6409, %v6411
      %v6413 = vadd.f32 %v6409, %v6412
      %vm6414 = vweird.f32 %v6409
      %v6415 = vsel %vm6414, %v6409, %v6413
      %v6416 = vmul.f32 %v6339, %v6415
      %v6417 = vmul.f32 %v6408, %v6415
      %v6418 = vpack.c.bf16 %v6416, %v6416
      %v6419 = vpack.c.bf16 %v6417, %v6417
      %v6420 = vld [vmem:[%s541] sm:$0xf]
      %v6423 = vunpack.c.l.b16 %v6418
      %v6424 = vunpack.c.l.b16 %v6419
      %vm6425 = vcmask 1041409
      %v6426 = vsel %vm6425, %v6424, %v6423
      %v6427 = vpack.c.b16 %v6426, %v6426
      %v6429 = vsel %vm768, %v6427, 0
      %v6432 = vsel %vm2749, %v6420, 0
      %6434 = vmatpush.bf16.msra.mxu0 0
      %6435 = vmatpush.bf16.msra.mxu0 0
      %6436 = vmatpush.bf16.msra.mxu0 0
      %6437 = vmatpush.bf16.msra.mxu0 0
      %6438 = vmatpush.bf16.msra.mxu0 0
      %6439 = vmatpush.bf16.msra.mxu0 0
      %6440 = vmatpush.bf16.msra.mxu0 0
      %6441 = vmatpush.bf16.msra.mxu0 %v6432
      %6442 = vmatmul.bf16.gmra.mxu0 %v6429
      %v6443 = vpop.f32.mrf.mxu0
      %v6444 = vadd.f32 0.0, %v6443
      %v6445 = vpop.f32.mrf.mxu0
      %6446 = vdwg.mxu0
      %v6447 = vmax.f32 %v6444, 0.0
      %v6448 = vpack.c.bf16 %v6447, %v6447
      %v6449 = vld [vmem:[%s545] sm:$0xf]
      %v6451 = vsel %vm768, %v6448, 0
      %v6454 = vsel %vm2749, %v6449, 0
      %6456 = vmatpush.bf16.msra.mxu0 0
      %6457 = vmatpush.bf16.msra.mxu0 0
      %6458 = vmatpush.bf16.msra.mxu0 0
      %6459 = vmatpush.bf16.msra.mxu0 0
      %6460 = vmatpush.bf16.msra.mxu0 0
      %6461 = vmatpush.bf16.msra.mxu0 0
      %6462 = vmatpush.bf16.msra.mxu0 0
      %6463 = vmatpush.bf16.msra.mxu0 %v6454
      %6464 = vmatmul.bf16.gmra.mxu0 %v6451
      %v6465 = vpop.f32.mrf.mxu0
      %v6466 = vadd.f32 0.0, %v6465
      %v6467 = vpop.f32.mrf.mxu0
      %6468 = vdwg.mxu0
      %v6469 = vxor.u32 %v6466, 2147483648
      %v6470 = vmul.f32 %v6469, 1.442695
      %v6471 = vpow.pop %v6470
      %v6472 = vadd.f32 %v6471, 1.0
      %v6473 = vrcp.pop %v6472
      %v6474 = vmul.f32 %v6472, %v6473
      %v6475 = vsub.f32 1.0, %v6474
      %v6476 = vmul.f32 %v6473, %v6475
      %v6477 = vadd.f32 %v6473, %v6476
      %vm6478 = vweird.f32 %v6472
      %vm6479 = vweird.f32 %v6473
      %vm6480 = vmor %vm6478, %vm6479
      %v6481 = vsel %vm6480, %v6473, %v6477
      %v6482 = vand.u32 2147483647, %v6472
      %vm6483 = vcmp.eq.f32.partialorder %v6482, 8.507059e+37
      %v6484 = vand.u32 %v6472, 2147483648
      %v6485 = vor.u32 1.1754944e-38, %v6484
      %v6486 = vsel %vm6483, %v6485, %v6481
      %v6487 = vmul.f32 1.0, %v6486
      %v6489 = vrot.slane %v6487, 1
      %v6490 = vperm.slane %v6487, 0
      %v6491 = vperm.slane %v6489, 0
      %v6494 = vmul.f32 %v6207, %v6490
      %v6495 = vmul.f32 %v6208, %v6490
      %v6496 = vmul.f32 %v6209, %v6490
      %v6497 = vmul.f32 %v6210, %v6490
      %v6498 = vmul.f32 %v6211, %v6490
      %v6499 = vmul.f32 %v6212, %v6490
      %v6500 = vmul.f32 %v6213, %v6490
      %v6501 = vmul.f32 %v6214, %v6490
      %v6502 = vmul.f32 %v6215, %v6490
      %v6503 = vmul.f32 %v6216, %v6490
      %v6504 = vmul.f32 %v6217, %v6490
      %v6505 = vmul.f32 %v6218, %v6490
      %v6506 = vmul.f32 %v6219, %v6490
      %v6507 = vmul.f32 %v6220, %v6490
      %v6508 = vmul.f32 %v6221, %v6490
      %v6509 = vmul.f32 %v6222, %v6490
      %v6510 = vmul.f32 %v6223, %v6490
      %v6511 = vmul.f32 %v6224, %v6490
      %v6512 = vmul.f32 %v6225, %v6490
      %v6513 = vmul.f32 %v6226, %v6490
      %v6514 = vmul.f32 %v6227, %v6490
      %v6515 = vmul.f32 %v6228, %v6490
      %v6516 = vmul.f32 %v6229, %v6490
      %v6517 = vmul.f32 %v6230, %v6490
      %v6518 = vmul.f32 %v6231, %v6490
      %v6519 = vmul.f32 %v6232, %v6490
      %v6520 = vmul.f32 %v6233, %v6490
      %v6521 = vmul.f32 %v6234, %v6490
      %v6522 = vmul.f32 %v6235, %v6490
      %v6523 = vmul.f32 %v6236, %v6490
      %v6524 = vmul.f32 %v6237, %v6490
      %v6525 = vmul.f32 %v6238, %v6490
      %v6526 = vmul.f32 %v6239, %v6491
      %v6527 = vmul.f32 %v6240, %v6491
      %v6528 = vmul.f32 %v6241, %v6491
      %v6529 = vmul.f32 %v6242, %v6491
      %v6530 = vmul.f32 %v6243, %v6491
      %v6531 = vmul.f32 %v6244, %v6491
      %v6532 = vmul.f32 %v6245, %v6491
      %v6533 = vmul.f32 %v6246, %v6491
      %v6534 = vmul.f32 %v6247, %v6491
      %v6535 = vmul.f32 %v6248, %v6491
      %v6536 = vmul.f32 %v6249, %v6491
      %v6537 = vmul.f32 %v6250, %v6491
      %v6538 = vmul.f32 %v6251, %v6491
      %v6539 = vmul.f32 %v6252, %v6491
      %v6540 = vmul.f32 %v6253, %v6491
      %v6541 = vmul.f32 %v6254, %v6491
      %v6542 = vmul.f32 %v6255, %v6491
      %v6543 = vmul.f32 %v6256, %v6491
      %v6544 = vmul.f32 %v6257, %v6491
      %v6545 = vmul.f32 %v6258, %v6491
      %v6546 = vmul.f32 %v6259, %v6491
      %v6547 = vmul.f32 %v6260, %v6491
      %v6548 = vmul.f32 %v6261, %v6491
      %v6549 = vmul.f32 %v6262, %v6491
      %v6550 = vmul.f32 %v6263, %v6491
      %v6551 = vmul.f32 %v6264, %v6491
      %v6552 = vmul.f32 %v6265, %v6491
      %v6553 = vmul.f32 %v6266, %v6491
      %v6554 = vmul.f32 %v6267, %v6491
      %v6555 = vmul.f32 %v6268, %v6491
      %v6556 = vmul.f32 %v6269, %v6491
      %v6557 = vmul.f32 %v6270, %v6491
      %6558 = vst.msk [vmem:[%s550] sm:$0xff] %vm768, %v6494
      %6559 = vst.msk [vmem:[%s550 + $0x8] sm:$0xff] %vm768, %v6495
      %6560 = vst.msk [vmem:[%s550 + $0x10] sm:$0xff] %vm768, %v6496
      %6561 = vst.msk [vmem:[%s550 + $0x18] sm:$0xff] %vm768, %v6497
      %6562 = vst.msk [vmem:[%s550 + $0x20] sm:$0xff] %vm768, %v6498
      %6563 = vst.msk [vmem:[%s550 + $0x28] sm:$0xff] %vm768, %v6499
      %6564 = vst.msk [vmem:[%s550 + $0x30] sm:$0xff] %vm768, %v6500
      %6565 = vst.msk [vmem:[%s550 + $0x38] sm:$0xff] %vm768, %v6501
      %6566 = vst.msk [vmem:[%s550 + $0x40] sm:$0xff] %vm768, %v6502
      %6567 = vst.msk [vmem:[%s550 + $0x48] sm:$0xff] %vm768, %v6503
      %6568 = vst.msk [vmem:[%s550 + $0x50] sm:$0xff] %vm768, %v6504
      %6569 = vst.msk [vmem:[%s550 + $0x58] sm:$0xff] %vm768, %v6505
      %6570 = vst.msk [vmem:[%s550 + $0x60] sm:$0xff] %vm768, %v6506
      %6571 = vst.msk [vmem:[%s550 + $0x68] sm:$0xff] %vm768, %v6507
      %6572 = vst.msk [vmem:[%s550 + $0x70] sm:$0xff] %vm768, %v6508
      %6573 = vst.msk [vmem:[%s550 + $0x78] sm:$0xff] %vm768, %v6509
      %6574 = vst.msk [vmem:[%s550 + $0x80] sm:$0xff] %vm768, %v6510
      %6575 = vst.msk [vmem:[%s550 + $0x88] sm:$0xff] %vm768, %v6511
      %6576 = vst.msk [vmem:[%s550 + $0x90] sm:$0xff] %vm768, %v6512
      %6577 = vst.msk [vmem:[%s550 + $0x98] sm:$0xff] %vm768, %v6513
      %6578 = vst.msk [vmem:[%s550 + $0xa0] sm:$0xff] %vm768, %v6514
      %6579 = vst.msk [vmem:[%s550 + $0xa8] sm:$0xff] %vm768, %v6515
      %6580 = vst.msk [vmem:[%s550 + $0xb0] sm:$0xff] %vm768, %v6516
      %6581 = vst.msk [vmem:[%s550 + $0xb8] sm:$0xff] %vm768, %v6517
      %6582 = vst.msk [vmem:[%s550 + $0xc0] sm:$0xff] %vm768, %v6518
      %6583 = vst.msk [vmem:[%s550 + $0xc8] sm:$0xff] %vm768, %v6519
      %6584 = vst.msk [vmem:[%s550 + $0xd0] sm:$0xff] %vm768, %v6520
      %6585 = vst.msk [vmem:[%s550 + $0xd8] sm:$0xff] %vm768, %v6521
      %6586 = vst.msk [vmem:[%s550 + $0xe0] sm:$0xff] %vm768, %v6522
      %6587 = vst.msk [vmem:[%s550 + $0xe8] sm:$0xff] %vm768, %v6523
      %6588 = vst.msk [vmem:[%s550 + $0xf0] sm:$0xff] %vm768, %v6524
      %6589 = vst.msk [vmem:[%s550 + $0xf8] sm:$0xff] %vm768, %v6525
      %6590 = vst.msk [vmem:[%s550 + $0x100] sm:$0xff] %vm768, %v6526
      %6591 = vst.msk [vmem:[%s550 + $0x108] sm:$0xff] %vm768, %v6527
      %6592 = vst.msk [vmem:[%s550 + $0x110] sm:$0xff] %vm768, %v6528
      %6593 = vst.msk [vmem:[%s550 + $0x118] sm:$0xff] %vm768, %v6529
      %6594 = vst.msk [vmem:[%s550 + $0x120] sm:$0xff] %vm768, %v6530
      %6595 = vst.msk [vmem:[%s550 + $0x128] sm:$0xff] %vm768, %v6531
      %6596 = vst.msk [vmem:[%s550 + $0x130] sm:$0xff] %vm768, %v6532
      %6597 = vst.msk [vmem:[%s550 + $0x138] sm:$0xff] %vm768, %v6533
      %6598 = vst.msk [vmem:[%s550 + $0x140] sm:$0xff] %vm768, %v6534
      %6599 = vst.msk [vmem:[%s550 + $0x148] sm:$0xff] %vm768, %v6535
      %6600 = vst.msk [vmem:[%s550 + $0x150] sm:$0xff] %vm768, %v6536
      %6601 = vst.msk [vmem:[%s550 + $0x158] sm:$0xff] %vm768, %v6537
      %6602 = vst.msk [vmem:[%s550 + $0x160] sm:$0xff] %vm768, %v6538
      %6603 = vst.msk [vmem:[%s550 + $0x168] sm:$0xff] %vm768, %v6539
      %6604 = vst.msk [vmem:[%s550 + $0x170] sm:$0xff] %vm768, %v6540
      %6605 = vst.msk [vmem:[%s550 + $0x178] sm:$0xff] %vm768, %v6541
      %6606 = vst.msk [vmem:[%s550 + $0x180] sm:$0xff] %vm768, %v6542
      %6607 = vst.msk [vmem:[%s550 + $0x188] sm:$0xff] %vm768, %v6543
      %6608 = vst.msk [vmem:[%s550 + $0x190] sm:$0xff] %vm768, %v6544
      %6609 = vst.msk [vmem:[%s550 + $0x198] sm:$0xff] %vm768, %v6545
      %6610 = vst.msk [vmem:[%s550 + $0x1a0] sm:$0xff] %vm768, %v6546
      %6611 = vst.msk [vmem:[%s550 + $0x1a8] sm:$0xff] %vm768, %v6547
      %6612 = vst.msk [vmem:[%s550 + $0x1b0] sm:$0xff] %vm768, %v6548
      %6613 = vst.msk [vmem:[%s550 + $0x1b8] sm:$0xff] %vm768, %v6549
      %6614 = vst.msk [vmem:[%s550 + $0x1c0] sm:$0xff] %vm768, %v6550
      %6615 = vst.msk [vmem:[%s550 + $0x1c8] sm:$0xff] %vm768, %v6551
      %6616 = vst.msk [vmem:[%s550 + $0x1d0] sm:$0xff] %vm768, %v6552
      %6617 = vst.msk [vmem:[%s550 + $0x1d8] sm:$0xff] %vm768, %v6553
      %6618 = vst.msk [vmem:[%s550 + $0x1e0] sm:$0xff] %vm768, %v6554
      %6619 = vst.msk [vmem:[%s550 + $0x1e8] sm:$0xff] %vm768, %v6555
      %6620 = vst.msk [vmem:[%s550 + $0x1f0] sm:$0xff] %vm768, %v6556
      %6621 = vst.msk [vmem:[%s550 + $0x1f8] sm:$0xff] %vm768, %v6557
      %p6622 = scmp.lt.s32.totalorder %s22, 1
      %s6623 = scalar_select %p6622, %s22, 1
      %s6624 = smul.addr %s6623, 64
      %s6625 = smul.addr %s6624, 8
      %s6626 = scalar_lea.vmem %s11, %s6625
      // Predicated region
      $region65: #{tpu_custom_call.1} parent=63 // pred_check
        %p6627 = pneg %p326
      $region66: #{tpu_custom_call.1} parent=63 // pred_check_branch
        %6629 = sbr.rel (%p6627) target = $region68
      $region67: #{tpu_custom_call.1} parent=63 // pred_region
        _
      $region68: #{tpu_custom_call.1} parent=63 // pred_fallthru
        _
    $region64: #{tpu_custom_call.1} parent=5 // pred_fallthru
      _
    %p6630 = scmp.le.s32.totalorder 2, %s17
    // Predicated region
    $region69: #{tpu_custom_call.1} parent=5 // pred_check
      %p6631 = pneg %p6630
    $region70: #{tpu_custom_call.1} parent=5 // pred_check_branch
      %6633 = sbr.rel (%p6631) target = $region72
    $region71: #{tpu_custom_call.1} parent=5 // pred_region
      %s6634 = ssub.s32 %s17, 2
      // Predicated region
      $region73: #{tpu_custom_call.1} parent=71 // pred_check
        %p6635 = pneg %p332
      $region74: #{tpu_custom_call.1} parent=71 // pred_check_branch
        %6637 = sbr.rel (%p6635) target = $region76
      $region75: #{tpu_custom_call.1} parent=71 // pred_region
        %p6638 = scmp.lt.s32.totalorder %s23, 1
        %s6639 = scalar_select %p6638, %s23, 1
        %s6640 = smul.addr %s6639, 64
        %s6641 = smul.addr %s6640, 8
        %s6642 = scalar_lea.vmem %s11, %s6641
      $region76: #{tpu_custom_call.1} parent=71 // pred_fallthru
        _
    $region72: #{tpu_custom_call.1} parent=5 // pred_fallthru
      _
  $region6: #{tpu_custom_call.1} parent=0 // loop_footer
    %s21 = sadd.s32 1, %s17
  $region7: #{tpu_custom_call.1} parent=0 // loop_footer_branch
    %16 = sbr.rel target = $region3
  $region8: #{tpu_custom_call.1} parent=0 // loop_exit
    _

</llo_original>
